<compile_context>
chip_gen: v7x
topology: tpu7x:2x2x1
jax: 0.10.0
libtpu: 0.0.40
codegen_flags: <defaults>
</compile_context>

<pallas_src>
import numpy as np
import jax
import jax.numpy as jnp
from jax.experimental import pallas as pl
from jax.experimental.pallas import tpu as pltpu

COMPUTE_DTYPE = jnp.bfloat16   # MXU operand / scratch dtype (accumulation stays f32)
FINAL_RELU = False             # see TODO above

# Nature-CNN geometry (fixed by the module: fc1 expects 32*4*4 features -> 60x60 input)
_C1, _C2, _C3 = 32, 64, 32
_K1, _S1 = 8, 4
_K2, _S2 = 4, 2
_K3, _S3 = 3, 1
_OH1, _OH2, _OH3 = 14, 6, 4
_P7 = _OH1 // 2                # phase-plane edge (7)


# ---------------------------------------------------------------------------
# Fused kernel: conv1 -> conv2 -> conv3 -> fc1 -> fc2 for TB samples per step
# ---------------------------------------------------------------------------
def _make_kernel(tb):
    def kernel(p1_ref, w1_ref, b1_ref, w2_ref, b2_ref, w3_ref, b3_ref,
               wf1_ref, bf1_ref, wf2_ref, bf2_ref, o_ref,
               h1_scr, p2_scr, h2_scr, p3_scr, h3_scr, pfc_scr):
        f32 = jnp.float32

        # ----- conv1: single wide-K matmul on wrapper-built im2col patches -----
        # p1 rows are ordered (phase=(i%2,j%2), ti, tj, sample); cols = (2x2 token, c, di, dj).
        h1 = jnp.dot(p1_ref[...], w1_ref[...], preferred_element_type=f32)
        h1 = jnp.maximum(h1 + b1_ref[...], 0.0)
        h1_scr[...] = h1.astype(COMPUTE_DTYPE)             # (196*tb, 32), cast once

        # ----- conv2 im2col: phase-plane layout => every copy is contiguous -----
        for ki in range(_K2):
            for kj in range(_K2):
                ph = (ki % 2) * 2 + (kj % 2)
                a, b = ki // 2, kj // 2
                col = (ki * _K2 + kj) * _C1
                for oh in range(_OH2):
                    src = ((ph * _P7 + oh + a) * _P7 + b) * tb
                    dst = oh * _OH2 * tb
                    p2_scr[dst:dst + _OH2 * tb, col:col + _C1] = \
                        h1_scr[src:src + _OH2 * tb, :]
        h2 = jnp.dot(p2_scr[...], w2_ref[...], preferred_element_type=f32)
        h2 = jnp.maximum(h2 + b2_ref[...], 0.0)
        h2_scr[...] = h2.astype(COMPUTE_DTYPE)             # (36*tb, 64)

        # ----- conv3 im2col (stride 1 -> contiguous row runs) -----
        for ki in range(_K3):
            for kj in range(_K3):
                col = (ki * _K3 + kj) * _C2
                for oh in range(_OH3):
                    src = ((oh + ki) * _OH2 + kj) * tb
                    dst = oh * _OH3 * tb
                    p3_scr[dst:dst + _OH3 * tb, col:col + _C2] = \
                        h2_scr[src:src + _OH3 * tb, :]
        h3 = jnp.dot(p3_scr[...], w3_ref[...], preferred_element_type=f32)
        h3 = jnp.maximum(h3 + b3_ref[...], 0.0)
        h3_scr[...] = h3.astype(COMPUTE_DTYPE)             # (16*tb, 32)

        # ----- fc1: gather (pos, sample, c) -> (sample, pos*32+c), one batched matmul -----
        for pos in range(_OH3 * _OH3):
            pfc_scr[:, pos * _C3:(pos + 1) * _C3] = h3_scr[pos * tb:(pos + 1) * tb, :]
        f1 = jnp.dot(pfc_scr[...], wf1_ref[...], preferred_element_type=f32)
        f1 = jnp.maximum(f1 + bf1_ref[...], 0.0)           # (tb, latent)

        # ----- fc2: linear output head (mu, log_std) -----
        out = jnp.dot(f1.astype(COMPUTE_DTYPE), wf2_ref[...],
                      preferred_element_type=f32) + bf2_ref[...]
        if FINAL_RELU:
            out = jnp.maximum(out, 0.0)
        o_ref[...] = out.astype(o_ref.dtype)               # one (tb, out_dim) store / step

    return kernel


def fused_forward(patches, packed, *, tb, latent, out_dim):
    """Run the whole encoder in one pallas_call; grid = padded_batch // tb (parallel)."""
    rows, k1 = patches.shape
    r1 = _OH1 * _OH1 * tb
    nb = rows // r1
    n_pad = nb * tb
    kernel = _make_kernel(tb)

    def rep(arr):  # weight/bias resident in VMEM (constant index_map => no per-step re-DMA)
        return pl.BlockSpec(arr.shape, lambda n: (0,) * arr.ndim)

    weight_args = [packed[k] for k in
                   ("w1", "b1", "w2", "b2", "w3", "b3", "wf1", "bf1", "wf2", "bf2")]
    in_specs = [pl.BlockSpec((r1, k1), lambda n: (n, 0))] + [rep(a) for a in weight_args]
    out_specs = pl.BlockSpec((tb, out_dim), lambda n: (n, 0))

    scratch = [
        pltpu.VMEM((_OH1 * _OH1 * tb, _C1), COMPUTE_DTYPE),             # h1 map
        pltpu.VMEM((_OH2 * _OH2 * tb, _K2 * _K2 * _C1), COMPUTE_DTYPE),  # conv2 patches
        pltpu.VMEM((_OH2 * _OH2 * tb, _C2), COMPUTE_DTYPE),             # h2 map
        pltpu.VMEM((_OH3 * _OH3 * tb, _K3 * _K3 * _C2), COMPUTE_DTYPE),  # conv3 patches
        pltpu.VMEM((_OH3 * _OH3 * tb, _C3), COMPUTE_DTYPE),             # h3 map
        pltpu.VMEM((tb, _OH3 * _OH3 * _C3), COMPUTE_DTYPE),             # fc1 operand
    ]

    flops_per_sample = 2 * (_OH1 * _OH1 * k1 * _C1
                            + _OH2 * _OH2 * (_K2 * _K2 * _C1) * _C2
                            + _OH3 * _OH3 * (_K3 * _K3 * _C2) * _C3
                            + (_OH3 * _OH3 * _C3) * latent
                            + latent * out_dim)
    bytes_w = sum(int(np.prod(a.shape)) * a.dtype.itemsize for a in weight_args)
    cost = pl.CostEstimate(
        flops=n_pad * flops_per_sample,
        transcendentals=0,
        bytes_accessed=int(patches.size) * patches.dtype.itemsize
        + bytes_w + n_pad * out_dim * 4,
    )

    out = pl.pallas_call(
        kernel,
        out_shape=jax.ShapeDtypeStruct((n_pad, out_dim), jnp.float32),
        grid_spec=pltpu.PrefetchScalarGridSpec(
            num_scalar_prefetch=0,
            grid=(nb,),
            in_specs=in_specs,
            out_specs=out_specs,
            scratch_shapes=scratch,
        ),
        compiler_params=pltpu.CompilerParams(
            dimension_semantics=("parallel",),
            # actual footprint is a few MiB even at tb=16; keep a modest, honest limit
            vmem_limit_bytes=24 * 1024 * 1024,
        ),
        cost_estimate=cost,
    )(patches, *weight_args)
    return out


# ---------------------------------------------------------------------------
# One-time parameter packing (torch layouts -> wide-K matmul layouts, bf16)
# ---------------------------------------------------------------------------
def pack_params(params, compute_dtype=COMPUTE_DTYPE):
    w1 = params["conv1_w"]                       # (32, C, 8, 8)
    C = w1.shape[1]
    latent = params["fc1_w"].shape[0]
    out_dim = params["fc2_w"].shape[0]
    assert params["fc1_w"].shape[1] == _C3 * _OH3 * _OH3

    # conv1: (co, c, ki=4*bi+di, kj=4*bj+dj) -> row = (bi*2+bj)*(C*16) + c*16 + di*4 + dj
    w1p = w1.reshape(_C1, C, 2, _S1, 2, _S1).transpose(2, 4, 1, 3, 5, 0)
    w1p = w1p.reshape(4 * C * _S1 * _S1, _C1)
    # conv2 / conv3: (co, c, ki, kj) -> row = (ki*K+kj)*Cin + c
    w2p = params["conv2_w"].transpose(2, 3, 1, 0).reshape(_K2 * _K2 * _C1, _C2)
    w3p = params["conv3_w"].transpose(2, 3, 1, 0).reshape(_K3 * _K3 * _C2, _C3)
    # fc1: torch flatten order is (c, h, w) -> our operand cols are pos*32 + c
    wf1p = params["fc1_w"].reshape(latent, _C3, _OH3 * _OH3).transpose(2, 1, 0)
    wf1p = wf1p.reshape(_OH3 * _OH3 * _C3, latent)
    wf2p = params["fc2_w"].T                     # (latent, out_dim)

    packed = {k: jnp.asarray(v, compute_dtype)
              for k, v in dict(w1=w1p, w2=w2p, w3=w3p, wf1=wf1p, wf2=wf2p).items()}
    packed.update({
        "b1": jnp.asarray(params["conv1_b"], jnp.float32).reshape(1, _C1),
        "b2": jnp.asarray(params["conv2_b"], jnp.float32).reshape(1, _C2),
        "b3": jnp.asarray(params["conv3_b"], jnp.float32).reshape(1, _C3),
        "bf1": jnp.asarray(params["fc1_b"], jnp.float32).reshape(1, latent),
        "bf2": jnp.asarray(params["fc2_b"], jnp.float32).reshape(1, out_dim),
    })
    return packed


def _build_conv1_patches(x, tb):
    """(N_pad, C, 60, 60) f32 -> conv1 im2col patches, bf16, shape (NB*196*tb, 4*C*16).

    Row order inside each batch block: (phase=(i%2)*2+(j%2), ti=i//2, tj=j//2, sample);
    column order: (2x2 token index)*C*16 + c*16 + di*4 + dj.  Pure layout plumbing.
    """
    n, C, H, W = x.shape
    assert H == 60 and W == 60, "fc1 expects a 4x4 conv3 map (use 60x60 observations)"
    K = 4 * C * _S1 * _S1
    hq, wq = H // _S1, W // _S1                               # 15, 15
    t = x.reshape(n, C, hq, _S1, wq, _S1).transpose(0, 2, 4, 1, 3, 5)
    t = t.reshape(n, hq, wq, C * _S1 * _S1)                   # tokens, feat = c*16+di*4+dj
    slabs = [t[:, bi:bi + _OH1, bj:bj + _OH1, :] for bi in (0, 1) for bj in (0, 1)]
    p = jnp.concatenate(slabs, axis=-1)                       # (n, 14, 14, K)
    # phase reorder of the 14x14 conv1 output grid
    p = p.reshape(n, _P7, 2, _P7, 2, K).transpose(0, 2, 4, 1, 3, 5)
    p = p.reshape(n, _OH1 * _OH1, K)
    nb = n // tb
    p = p.reshape(nb, tb, _OH1 * _OH1, K).transpose(0, 2, 1, 3)
    return p.reshape(nb * _OH1 * _OH1 * tb, K).astype(COMPUTE_DTYPE)


# ---------------------------------------------------------------------------
# PiConv2dModel forward
# ---------------------------------------------------------------------------
def pi_conv2d_forward(observation, packed_params, action_size, obs_ndim=3):
    lead_shape = observation.shape[:observation.ndim - obs_ndim]
    C, H, W = observation.shape[observation.ndim - obs_ndim:]
    n = int(np.prod(lead_shape)) if lead_shape else 1
    x = observation.reshape((n, C, H, W)).astype(jnp.float32)

    # batch tile: >=2 grid steps for real batches (v7x megacore); 8 keeps tiny demos cheap
    tb = 16 if n >= 32 else 8
    n_pad = ((n + tb - 1) // tb) * tb
    if n_pad != n:
        x = jnp.concatenate([x, jnp.zeros((n_pad - n, C, H, W), x.dtype)], axis=0)

    patches = _build_conv1_patches(x, tb)
    latent = packed_params["wf1"].shape[-1]
    out_dim = packed_params["wf2"].shape[-1]
    out = fused_forward(patches, packed_params, tb=tb, latent=latent, out_dim=out_dim)[:n]

    mu, log_std = jnp.split(out, 2, axis=-1)
    mu = mu.reshape(lead_shape + (action_size,))
    log_std = log_std.reshape(lead_shape + (action_size,))
    return mu, log_std


# ---------------------------------------------------------------------------
# Deterministic init (orthogonal, relu gain, zero bias) + pure-JAX reference
# ---------------------------------------------------------------------------
def _orthogonal(shape, gain, rng):
    rows = shape[0]
    cols = int(np.prod(shape[1:]))
    flat = rng.standard_normal((rows, cols)).astype(np.float64)
    a = flat.T if rows < cols else flat
    q, r = np.linalg.qr(a)
    q = q * np.sign(np.diag(r))
    if rows < cols:
        q = q.T
    return (gain * q).reshape(shape).astype(np.float32)


def make_params(img_channels, latent_size, output_size, seed=0):
    rng = np.random.default_rng(seed)
    gain = np.sqrt(2.0)  # nn.init.calculate_gain('relu')
    p = {
        "conv1_w": _orthogonal((32, img_channels, 8, 8), gain, rng),
        "conv1_b": np.zeros((32,), np.float32),
        "conv2_w": _orthogonal((64, 32, 4, 4), gain, rng),
        "conv2_b": np.zeros((64,), np.float32),
        "conv3_w": _orthogonal((32, 64, 3, 3), gain, rng),
        "conv3_b": np.zeros((32,), np.float32),
        "fc1_w": _orthogonal((latent_size, 32 * 4 * 4), gain, rng),
        "fc1_b": np.zeros((latent_size,), np.float32),
        "fc2_w": _orthogonal((output_size, latent_size), gain, rng),
        "fc2_b": np.zeros((output_size,), np.float32),
    }
    return {k: jnp.asarray(v) for k, v in p.items()}


def _reference_forward(x_nchw, params):
    """Pure-JAX f32 reference of the same network (numerical self-check)."""
    dn = ("NCHW", "OIHW", "NCHW")

    def conv(x, w, b, s):
        y = jax.lax.conv_general_dilated(x, w, (s, s), "VALID", dimension_numbers=dn)
        return jnp.maximum(y + b[None, :, None, None], 0.0)

    x = x_nchw.astype(jnp.float32)
    x = conv(x, params["conv1_w"], params["conv1_b"], 4)
    x = conv(x, params["conv2_w"], params["conv2_b"], 2)
    x = conv(x, params["conv3_w"], params["conv3_b"], 1)
    x = x.reshape(x.shape[0], -1)
    x = jnp.maximum(x @ params["fc1_w"].T + params["fc1_b"], 0.0)
    x = x @ params["fc2_w"].T + params["fc2_b"]
    if FINAL_RELU:
        x = jnp.maximum(x, 0.0)
    return x


if __name__ == "__main__":
    # Spatial size 60x60 is forced by fc1 expecting 32*4*4 features (60 -> 14 -> 6 -> 4).
    T, B = 2, 2
    img_channels, latent_size, action_size = 4, 32, 4

    key = jax.random.PRNGKey(0)
    observation = jax.random.normal(key, (T, B, img_channels, 60, 60), dtype=jnp.float32)

    params = make_params(img_channels, latent_size, action_size * 2, seed=0)
    packed = pack_params(params)

    mu, log_std = pi_conv2d_forward(observation, packed, action_size)
    jax.block_until_ready((mu, log_std))

    assert mu.shape == (T, B, action_size), mu.shape
    assert log_std.shape == (T, B, action_size), log_std.shape

    # Numerical self-check against the pure-JAX reference (bf16 operands => loose tol).
    ref = _reference_forward(observation.reshape(T * B, img_channels, 60, 60), params)
    got = jnp.concatenate([mu.reshape(T * B, -1), log_std.reshape(T * B, -1)], axis=-1)
    err = float(jnp.max(jnp.abs(got - ref) / (1.0 + jnp.abs(ref))))
    assert err < 5e-2, f"kernel/reference mismatch: max rel err = {err}"

    print("KERNEL_OK")
</pallas_src>

<mosaic_0001>
module attributes {stable_mosaic.version = 11 : i64} {
  func.func @kernel(%arg0: i32, %arg1: memref<1568x256xbf16, #tpu.memory_space<vmem>>, %arg2: memref<256x32xbf16, #tpu.memory_space<vmem>>, %arg3: memref<1x32xf32, #tpu.memory_space<vmem>>, %arg4: memref<512x64xbf16, #tpu.memory_space<vmem>>, %arg5: memref<1x64xf32, #tpu.memory_space<vmem>>, %arg6: memref<576x32xbf16, #tpu.memory_space<vmem>>, %arg7: memref<1x32xf32, #tpu.memory_space<vmem>>, %arg8: memref<512x32xbf16, #tpu.memory_space<vmem>>, %arg9: memref<1x32xf32, #tpu.memory_space<vmem>>, %arg10: memref<32x8xbf16, #tpu.memory_space<vmem>>, %arg11: memref<1x8xf32, #tpu.memory_space<vmem>>, %arg12: memref<8x8xf32, #tpu.memory_space<vmem>>, %arg13: memref<1568x32xbf16, #tpu.memory_space<vmem>>, %arg14: memref<288x512xbf16, #tpu.memory_space<vmem>>, %arg15: memref<288x64xbf16, #tpu.memory_space<vmem>>, %arg16: memref<128x576xbf16, #tpu.memory_space<vmem>>, %arg17: memref<128x32xbf16, #tpu.memory_space<vmem>>, %arg18: memref<8x512xbf16, #tpu.memory_space<vmem>>) attributes {dimension_semantics = [#tpu.dimension_semantics<parallel>], iteration_bounds = array<i64: 1>, scalar_prefetch = 0 : i64, scratch_operands = 6 : i64, tpu.core_type = #tpu.core_type<tc>, window_params = [{transform_indices = @transform_0, window_bounds = array<i64: 1568, 256>}, {pipeline_mode = #tpu.pipeline_mode<synchronous>, transform_indices = @transform_1, window_bounds = array<i64: 256, 32>}, {pipeline_mode = #tpu.pipeline_mode<synchronous>, transform_indices = @transform_2, window_bounds = array<i64: 1, 32>}, {pipeline_mode = #tpu.pipeline_mode<synchronous>, transform_indices = @transform_3, window_bounds = array<i64: 512, 64>}, {pipeline_mode = #tpu.pipeline_mode<synchronous>, transform_indices = @transform_4, window_bounds = array<i64: 1, 64>}, {pipeline_mode = #tpu.pipeline_mode<synchronous>, transform_indices = @transform_5, window_bounds = array<i64: 576, 32>}, {pipeline_mode = #tpu.pipeline_mode<synchronous>, transform_indices = @transform_6, window_bounds = array<i64: 1, 32>}, {pipeline_mode = #tpu.pipeline_mode<synchronous>, transform_indices = @transform_7, window_bounds = array<i64: 512, 32>}, {pipeline_mode = #tpu.pipeline_mode<synchronous>, transform_indices = @transform_8, window_bounds = array<i64: 1, 32>}, {pipeline_mode = #tpu.pipeline_mode<synchronous>, transform_indices = @transform_9, window_bounds = array<i64: 32, 8>}, {pipeline_mode = #tpu.pipeline_mode<synchronous>, transform_indices = @transform_10, window_bounds = array<i64: 1, 8>}, {transform_indices = @transform_11, window_bounds = array<i64: 8, 8>}]} {
    %c0 = arith.constant 0 : index
    %c0_0 = arith.constant 0 : index
    %0 = vector.load %arg1[%c0, %c0_0] : memref<1568x256xbf16, #tpu.memory_space<vmem>>, vector<1568x256xbf16>
    %c0_1 = arith.constant 0 : index
    %c0_2 = arith.constant 0 : index
    %1 = vector.load %arg2[%c0_1, %c0_2] : memref<256x32xbf16, #tpu.memory_space<vmem>>, vector<256x32xbf16>
    %cst = arith.constant dense<0.000000e+00> : vector<1568x32xf32>
    %2 = tpu.matmul %0, %1, %cst {dimension_numbers = #tpu.dot_dimension_numbers<[1], [0], [0], [1], [0, 0, 1, 1], [], []>} : vector<1568x256xbf16>, vector<256x32xbf16>, vector<1568x32xf32> -> vector<1568x32xf32>
    %c0_3 = arith.constant 0 : index
    %c0_4 = arith.constant 0 : index
    %3 = vector.load %arg3[%c0_3, %c0_4] : memref<1x32xf32, #tpu.memory_space<vmem>>, vector<1x32xf32>
    %4 = vector.broadcast %3 : vector<1x32xf32> to vector<1568x32xf32>
    %5 = arith.addf %2, %4 : vector<1568x32xf32>
    %cst_5 = arith.constant 0.000000e+00 : f32
    %6 = vector.broadcast %cst_5 : f32 to vector<1568x32xf32>
    %7 = arith.maximumf %5, %6 : vector<1568x32xf32>
    %8 = arith.truncf %7 : vector<1568x32xf32> to vector<1568x32xbf16>
    %c0_6 = arith.constant 0 : index
    %c0_7 = arith.constant 0 : index
    %9 = vector.load %arg13[%c0_6, %c0_7] : memref<1568x32xbf16, #tpu.memory_space<vmem>>, vector<1568x32xbf16>
    tpu.vector_store %arg13[%c0_6, %c0_7], %8 {strides = array<i32>} : memref<1568x32xbf16, #tpu.memory_space<vmem>>, vector<1568x32xbf16>,
    %c0_8 = arith.constant 0 : index
    %c0_9 = arith.constant 0 : index
    %10 = vector.load %arg13[%c0_8, %c0_9] : memref<1568x32xbf16, #tpu.memory_space<vmem>>, vector<48x32xbf16>
    %c0_10 = arith.constant 0 : index
    %c0_11 = arith.constant 0 : index
    %11 = vector.load %arg14[%c0_10, %c0_11] : memref<288x512xbf16, #tpu.memory_space<vmem>>, vector<48x32xbf16>
    tpu.vector_store %arg14[%c0_10, %c0_11], %10 {strides = array<i32>} : memref<288x512xbf16, #tpu.memory_space<vmem>>, vector<48x32xbf16>,
    %c56 = arith.constant 56 : index
    %c0_12 = arith.constant 0 : index
    %12 = vector.load %arg13[%c56, %c0_12] : memref<1568x32xbf16, #tpu.memory_space<vmem>>, vector<48x32xbf16>
    %c48 = arith.constant 48 : index
    %c0_13 = arith.constant 0 : index
    %13 = vector.load %arg14[%c48, %c0_13] : memref<288x512xbf16, #tpu.memory_space<vmem>>, vector<48x32xbf16>
    tpu.vector_store %arg14[%c48, %c0_13], %12 {strides = array<i32>} : memref<288x512xbf16, #tpu.memory_space<vmem>>, vector<48x32xbf16>,
    %c112 = arith.constant 112 : index
    %c0_14 = arith.constant 0 : index
    %14 = vector.load %arg13[%c112, %c0_14] : memref<1568x32xbf16, #tpu.memory_space<vmem>>, vector<48x32xbf16>
    %c96 = arith.constant 96 : index
    %c0_15 = arith.constant 0 : index
    %15 = vector.load %arg14[%c96, %c0_15] : memref<288x512xbf16, #tpu.memory_space<vmem>>, vector<48x32xbf16>
    tpu.vector_store %arg14[%c96, %c0_15], %14 {strides = array<i32>} : memref<288x512xbf16, #tpu.memory_space<vmem>>, vector<48x32xbf16>,
    %c168 = arith.constant 168 : index
    %c0_16 = arith.constant 0 : index
    %16 = vector.load %arg13[%c168, %c0_16] : memref<1568x32xbf16, #tpu.memory_space<vmem>>, vector<48x32xbf16>
    %c144 = arith.constant 144 : index
    %c0_17 = arith.constant 0 : index
    %17 = vector.load %arg14[%c144, %c0_17] : memref<288x512xbf16, #tpu.memory_space<vmem>>, vector<48x32xbf16>
    tpu.vector_store %arg14[%c144, %c0_17], %16 {strides = array<i32>} : memref<288x512xbf16, #tpu.memory_space<vmem>>, vector<48x32xbf16>,
    %c224 = arith.constant 224 : index
    %c0_18 = arith.constant 0 : index
    %18 = vector.load %arg13[%c224, %c0_18] : memref<1568x32xbf16, #tpu.memory_space<vmem>>, vector<48x32xbf16>
    %c192 = arith.constant 192 : index
    %c0_19 = arith.constant 0 : index
    %19 = vector.load %arg14[%c192, %c0_19] : memref<288x512xbf16, #tpu.memory_space<vmem>>, vector<48x32xbf16>
    tpu.vector_store %arg14[%c192, %c0_19], %18 {strides = array<i32>} : memref<288x512xbf16, #tpu.memory_space<vmem>>, vector<48x32xbf16>,
    %c280 = arith.constant 280 : index
    %c0_20 = arith.constant 0 : index
    %20 = vector.load %arg13[%c280, %c0_20] : memref<1568x32xbf16, #tpu.memory_space<vmem>>, vector<48x32xbf16>
    %c240 = arith.constant 240 : index
    %c0_21 = arith.constant 0 : index
    %21 = vector.load %arg14[%c240, %c0_21] : memref<288x512xbf16, #tpu.memory_space<vmem>>, vector<48x32xbf16>
    tpu.vector_store %arg14[%c240, %c0_21], %20 {strides = array<i32>} : memref<288x512xbf16, #tpu.memory_space<vmem>>, vector<48x32xbf16>,
    %c392 = arith.constant 392 : index
    %c0_22 = arith.constant 0 : index
    %22 = vector.load %arg13[%c392, %c0_22] : memref<1568x32xbf16, #tpu.memory_space<vmem>>, vector<48x32xbf16>
    %c0_23 = arith.constant 0 : index
    %c32 = arith.constant 32 : index
    %23 = vector.load %arg14[%c0_23, %c32] : memref<288x512xbf16, #tpu.memory_space<vmem>>, vector<48x32xbf16>
    tpu.vector_store %arg14[%c0_23, %c32], %22 {strides = array<i32>} : memref<288x512xbf16, #tpu.memory_space<vmem>>, vector<48x32xbf16>,
    %c448 = arith.constant 448 : index
    %c0_24 = arith.constant 0 : index
    %24 = vector.load %arg13[%c448, %c0_24] : memref<1568x32xbf16, #tpu.memory_space<vmem>>, vector<48x32xbf16>
    %c48_25 = arith.constant 48 : index
    %c32_26 = arith.constant 32 : index
    %25 = vector.load %arg14[%c48_25, %c32_26] : memref<288x512xbf16, #tpu.memory_space<vmem>>, vector<48x32xbf16>
    tpu.vector_store %arg14[%c48_25, %c32_26], %24 {strides = array<i32>} : memref<288x512xbf16, #tpu.memory_space<vmem>>, vector<48x32xbf16>,
    %c504 = arith.constant 504 : index
    %c0_27 = arith.constant 0 : index
    %26 = vector.load %arg13[%c504, %c0_27] : memref<1568x32xbf16, #tpu.memory_space<vmem>>, vector<48x32xbf16>
    %c96_28 = arith.constant 96 : index
    %c32_29 = arith.constant 32 : index
    %27 = vector.load %arg14[%c96_28, %c32_29] : memref<288x512xbf16, #tpu.memory_space<vmem>>, vector<48x32xbf16>
    tpu.vector_store %arg14[%c96_28, %c32_29], %26 {strides = array<i32>} : memref<288x512xbf16, #tpu.memory_space<vmem>>, vector<48x32xbf16>,
    %c560 = arith.constant 560 : index
    %c0_30 = arith.constant 0 : index
    %28 = vector.load %arg13[%c560, %c0_30] : memref<1568x32xbf16, #tpu.memory_space<vmem>>, vector<48x32xbf16>
    %c144_31 = arith.constant 144 : index
    %c32_32 = arith.constant 32 : index
    %29 = vector.load %arg14[%c144_31, %c32_32] : memref<288x512xbf16, #tpu.memory_space<vmem>>, vector<48x32xbf16>
    tpu.vector_store %arg14[%c144_31, %c32_32], %28 {strides = array<i32>} : memref<288x512xbf16, #tpu.memory_space<vmem>>, vector<48x32xbf16>,
    %c616 = arith.constant 616 : index
    %c0_33 = arith.constant 0 : index
    %30 = vector.load %arg13[%c616, %c0_33] : memref<1568x32xbf16, #tpu.memory_space<vmem>>, vector<48x32xbf16>
    %c192_34 = arith.constant 192 : index
    %c32_35 = arith.constant 32 : index
    %31 = vector.load %arg14[%c192_34, %c32_35] : memref<288x512xbf16, #tpu.memory_space<vmem>>, vector<48x32xbf16>
    tpu.vector_store %arg14[%c192_34, %c32_35], %30 {strides = array<i32>} : memref<288x512xbf16, #tpu.memory_space<vmem>>, vector<48x32xbf16>,
    %c672 = arith.constant 672 : index
    %c0_36 = arith.constant 0 : index
    %32 = vector.load %arg13[%c672, %c0_36] : memref<1568x32xbf16, #tpu.memory_space<vmem>>, vector<48x32xbf16>
    %c240_37 = arith.constant 240 : index
    %c32_38 = arith.constant 32 : index
    %33 = vector.load %arg14[%c240_37, %c32_38] : memref<288x512xbf16, #tpu.memory_space<vmem>>, vector<48x32xbf16>
    tpu.vector_store %arg14[%c240_37, %c32_38], %32 {strides = array<i32>} : memref<288x512xbf16, #tpu.memory_space<vmem>>, vector<48x32xbf16>,
    %c8 = arith.constant 8 : index
    %c0_39 = arith.constant 0 : index
    %34 = vector.load %arg13[%c8, %c0_39] : memref<1568x32xbf16, #tpu.memory_space<vmem>>, vector<48x32xbf16>
    %c0_40 = arith.constant 0 : index
    %c64 = arith.constant 64 : index
    %35 = vector.load %arg14[%c0_40, %c64] : memref<288x512xbf16, #tpu.memory_space<vmem>>, vector<48x32xbf16>
    tpu.vector_store %arg14[%c0_40, %c64], %34 {strides = array<i32>} : memref<288x512xbf16, #tpu.memory_space<vmem>>, vector<48x32xbf16>,
    %c64_41 = arith.constant 64 : index
    %c0_42 = arith.constant 0 : index
    %36 = vector.load %arg13[%c64_41, %c0_42] : memref<1568x32xbf16, #tpu.memory_space<vmem>>, vector<48x32xbf16>
    %c48_43 = arith.constant 48 : index
    %c64_44 = arith.constant 64 : index
    %37 = vector.load %arg14[%c48_43, %c64_44] : memref<288x512xbf16, #tpu.memory_space<vmem>>, vector<48x32xbf16>
    tpu.vector_store %arg14[%c48_43, %c64_44], %36 {strides = array<i32>} : memref<288x512xbf16, #tpu.memory_space<vmem>>, vector<48x32xbf16>,
    %c120 = arith.constant 120 : index
    %c0_45 = arith.constant 0 : index
    %38 = vector.load %arg13[%c120, %c0_45] : memref<1568x32xbf16, #tpu.memory_space<vmem>>, vector<48x32xbf16>
    %c96_46 = arith.constant 96 : index
    %c64_47 = arith.constant 64 : index
    %39 = vector.load %arg14[%c96_46, %c64_47] : memref<288x512xbf16, #tpu.memory_space<vmem>>, vector<48x32xbf16>
    tpu.vector_store %arg14[%c96_46, %c64_47], %38 {strides = array<i32>} : memref<288x512xbf16, #tpu.memory_space<vmem>>, vector<48x32xbf16>,
    %c176 = arith.constant 176 : index
    %c0_48 = arith.constant 0 : index
    %40 = vector.load %arg13[%c176, %c0_48] : memref<1568x32xbf16, #tpu.memory_space<vmem>>, vector<48x32xbf16>
    %c144_49 = arith.constant 144 : index
    %c64_50 = arith.constant 64 : index
    %41 = vector.load %arg14[%c144_49, %c64_50] : memref<288x512xbf16, #tpu.memory_space<vmem>>, vector<48x32xbf16>
    tpu.vector_store %arg14[%c144_49, %c64_50], %40 {strides = array<i32>} : memref<288x512xbf16, #tpu.memory_space<vmem>>, vector<48x32xbf16>,
    %c232 = arith.constant 232 : index
    %c0_51 = arith.constant 0 : index
    %42 = vector.load %arg13[%c232, %c0_51] : memref<1568x32xbf16, #tpu.memory_space<vmem>>, vector<48x32xbf16>
    %c192_52 = arith.constant 192 : index
    %c64_53 = arith.constant 64 : index
    %43 = vector.load %arg14[%c192_52, %c64_53] : memref<288x512xbf16, #tpu.memory_space<vmem>>, vector<48x32xbf16>
    tpu.vector_store %arg14[%c192_52, %c64_53], %42 {strides = array<i32>} : memref<288x512xbf16, #tpu.memory_space<vmem>>, vector<48x32xbf16>,
    %c288 = arith.constant 288 : index
    %c0_54 = arith.constant 0 : index
    %44 = vector.load %arg13[%c288, %c0_54] : memref<1568x32xbf16, #tpu.memory_space<vmem>>, vector<48x32xbf16>
    %c240_55 = arith.constant 240 : index
    %c64_56 = arith.constant 64 : index
    %45 = vector.load %arg14[%c240_55, %c64_56] : memref<288x512xbf16, #tpu.memory_space<vmem>>, vector<48x32xbf16>
    tpu.vector_store %arg14[%c240_55, %c64_56], %44 {strides = array<i32>} : memref<288x512xbf16, #tpu.memory_space<vmem>>, vector<48x32xbf16>,
    %c400 = arith.constant 400 : index
    %c0_57 = arith.constant 0 : index
    %46 = vector.load %arg13[%c400, %c0_57] : memref<1568x32xbf16, #tpu.memory_space<vmem>>, vector<48x32xbf16>
    %c0_58 = arith.constant 0 : index
    %c96_59 = arith.constant 96 : index
    %47 = vector.load %arg14[%c0_58, %c96_59] : memref<288x512xbf16, #tpu.memory_space<vmem>>, vector<48x32xbf16>
    tpu.vector_store %arg14[%c0_58, %c96_59], %46 {strides = array<i32>} : memref<288x512xbf16, #tpu.memory_space<vmem>>, vector<48x32xbf16>,
    %c456 = arith.constant 456 : index
    %c0_60 = arith.constant 0 : index
    %48 = vector.load %arg13[%c456, %c0_60] : memref<1568x32xbf16, #tpu.memory_space<vmem>>, vector<48x32xbf16>
    %c48_61 = arith.constant 48 : index
    %c96_62 = arith.constant 96 : index
    %49 = vector.load %arg14[%c48_61, %c96_62] : memref<288x512xbf16, #tpu.memory_space<vmem>>, vector<48x32xbf16>
    tpu.vector_store %arg14[%c48_61, %c96_62], %48 {strides = array<i32>} : memref<288x512xbf16, #tpu.memory_space<vmem>>, vector<48x32xbf16>,
    %c512 = arith.constant 512 : index
    %c0_63 = arith.constant 0 : index
    %50 = vector.load %arg13[%c512, %c0_63] : memref<1568x32xbf16, #tpu.memory_space<vmem>>, vector<48x32xbf16>
    %c96_64 = arith.constant 96 : index
    %c96_65 = arith.constant 96 : index
    %51 = vector.load %arg14[%c96_64, %c96_65] : memref<288x512xbf16, #tpu.memory_space<vmem>>, vector<48x32xbf16>
    tpu.vector_store %arg14[%c96_64, %c96_65], %50 {strides = array<i32>} : memref<288x512xbf16, #tpu.memory_space<vmem>>, vector<48x32xbf16>,
    %c568 = arith.constant 568 : index
    %c0_66 = arith.constant 0 : index
    %52 = vector.load %arg13[%c568, %c0_66] : memref<1568x32xbf16, #tpu.memory_space<vmem>>, vector<48x32xbf16>
    %c144_67 = arith.constant 144 : index
    %c96_68 = arith.constant 96 : index
    %53 = vector.load %arg14[%c144_67, %c96_68] : memref<288x512xbf16, #tpu.memory_space<vmem>>, vector<48x32xbf16>
    tpu.vector_store %arg14[%c144_67, %c96_68], %52 {strides = array<i32>} : memref<288x512xbf16, #tpu.memory_space<vmem>>, vector<48x32xbf16>,
    %c624 = arith.constant 624 : index
    %c0_69 = arith.constant 0 : index
    %54 = vector.load %arg13[%c624, %c0_69] : memref<1568x32xbf16, #tpu.memory_space<vmem>>, vector<48x32xbf16>
    %c192_70 = arith.constant 192 : index
    %c96_71 = arith.constant 96 : index
    %55 = vector.load %arg14[%c192_70, %c96_71] : memref<288x512xbf16, #tpu.memory_space<vmem>>, vector<48x32xbf16>
    tpu.vector_store %arg14[%c192_70, %c96_71], %54 {strides = array<i32>} : memref<288x512xbf16, #tpu.memory_space<vmem>>, vector<48x32xbf16>,
    %c680 = arith.constant 680 : index
    %c0_72 = arith.constant 0 : index
    %56 = vector.load %arg13[%c680, %c0_72] : memref<1568x32xbf16, #tpu.memory_space<vmem>>, vector<48x32xbf16>
    %c240_73 = arith.constant 240 : index
    %c96_74 = arith.constant 96 : index
    %57 = vector.load %arg14[%c240_73, %c96_74] : memref<288x512xbf16, #tpu.memory_space<vmem>>, vector<48x32xbf16>
    tpu.vector_store %arg14[%c240_73, %c96_74], %56 {strides = array<i32>} : memref<288x512xbf16, #tpu.memory_space<vmem>>, vector<48x32xbf16>,
    %c784 = arith.constant 784 : index
    %c0_75 = arith.constant 0 : index
    %58 = vector.load %arg13[%c784, %c0_75] : memref<1568x32xbf16, #tpu.memory_space<vmem>>, vector<48x32xbf16>
    %c0_76 = arith.constant 0 : index
    %c128 = arith.constant 128 : index
    %59 = vector.load %arg14[%c0_76, %c128] : memref<288x512xbf16, #tpu.memory_space<vmem>>, vector<48x32xbf16>
    tpu.vector_store %arg14[%c0_76, %c128], %58 {strides = array<i32>} : memref<288x512xbf16, #tpu.memory_space<vmem>>, vector<48x32xbf16>,
    %c840 = arith.constant 840 : index
    %c0_77 = arith.constant 0 : index
    %60 = vector.load %arg13[%c840, %c0_77] : memref<1568x32xbf16, #tpu.memory_space<vmem>>, vector<48x32xbf16>
    %c48_78 = arith.constant 48 : index
    %c128_79 = arith.constant 128 : index
    %61 = vector.load %arg14[%c48_78, %c128_79] : memref<288x512xbf16, #tpu.memory_space<vmem>>, vector<48x32xbf16>
    tpu.vector_store %arg14[%c48_78, %c128_79], %60 {strides = array<i32>} : memref<288x512xbf16, #tpu.memory_space<vmem>>, vector<48x32xbf16>,
    %c896 = arith.constant 896 : index
    %c0_80 = arith.constant 0 : index
    %62 = vector.load %arg13[%c896, %c0_80] : memref<1568x32xbf16, #tpu.memory_space<vmem>>, vector<48x32xbf16>
    %c96_81 = arith.constant 96 : index
    %c128_82 = arith.constant 128 : index
    %63 = vector.load %arg14[%c96_81, %c128_82] : memref<288x512xbf16, #tpu.memory_space<vmem>>, vector<48x32xbf16>
    tpu.vector_store %arg14[%c96_81, %c128_82], %62 {strides = array<i32>} : memref<288x512xbf16, #tpu.memory_space<vmem>>, vector<48x32xbf16>,
    %c952 = arith.constant 952 : index
    %c0_83 = arith.constant 0 : index
    %64 = vector.load %arg13[%c952, %c0_83] : memref<1568x32xbf16, #tpu.memory_space<vmem>>, vector<48x32xbf16>
    %c144_84 = arith.constant 144 : index
    %c128_85 = arith.constant 128 : index
    %65 = vector.load %arg14[%c144_84, %c128_85] : memref<288x512xbf16, #tpu.memory_space<vmem>>, vector<48x32xbf16>
    tpu.vector_store %arg14[%c144_84, %c128_85], %64 {strides = array<i32>} : memref<288x512xbf16, #tpu.memory_space<vmem>>, vector<48x32xbf16>,
    %c1008 = arith.constant 1008 : index
    %c0_86 = arith.constant 0 : index
    %66 = vector.load %arg13[%c1008, %c0_86] : memref<1568x32xbf16, #tpu.memory_space<vmem>>, vector<48x32xbf16>
    %c192_87 = arith.constant 192 : index
    %c128_88 = arith.constant 128 : index
    %67 = vector.load %arg14[%c192_87, %c128_88] : memref<288x512xbf16, #tpu.memory_space<vmem>>, vector<48x32xbf16>
    tpu.vector_store %arg14[%c192_87, %c128_88], %66 {strides = array<i32>} : memref<288x512xbf16, #tpu.memory_space<vmem>>, vector<48x32xbf16>,
    %c1064 = arith.constant 1064 : index
    %c0_89 = arith.constant 0 : index
    %68 = vector.load %arg13[%c1064, %c0_89] : memref<1568x32xbf16, #tpu.memory_space<vmem>>, vector<48x32xbf16>
    %c240_90 = arith.constant 240 : index
    %c128_91 = arith.constant 128 : index
    %69 = vector.load %arg14[%c240_90, %c128_91] : memref<288x512xbf16, #tpu.memory_space<vmem>>, vector<48x32xbf16>
    tpu.vector_store %arg14[%c240_90, %c128_91], %68 {strides = array<i32>} : memref<288x512xbf16, #tpu.memory_space<vmem>>, vector<48x32xbf16>,
    %c1176 = arith.constant 1176 : index
    %c0_92 = arith.constant 0 : index
    %70 = vector.load %arg13[%c1176, %c0_92] : memref<1568x32xbf16, #tpu.memory_space<vmem>>, vector<48x32xbf16>
    %c0_93 = arith.constant 0 : index
    %c160 = arith.constant 160 : index
    %71 = vector.load %arg14[%c0_93, %c160] : memref<288x512xbf16, #tpu.memory_space<vmem>>, vector<48x32xbf16>
    tpu.vector_store %arg14[%c0_93, %c160], %70 {strides = array<i32>} : memref<288x512xbf16, #tpu.memory_space<vmem>>, vector<48x32xbf16>,
    %c1232 = arith.constant 1232 : index
    %c0_94 = arith.constant 0 : index
    %72 = vector.load %arg13[%c1232, %c0_94] : memref<1568x32xbf16, #tpu.memory_space<vmem>>, vector<48x32xbf16>
    %c48_95 = arith.constant 48 : index
    %c160_96 = arith.constant 160 : index
    %73 = vector.load %arg14[%c48_95, %c160_96] : memref<288x512xbf16, #tpu.memory_space<vmem>>, vector<48x32xbf16>
    tpu.vector_store %arg14[%c48_95, %c160_96], %72 {strides = array<i32>} : memref<288x512xbf16, #tpu.memory_space<vmem>>, vector<48x32xbf16>,
    %c1288 = arith.constant 1288 : index
    %c0_97 = arith.constant 0 : index
    %74 = vector.load %arg13[%c1288, %c0_97] : memref<1568x32xbf16, #tpu.memory_space<vmem>>, vector<48x32xbf16>
    %c96_98 = arith.constant 96 : index
    %c160_99 = arith.constant 160 : index
    %75 = vector.load %arg14[%c96_98, %c160_99] : memref<288x512xbf16, #tpu.memory_space<vmem>>, vector<48x32xbf16>
    tpu.vector_store %arg14[%c96_98, %c160_99], %74 {strides = array<i32>} : memref<288x512xbf16, #tpu.memory_space<vmem>>, vector<48x32xbf16>,
    %c1344 = arith.constant 1344 : index
    %c0_100 = arith.constant 0 : index
    %76 = vector.load %arg13[%c1344, %c0_100] : memref<1568x32xbf16, #tpu.memory_space<vmem>>, vector<48x32xbf16>
    %c144_101 = arith.constant 144 : index
    %c160_102 = arith.constant 160 : index
    %77 = vector.load %arg14[%c144_101, %c160_102] : memref<288x512xbf16, #tpu.memory_space<vmem>>, vector<48x32xbf16>
    tpu.vector_store %arg14[%c144_101, %c160_102], %76 {strides = array<i32>} : memref<288x512xbf16, #tpu.memory_space<vmem>>, vector<48x32xbf16>,
    %c1400 = arith.constant 1400 : index
    %c0_103 = arith.constant 0 : index
    %78 = vector.load %arg13[%c1400, %c0_103] : memref<1568x32xbf16, #tpu.memory_space<vmem>>, vector<48x32xbf16>
    %c192_104 = arith.constant 192 : index
    %c160_105 = arith.constant 160 : index
    %79 = vector.load %arg14[%c192_104, %c160_105] : memref<288x512xbf16, #tpu.memory_space<vmem>>, vector<48x32xbf16>
    tpu.vector_store %arg14[%c192_104, %c160_105], %78 {strides = array<i32>} : memref<288x512xbf16, #tpu.memory_space<vmem>>, vector<48x32xbf16>,
    %c1456 = arith.constant 1456 : index
    %c0_106 = arith.constant 0 : index
    %80 = vector.load %arg13[%c1456, %c0_106] : memref<1568x32xbf16, #tpu.memory_space<vmem>>, vector<48x32xbf16>
    %c240_107 = arith.constant 240 : index
    %c160_108 = arith.constant 160 : index
    %81 = vector.load %arg14[%c240_107, %c160_108] : memref<288x512xbf16, #tpu.memory_space<vmem>>, vector<48x32xbf16>
    tpu.vector_store %arg14[%c240_107, %c160_108], %80 {strides = array<i32>} : memref<288x512xbf16, #tpu.memory_space<vmem>>, vector<48x32xbf16>,
    %c792 = arith.constant 792 : index
    %c0_109 = arith.constant 0 : index
    %82 = vector.load %arg13[%c792, %c0_109] : memref<1568x32xbf16, #tpu.memory_space<vmem>>, vector<48x32xbf16>
    %c0_110 = arith.constant 0 : index
    %c192_111 = arith.constant 192 : index
    %83 = vector.load %arg14[%c0_110, %c192_111] : memref<288x512xbf16, #tpu.memory_space<vmem>>, vector<48x32xbf16>
    tpu.vector_store %arg14[%c0_110, %c192_111], %82 {strides = array<i32>} : memref<288x512xbf16, #tpu.memory_space<vmem>>, vector<48x32xbf16>,
    %c848 = arith.constant 848 : index
    %c0_112 = arith.constant 0 : index
    %84 = vector.load %arg13[%c848, %c0_112] : memref<1568x32xbf16, #tpu.memory_space<vmem>>, vector<48x32xbf16>
    %c48_113 = arith.constant 48 : index
    %c192_114 = arith.constant 192 : index
    %85 = vector.load %arg14[%c48_113, %c192_114] : memref<288x512xbf16, #tpu.memory_space<vmem>>, vector<48x32xbf16>
    tpu.vector_store %arg14[%c48_113, %c192_114], %84 {strides = array<i32>} : memref<288x512xbf16, #tpu.memory_space<vmem>>, vector<48x32xbf16>,
    %c904 = arith.constant 904 : index
    %c0_115 = arith.constant 0 : index
    %86 = vector.load %arg13[%c904, %c0_115] : memref<1568x32xbf16, #tpu.memory_space<vmem>>, vector<48x32xbf16>
    %c96_116 = arith.constant 96 : index
    %c192_117 = arith.constant 192 : index
    %87 = vector.load %arg14[%c96_116, %c192_117] : memref<288x512xbf16, #tpu.memory_space<vmem>>, vector<48x32xbf16>
    tpu.vector_store %arg14[%c96_116, %c192_117], %86 {strides = array<i32>} : memref<288x512xbf16, #tpu.memory_space<vmem>>, vector<48x32xbf16>,
    %c960 = arith.constant 960 : index
    %c0_118 = arith.constant 0 : index
    %88 = vector.load %arg13[%c960, %c0_118] : memref<1568x32xbf16, #tpu.memory_space<vmem>>, vector<48x32xbf16>
    %c144_119 = arith.constant 144 : index
    %c192_120 = arith.constant 192 : index
    %89 = vector.load %arg14[%c144_119, %c192_120] : memref<288x512xbf16, #tpu.memory_space<vmem>>, vector<48x32xbf16>
    tpu.vector_store %arg14[%c144_119, %c192_120], %88 {strides = array<i32>} : memref<288x512xbf16, #tpu.memory_space<vmem>>, vector<48x32xbf16>,
    %c1016 = arith.constant 1016 : index
    %c0_121 = arith.constant 0 : index
    %90 = vector.load %arg13[%c1016, %c0_121] : memref<1568x32xbf16, #tpu.memory_space<vmem>>, vector<48x32xbf16>
    %c192_122 = arith.constant 192 : index
    %c192_123 = arith.constant 192 : index
    %91 = vector.load %arg14[%c192_122, %c192_123] : memref<288x512xbf16, #tpu.memory_space<vmem>>, vector<48x32xbf16>
    tpu.vector_store %arg14[%c192_122, %c192_123], %90 {strides = array<i32>} : memref<288x512xbf16, #tpu.memory_space<vmem>>, vector<48x32xbf16>,
    %c1072 = arith.constant 1072 : index
    %c0_124 = arith.constant 0 : index
    %92 = vector.load %arg13[%c1072, %c0_124] : memref<1568x32xbf16, #tpu.memory_space<vmem>>, vector<48x32xbf16>
    %c240_125 = arith.constant 240 : index
    %c192_126 = arith.constant 192 : index
    %93 = vector.load %arg14[%c240_125, %c192_126] : memref<288x512xbf16, #tpu.memory_space<vmem>>, vector<48x32xbf16>
    tpu.vector_store %arg14[%c240_125, %c192_126], %92 {strides = array<i32>} : memref<288x512xbf16, #tpu.memory_space<vmem>>, vector<48x32xbf16>,
    %c1184 = arith.constant 1184 : index
    %c0_127 = arith.constant 0 : index
    %94 = vector.load %arg13[%c1184, %c0_127] : memref<1568x32xbf16, #tpu.memory_space<vmem>>, vector<48x32xbf16>
    %c0_128 = arith.constant 0 : index
    %c224_129 = arith.constant 224 : index
    %95 = vector.load %arg14[%c0_128, %c224_129] : memref<288x512xbf16, #tpu.memory_space<vmem>>, vector<48x32xbf16>
    tpu.vector_store %arg14[%c0_128, %c224_129], %94 {strides = array<i32>} : memref<288x512xbf16, #tpu.memory_space<vmem>>, vector<48x32xbf16>,
    %c1240 = arith.constant 1240 : index
    %c0_130 = arith.constant 0 : index
    %96 = vector.load %arg13[%c1240, %c0_130] : memref<1568x32xbf16, #tpu.memory_space<vmem>>, vector<48x32xbf16>
    %c48_131 = arith.constant 48 : index
    %c224_132 = arith.constant 224 : index
    %97 = vector.load %arg14[%c48_131, %c224_132] : memref<288x512xbf16, #tpu.memory_space<vmem>>, vector<48x32xbf16>
    tpu.vector_store %arg14[%c48_131, %c224_132], %96 {strides = array<i32>} : memref<288x512xbf16, #tpu.memory_space<vmem>>, vector<48x32xbf16>,
    %c1296 = arith.constant 1296 : index
    %c0_133 = arith.constant 0 : index
    %98 = vector.load %arg13[%c1296, %c0_133] : memref<1568x32xbf16, #tpu.memory_space<vmem>>, vector<48x32xbf16>
    %c96_134 = arith.constant 96 : index
    %c224_135 = arith.constant 224 : index
    %99 = vector.load %arg14[%c96_134, %c224_135] : memref<288x512xbf16, #tpu.memory_space<vmem>>, vector<48x32xbf16>
    tpu.vector_store %arg14[%c96_134, %c224_135], %98 {strides = array<i32>} : memref<288x512xbf16, #tpu.memory_space<vmem>>, vector<48x32xbf16>,
    %c1352 = arith.constant 1352 : index
    %c0_136 = arith.constant 0 : index
    %100 = vector.load %arg13[%c1352, %c0_136] : memref<1568x32xbf16, #tpu.memory_space<vmem>>, vector<48x32xbf16>
    %c144_137 = arith.constant 144 : index
    %c224_138 = arith.constant 224 : index
    %101 = vector.load %arg14[%c144_137, %c224_138] : memref<288x512xbf16, #tpu.memory_space<vmem>>, vector<48x32xbf16>
    tpu.vector_store %arg14[%c144_137, %c224_138], %100 {strides = array<i32>} : memref<288x512xbf16, #tpu.memory_space<vmem>>, vector<48x32xbf16>,
    %c1408 = arith.constant 1408 : index
    %c0_139 = arith.constant 0 : index
    %102 = vector.load %arg13[%c1408, %c0_139] : memref<1568x32xbf16, #tpu.memory_space<vmem>>, vector<48x32xbf16>
    %c192_140 = arith.constant 192 : index
    %c224_141 = arith.constant 224 : index
    %103 = vector.load %arg14[%c192_140, %c224_141] : memref<288x512xbf16, #tpu.memory_space<vmem>>, vector<48x32xbf16>
    tpu.vector_store %arg14[%c192_140, %c224_141], %102 {strides = array<i32>} : memref<288x512xbf16, #tpu.memory_space<vmem>>, vector<48x32xbf16>,
    %c1464 = arith.constant 1464 : index
    %c0_142 = arith.constant 0 : index
    %104 = vector.load %arg13[%c1464, %c0_142] : memref<1568x32xbf16, #tpu.memory_space<vmem>>, vector<48x32xbf16>
    %c240_143 = arith.constant 240 : index
    %c224_144 = arith.constant 224 : index
    %105 = vector.load %arg14[%c240_143, %c224_144] : memref<288x512xbf16, #tpu.memory_space<vmem>>, vector<48x32xbf16>
    tpu.vector_store %arg14[%c240_143, %c224_144], %104 {strides = array<i32>} : memref<288x512xbf16, #tpu.memory_space<vmem>>, vector<48x32xbf16>,
    %c56_145 = arith.constant 56 : index
    %c0_146 = arith.constant 0 : index
    %106 = vector.load %arg13[%c56_145, %c0_146] : memref<1568x32xbf16, #tpu.memory_space<vmem>>, vector<48x32xbf16>
    %c0_147 = arith.constant 0 : index
    %c256 = arith.constant 256 : index
    %107 = vector.load %arg14[%c0_147, %c256] : memref<288x512xbf16, #tpu.memory_space<vmem>>, vector<48x32xbf16>
    tpu.vector_store %arg14[%c0_147, %c256], %106 {strides = array<i32>} : memref<288x512xbf16, #tpu.memory_space<vmem>>, vector<48x32xbf16>,
    %c112_148 = arith.constant 112 : index
    %c0_149 = arith.constant 0 : index
    %108 = vector.load %arg13[%c112_148, %c0_149] : memref<1568x32xbf16, #tpu.memory_space<vmem>>, vector<48x32xbf16>
    %c48_150 = arith.constant 48 : index
    %c256_151 = arith.constant 256 : index
    %109 = vector.load %arg14[%c48_150, %c256_151] : memref<288x512xbf16, #tpu.memory_space<vmem>>, vector<48x32xbf16>
    tpu.vector_store %arg14[%c48_150, %c256_151], %108 {strides = array<i32>} : memref<288x512xbf16, #tpu.memory_space<vmem>>, vector<48x32xbf16>,
    %c168_152 = arith.constant 168 : index
    %c0_153 = arith.constant 0 : index
    %110 = vector.load %arg13[%c168_152, %c0_153] : memref<1568x32xbf16, #tpu.memory_space<vmem>>, vector<48x32xbf16>
    %c96_154 = arith.constant 96 : index
    %c256_155 = arith.constant 256 : index
    %111 = vector.load %arg14[%c96_154, %c256_155] : memref<288x512xbf16, #tpu.memory_space<vmem>>, vector<48x32xbf16>
    tpu.vector_store %arg14[%c96_154, %c256_155], %110 {strides = array<i32>} : memref<288x512xbf16, #tpu.memory_space<vmem>>, vector<48x32xbf16>,
    %c224_156 = arith.constant 224 : index
    %c0_157 = arith.constant 0 : index
    %112 = vector.load %arg13[%c224_156, %c0_157] : memref<1568x32xbf16, #tpu.memory_space<vmem>>, vector<48x32xbf16>
    %c144_158 = arith.constant 144 : index
    %c256_159 = arith.constant 256 : index
    %113 = vector.load %arg14[%c144_158, %c256_159] : memref<288x512xbf16, #tpu.memory_space<vmem>>, vector<48x32xbf16>
    tpu.vector_store %arg14[%c144_158, %c256_159], %112 {strides = array<i32>} : memref<288x512xbf16, #tpu.memory_space<vmem>>, vector<48x32xbf16>,
    %c280_160 = arith.constant 280 : index
    %c0_161 = arith.constant 0 : index
    %114 = vector.load %arg13[%c280_160, %c0_161] : memref<1568x32xbf16, #tpu.memory_space<vmem>>, vector<48x32xbf16>
    %c192_162 = arith.constant 192 : index
    %c256_163 = arith.constant 256 : index
    %115 = vector.load %arg14[%c192_162, %c256_163] : memref<288x512xbf16, #tpu.memory_space<vmem>>, vector<48x32xbf16>
    tpu.vector_store %arg14[%c192_162, %c256_163], %114 {strides = array<i32>} : memref<288x512xbf16, #tpu.memory_space<vmem>>, vector<48x32xbf16>,
    %c336 = arith.constant 336 : index
    %c0_164 = arith.constant 0 : index
    %116 = vector.load %arg13[%c336, %c0_164] : memref<1568x32xbf16, #tpu.memory_space<vmem>>, vector<48x32xbf16>
    %c240_165 = arith.constant 240 : index
    %c256_166 = arith.constant 256 : index
    %117 = vector.load %arg14[%c240_165, %c256_166] : memref<288x512xbf16, #tpu.memory_space<vmem>>, vector<48x32xbf16>
    tpu.vector_store %arg14[%c240_165, %c256_166], %116 {strides = array<i32>} : memref<288x512xbf16, #tpu.memory_space<vmem>>, vector<48x32xbf16>,
    %c448_167 = arith.constant 448 : index
    %c0_168 = arith.constant 0 : index
    %118 = vector.load %arg13[%c448_167, %c0_168] : memref<1568x32xbf16, #tpu.memory_space<vmem>>, vector<48x32xbf16>
    %c0_169 = arith.constant 0 : index
    %c288_170 = arith.constant 288 : index
    %119 = vector.load %arg14[%c0_169, %c288_170] : memref<288x512xbf16, #tpu.memory_space<vmem>>, vector<48x32xbf16>
    tpu.vector_store %arg14[%c0_169, %c288_170], %118 {strides = array<i32>} : memref<288x512xbf16, #tpu.memory_space<vmem>>, vector<48x32xbf16>,
    %c504_171 = arith.constant 504 : index
    %c0_172 = arith.constant 0 : index
    %120 = vector.load %arg13[%c504_171, %c0_172] : memref<1568x32xbf16, #tpu.memory_space<vmem>>, vector<48x32xbf16>
    %c48_173 = arith.constant 48 : index
    %c288_174 = arith.constant 288 : index
    %121 = vector.load %arg14[%c48_173, %c288_174] : memref<288x512xbf16, #tpu.memory_space<vmem>>, vector<48x32xbf16>
    tpu.vector_store %arg14[%c48_173, %c288_174], %120 {strides = array<i32>} : memref<288x512xbf16, #tpu.memory_space<vmem>>, vector<48x32xbf16>,
    %c560_175 = arith.constant 560 : index
    %c0_176 = arith.constant 0 : index
    %122 = vector.load %arg13[%c560_175, %c0_176] : memref<1568x32xbf16, #tpu.memory_space<vmem>>, vector<48x32xbf16>
    %c96_177 = arith.constant 96 : index
    %c288_178 = arith.constant 288 : index
    %123 = vector.load %arg14[%c96_177, %c288_178] : memref<288x512xbf16, #tpu.memory_space<vmem>>, vector<48x32xbf16>
    tpu.vector_store %arg14[%c96_177, %c288_178], %122 {strides = array<i32>} : memref<288x512xbf16, #tpu.memory_space<vmem>>, vector<48x32xbf16>,
    %c616_179 = arith.constant 616 : index
    %c0_180 = arith.constant 0 : index
    %124 = vector.load %arg13[%c616_179, %c0_180] : memref<1568x32xbf16, #tpu.memory_space<vmem>>, vector<48x32xbf16>
    %c144_181 = arith.constant 144 : index
    %c288_182 = arith.constant 288 : index
    %125 = vector.load %arg14[%c144_181, %c288_182] : memref<288x512xbf16, #tpu.memory_space<vmem>>, vector<48x32xbf16>
    tpu.vector_store %arg14[%c144_181, %c288_182], %124 {strides = array<i32>} : memref<288x512xbf16, #tpu.memory_space<vmem>>, vector<48x32xbf16>,
    %c672_183 = arith.constant 672 : index
    %c0_184 = arith.constant 0 : index
    %126 = vector.load %arg13[%c672_183, %c0_184] : memref<1568x32xbf16, #tpu.memory_space<vmem>>, vector<48x32xbf16>
    %c192_185 = arith.constant 192 : index
    %c288_186 = arith.constant 288 : index
    %127 = vector.load %arg14[%c192_185, %c288_186] : memref<288x512xbf16, #tpu.memory_space<vmem>>, vector<48x32xbf16>
    tpu.vector_store %arg14[%c192_185, %c288_186], %126 {strides = array<i32>} : memref<288x512xbf16, #tpu.memory_space<vmem>>, vector<48x32xbf16>,
    %c728 = arith.constant 728 : index
    %c0_187 = arith.constant 0 : index
    %128 = vector.load %arg13[%c728, %c0_187] : memref<1568x32xbf16, #tpu.memory_space<vmem>>, vector<48x32xbf16>
    %c240_188 = arith.constant 240 : index
    %c288_189 = arith.constant 288 : index
    %129 = vector.load %arg14[%c240_188, %c288_189] : memref<288x512xbf16, #tpu.memory_space<vmem>>, vector<48x32xbf16>
    tpu.vector_store %arg14[%c240_188, %c288_189], %128 {strides = array<i32>} : memref<288x512xbf16, #tpu.memory_space<vmem>>, vector<48x32xbf16>,
    %c64_190 = arith.constant 64 : index
    %c0_191 = arith.constant 0 : index
    %130 = vector.load %arg13[%c64_190, %c0_191] : memref<1568x32xbf16, #tpu.memory_space<vmem>>, vector<48x32xbf16>
    %c0_192 = arith.constant 0 : index
    %c320 = arith.constant 320 : index
    %131 = vector.load %arg14[%c0_192, %c320] : memref<288x512xbf16, #tpu.memory_space<vmem>>, vector<48x32xbf16>
    tpu.vector_store %arg14[%c0_192, %c320], %130 {strides = array<i32>} : memref<288x512xbf16, #tpu.memory_space<vmem>>, vector<48x32xbf16>,
    %c120_193 = arith.constant 120 : index
    %c0_194 = arith.constant 0 : index
    %132 = vector.load %arg13[%c120_193, %c0_194] : memref<1568x32xbf16, #tpu.memory_space<vmem>>, vector<48x32xbf16>
    %c48_195 = arith.constant 48 : index
    %c320_196 = arith.constant 320 : index
    %133 = vector.load %arg14[%c48_195, %c320_196] : memref<288x512xbf16, #tpu.memory_space<vmem>>, vector<48x32xbf16>
    tpu.vector_store %arg14[%c48_195, %c320_196], %132 {strides = array<i32>} : memref<288x512xbf16, #tpu.memory_space<vmem>>, vector<48x32xbf16>,
    %c176_197 = arith.constant 176 : index
    %c0_198 = arith.constant 0 : index
    %134 = vector.load %arg13[%c176_197, %c0_198] : memref<1568x32xbf16, #tpu.memory_space<vmem>>, vector<48x32xbf16>
    %c96_199 = arith.constant 96 : index
    %c320_200 = arith.constant 320 : index
    %135 = vector.load %arg14[%c96_199, %c320_200] : memref<288x512xbf16, #tpu.memory_space<vmem>>, vector<48x32xbf16>
    tpu.vector_store %arg14[%c96_199, %c320_200], %134 {strides = array<i32>} : memref<288x512xbf16, #tpu.memory_space<vmem>>, vector<48x32xbf16>,
    %c232_201 = arith.constant 232 : index
    %c0_202 = arith.constant 0 : index
    %136 = vector.load %arg13[%c232_201, %c0_202] : memref<1568x32xbf16, #tpu.memory_space<vmem>>, vector<48x32xbf16>
    %c144_203 = arith.constant 144 : index
    %c320_204 = arith.constant 320 : index
    %137 = vector.load %arg14[%c144_203, %c320_204] : memref<288x512xbf16, #tpu.memory_space<vmem>>, vector<48x32xbf16>
    tpu.vector_store %arg14[%c144_203, %c320_204], %136 {strides = array<i32>} : memref<288x512xbf16, #tpu.memory_space<vmem>>, vector<48x32xbf16>,
    %c288_205 = arith.constant 288 : index
    %c0_206 = arith.constant 0 : index
    %138 = vector.load %arg13[%c288_205, %c0_206] : memref<1568x32xbf16, #tpu.memory_space<vmem>>, vector<48x32xbf16>
    %c192_207 = arith.constant 192 : index
    %c320_208 = arith.constant 320 : index
    %139 = vector.load %arg14[%c192_207, %c320_208] : memref<288x512xbf16, #tpu.memory_space<vmem>>, vector<48x32xbf16>
    tpu.vector_store %arg14[%c192_207, %c320_208], %138 {strides = array<i32>} : memref<288x512xbf16, #tpu.memory_space<vmem>>, vector<48x32xbf16>,
    %c344 = arith.constant 344 : index
    %c0_209 = arith.constant 0 : index
    %140 = vector.load %arg13[%c344, %c0_209] : memref<1568x32xbf16, #tpu.memory_space<vmem>>, vector<48x32xbf16>
    %c240_210 = arith.constant 240 : index
    %c320_211 = arith.constant 320 : index
    %141 = vector.load %arg14[%c240_210, %c320_211] : memref<288x512xbf16, #tpu.memory_space<vmem>>, vector<48x32xbf16>
    tpu.vector_store %arg14[%c240_210, %c320_211], %140 {strides = array<i32>} : memref<288x512xbf16, #tpu.memory_space<vmem>>, vector<48x32xbf16>,
    %c456_212 = arith.constant 456 : index
    %c0_213 = arith.constant 0 : index
    %142 = vector.load %arg13[%c456_212, %c0_213] : memref<1568x32xbf16, #tpu.memory_space<vmem>>, vector<48x32xbf16>
    %c0_214 = arith.constant 0 : index
    %c352 = arith.constant 352 : index
    %143 = vector.load %arg14[%c0_214, %c352] : memref<288x512xbf16, #tpu.memory_space<vmem>>, vector<48x32xbf16>
    tpu.vector_store %arg14[%c0_214, %c352], %142 {strides = array<i32>} : memref<288x512xbf16, #tpu.memory_space<vmem>>, vector<48x32xbf16>,
    %c512_215 = arith.constant 512 : index
    %c0_216 = arith.constant 0 : index
    %144 = vector.load %arg13[%c512_215, %c0_216] : memref<1568x32xbf16, #tpu.memory_space<vmem>>, vector<48x32xbf16>
    %c48_217 = arith.constant 48 : index
    %c352_218 = arith.constant 352 : index
    %145 = vector.load %arg14[%c48_217, %c352_218] : memref<288x512xbf16, #tpu.memory_space<vmem>>, vector<48x32xbf16>
    tpu.vector_store %arg14[%c48_217, %c352_218], %144 {strides = array<i32>} : memref<288x512xbf16, #tpu.memory_space<vmem>>, vector<48x32xbf16>,
    %c568_219 = arith.constant 568 : index
    %c0_220 = arith.constant 0 : index
    %146 = vector.load %arg13[%c568_219, %c0_220] : memref<1568x32xbf16, #tpu.memory_space<vmem>>, vector<48x32xbf16>
    %c96_221 = arith.constant 96 : index
    %c352_222 = arith.constant 352 : index
    %147 = vector.load %arg14[%c96_221, %c352_222] : memref<288x512xbf16, #tpu.memory_space<vmem>>, vector<48x32xbf16>
    tpu.vector_store %arg14[%c96_221, %c352_222], %146 {strides = array<i32>} : memref<288x512xbf16, #tpu.memory_space<vmem>>, vector<48x32xbf16>,
    %c624_223 = arith.constant 624 : index
    %c0_224 = arith.constant 0 : index
    %148 = vector.load %arg13[%c624_223, %c0_224] : memref<1568x32xbf16, #tpu.memory_space<vmem>>, vector<48x32xbf16>
    %c144_225 = arith.constant 144 : index
    %c352_226 = arith.constant 352 : index
    %149 = vector.load %arg14[%c144_225, %c352_226] : memref<288x512xbf16, #tpu.memory_space<vmem>>, vector<48x32xbf16>
    tpu.vector_store %arg14[%c144_225, %c352_226], %148 {strides = array<i32>} : memref<288x512xbf16, #tpu.memory_space<vmem>>, vector<48x32xbf16>,
    %c680_227 = arith.constant 680 : index
    %c0_228 = arith.constant 0 : index
    %150 = vector.load %arg13[%c680_227, %c0_228] : memref<1568x32xbf16, #tpu.memory_space<vmem>>, vector<48x32xbf16>
    %c192_229 = arith.constant 192 : index
    %c352_230 = arith.constant 352 : index
    %151 = vector.load %arg14[%c192_229, %c352_230] : memref<288x512xbf16, #tpu.memory_space<vmem>>, vector<48x32xbf16>
    tpu.vector_store %arg14[%c192_229, %c352_230], %150 {strides = array<i32>} : memref<288x512xbf16, #tpu.memory_space<vmem>>, vector<48x32xbf16>,
    %c736 = arith.constant 736 : index
    %c0_231 = arith.constant 0 : index
    %152 = vector.load %arg13[%c736, %c0_231] : memref<1568x32xbf16, #tpu.memory_space<vmem>>, vector<48x32xbf16>
    %c240_232 = arith.constant 240 : index
    %c352_233 = arith.constant 352 : index
    %153 = vector.load %arg14[%c240_232, %c352_233] : memref<288x512xbf16, #tpu.memory_space<vmem>>, vector<48x32xbf16>
    tpu.vector_store %arg14[%c240_232, %c352_233], %152 {strides = array<i32>} : memref<288x512xbf16, #tpu.memory_space<vmem>>, vector<48x32xbf16>,
    %c840_234 = arith.constant 840 : index
    %c0_235 = arith.constant 0 : index
    %154 = vector.load %arg13[%c840_234, %c0_235] : memref<1568x32xbf16, #tpu.memory_space<vmem>>, vector<48x32xbf16>
    %c0_236 = arith.constant 0 : index
    %c384 = arith.constant 384 : index
    %155 = vector.load %arg14[%c0_236, %c384] : memref<288x512xbf16, #tpu.memory_space<vmem>>, vector<48x32xbf16>
    tpu.vector_store %arg14[%c0_236, %c384], %154 {strides = array<i32>} : memref<288x512xbf16, #tpu.memory_space<vmem>>, vector<48x32xbf16>,
    %c896_237 = arith.constant 896 : index
    %c0_238 = arith.constant 0 : index
    %156 = vector.load %arg13[%c896_237, %c0_238] : memref<1568x32xbf16, #tpu.memory_space<vmem>>, vector<48x32xbf16>
    %c48_239 = arith.constant 48 : index
    %c384_240 = arith.constant 384 : index
    %157 = vector.load %arg14[%c48_239, %c384_240] : memref<288x512xbf16, #tpu.memory_space<vmem>>, vector<48x32xbf16>
    tpu.vector_store %arg14[%c48_239, %c384_240], %156 {strides = array<i32>} : memref<288x512xbf16, #tpu.memory_space<vmem>>, vector<48x32xbf16>,
    %c952_241 = arith.constant 952 : index
    %c0_242 = arith.constant 0 : index
    %158 = vector.load %arg13[%c952_241, %c0_242] : memref<1568x32xbf16, #tpu.memory_space<vmem>>, vector<48x32xbf16>
    %c96_243 = arith.constant 96 : index
    %c384_244 = arith.constant 384 : index
    %159 = vector.load %arg14[%c96_243, %c384_244] : memref<288x512xbf16, #tpu.memory_space<vmem>>, vector<48x32xbf16>
    tpu.vector_store %arg14[%c96_243, %c384_244], %158 {strides = array<i32>} : memref<288x512xbf16, #tpu.memory_space<vmem>>, vector<48x32xbf16>,
    %c1008_245 = arith.constant 1008 : index
    %c0_246 = arith.constant 0 : index
    %160 = vector.load %arg13[%c1008_245, %c0_246] : memref<1568x32xbf16, #tpu.memory_space<vmem>>, vector<48x32xbf16>
    %c144_247 = arith.constant 144 : index
    %c384_248 = arith.constant 384 : index
    %161 = vector.load %arg14[%c144_247, %c384_248] : memref<288x512xbf16, #tpu.memory_space<vmem>>, vector<48x32xbf16>
    tpu.vector_store %arg14[%c144_247, %c384_248], %160 {strides = array<i32>} : memref<288x512xbf16, #tpu.memory_space<vmem>>, vector<48x32xbf16>,
    %c1064_249 = arith.constant 1064 : index
    %c0_250 = arith.constant 0 : index
    %162 = vector.load %arg13[%c1064_249, %c0_250] : memref<1568x32xbf16, #tpu.memory_space<vmem>>, vector<48x32xbf16>
    %c192_251 = arith.constant 192 : index
    %c384_252 = arith.constant 384 : index
    %163 = vector.load %arg14[%c192_251, %c384_252] : memref<288x512xbf16, #tpu.memory_space<vmem>>, vector<48x32xbf16>
    tpu.vector_store %arg14[%c192_251, %c384_252], %162 {strides = array<i32>} : memref<288x512xbf16, #tpu.memory_space<vmem>>, vector<48x32xbf16>,
    %c1120 = arith.constant 1120 : index
    %c0_253 = arith.constant 0 : index
    %164 = vector.load %arg13[%c1120, %c0_253] : memref<1568x32xbf16, #tpu.memory_space<vmem>>, vector<48x32xbf16>
    %c240_254 = arith.constant 240 : index
    %c384_255 = arith.constant 384 : index
    %165 = vector.load %arg14[%c240_254, %c384_255] : memref<288x512xbf16, #tpu.memory_space<vmem>>, vector<48x32xbf16>
    tpu.vector_store %arg14[%c240_254, %c384_255], %164 {strides = array<i32>} : memref<288x512xbf16, #tpu.memory_space<vmem>>, vector<48x32xbf16>,
    %c1232_256 = arith.constant 1232 : index
    %c0_257 = arith.constant 0 : index
    %166 = vector.load %arg13[%c1232_256, %c0_257] : memref<1568x32xbf16, #tpu.memory_space<vmem>>, vector<48x32xbf16>
    %c0_258 = arith.constant 0 : index
    %c416 = arith.constant 416 : index
    %167 = vector.load %arg14[%c0_258, %c416] : memref<288x512xbf16, #tpu.memory_space<vmem>>, vector<48x32xbf16>
    tpu.vector_store %arg14[%c0_258, %c416], %166 {strides = array<i32>} : memref<288x512xbf16, #tpu.memory_space<vmem>>, vector<48x32xbf16>,
    %c1288_259 = arith.constant 1288 : index
    %c0_260 = arith.constant 0 : index
    %168 = vector.load %arg13[%c1288_259, %c0_260] : memref<1568x32xbf16, #tpu.memory_space<vmem>>, vector<48x32xbf16>
    %c48_261 = arith.constant 48 : index
    %c416_262 = arith.constant 416 : index
    %169 = vector.load %arg14[%c48_261, %c416_262] : memref<288x512xbf16, #tpu.memory_space<vmem>>, vector<48x32xbf16>
    tpu.vector_store %arg14[%c48_261, %c416_262], %168 {strides = array<i32>} : memref<288x512xbf16, #tpu.memory_space<vmem>>, vector<48x32xbf16>,
    %c1344_263 = arith.constant 1344 : index
    %c0_264 = arith.constant 0 : index
    %170 = vector.load %arg13[%c1344_263, %c0_264] : memref<1568x32xbf16, #tpu.memory_space<vmem>>, vector<48x32xbf16>
    %c96_265 = arith.constant 96 : index
    %c416_266 = arith.constant 416 : index
    %171 = vector.load %arg14[%c96_265, %c416_266] : memref<288x512xbf16, #tpu.memory_space<vmem>>, vector<48x32xbf16>
    tpu.vector_store %arg14[%c96_265, %c416_266], %170 {strides = array<i32>} : memref<288x512xbf16, #tpu.memory_space<vmem>>, vector<48x32xbf16>,
    %c1400_267 = arith.constant 1400 : index
    %c0_268 = arith.constant 0 : index
    %172 = vector.load %arg13[%c1400_267, %c0_268] : memref<1568x32xbf16, #tpu.memory_space<vmem>>, vector<48x32xbf16>
    %c144_269 = arith.constant 144 : index
    %c416_270 = arith.constant 416 : index
    %173 = vector.load %arg14[%c144_269, %c416_270] : memref<288x512xbf16, #tpu.memory_space<vmem>>, vector<48x32xbf16>
    tpu.vector_store %arg14[%c144_269, %c416_270], %172 {strides = array<i32>} : memref<288x512xbf16, #tpu.memory_space<vmem>>, vector<48x32xbf16>,
    %c1456_271 = arith.constant 1456 : index
    %c0_272 = arith.constant 0 : index
    %174 = vector.load %arg13[%c1456_271, %c0_272] : memref<1568x32xbf16, #tpu.memory_space<vmem>>, vector<48x32xbf16>
    %c192_273 = arith.constant 192 : index
    %c416_274 = arith.constant 416 : index
    %175 = vector.load %arg14[%c192_273, %c416_274] : memref<288x512xbf16, #tpu.memory_space<vmem>>, vector<48x32xbf16>
    tpu.vector_store %arg14[%c192_273, %c416_274], %174 {strides = array<i32>} : memref<288x512xbf16, #tpu.memory_space<vmem>>, vector<48x32xbf16>,
    %c1512 = arith.constant 1512 : index
    %c0_275 = arith.constant 0 : index
    %176 = vector.load %arg13[%c1512, %c0_275] : memref<1568x32xbf16, #tpu.memory_space<vmem>>, vector<48x32xbf16>
    %c240_276 = arith.constant 240 : index
    %c416_277 = arith.constant 416 : index
    %177 = vector.load %arg14[%c240_276, %c416_277] : memref<288x512xbf16, #tpu.memory_space<vmem>>, vector<48x32xbf16>
    tpu.vector_store %arg14[%c240_276, %c416_277], %176 {strides = array<i32>} : memref<288x512xbf16, #tpu.memory_space<vmem>>, vector<48x32xbf16>,
    %c848_278 = arith.constant 848 : index
    %c0_279 = arith.constant 0 : index
    %178 = vector.load %arg13[%c848_278, %c0_279] : memref<1568x32xbf16, #tpu.memory_space<vmem>>, vector<48x32xbf16>
    %c0_280 = arith.constant 0 : index
    %c448_281 = arith.constant 448 : index
    %179 = vector.load %arg14[%c0_280, %c448_281] : memref<288x512xbf16, #tpu.memory_space<vmem>>, vector<48x32xbf16>
    tpu.vector_store %arg14[%c0_280, %c448_281], %178 {strides = array<i32>} : memref<288x512xbf16, #tpu.memory_space<vmem>>, vector<48x32xbf16>,
    %c904_282 = arith.constant 904 : index
    %c0_283 = arith.constant 0 : index
    %180 = vector.load %arg13[%c904_282, %c0_283] : memref<1568x32xbf16, #tpu.memory_space<vmem>>, vector<48x32xbf16>
    %c48_284 = arith.constant 48 : index
    %c448_285 = arith.constant 448 : index
    %181 = vector.load %arg14[%c48_284, %c448_285] : memref<288x512xbf16, #tpu.memory_space<vmem>>, vector<48x32xbf16>
    tpu.vector_store %arg14[%c48_284, %c448_285], %180 {strides = array<i32>} : memref<288x512xbf16, #tpu.memory_space<vmem>>, vector<48x32xbf16>,
    %c960_286 = arith.constant 960 : index
    %c0_287 = arith.constant 0 : index
    %182 = vector.load %arg13[%c960_286, %c0_287] : memref<1568x32xbf16, #tpu.memory_space<vmem>>, vector<48x32xbf16>
    %c96_288 = arith.constant 96 : index
    %c448_289 = arith.constant 448 : index
    %183 = vector.load %arg14[%c96_288, %c448_289] : memref<288x512xbf16, #tpu.memory_space<vmem>>, vector<48x32xbf16>
    tpu.vector_store %arg14[%c96_288, %c448_289], %182 {strides = array<i32>} : memref<288x512xbf16, #tpu.memory_space<vmem>>, vector<48x32xbf16>,
    %c1016_290 = arith.constant 1016 : index
    %c0_291 = arith.constant 0 : index
    %184 = vector.load %arg13[%c1016_290, %c0_291] : memref<1568x32xbf16, #tpu.memory_space<vmem>>, vector<48x32xbf16>
    %c144_292 = arith.constant 144 : index
    %c448_293 = arith.constant 448 : index
    %185 = vector.load %arg14[%c144_292, %c448_293] : memref<288x512xbf16, #tpu.memory_space<vmem>>, vector<48x32xbf16>
    tpu.vector_store %arg14[%c144_292, %c448_293], %184 {strides = array<i32>} : memref<288x512xbf16, #tpu.memory_space<vmem>>, vector<48x32xbf16>,
    %c1072_294 = arith.constant 1072 : index
    %c0_295 = arith.constant 0 : index
    %186 = vector.load %arg13[%c1072_294, %c0_295] : memref<1568x32xbf16, #tpu.memory_space<vmem>>, vector<48x32xbf16>
    %c192_296 = arith.constant 192 : index
    %c448_297 = arith.constant 448 : index
    %187 = vector.load %arg14[%c192_296, %c448_297] : memref<288x512xbf16, #tpu.memory_space<vmem>>, vector<48x32xbf16>
    tpu.vector_store %arg14[%c192_296, %c448_297], %186 {strides = array<i32>} : memref<288x512xbf16, #tpu.memory_space<vmem>>, vector<48x32xbf16>,
    %c1128 = arith.constant 1128 : index
    %c0_298 = arith.constant 0 : index
    %188 = vector.load %arg13[%c1128, %c0_298] : memref<1568x32xbf16, #tpu.memory_space<vmem>>, vector<48x32xbf16>
    %c240_299 = arith.constant 240 : index
    %c448_300 = arith.constant 448 : index
    %189 = vector.load %arg14[%c240_299, %c448_300] : memref<288x512xbf16, #tpu.memory_space<vmem>>, vector<48x32xbf16>
    tpu.vector_store %arg14[%c240_299, %c448_300], %188 {strides = array<i32>} : memref<288x512xbf16, #tpu.memory_space<vmem>>, vector<48x32xbf16>,
    %c1240_301 = arith.constant 1240 : index
    %c0_302 = arith.constant 0 : index
    %190 = vector.load %arg13[%c1240_301, %c0_302] : memref<1568x32xbf16, #tpu.memory_space<vmem>>, vector<48x32xbf16>
    %c0_303 = arith.constant 0 : index
    %c480 = arith.constant 480 : index
    %191 = vector.load %arg14[%c0_303, %c480] : memref<288x512xbf16, #tpu.memory_space<vmem>>, vector<48x32xbf16>
    tpu.vector_store %arg14[%c0_303, %c480], %190 {strides = array<i32>} : memref<288x512xbf16, #tpu.memory_space<vmem>>, vector<48x32xbf16>,
    %c1296_304 = arith.constant 1296 : index
    %c0_305 = arith.constant 0 : index
    %192 = vector.load %arg13[%c1296_304, %c0_305] : memref<1568x32xbf16, #tpu.memory_space<vmem>>, vector<48x32xbf16>
    %c48_306 = arith.constant 48 : index
    %c480_307 = arith.constant 480 : index
    %193 = vector.load %arg14[%c48_306, %c480_307] : memref<288x512xbf16, #tpu.memory_space<vmem>>, vector<48x32xbf16>
    tpu.vector_store %arg14[%c48_306, %c480_307], %192 {strides = array<i32>} : memref<288x512xbf16, #tpu.memory_space<vmem>>, vector<48x32xbf16>,
    %c1352_308 = arith.constant 1352 : index
    %c0_309 = arith.constant 0 : index
    %194 = vector.load %arg13[%c1352_308, %c0_309] : memref<1568x32xbf16, #tpu.memory_space<vmem>>, vector<48x32xbf16>
    %c96_310 = arith.constant 96 : index
    %c480_311 = arith.constant 480 : index
    %195 = vector.load %arg14[%c96_310, %c480_311] : memref<288x512xbf16, #tpu.memory_space<vmem>>, vector<48x32xbf16>
    tpu.vector_store %arg14[%c96_310, %c480_311], %194 {strides = array<i32>} : memref<288x512xbf16, #tpu.memory_space<vmem>>, vector<48x32xbf16>,
    %c1408_312 = arith.constant 1408 : index
    %c0_313 = arith.constant 0 : index
    %196 = vector.load %arg13[%c1408_312, %c0_313] : memref<1568x32xbf16, #tpu.memory_space<vmem>>, vector<48x32xbf16>
    %c144_314 = arith.constant 144 : index
    %c480_315 = arith.constant 480 : index
    %197 = vector.load %arg14[%c144_314, %c480_315] : memref<288x512xbf16, #tpu.memory_space<vmem>>, vector<48x32xbf16>
    tpu.vector_store %arg14[%c144_314, %c480_315], %196 {strides = array<i32>} : memref<288x512xbf16, #tpu.memory_space<vmem>>, vector<48x32xbf16>,
    %c1464_316 = arith.constant 1464 : index
    %c0_317 = arith.constant 0 : index
    %198 = vector.load %arg13[%c1464_316, %c0_317] : memref<1568x32xbf16, #tpu.memory_space<vmem>>, vector<48x32xbf16>
    %c192_318 = arith.constant 192 : index
    %c480_319 = arith.constant 480 : index
    %199 = vector.load %arg14[%c192_318, %c480_319] : memref<288x512xbf16, #tpu.memory_space<vmem>>, vector<48x32xbf16>
    tpu.vector_store %arg14[%c192_318, %c480_319], %198 {strides = array<i32>} : memref<288x512xbf16, #tpu.memory_space<vmem>>, vector<48x32xbf16>,
    %c1520 = arith.constant 1520 : index
    %c0_320 = arith.constant 0 : index
    %200 = vector.load %arg13[%c1520, %c0_320] : memref<1568x32xbf16, #tpu.memory_space<vmem>>, vector<48x32xbf16>
    %c240_321 = arith.constant 240 : index
    %c480_322 = arith.constant 480 : index
    %201 = vector.load %arg14[%c240_321, %c480_322] : memref<288x512xbf16, #tpu.memory_space<vmem>>, vector<48x32xbf16>
    tpu.vector_store %arg14[%c240_321, %c480_322], %200 {strides = array<i32>} : memref<288x512xbf16, #tpu.memory_space<vmem>>, vector<48x32xbf16>,
    %c0_323 = arith.constant 0 : index
    %c0_324 = arith.constant 0 : index
    %202 = vector.load %arg14[%c0_323, %c0_324] : memref<288x512xbf16, #tpu.memory_space<vmem>>, vector<288x512xbf16>
    %c0_325 = arith.constant 0 : index
    %c0_326 = arith.constant 0 : index
    %203 = vector.load %arg4[%c0_325, %c0_326] : memref<512x64xbf16, #tpu.memory_space<vmem>>, vector<512x64xbf16>
    %cst_327 = arith.constant dense<0.000000e+00> : vector<288x64xf32>
    %204 = tpu.matmul %202, %203, %cst_327 {dimension_numbers = #tpu.dot_dimension_numbers<[1], [0], [0], [1], [0, 0, 1, 1], [], []>} : vector<288x512xbf16>, vector<512x64xbf16>, vector<288x64xf32> -> vector<288x64xf32>
    %c0_328 = arith.constant 0 : index
    %c0_329 = arith.constant 0 : index
    %205 = vector.load %arg5[%c0_328, %c0_329] : memref<1x64xf32, #tpu.memory_space<vmem>>, vector<1x64xf32>
    %206 = vector.broadcast %205 : vector<1x64xf32> to vector<288x64xf32>
    %207 = arith.addf %204, %206 : vector<288x64xf32>
    %cst_330 = arith.constant 0.000000e+00 : f32
    %208 = vector.broadcast %cst_330 : f32 to vector<288x64xf32>
    %209 = arith.maximumf %207, %208 : vector<288x64xf32>
    %210 = arith.truncf %209 : vector<288x64xf32> to vector<288x64xbf16>
    %c0_331 = arith.constant 0 : index
    %c0_332 = arith.constant 0 : index
    %211 = vector.load %arg15[%c0_331, %c0_332] : memref<288x64xbf16, #tpu.memory_space<vmem>>, vector<288x64xbf16>
    tpu.vector_store %arg15[%c0_331, %c0_332], %210 {strides = array<i32>} : memref<288x64xbf16, #tpu.memory_space<vmem>>, vector<288x64xbf16>,
    %c0_333 = arith.constant 0 : index
    %c0_334 = arith.constant 0 : index
    %212 = vector.load %arg15[%c0_333, %c0_334] : memref<288x64xbf16, #tpu.memory_space<vmem>>, vector<32x64xbf16>
    %c0_335 = arith.constant 0 : index
    %c0_336 = arith.constant 0 : index
    %213 = vector.load %arg16[%c0_335, %c0_336] : memref<128x576xbf16, #tpu.memory_space<vmem>>, vector<32x64xbf16>
    tpu.vector_store %arg16[%c0_335, %c0_336], %212 {strides = array<i32>} : memref<128x576xbf16, #tpu.memory_space<vmem>>, vector<32x64xbf16>,
    %c48_337 = arith.constant 48 : index
    %c0_338 = arith.constant 0 : index
    %214 = vector.load %arg15[%c48_337, %c0_338] : memref<288x64xbf16, #tpu.memory_space<vmem>>, vector<32x64xbf16>
    %c32_339 = arith.constant 32 : index
    %c0_340 = arith.constant 0 : index
    %215 = vector.load %arg16[%c32_339, %c0_340] : memref<128x576xbf16, #tpu.memory_space<vmem>>, vector<32x64xbf16>
    tpu.vector_store %arg16[%c32_339, %c0_340], %214 {strides = array<i32>} : memref<128x576xbf16, #tpu.memory_space<vmem>>, vector<32x64xbf16>,
    %c96_341 = arith.constant 96 : index
    %c0_342 = arith.constant 0 : index
    %216 = vector.load %arg15[%c96_341, %c0_342] : memref<288x64xbf16, #tpu.memory_space<vmem>>, vector<32x64xbf16>
    %c64_343 = arith.constant 64 : index
    %c0_344 = arith.constant 0 : index
    %217 = vector.load %arg16[%c64_343, %c0_344] : memref<128x576xbf16, #tpu.memory_space<vmem>>, vector<32x64xbf16>
    tpu.vector_store %arg16[%c64_343, %c0_344], %216 {strides = array<i32>} : memref<128x576xbf16, #tpu.memory_space<vmem>>, vector<32x64xbf16>,
    %c144_345 = arith.constant 144 : index
    %c0_346 = arith.constant 0 : index
    %218 = vector.load %arg15[%c144_345, %c0_346] : memref<288x64xbf16, #tpu.memory_space<vmem>>, vector<32x64xbf16>
    %c96_347 = arith.constant 96 : index
    %c0_348 = arith.constant 0 : index
    %219 = vector.load %arg16[%c96_347, %c0_348] : memref<128x576xbf16, #tpu.memory_space<vmem>>, vector<32x64xbf16>
    tpu.vector_store %arg16[%c96_347, %c0_348], %218 {strides = array<i32>} : memref<128x576xbf16, #tpu.memory_space<vmem>>, vector<32x64xbf16>,
    %c8_349 = arith.constant 8 : index
    %c0_350 = arith.constant 0 : index
    %220 = vector.load %arg15[%c8_349, %c0_350] : memref<288x64xbf16, #tpu.memory_space<vmem>>, vector<32x64xbf16>
    %c0_351 = arith.constant 0 : index
    %c64_352 = arith.constant 64 : index
    %221 = vector.load %arg16[%c0_351, %c64_352] : memref<128x576xbf16, #tpu.memory_space<vmem>>, vector<32x64xbf16>
    tpu.vector_store %arg16[%c0_351, %c64_352], %220 {strides = array<i32>} : memref<128x576xbf16, #tpu.memory_space<vmem>>, vector<32x64xbf16>,
    %c56_353 = arith.constant 56 : index
    %c0_354 = arith.constant 0 : index
    %222 = vector.load %arg15[%c56_353, %c0_354] : memref<288x64xbf16, #tpu.memory_space<vmem>>, vector<32x64xbf16>
    %c32_355 = arith.constant 32 : index
    %c64_356 = arith.constant 64 : index
    %223 = vector.load %arg16[%c32_355, %c64_356] : memref<128x576xbf16, #tpu.memory_space<vmem>>, vector<32x64xbf16>
    tpu.vector_store %arg16[%c32_355, %c64_356], %222 {strides = array<i32>} : memref<128x576xbf16, #tpu.memory_space<vmem>>, vector<32x64xbf16>,
    %c104 = arith.constant 104 : index
    %c0_357 = arith.constant 0 : index
    %224 = vector.load %arg15[%c104, %c0_357] : memref<288x64xbf16, #tpu.memory_space<vmem>>, vector<32x64xbf16>
    %c64_358 = arith.constant 64 : index
    %c64_359 = arith.constant 64 : index
    %225 = vector.load %arg16[%c64_358, %c64_359] : memref<128x576xbf16, #tpu.memory_space<vmem>>, vector<32x64xbf16>
    tpu.vector_store %arg16[%c64_358, %c64_359], %224 {strides = array<i32>} : memref<128x576xbf16, #tpu.memory_space<vmem>>, vector<32x64xbf16>,
    %c152 = arith.constant 152 : index
    %c0_360 = arith.constant 0 : index
    %226 = vector.load %arg15[%c152, %c0_360] : memref<288x64xbf16, #tpu.memory_space<vmem>>, vector<32x64xbf16>
    %c96_361 = arith.constant 96 : index
    %c64_362 = arith.constant 64 : index
    %227 = vector.load %arg16[%c96_361, %c64_362] : memref<128x576xbf16, #tpu.memory_space<vmem>>, vector<32x64xbf16>
    tpu.vector_store %arg16[%c96_361, %c64_362], %226 {strides = array<i32>} : memref<128x576xbf16, #tpu.memory_space<vmem>>, vector<32x64xbf16>,
    %c16 = arith.constant 16 : index
    %c0_363 = arith.constant 0 : index
    %228 = vector.load %arg15[%c16, %c0_363] : memref<288x64xbf16, #tpu.memory_space<vmem>>, vector<32x64xbf16>
    %c0_364 = arith.constant 0 : index
    %c128_365 = arith.constant 128 : index
    %229 = vector.load %arg16[%c0_364, %c128_365] : memref<128x576xbf16, #tpu.memory_space<vmem>>, vector<32x64xbf16>
    tpu.vector_store %arg16[%c0_364, %c128_365], %228 {strides = array<i32>} : memref<128x576xbf16, #tpu.memory_space<vmem>>, vector<32x64xbf16>,
    %c64_366 = arith.constant 64 : index
    %c0_367 = arith.constant 0 : index
    %230 = vector.load %arg15[%c64_366, %c0_367] : memref<288x64xbf16, #tpu.memory_space<vmem>>, vector<32x64xbf16>
    %c32_368 = arith.constant 32 : index
    %c128_369 = arith.constant 128 : index
    %231 = vector.load %arg16[%c32_368, %c128_369] : memref<128x576xbf16, #tpu.memory_space<vmem>>, vector<32x64xbf16>
    tpu.vector_store %arg16[%c32_368, %c128_369], %230 {strides = array<i32>} : memref<128x576xbf16, #tpu.memory_space<vmem>>, vector<32x64xbf16>,
    %c112_370 = arith.constant 112 : index
    %c0_371 = arith.constant 0 : index
    %232 = vector.load %arg15[%c112_370, %c0_371] : memref<288x64xbf16, #tpu.memory_space<vmem>>, vector<32x64xbf16>
    %c64_372 = arith.constant 64 : index
    %c128_373 = arith.constant 128 : index
    %233 = vector.load %arg16[%c64_372, %c128_373] : memref<128x576xbf16, #tpu.memory_space<vmem>>, vector<32x64xbf16>
    tpu.vector_store %arg16[%c64_372, %c128_373], %232 {strides = array<i32>} : memref<128x576xbf16, #tpu.memory_space<vmem>>, vector<32x64xbf16>,
    %c160_374 = arith.constant 160 : index
    %c0_375 = arith.constant 0 : index
    %234 = vector.load %arg15[%c160_374, %c0_375] : memref<288x64xbf16, #tpu.memory_space<vmem>>, vector<32x64xbf16>
    %c96_376 = arith.constant 96 : index
    %c128_377 = arith.constant 128 : index
    %235 = vector.load %arg16[%c96_376, %c128_377] : memref<128x576xbf16, #tpu.memory_space<vmem>>, vector<32x64xbf16>
    tpu.vector_store %arg16[%c96_376, %c128_377], %234 {strides = array<i32>} : memref<128x576xbf16, #tpu.memory_space<vmem>>, vector<32x64xbf16>,
    %c48_378 = arith.constant 48 : index
    %c0_379 = arith.constant 0 : index
    %236 = vector.load %arg15[%c48_378, %c0_379] : memref<288x64xbf16, #tpu.memory_space<vmem>>, vector<32x64xbf16>
    %c0_380 = arith.constant 0 : index
    %c192_381 = arith.constant 192 : index
    %237 = vector.load %arg16[%c0_380, %c192_381] : memref<128x576xbf16, #tpu.memory_space<vmem>>, vector<32x64xbf16>
    tpu.vector_store %arg16[%c0_380, %c192_381], %236 {strides = array<i32>} : memref<128x576xbf16, #tpu.memory_space<vmem>>, vector<32x64xbf16>,
    %c96_382 = arith.constant 96 : index
    %c0_383 = arith.constant 0 : index
    %238 = vector.load %arg15[%c96_382, %c0_383] : memref<288x64xbf16, #tpu.memory_space<vmem>>, vector<32x64xbf16>
    %c32_384 = arith.constant 32 : index
    %c192_385 = arith.constant 192 : index
    %239 = vector.load %arg16[%c32_384, %c192_385] : memref<128x576xbf16, #tpu.memory_space<vmem>>, vector<32x64xbf16>
    tpu.vector_store %arg16[%c32_384, %c192_385], %238 {strides = array<i32>} : memref<128x576xbf16, #tpu.memory_space<vmem>>, vector<32x64xbf16>,
    %c144_386 = arith.constant 144 : index
    %c0_387 = arith.constant 0 : index
    %240 = vector.load %arg15[%c144_386, %c0_387] : memref<288x64xbf16, #tpu.memory_space<vmem>>, vector<32x64xbf16>
    %c64_388 = arith.constant 64 : index
    %c192_389 = arith.constant 192 : index
    %241 = vector.load %arg16[%c64_388, %c192_389] : memref<128x576xbf16, #tpu.memory_space<vmem>>, vector<32x64xbf16>
    tpu.vector_store %arg16[%c64_388, %c192_389], %240 {strides = array<i32>} : memref<128x576xbf16, #tpu.memory_space<vmem>>, vector<32x64xbf16>,
    %c192_390 = arith.constant 192 : index
    %c0_391 = arith.constant 0 : index
    %242 = vector.load %arg15[%c192_390, %c0_391] : memref<288x64xbf16, #tpu.memory_space<vmem>>, vector<32x64xbf16>
    %c96_392 = arith.constant 96 : index
    %c192_393 = arith.constant 192 : index
    %243 = vector.load %arg16[%c96_392, %c192_393] : memref<128x576xbf16, #tpu.memory_space<vmem>>, vector<32x64xbf16>
    tpu.vector_store %arg16[%c96_392, %c192_393], %242 {strides = array<i32>} : memref<128x576xbf16, #tpu.memory_space<vmem>>, vector<32x64xbf16>,
    %c56_394 = arith.constant 56 : index
    %c0_395 = arith.constant 0 : index
    %244 = vector.load %arg15[%c56_394, %c0_395] : memref<288x64xbf16, #tpu.memory_space<vmem>>, vector<32x64xbf16>
    %c0_396 = arith.constant 0 : index
    %c256_397 = arith.constant 256 : index
    %245 = vector.load %arg16[%c0_396, %c256_397] : memref<128x576xbf16, #tpu.memory_space<vmem>>, vector<32x64xbf16>
    tpu.vector_store %arg16[%c0_396, %c256_397], %244 {strides = array<i32>} : memref<128x576xbf16, #tpu.memory_space<vmem>>, vector<32x64xbf16>,
    %c104_398 = arith.constant 104 : index
    %c0_399 = arith.constant 0 : index
    %246 = vector.load %arg15[%c104_398, %c0_399] : memref<288x64xbf16, #tpu.memory_space<vmem>>, vector<32x64xbf16>
    %c32_400 = arith.constant 32 : index
    %c256_401 = arith.constant 256 : index
    %247 = vector.load %arg16[%c32_400, %c256_401] : memref<128x576xbf16, #tpu.memory_space<vmem>>, vector<32x64xbf16>
    tpu.vector_store %arg16[%c32_400, %c256_401], %246 {strides = array<i32>} : memref<128x576xbf16, #tpu.memory_space<vmem>>, vector<32x64xbf16>,
    %c152_402 = arith.constant 152 : index
    %c0_403 = arith.constant 0 : index
    %248 = vector.load %arg15[%c152_402, %c0_403] : memref<288x64xbf16, #tpu.memory_space<vmem>>, vector<32x64xbf16>
    %c64_404 = arith.constant 64 : index
    %c256_405 = arith.constant 256 : index
    %249 = vector.load %arg16[%c64_404, %c256_405] : memref<128x576xbf16, #tpu.memory_space<vmem>>, vector<32x64xbf16>
    tpu.vector_store %arg16[%c64_404, %c256_405], %248 {strides = array<i32>} : memref<128x576xbf16, #tpu.memory_space<vmem>>, vector<32x64xbf16>,
    %c200 = arith.constant 200 : index
    %c0_406 = arith.constant 0 : index
    %250 = vector.load %arg15[%c200, %c0_406] : memref<288x64xbf16, #tpu.memory_space<vmem>>, vector<32x64xbf16>
    %c96_407 = arith.constant 96 : index
    %c256_408 = arith.constant 256 : index
    %251 = vector.load %arg16[%c96_407, %c256_408] : memref<128x576xbf16, #tpu.memory_space<vmem>>, vector<32x64xbf16>
    tpu.vector_store %arg16[%c96_407, %c256_408], %250 {strides = array<i32>} : memref<128x576xbf16, #tpu.memory_space<vmem>>, vector<32x64xbf16>,
    %c64_409 = arith.constant 64 : index
    %c0_410 = arith.constant 0 : index
    %252 = vector.load %arg15[%c64_409, %c0_410] : memref<288x64xbf16, #tpu.memory_space<vmem>>, vector<32x64xbf16>
    %c0_411 = arith.constant 0 : index
    %c320_412 = arith.constant 320 : index
    %253 = vector.load %arg16[%c0_411, %c320_412] : memref<128x576xbf16, #tpu.memory_space<vmem>>, vector<32x64xbf16>
    tpu.vector_store %arg16[%c0_411, %c320_412], %252 {strides = array<i32>} : memref<128x576xbf16, #tpu.memory_space<vmem>>, vector<32x64xbf16>,
    %c112_413 = arith.constant 112 : index
    %c0_414 = arith.constant 0 : index
    %254 = vector.load %arg15[%c112_413, %c0_414] : memref<288x64xbf16, #tpu.memory_space<vmem>>, vector<32x64xbf16>
    %c32_415 = arith.constant 32 : index
    %c320_416 = arith.constant 320 : index
    %255 = vector.load %arg16[%c32_415, %c320_416] : memref<128x576xbf16, #tpu.memory_space<vmem>>, vector<32x64xbf16>
    tpu.vector_store %arg16[%c32_415, %c320_416], %254 {strides = array<i32>} : memref<128x576xbf16, #tpu.memory_space<vmem>>, vector<32x64xbf16>,
    %c160_417 = arith.constant 160 : index
    %c0_418 = arith.constant 0 : index
    %256 = vector.load %arg15[%c160_417, %c0_418] : memref<288x64xbf16, #tpu.memory_space<vmem>>, vector<32x64xbf16>
    %c64_419 = arith.constant 64 : index
    %c320_420 = arith.constant 320 : index
    %257 = vector.load %arg16[%c64_419, %c320_420] : memref<128x576xbf16, #tpu.memory_space<vmem>>, vector<32x64xbf16>
    tpu.vector_store %arg16[%c64_419, %c320_420], %256 {strides = array<i32>} : memref<128x576xbf16, #tpu.memory_space<vmem>>, vector<32x64xbf16>,
    %c208 = arith.constant 208 : index
    %c0_421 = arith.constant 0 : index
    %258 = vector.load %arg15[%c208, %c0_421] : memref<288x64xbf16, #tpu.memory_space<vmem>>, vector<32x64xbf16>
    %c96_422 = arith.constant 96 : index
    %c320_423 = arith.constant 320 : index
    %259 = vector.load %arg16[%c96_422, %c320_423] : memref<128x576xbf16, #tpu.memory_space<vmem>>, vector<32x64xbf16>
    tpu.vector_store %arg16[%c96_422, %c320_423], %258 {strides = array<i32>} : memref<128x576xbf16, #tpu.memory_space<vmem>>, vector<32x64xbf16>,
    %c96_424 = arith.constant 96 : index
    %c0_425 = arith.constant 0 : index
    %260 = vector.load %arg15[%c96_424, %c0_425] : memref<288x64xbf16, #tpu.memory_space<vmem>>, vector<32x64xbf16>
    %c0_426 = arith.constant 0 : index
    %c384_427 = arith.constant 384 : index
    %261 = vector.load %arg16[%c0_426, %c384_427] : memref<128x576xbf16, #tpu.memory_space<vmem>>, vector<32x64xbf16>
    tpu.vector_store %arg16[%c0_426, %c384_427], %260 {strides = array<i32>} : memref<128x576xbf16, #tpu.memory_space<vmem>>, vector<32x64xbf16>,
    %c144_428 = arith.constant 144 : index
    %c0_429 = arith.constant 0 : index
    %262 = vector.load %arg15[%c144_428, %c0_429] : memref<288x64xbf16, #tpu.memory_space<vmem>>, vector<32x64xbf16>
    %c32_430 = arith.constant 32 : index
    %c384_431 = arith.constant 384 : index
    %263 = vector.load %arg16[%c32_430, %c384_431] : memref<128x576xbf16, #tpu.memory_space<vmem>>, vector<32x64xbf16>
    tpu.vector_store %arg16[%c32_430, %c384_431], %262 {strides = array<i32>} : memref<128x576xbf16, #tpu.memory_space<vmem>>, vector<32x64xbf16>,
    %c192_432 = arith.constant 192 : index
    %c0_433 = arith.constant 0 : index
    %264 = vector.load %arg15[%c192_432, %c0_433] : memref<288x64xbf16, #tpu.memory_space<vmem>>, vector<32x64xbf16>
    %c64_434 = arith.constant 64 : index
    %c384_435 = arith.constant 384 : index
    %265 = vector.load %arg16[%c64_434, %c384_435] : memref<128x576xbf16, #tpu.memory_space<vmem>>, vector<32x64xbf16>
    tpu.vector_store %arg16[%c64_434, %c384_435], %264 {strides = array<i32>} : memref<128x576xbf16, #tpu.memory_space<vmem>>, vector<32x64xbf16>,
    %c240_436 = arith.constant 240 : index
    %c0_437 = arith.constant 0 : index
    %266 = vector.load %arg15[%c240_436, %c0_437] : memref<288x64xbf16, #tpu.memory_space<vmem>>, vector<32x64xbf16>
    %c96_438 = arith.constant 96 : index
    %c384_439 = arith.constant 384 : index
    %267 = vector.load %arg16[%c96_438, %c384_439] : memref<128x576xbf16, #tpu.memory_space<vmem>>, vector<32x64xbf16>
    tpu.vector_store %arg16[%c96_438, %c384_439], %266 {strides = array<i32>} : memref<128x576xbf16, #tpu.memory_space<vmem>>, vector<32x64xbf16>,
    %c104_440 = arith.constant 104 : index
    %c0_441 = arith.constant 0 : index
    %268 = vector.load %arg15[%c104_440, %c0_441] : memref<288x64xbf16, #tpu.memory_space<vmem>>, vector<32x64xbf16>
    %c0_442 = arith.constant 0 : index
    %c448_443 = arith.constant 448 : index
    %269 = vector.load %arg16[%c0_442, %c448_443] : memref<128x576xbf16, #tpu.memory_space<vmem>>, vector<32x64xbf16>
    tpu.vector_store %arg16[%c0_442, %c448_443], %268 {strides = array<i32>} : memref<128x576xbf16, #tpu.memory_space<vmem>>, vector<32x64xbf16>,
    %c152_444 = arith.constant 152 : index
    %c0_445 = arith.constant 0 : index
    %270 = vector.load %arg15[%c152_444, %c0_445] : memref<288x64xbf16, #tpu.memory_space<vmem>>, vector<32x64xbf16>
    %c32_446 = arith.constant 32 : index
    %c448_447 = arith.constant 448 : index
    %271 = vector.load %arg16[%c32_446, %c448_447] : memref<128x576xbf16, #tpu.memory_space<vmem>>, vector<32x64xbf16>
    tpu.vector_store %arg16[%c32_446, %c448_447], %270 {strides = array<i32>} : memref<128x576xbf16, #tpu.memory_space<vmem>>, vector<32x64xbf16>,
    %c200_448 = arith.constant 200 : index
    %c0_449 = arith.constant 0 : index
    %272 = vector.load %arg15[%c200_448, %c0_449] : memref<288x64xbf16, #tpu.memory_space<vmem>>, vector<32x64xbf16>
    %c64_450 = arith.constant 64 : index
    %c448_451 = arith.constant 448 : index
    %273 = vector.load %arg16[%c64_450, %c448_451] : memref<128x576xbf16, #tpu.memory_space<vmem>>, vector<32x64xbf16>
    tpu.vector_store %arg16[%c64_450, %c448_451], %272 {strides = array<i32>} : memref<128x576xbf16, #tpu.memory_space<vmem>>, vector<32x64xbf16>,
    %c248 = arith.constant 248 : index
    %c0_452 = arith.constant 0 : index
    %274 = vector.load %arg15[%c248, %c0_452] : memref<288x64xbf16, #tpu.memory_space<vmem>>, vector<32x64xbf16>
    %c96_453 = arith.constant 96 : index
    %c448_454 = arith.constant 448 : index
    %275 = vector.load %arg16[%c96_453, %c448_454] : memref<128x576xbf16, #tpu.memory_space<vmem>>, vector<32x64xbf16>
    tpu.vector_store %arg16[%c96_453, %c448_454], %274 {strides = array<i32>} : memref<128x576xbf16, #tpu.memory_space<vmem>>, vector<32x64xbf16>,
    %c112_455 = arith.constant 112 : index
    %c0_456 = arith.constant 0 : index
    %276 = vector.load %arg15[%c112_455, %c0_456] : memref<288x64xbf16, #tpu.memory_space<vmem>>, vector<32x64xbf16>
    %c0_457 = arith.constant 0 : index
    %c512_458 = arith.constant 512 : index
    %277 = vector.load %arg16[%c0_457, %c512_458] : memref<128x576xbf16, #tpu.memory_space<vmem>>, vector<32x64xbf16>
    tpu.vector_store %arg16[%c0_457, %c512_458], %276 {strides = array<i32>} : memref<128x576xbf16, #tpu.memory_space<vmem>>, vector<32x64xbf16>,
    %c160_459 = arith.constant 160 : index
    %c0_460 = arith.constant 0 : index
    %278 = vector.load %arg15[%c160_459, %c0_460] : memref<288x64xbf16, #tpu.memory_space<vmem>>, vector<32x64xbf16>
    %c32_461 = arith.constant 32 : index
    %c512_462 = arith.constant 512 : index
    %279 = vector.load %arg16[%c32_461, %c512_462] : memref<128x576xbf16, #tpu.memory_space<vmem>>, vector<32x64xbf16>
    tpu.vector_store %arg16[%c32_461, %c512_462], %278 {strides = array<i32>} : memref<128x576xbf16, #tpu.memory_space<vmem>>, vector<32x64xbf16>,
    %c208_463 = arith.constant 208 : index
    %c0_464 = arith.constant 0 : index
    %280 = vector.load %arg15[%c208_463, %c0_464] : memref<288x64xbf16, #tpu.memory_space<vmem>>, vector<32x64xbf16>
    %c64_465 = arith.constant 64 : index
    %c512_466 = arith.constant 512 : index
    %281 = vector.load %arg16[%c64_465, %c512_466] : memref<128x576xbf16, #tpu.memory_space<vmem>>, vector<32x64xbf16>
    tpu.vector_store %arg16[%c64_465, %c512_466], %280 {strides = array<i32>} : memref<128x576xbf16, #tpu.memory_space<vmem>>, vector<32x64xbf16>,
    %c256_467 = arith.constant 256 : index
    %c0_468 = arith.constant 0 : index
    %282 = vector.load %arg15[%c256_467, %c0_468] : memref<288x64xbf16, #tpu.memory_space<vmem>>, vector<32x64xbf16>
    %c96_469 = arith.constant 96 : index
    %c512_470 = arith.constant 512 : index
    %283 = vector.load %arg16[%c96_469, %c512_470] : memref<128x576xbf16, #tpu.memory_space<vmem>>, vector<32x64xbf16>
    tpu.vector_store %arg16[%c96_469, %c512_470], %282 {strides = array<i32>} : memref<128x576xbf16, #tpu.memory_space<vmem>>, vector<32x64xbf16>,
    %c0_471 = arith.constant 0 : index
    %c0_472 = arith.constant 0 : index
    %284 = vector.load %arg16[%c0_471, %c0_472] : memref<128x576xbf16, #tpu.memory_space<vmem>>, vector<128x576xbf16>
    %c0_473 = arith.constant 0 : index
    %c0_474 = arith.constant 0 : index
    %285 = vector.load %arg6[%c0_473, %c0_474] : memref<576x32xbf16, #tpu.memory_space<vmem>>, vector<576x32xbf16>
    %cst_475 = arith.constant dense<0.000000e+00> : vector<128x32xf32>
    %286 = tpu.matmul %284, %285, %cst_475 {dimension_numbers = #tpu.dot_dimension_numbers<[1], [0], [0], [1], [0, 0, 1, 1], [], []>} : vector<128x576xbf16>, vector<576x32xbf16>, vector<128x32xf32> -> vector<128x32xf32>
    %c0_476 = arith.constant 0 : index
    %c0_477 = arith.constant 0 : index
    %287 = vector.load %arg7[%c0_476, %c0_477] : memref<1x32xf32, #tpu.memory_space<vmem>>, vector<1x32xf32>
    %288 = vector.broadcast %287 : vector<1x32xf32> to vector<128x32xf32>
    %289 = arith.addf %286, %288 : vector<128x32xf32>
    %cst_478 = arith.constant 0.000000e+00 : f32
    %290 = vector.broadcast %cst_478 : f32 to vector<128x32xf32>
    %291 = arith.maximumf %289, %290 : vector<128x32xf32>
    %292 = arith.truncf %291 : vector<128x32xf32> to vector<128x32xbf16>
    %c0_479 = arith.constant 0 : index
    %c0_480 = arith.constant 0 : index
    %293 = vector.load %arg17[%c0_479, %c0_480] : memref<128x32xbf16, #tpu.memory_space<vmem>>, vector<128x32xbf16>
    tpu.vector_store %arg17[%c0_479, %c0_480], %292 {strides = array<i32>} : memref<128x32xbf16, #tpu.memory_space<vmem>>, vector<128x32xbf16>,
    %c0_481 = arith.constant 0 : index
    %c0_482 = arith.constant 0 : index
    %294 = vector.load %arg17[%c0_481, %c0_482] : memref<128x32xbf16, #tpu.memory_space<vmem>>, vector<8x32xbf16>
    %c0_483 = arith.constant 0 : index
    %c0_484 = arith.constant 0 : index
    %295 = vector.load %arg18[%c0_483, %c0_484] : memref<8x512xbf16, #tpu.memory_space<vmem>>, vector<8x32xbf16>
    tpu.vector_store %arg18[%c0_483, %c0_484], %294 {strides = array<i32>} : memref<8x512xbf16, #tpu.memory_space<vmem>>, vector<8x32xbf16>,
    %c8_485 = arith.constant 8 : index
    %c0_486 = arith.constant 0 : index
    %296 = vector.load %arg17[%c8_485, %c0_486] : memref<128x32xbf16, #tpu.memory_space<vmem>>, vector<8x32xbf16>
    %c0_487 = arith.constant 0 : index
    %c32_488 = arith.constant 32 : index
    %297 = vector.load %arg18[%c0_487, %c32_488] : memref<8x512xbf16, #tpu.memory_space<vmem>>, vector<8x32xbf16>
    tpu.vector_store %arg18[%c0_487, %c32_488], %296 {strides = array<i32>} : memref<8x512xbf16, #tpu.memory_space<vmem>>, vector<8x32xbf16>,
    %c16_489 = arith.constant 16 : index
    %c0_490 = arith.constant 0 : index
    %298 = vector.load %arg17[%c16_489, %c0_490] : memref<128x32xbf16, #tpu.memory_space<vmem>>, vector<8x32xbf16>
    %c0_491 = arith.constant 0 : index
    %c64_492 = arith.constant 64 : index
    %299 = vector.load %arg18[%c0_491, %c64_492] : memref<8x512xbf16, #tpu.memory_space<vmem>>, vector<8x32xbf16>
    tpu.vector_store %arg18[%c0_491, %c64_492], %298 {strides = array<i32>} : memref<8x512xbf16, #tpu.memory_space<vmem>>, vector<8x32xbf16>,
    %c24 = arith.constant 24 : index
    %c0_493 = arith.constant 0 : index
    %300 = vector.load %arg17[%c24, %c0_493] : memref<128x32xbf16, #tpu.memory_space<vmem>>, vector<8x32xbf16>
    %c0_494 = arith.constant 0 : index
    %c96_495 = arith.constant 96 : index
    %301 = vector.load %arg18[%c0_494, %c96_495] : memref<8x512xbf16, #tpu.memory_space<vmem>>, vector<8x32xbf16>
    tpu.vector_store %arg18[%c0_494, %c96_495], %300 {strides = array<i32>} : memref<8x512xbf16, #tpu.memory_space<vmem>>, vector<8x32xbf16>,
    %c32_496 = arith.constant 32 : index
    %c0_497 = arith.constant 0 : index
    %302 = vector.load %arg17[%c32_496, %c0_497] : memref<128x32xbf16, #tpu.memory_space<vmem>>, vector<8x32xbf16>
    %c0_498 = arith.constant 0 : index
    %c128_499 = arith.constant 128 : index
    %303 = vector.load %arg18[%c0_498, %c128_499] : memref<8x512xbf16, #tpu.memory_space<vmem>>, vector<8x32xbf16>
    tpu.vector_store %arg18[%c0_498, %c128_499], %302 {strides = array<i32>} : memref<8x512xbf16, #tpu.memory_space<vmem>>, vector<8x32xbf16>,
    %c40 = arith.constant 40 : index
    %c0_500 = arith.constant 0 : index
    %304 = vector.load %arg17[%c40, %c0_500] : memref<128x32xbf16, #tpu.memory_space<vmem>>, vector<8x32xbf16>
    %c0_501 = arith.constant 0 : index
    %c160_502 = arith.constant 160 : index
    %305 = vector.load %arg18[%c0_501, %c160_502] : memref<8x512xbf16, #tpu.memory_space<vmem>>, vector<8x32xbf16>
    tpu.vector_store %arg18[%c0_501, %c160_502], %304 {strides = array<i32>} : memref<8x512xbf16, #tpu.memory_space<vmem>>, vector<8x32xbf16>,
    %c48_503 = arith.constant 48 : index
    %c0_504 = arith.constant 0 : index
    %306 = vector.load %arg17[%c48_503, %c0_504] : memref<128x32xbf16, #tpu.memory_space<vmem>>, vector<8x32xbf16>
    %c0_505 = arith.constant 0 : index
    %c192_506 = arith.constant 192 : index
    %307 = vector.load %arg18[%c0_505, %c192_506] : memref<8x512xbf16, #tpu.memory_space<vmem>>, vector<8x32xbf16>
    tpu.vector_store %arg18[%c0_505, %c192_506], %306 {strides = array<i32>} : memref<8x512xbf16, #tpu.memory_space<vmem>>, vector<8x32xbf16>,
    %c56_507 = arith.constant 56 : index
    %c0_508 = arith.constant 0 : index
    %308 = vector.load %arg17[%c56_507, %c0_508] : memref<128x32xbf16, #tpu.memory_space<vmem>>, vector<8x32xbf16>
    %c0_509 = arith.constant 0 : index
    %c224_510 = arith.constant 224 : index
    %309 = vector.load %arg18[%c0_509, %c224_510] : memref<8x512xbf16, #tpu.memory_space<vmem>>, vector<8x32xbf16>
    tpu.vector_store %arg18[%c0_509, %c224_510], %308 {strides = array<i32>} : memref<8x512xbf16, #tpu.memory_space<vmem>>, vector<8x32xbf16>,
    %c64_511 = arith.constant 64 : index
    %c0_512 = arith.constant 0 : index
    %310 = vector.load %arg17[%c64_511, %c0_512] : memref<128x32xbf16, #tpu.memory_space<vmem>>, vector<8x32xbf16>
    %c0_513 = arith.constant 0 : index
    %c256_514 = arith.constant 256 : index
    %311 = vector.load %arg18[%c0_513, %c256_514] : memref<8x512xbf16, #tpu.memory_space<vmem>>, vector<8x32xbf16>
    tpu.vector_store %arg18[%c0_513, %c256_514], %310 {strides = array<i32>} : memref<8x512xbf16, #tpu.memory_space<vmem>>, vector<8x32xbf16>,
    %c72 = arith.constant 72 : index
    %c0_515 = arith.constant 0 : index
    %312 = vector.load %arg17[%c72, %c0_515] : memref<128x32xbf16, #tpu.memory_space<vmem>>, vector<8x32xbf16>
    %c0_516 = arith.constant 0 : index
    %c288_517 = arith.constant 288 : index
    %313 = vector.load %arg18[%c0_516, %c288_517] : memref<8x512xbf16, #tpu.memory_space<vmem>>, vector<8x32xbf16>
    tpu.vector_store %arg18[%c0_516, %c288_517], %312 {strides = array<i32>} : memref<8x512xbf16, #tpu.memory_space<vmem>>, vector<8x32xbf16>,
    %c80 = arith.constant 80 : index
    %c0_518 = arith.constant 0 : index
    %314 = vector.load %arg17[%c80, %c0_518] : memref<128x32xbf16, #tpu.memory_space<vmem>>, vector<8x32xbf16>
    %c0_519 = arith.constant 0 : index
    %c320_520 = arith.constant 320 : index
    %315 = vector.load %arg18[%c0_519, %c320_520] : memref<8x512xbf16, #tpu.memory_space<vmem>>, vector<8x32xbf16>
    tpu.vector_store %arg18[%c0_519, %c320_520], %314 {strides = array<i32>} : memref<8x512xbf16, #tpu.memory_space<vmem>>, vector<8x32xbf16>,
    %c88 = arith.constant 88 : index
    %c0_521 = arith.constant 0 : index
    %316 = vector.load %arg17[%c88, %c0_521] : memref<128x32xbf16, #tpu.memory_space<vmem>>, vector<8x32xbf16>
    %c0_522 = arith.constant 0 : index
    %c352_523 = arith.constant 352 : index
    %317 = vector.load %arg18[%c0_522, %c352_523] : memref<8x512xbf16, #tpu.memory_space<vmem>>, vector<8x32xbf16>
    tpu.vector_store %arg18[%c0_522, %c352_523], %316 {strides = array<i32>} : memref<8x512xbf16, #tpu.memory_space<vmem>>, vector<8x32xbf16>,
    %c96_524 = arith.constant 96 : index
    %c0_525 = arith.constant 0 : index
    %318 = vector.load %arg17[%c96_524, %c0_525] : memref<128x32xbf16, #tpu.memory_space<vmem>>, vector<8x32xbf16>
    %c0_526 = arith.constant 0 : index
    %c384_527 = arith.constant 384 : index
    %319 = vector.load %arg18[%c0_526, %c384_527] : memref<8x512xbf16, #tpu.memory_space<vmem>>, vector<8x32xbf16>
    tpu.vector_store %arg18[%c0_526, %c384_527], %318 {strides = array<i32>} : memref<8x512xbf16, #tpu.memory_space<vmem>>, vector<8x32xbf16>,
    %c104_528 = arith.constant 104 : index
    %c0_529 = arith.constant 0 : index
    %320 = vector.load %arg17[%c104_528, %c0_529] : memref<128x32xbf16, #tpu.memory_space<vmem>>, vector<8x32xbf16>
    %c0_530 = arith.constant 0 : index
    %c416_531 = arith.constant 416 : index
    %321 = vector.load %arg18[%c0_530, %c416_531] : memref<8x512xbf16, #tpu.memory_space<vmem>>, vector<8x32xbf16>
    tpu.vector_store %arg18[%c0_530, %c416_531], %320 {strides = array<i32>} : memref<8x512xbf16, #tpu.memory_space<vmem>>, vector<8x32xbf16>,
    %c112_532 = arith.constant 112 : index
    %c0_533 = arith.constant 0 : index
    %322 = vector.load %arg17[%c112_532, %c0_533] : memref<128x32xbf16, #tpu.memory_space<vmem>>, vector<8x32xbf16>
    %c0_534 = arith.constant 0 : index
    %c448_535 = arith.constant 448 : index
    %323 = vector.load %arg18[%c0_534, %c448_535] : memref<8x512xbf16, #tpu.memory_space<vmem>>, vector<8x32xbf16>
    tpu.vector_store %arg18[%c0_534, %c448_535], %322 {strides = array<i32>} : memref<8x512xbf16, #tpu.memory_space<vmem>>, vector<8x32xbf16>,
    %c120_536 = arith.constant 120 : index
    %c0_537 = arith.constant 0 : index
    %324 = vector.load %arg17[%c120_536, %c0_537] : memref<128x32xbf16, #tpu.memory_space<vmem>>, vector<8x32xbf16>
    %c0_538 = arith.constant 0 : index
    %c480_539 = arith.constant 480 : index
    %325 = vector.load %arg18[%c0_538, %c480_539] : memref<8x512xbf16, #tpu.memory_space<vmem>>, vector<8x32xbf16>
    tpu.vector_store %arg18[%c0_538, %c480_539], %324 {strides = array<i32>} : memref<8x512xbf16, #tpu.memory_space<vmem>>, vector<8x32xbf16>,
    %c0_540 = arith.constant 0 : index
    %c0_541 = arith.constant 0 : index
    %326 = vector.load %arg18[%c0_540, %c0_541] : memref<8x512xbf16, #tpu.memory_space<vmem>>, vector<8x512xbf16>
    %c0_542 = arith.constant 0 : index
    %c0_543 = arith.constant 0 : index
    %327 = vector.load %arg8[%c0_542, %c0_543] : memref<512x32xbf16, #tpu.memory_space<vmem>>, vector<512x32xbf16>
    %cst_544 = arith.constant dense<0.000000e+00> : vector<8x32xf32>
    %328 = tpu.matmul %326, %327, %cst_544 {dimension_numbers = #tpu.dot_dimension_numbers<[1], [0], [0], [1], [0, 0, 1, 1], [], []>} : vector<8x512xbf16>, vector<512x32xbf16>, vector<8x32xf32> -> vector<8x32xf32>
    %c0_545 = arith.constant 0 : index
    %c0_546 = arith.constant 0 : index
    %329 = vector.load %arg9[%c0_545, %c0_546] : memref<1x32xf32, #tpu.memory_space<vmem>>, vector<1x32xf32>
    %330 = vector.broadcast %329 : vector<1x32xf32> to vector<8x32xf32>
    %331 = arith.addf %328, %330 : vector<8x32xf32>
    %cst_547 = arith.constant 0.000000e+00 : f32
    %332 = vector.broadcast %cst_547 : f32 to vector<8x32xf32>
    %333 = arith.maximumf %331, %332 : vector<8x32xf32>
    %334 = arith.truncf %333 : vector<8x32xf32> to vector<8x32xbf16>
    %c0_548 = arith.constant 0 : index
    %c0_549 = arith.constant 0 : index
    %335 = vector.load %arg10[%c0_548, %c0_549] : memref<32x8xbf16, #tpu.memory_space<vmem>>, vector<32x8xbf16>
    %cst_550 = arith.constant dense<0.000000e+00> : vector<8x8xf32>
    %336 = tpu.matmul %334, %335, %cst_550 {dimension_numbers = #tpu.dot_dimension_numbers<[1], [0], [0], [1], [0, 0, 1, 1], [], []>} : vector<8x32xbf16>, vector<32x8xbf16>, vector<8x8xf32> -> vector<8x8xf32>
    %c0_551 = arith.constant 0 : index
    %c0_552 = arith.constant 0 : index
    %337 = vector.load %arg11[%c0_551, %c0_552] : memref<1x8xf32, #tpu.memory_space<vmem>>, vector<1x8xf32>
    %338 = vector.broadcast %337 : vector<1x8xf32> to vector<8x8xf32>
    %339 = arith.addf %336, %338 : vector<8x8xf32>
    %c0_553 = arith.constant 0 : index
    %c0_554 = arith.constant 0 : index
    %340 = vector.load %arg12[%c0_553, %c0_554] : memref<8x8xf32, #tpu.memory_space<vmem>>, vector<8x8xf32>
    tpu.vector_store %arg12[%c0_553, %c0_554], %339 {strides = array<i32>} : memref<8x8xf32, #tpu.memory_space<vmem>>, vector<8x8xf32>,
    return
  }
  func.func @transform_0(%arg0: i32) -> (i32, i32) {
    %c0_i32 = arith.constant 0 : i32
    %c0_i32_0 = arith.constant 0 : i32
    return %arg0, %c0_i32 : i32, i32
  }
  func.func @transform_1(%arg0: i32) -> (i32, i32) {
    %c0_i32 = arith.constant 0 : i32
    %c0_i32_0 = arith.constant 0 : i32
    %c0_i32_1 = arith.constant 0 : i32
    return %c0_i32, %c0_i32_0 : i32, i32
  }
  func.func @transform_2(%arg0: i32) -> (i32, i32) {
    %c0_i32 = arith.constant 0 : i32
    %c0_i32_0 = arith.constant 0 : i32
    %c0_i32_1 = arith.constant 0 : i32
    return %c0_i32, %c0_i32_0 : i32, i32
  }
  func.func @transform_3(%arg0: i32) -> (i32, i32) {
    %c0_i32 = arith.constant 0 : i32
    %c0_i32_0 = arith.constant 0 : i32
    %c0_i32_1 = arith.constant 0 : i32
    return %c0_i32, %c0_i32_0 : i32, i32
  }
  func.func @transform_4(%arg0: i32) -> (i32, i32) {
    %c0_i32 = arith.constant 0 : i32
    %c0_i32_0 = arith.constant 0 : i32
    %c0_i32_1 = arith.constant 0 : i32
    return %c0_i32, %c0_i32_0 : i32, i32
  }
  func.func @transform_5(%arg0: i32) -> (i32, i32) {
    %c0_i32 = arith.constant 0 : i32
    %c0_i32_0 = arith.constant 0 : i32
    %c0_i32_1 = arith.constant 0 : i32
    return %c0_i32, %c0_i32_0 : i32, i32
  }
  func.func @transform_6(%arg0: i32) -> (i32, i32) {
    %c0_i32 = arith.constant 0 : i32
    %c0_i32_0 = arith.constant 0 : i32
    %c0_i32_1 = arith.constant 0 : i32
    return %c0_i32, %c0_i32_0 : i32, i32
  }
  func.func @transform_7(%arg0: i32) -> (i32, i32) {
    %c0_i32 = arith.constant 0 : i32
    %c0_i32_0 = arith.constant 0 : i32
    %c0_i32_1 = arith.constant 0 : i32
    return %c0_i32, %c0_i32_0 : i32, i32
  }
  func.func @transform_8(%arg0: i32) -> (i32, i32) {
    %c0_i32 = arith.constant 0 : i32
    %c0_i32_0 = arith.constant 0 : i32
    %c0_i32_1 = arith.constant 0 : i32
    return %c0_i32, %c0_i32_0 : i32, i32
  }
  func.func @transform_9(%arg0: i32) -> (i32, i32) {
    %c0_i32 = arith.constant 0 : i32
    %c0_i32_0 = arith.constant 0 : i32
    %c0_i32_1 = arith.constant 0 : i32
    return %c0_i32, %c0_i32_0 : i32, i32
  }
  func.func @transform_10(%arg0: i32) -> (i32, i32) {
    %c0_i32 = arith.constant 0 : i32
    %c0_i32_0 = arith.constant 0 : i32
    %c0_i32_1 = arith.constant 0 : i32
    return %c0_i32, %c0_i32_0 : i32, i32
  }
  func.func @transform_11(%arg0: i32) -> (i32, i32) {
    %c0_i32 = arith.constant 0 : i32
    %c0_i32_0 = arith.constant 0 : i32
    return %arg0, %c0_i32 : i32, i32
  }
}

</mosaic_0001>

<llo_original>
// kernel: tpu_custom_call.1
$region0: #{tpu_custom_call.1}
  #allocation0 [shape = 'u32[]', space=smem, size = 0x4, offset = 0x4, fixed_abs, tag = 'smem constant byte address 0x4 - core index']
  #allocation1 [shape = 'u32[144,128]{1,0:T(1,128)}', space=vmem, size = 0x12000, scoped, tag = 'internal scratch']
  #allocation2 [shape = 'bf16[1568,32]{1,0:T(16,128)(2,1)}', space=vmem, size = 0x62000, scoped, tag = 'scratch operand']
  #allocation3 [shape = 'bf16[288,512]{1,0:T(16,128)(2,1)}', space=vmem, size = 0x48000, scoped, tag = 'scratch operand']
  #allocation4 [shape = 'bf16[288,64]{1,0:T(16,128)(2,1)}', space=vmem, size = 0x12000, scoped, tag = 'scratch operand']
  #allocation5 [shape = 'bf16[128,576]{1,0:T(16,128)(2,1)}', space=vmem, size = 0x28000, scoped, tag = 'scratch operand']
  #allocation6 [shape = 'bf16[128,32]{1,0:T(16,128)(2,1)}', space=vmem, size = 0x8000, scoped, tag = 'scratch operand']
  #allocation7 [shape = 'bf16[8,512]{1,0:T(8,128)(2,1)}', space=vmem, size = 0x2000, scoped, tag = 'scratch operand']
  %s0 = inlined_call_operand.hbm [shape: bf16[1568,256], index: 0, kind: input, shape index: {}]
  %s1 = inlined_call_operand.vmem [shape: bf16[256,32], index: 1, kind: input, shape index: {}]
  %s2 = inlined_call_operand.vmem [shape: f32[1,32], index: 2, kind: input, shape index: {}]
  %s3 = inlined_call_operand.vmem [shape: bf16[512,64], index: 3, kind: input, shape index: {}]
  %s4 = inlined_call_operand.vmem [shape: f32[1,64], index: 4, kind: input, shape index: {}]
  %s5 = inlined_call_operand.vmem [shape: bf16[576,32], index: 5, kind: input, shape index: {}]
  %s6 = inlined_call_operand.vmem [shape: f32[1,32], index: 6, kind: input, shape index: {}]
  %s7 = inlined_call_operand.vmem [shape: bf16[512,32], index: 7, kind: input, shape index: {}]
  %s8 = inlined_call_operand.vmem [shape: f32[1,32], index: 8, kind: input, shape index: {}]
  %s9 = inlined_call_operand.vmem [shape: bf16[32,8], index: 9, kind: input, shape index: {}]
  %s10 = inlined_call_operand.vmem [shape: f32[1,8], index: 10, kind: input, shape index: {}]
  %s11 = inlined_call_operand.hbm [shape: f32[8,8], index: 11, kind: output, shape index: {}]
  %s12 = sld [smem:[#allocation0]]
  $region58: #{tpu_custom_call.1} parent=0
    _
  %s14 = ssub.s32 1, %s12
  %s15 = scalar_select 0, %s14, %s12
  $region1: #{tpu_custom_call.1} parent=0
    #allocation8 [shape = 'u8[802816]{0}', space=vmem, size = 0xc4000, scoped, tag = 'input window, operand 0, single buffered']
    #allocation9 [shape = 's32[1]{0}', space=sflag, size = 0x4, scoped, tag = 'scoped memory for tpu_custom_call.1']
    #allocation10 [shape = 's32[1]{0}', space=sflag, size = 0x4, scoped, tag = 'scoped memory for tpu_custom_call.1']
    #allocation11 [shape = 'u8[4096]{0}', space=vmem, size = 0x1000, scoped, tag = 'output window, operand 0, single buffered']
    %16 = vsyncpa [#allocation9], 0
    %17 = vsyncpa [#allocation10], 0
    // Predicated region
    $region2: #{tpu_custom_call.1} parent=1 // pred_check
      _
    $region3: #{tpu_custom_call.1} parent=1 // pred_check_branch
      %19 = sbr.rel (0) target = $region5
    $region4: #{tpu_custom_call.1} parent=1 // pred_region
      %s21 = ssub.s32 25088, 25088
      %22 = vsyncadd [#allocation9], %s21
      %s23 = sshll.u32 [#allocation8], 4
      %s24 = int_to_ptr.vmem [resolvable:$true] %s23
      %29 = dma.hbm_to_vmem [thread:$0]  %s0, 25088, %s24, [#allocation9], 128, 128, 8
    $region5: #{tpu_custom_call.1} parent=1 // pred_fallthru
      _
    // Predicated region
    $region6: #{tpu_custom_call.1} parent=1 // pred_check
      _
    $region7: #{tpu_custom_call.1} parent=1 // pred_check_branch
      %31 = sbr.rel (0) target = $region9
    $region8: #{tpu_custom_call.1} parent=1 // pred_region
      _
    $region9: #{tpu_custom_call.1} parent=1 // pred_fallthru
      _
    // Predicated region
    $region10: #{tpu_custom_call.1} parent=1 // pred_check
      _
    $region11: #{tpu_custom_call.1} parent=1 // pred_check_branch
      %33 = sbr.rel (0) target = $region13
    $region12: #{tpu_custom_call.1} parent=1 // pred_region
      _
    $region13: #{tpu_custom_call.1} parent=1 // pred_fallthru
      _
    // Predicated region
    $region14: #{tpu_custom_call.1} parent=1 // pred_check
      _
    $region15: #{tpu_custom_call.1} parent=1 // pred_check_branch
      %35 = sbr.rel (0) target = $region17
    $region16: #{tpu_custom_call.1} parent=1 // pred_region
      _
    $region17: #{tpu_custom_call.1} parent=1 // pred_fallthru
      _
    // Predicated region
    $region18: #{tpu_custom_call.1} parent=1 // pred_check
      _
    $region19: #{tpu_custom_call.1} parent=1 // pred_check_branch
      %37 = sbr.rel (0) target = $region21
    $region20: #{tpu_custom_call.1} parent=1 // pred_region
      _
    $region21: #{tpu_custom_call.1} parent=1 // pred_fallthru
      _
    // Predicated region
    $region22: #{tpu_custom_call.1} parent=1 // pred_check
      _
    $region23: #{tpu_custom_call.1} parent=1 // pred_check_branch
      %39 = sbr.rel (0) target = $region25
    $region24: #{tpu_custom_call.1} parent=1 // pred_region
      _
    $region25: #{tpu_custom_call.1} parent=1 // pred_fallthru
      _
    // Predicated region
    $region26: #{tpu_custom_call.1} parent=1 // pred_check
      _
    $region27: #{tpu_custom_call.1} parent=1 // pred_check_branch
      %41 = sbr.rel (0) target = $region29
    $region28: #{tpu_custom_call.1} parent=1 // pred_region
      _
    $region29: #{tpu_custom_call.1} parent=1 // pred_fallthru
      _
    // Predicated region
    $region30: #{tpu_custom_call.1} parent=1 // pred_check
      _
    $region31: #{tpu_custom_call.1} parent=1 // pred_check_branch
      %43 = sbr.rel (0) target = $region33
    $region32: #{tpu_custom_call.1} parent=1 // pred_region
      _
    $region33: #{tpu_custom_call.1} parent=1 // pred_fallthru
      _
    // Predicated region
    $region34: #{tpu_custom_call.1} parent=1 // pred_check
      _
    $region35: #{tpu_custom_call.1} parent=1 // pred_check_branch
      %45 = sbr.rel (0) target = $region37
    $region36: #{tpu_custom_call.1} parent=1 // pred_region
      _
    $region37: #{tpu_custom_call.1} parent=1 // pred_fallthru
      _
    // Predicated region
    $region38: #{tpu_custom_call.1} parent=1 // pred_check
      _
    $region39: #{tpu_custom_call.1} parent=1 // pred_check_branch
      %47 = sbr.rel (0) target = $region41
    $region40: #{tpu_custom_call.1} parent=1 // pred_region
      _
    $region41: #{tpu_custom_call.1} parent=1 // pred_fallthru
      _
    // Predicated region
    $region42: #{tpu_custom_call.1} parent=1 // pred_check
      _
    $region43: #{tpu_custom_call.1} parent=1 // pred_check_branch
      %49 = sbr.rel (0) target = $region45
    $region44: #{tpu_custom_call.1} parent=1 // pred_region
      _
    $region45: #{tpu_custom_call.1} parent=1 // pred_fallthru
      _
    // Predicated region
    $region46: #{tpu_custom_call.1} parent=1 // pred_check
      _
    $region47: #{tpu_custom_call.1} parent=1 // pred_check_branch
      %51 = sbr.rel (0) target = $region49
    $region48: #{tpu_custom_call.1} parent=1 // pred_region
      %52 = dma.done [#allocation9], 25088
    $region49: #{tpu_custom_call.1} parent=1 // pred_fallthru
      _
    %v54 = vld [vmem:[#allocation8] sm:$0xff]
    %v55 = vld [vmem:[#allocation8 + $0x8] sm:$0xff]
    %v56 = vld [vmem:[#allocation8 + $0x10] sm:$0xff]
    %v57 = vld [vmem:[#allocation8 + $0x18] sm:$0xff]
    %v58 = vld [vmem:[#allocation8 + $0x20] sm:$0xff]
    %v59 = vld [vmem:[#allocation8 + $0x28] sm:$0xff]
    %v60 = vld [vmem:[#allocation8 + $0x30] sm:$0xff]
    %v61 = vld [vmem:[#allocation8 + $0x38] sm:$0xff]
    %v62 = vld [vmem:[#allocation8 + $0x40] sm:$0xff]
    %v63 = vld [vmem:[#allocation8 + $0x48] sm:$0xff]
    %v64 = vld [vmem:[#allocation8 + $0x50] sm:$0xff]
    %v65 = vld [vmem:[#allocation8 + $0x58] sm:$0xff]
    %v66 = vld [vmem:[#allocation8 + $0x60] sm:$0xff]
    %v67 = vld [vmem:[#allocation8 + $0x68] sm:$0xff]
    %v68 = vld [vmem:[#allocation8 + $0x70] sm:$0xff]
    %v69 = vld [vmem:[#allocation8 + $0x78] sm:$0xff]
    %v70 = vld [vmem:[#allocation8 + $0x80] sm:$0xff]
    %v71 = vld [vmem:[#allocation8 + $0x88] sm:$0xff]
    %v72 = vld [vmem:[#allocation8 + $0x90] sm:$0xff]
    %v73 = vld [vmem:[#allocation8 + $0x98] sm:$0xff]
    %v74 = vld [vmem:[#allocation8 + $0xa0] sm:$0xff]
    %v75 = vld [vmem:[#allocation8 + $0xa8] sm:$0xff]
    %v76 = vld [vmem:[#allocation8 + $0xb0] sm:$0xff]
    %v77 = vld [vmem:[#allocation8 + $0xb8] sm:$0xff]
    %v78 = vld [vmem:[#allocation8 + $0xc0] sm:$0xff]
    %v79 = vld [vmem:[#allocation8 + $0xc8] sm:$0xff]
    %v80 = vld [vmem:[#allocation8 + $0xd0] sm:$0xff]
    %v81 = vld [vmem:[#allocation8 + $0xd8] sm:$0xff]
    %v82 = vld [vmem:[#allocation8 + $0xe0] sm:$0xff]
    %v83 = vld [vmem:[#allocation8 + $0xe8] sm:$0xff]
    %v84 = vld [vmem:[#allocation8 + $0xf0] sm:$0xff]
    %v85 = vld [vmem:[#allocation8 + $0xf8] sm:$0xff]
    %v86 = vld [vmem:[#allocation8 + $0x100] sm:$0xff]
    %v87 = vld [vmem:[#allocation8 + $0x108] sm:$0xff]
    %v88 = vld [vmem:[#allocation8 + $0x110] sm:$0xff]
    %v89 = vld [vmem:[#allocation8 + $0x118] sm:$0xff]
    %v90 = vld [vmem:[#allocation8 + $0x120] sm:$0xff]
    %v91 = vld [vmem:[#allocation8 + $0x128] sm:$0xff]
    %v92 = vld [vmem:[#allocation8 + $0x130] sm:$0xff]
    %v93 = vld [vmem:[#allocation8 + $0x138] sm:$0xff]
    %v94 = vld [vmem:[#allocation8 + $0x140] sm:$0xff]
    %v95 = vld [vmem:[#allocation8 + $0x148] sm:$0xff]
    %v96 = vld [vmem:[#allocation8 + $0x150] sm:$0xff]
    %v97 = vld [vmem:[#allocation8 + $0x158] sm:$0xff]
    %v98 = vld [vmem:[#allocation8 + $0x160] sm:$0xff]
    %v99 = vld [vmem:[#allocation8 + $0x168] sm:$0xff]
    %v100 = vld [vmem:[#allocation8 + $0x170] sm:$0xff]
    %v101 = vld [vmem:[#allocation8 + $0x178] sm:$0xff]
    %v102 = vld [vmem:[#allocation8 + $0x180] sm:$0xff]
    %v103 = vld [vmem:[#allocation8 + $0x188] sm:$0xff]
    %v104 = vld [vmem:[#allocation8 + $0x190] sm:$0xff]
    %v105 = vld [vmem:[#allocation8 + $0x198] sm:$0xff]
    %v106 = vld [vmem:[#allocation8 + $0x1a0] sm:$0xff]
    %v107 = vld [vmem:[#allocation8 + $0x1a8] sm:$0xff]
    %v108 = vld [vmem:[#allocation8 + $0x1b0] sm:$0xff]
    %v109 = vld [vmem:[#allocation8 + $0x1b8] sm:$0xff]
    %v110 = vld [vmem:[#allocation8 + $0x1c0] sm:$0xff]
    %v111 = vld [vmem:[#allocation8 + $0x1c8] sm:$0xff]
    %v112 = vld [vmem:[#allocation8 + $0x1d0] sm:$0xff]
    %v113 = vld [vmem:[#allocation8 + $0x1d8] sm:$0xff]
    %v114 = vld [vmem:[#allocation8 + $0x1e0] sm:$0xff]
    %v115 = vld [vmem:[#allocation8 + $0x1e8] sm:$0xff]
    %v116 = vld [vmem:[#allocation8 + $0x1f0] sm:$0xff]
    %v117 = vld [vmem:[#allocation8 + $0x1f8] sm:$0xff]
    %v118 = vld [vmem:[#allocation8 + $0x200] sm:$0xff]
    %v119 = vld [vmem:[#allocation8 + $0x208] sm:$0xff]
    %v120 = vld [vmem:[#allocation8 + $0x210] sm:$0xff]
    %v121 = vld [vmem:[#allocation8 + $0x218] sm:$0xff]
    %v122 = vld [vmem:[#allocation8 + $0x220] sm:$0xff]
    %v123 = vld [vmem:[#allocation8 + $0x228] sm:$0xff]
    %v124 = vld [vmem:[#allocation8 + $0x230] sm:$0xff]
    %v125 = vld [vmem:[#allocation8 + $0x238] sm:$0xff]
    %v126 = vld [vmem:[#allocation8 + $0x240] sm:$0xff]
    %v127 = vld [vmem:[#allocation8 + $0x248] sm:$0xff]
    %v128 = vld [vmem:[#allocation8 + $0x250] sm:$0xff]
    %v129 = vld [vmem:[#allocation8 + $0x258] sm:$0xff]
    %v130 = vld [vmem:[#allocation8 + $0x260] sm:$0xff]
    %v131 = vld [vmem:[#allocation8 + $0x268] sm:$0xff]
    %v132 = vld [vmem:[#allocation8 + $0x270] sm:$0xff]
    %v133 = vld [vmem:[#allocation8 + $0x278] sm:$0xff]
    %v134 = vld [vmem:[#allocation8 + $0x280] sm:$0xff]
    %v135 = vld [vmem:[#allocation8 + $0x288] sm:$0xff]
    %v136 = vld [vmem:[#allocation8 + $0x290] sm:$0xff]
    %v137 = vld [vmem:[#allocation8 + $0x298] sm:$0xff]
    %v138 = vld [vmem:[#allocation8 + $0x2a0] sm:$0xff]
    %v139 = vld [vmem:[#allocation8 + $0x2a8] sm:$0xff]
    %v140 = vld [vmem:[#allocation8 + $0x2b0] sm:$0xff]
    %v141 = vld [vmem:[#allocation8 + $0x2b8] sm:$0xff]
    %v142 = vld [vmem:[#allocation8 + $0x2c0] sm:$0xff]
    %v143 = vld [vmem:[#allocation8 + $0x2c8] sm:$0xff]
    %v144 = vld [vmem:[#allocation8 + $0x2d0] sm:$0xff]
    %v145 = vld [vmem:[#allocation8 + $0x2d8] sm:$0xff]
    %v146 = vld [vmem:[#allocation8 + $0x2e0] sm:$0xff]
    %v147 = vld [vmem:[#allocation8 + $0x2e8] sm:$0xff]
    %v148 = vld [vmem:[#allocation8 + $0x2f0] sm:$0xff]
    %v149 = vld [vmem:[#allocation8 + $0x2f8] sm:$0xff]
    %v150 = vld [vmem:[#allocation8 + $0x300] sm:$0xff]
    %v151 = vld [vmem:[#allocation8 + $0x308] sm:$0xff]
    %v152 = vld [vmem:[#allocation8 + $0x310] sm:$0xff]
    %v153 = vld [vmem:[#allocation8 + $0x318] sm:$0xff]
    %v154 = vld [vmem:[#allocation8 + $0x320] sm:$0xff]
    %v155 = vld [vmem:[#allocation8 + $0x328] sm:$0xff]
    %v156 = vld [vmem:[#allocation8 + $0x330] sm:$0xff]
    %v157 = vld [vmem:[#allocation8 + $0x338] sm:$0xff]
    %v158 = vld [vmem:[#allocation8 + $0x340] sm:$0xff]
    %v159 = vld [vmem:[#allocation8 + $0x348] sm:$0xff]
    %v160 = vld [vmem:[#allocation8 + $0x350] sm:$0xff]
    %v161 = vld [vmem:[#allocation8 + $0x358] sm:$0xff]
    %v162 = vld [vmem:[#allocation8 + $0x360] sm:$0xff]
    %v163 = vld [vmem:[#allocation8 + $0x368] sm:$0xff]
    %v164 = vld [vmem:[#allocation8 + $0x370] sm:$0xff]
    %v165 = vld [vmem:[#allocation8 + $0x378] sm:$0xff]
    %v166 = vld [vmem:[#allocation8 + $0x380] sm:$0xff]
    %v167 = vld [vmem:[#allocation8 + $0x388] sm:$0xff]
    %v168 = vld [vmem:[#allocation8 + $0x390] sm:$0xff]
    %v169 = vld [vmem:[#allocation8 + $0x398] sm:$0xff]
    %v170 = vld [vmem:[#allocation8 + $0x3a0] sm:$0xff]
    %v171 = vld [vmem:[#allocation8 + $0x3a8] sm:$0xff]
    %v172 = vld [vmem:[#allocation8 + $0x3b0] sm:$0xff]
    %v173 = vld [vmem:[#allocation8 + $0x3b8] sm:$0xff]
    %v174 = vld [vmem:[#allocation8 + $0x3c0] sm:$0xff]
    %v175 = vld [vmem:[#allocation8 + $0x3c8] sm:$0xff]
    %v176 = vld [vmem:[#allocation8 + $0x3d0] sm:$0xff]
    %v177 = vld [vmem:[#allocation8 + $0x3d8] sm:$0xff]
    %v178 = vld [vmem:[#allocation8 + $0x3e0] sm:$0xff]
    %v179 = vld [vmem:[#allocation8 + $0x3e8] sm:$0xff]
    %v180 = vld [vmem:[#allocation8 + $0x3f0] sm:$0xff]
    %v181 = vld [vmem:[#allocation8 + $0x3f8] sm:$0xff]
    %v182 = vld [vmem:[#allocation8 + $0x400] sm:$0xff]
    %v183 = vld [vmem:[#allocation8 + $0x408] sm:$0xff]
    %v184 = vld [vmem:[#allocation8 + $0x410] sm:$0xff]
    %v185 = vld [vmem:[#allocation8 + $0x418] sm:$0xff]
    %v186 = vld [vmem:[#allocation8 + $0x420] sm:$0xff]
    %v187 = vld [vmem:[#allocation8 + $0x428] sm:$0xff]
    %v188 = vld [vmem:[#allocation8 + $0x430] sm:$0xff]
    %v189 = vld [vmem:[#allocation8 + $0x438] sm:$0xff]
    %v190 = vld [vmem:[#allocation8 + $0x440] sm:$0xff]
    %v191 = vld [vmem:[#allocation8 + $0x448] sm:$0xff]
    %v192 = vld [vmem:[#allocation8 + $0x450] sm:$0xff]
    %v193 = vld [vmem:[#allocation8 + $0x458] sm:$0xff]
    %v194 = vld [vmem:[#allocation8 + $0x460] sm:$0xff]
    %v195 = vld [vmem:[#allocation8 + $0x468] sm:$0xff]
    %v196 = vld [vmem:[#allocation8 + $0x470] sm:$0xff]
    %v197 = vld [vmem:[#allocation8 + $0x478] sm:$0xff]
    %v198 = vld [vmem:[#allocation8 + $0x480] sm:$0xff]
    %v199 = vld [vmem:[#allocation8 + $0x488] sm:$0xff]
    %v200 = vld [vmem:[#allocation8 + $0x490] sm:$0xff]
    %v201 = vld [vmem:[#allocation8 + $0x498] sm:$0xff]
    %v202 = vld [vmem:[#allocation8 + $0x4a0] sm:$0xff]
    %v203 = vld [vmem:[#allocation8 + $0x4a8] sm:$0xff]
    %v204 = vld [vmem:[#allocation8 + $0x4b0] sm:$0xff]
    %v205 = vld [vmem:[#allocation8 + $0x4b8] sm:$0xff]
    %v206 = vld [vmem:[#allocation8 + $0x4c0] sm:$0xff]
    %v207 = vld [vmem:[#allocation8 + $0x4c8] sm:$0xff]
    %v208 = vld [vmem:[#allocation8 + $0x4d0] sm:$0xff]
    %v209 = vld [vmem:[#allocation8 + $0x4d8] sm:$0xff]
    %v210 = vld [vmem:[#allocation8 + $0x4e0] sm:$0xff]
    %v211 = vld [vmem:[#allocation8 + $0x4e8] sm:$0xff]
    %v212 = vld [vmem:[#allocation8 + $0x4f0] sm:$0xff]
    %v213 = vld [vmem:[#allocation8 + $0x4f8] sm:$0xff]
    %v214 = vld [vmem:[#allocation8 + $0x500] sm:$0xff]
    %v215 = vld [vmem:[#allocation8 + $0x508] sm:$0xff]
    %v216 = vld [vmem:[#allocation8 + $0x510] sm:$0xff]
    %v217 = vld [vmem:[#allocation8 + $0x518] sm:$0xff]
    %v218 = vld [vmem:[#allocation8 + $0x520] sm:$0xff]
    %v219 = vld [vmem:[#allocation8 + $0x528] sm:$0xff]
    %v220 = vld [vmem:[#allocation8 + $0x530] sm:$0xff]
    %v221 = vld [vmem:[#allocation8 + $0x538] sm:$0xff]
    %v222 = vld [vmem:[#allocation8 + $0x540] sm:$0xff]
    %v223 = vld [vmem:[#allocation8 + $0x548] sm:$0xff]
    %v224 = vld [vmem:[#allocation8 + $0x550] sm:$0xff]
    %v225 = vld [vmem:[#allocation8 + $0x558] sm:$0xff]
    %v226 = vld [vmem:[#allocation8 + $0x560] sm:$0xff]
    %v227 = vld [vmem:[#allocation8 + $0x568] sm:$0xff]
    %v228 = vld [vmem:[#allocation8 + $0x570] sm:$0xff]
    %v229 = vld [vmem:[#allocation8 + $0x578] sm:$0xff]
    %v230 = vld [vmem:[#allocation8 + $0x580] sm:$0xff]
    %v231 = vld [vmem:[#allocation8 + $0x588] sm:$0xff]
    %v232 = vld [vmem:[#allocation8 + $0x590] sm:$0xff]
    %v233 = vld [vmem:[#allocation8 + $0x598] sm:$0xff]
    %v234 = vld [vmem:[#allocation8 + $0x5a0] sm:$0xff]
    %v235 = vld [vmem:[#allocation8 + $0x5a8] sm:$0xff]
    %v236 = vld [vmem:[#allocation8 + $0x5b0] sm:$0xff]
    %v237 = vld [vmem:[#allocation8 + $0x5b8] sm:$0xff]
    %v238 = vld [vmem:[#allocation8 + $0x5c0] sm:$0xff]
    %v239 = vld [vmem:[#allocation8 + $0x5c8] sm:$0xff]
    %v240 = vld [vmem:[#allocation8 + $0x5d0] sm:$0xff]
    %v241 = vld [vmem:[#allocation8 + $0x5d8] sm:$0xff]
    %v242 = vld [vmem:[#allocation8 + $0x5e0] sm:$0xff]
    %v243 = vld [vmem:[#allocation8 + $0x5e8] sm:$0xff]
    %v244 = vld [vmem:[#allocation8 + $0x5f0] sm:$0xff]
    %v245 = vld [vmem:[#allocation8 + $0x5f8] sm:$0xff]
    %v246 = vld [vmem:[#allocation8 + $0x600] sm:$0xff]
    %v247 = vld [vmem:[#allocation8 + $0x608] sm:$0xff]
    %v248 = vld [vmem:[#allocation8 + $0x610] sm:$0xff]
    %v249 = vld [vmem:[#allocation8 + $0x618] sm:$0xff]
    %v250 = vld [vmem:[%s1] sm:$0xf]
    %v251 = vld [vmem:[%s1 + $0x4] sm:$0xf]
    %v252 = vld [vmem:[%s1 + $0x8] sm:$0xf]
    %v253 = vld [vmem:[%s1 + $0xc] sm:$0xf]
    %v254 = vld [vmem:[%s1 + $0x10] sm:$0xf]
    %v255 = vld [vmem:[%s1 + $0x14] sm:$0xf]
    %v256 = vld [vmem:[%s1 + $0x18] sm:$0xf]
    %v257 = vld [vmem:[%s1 + $0x1c] sm:$0xf]
    %v258 = vld [vmem:[%s1 + $0x20] sm:$0xf]
    %v259 = vld [vmem:[%s1 + $0x24] sm:$0xf]
    %v260 = vld [vmem:[%s1 + $0x28] sm:$0xf]
    %v261 = vld [vmem:[%s1 + $0x2c] sm:$0xf]
    %v262 = vld [vmem:[%s1 + $0x30] sm:$0xf]
    %v263 = vld [vmem:[%s1 + $0x34] sm:$0xf]
    %v264 = vld [vmem:[%s1 + $0x38] sm:$0xf]
    %v265 = vld [vmem:[%s1 + $0x3c] sm:$0xf]
    %v266 = vld [vmem:[%s1 + $0x40] sm:$0xf]
    %v267 = vld [vmem:[%s1 + $0x44] sm:$0xf]
    %v268 = vld [vmem:[%s1 + $0x48] sm:$0xf]
    %v269 = vld [vmem:[%s1 + $0x4c] sm:$0xf]
    %v270 = vld [vmem:[%s1 + $0x50] sm:$0xf]
    %v271 = vld [vmem:[%s1 + $0x54] sm:$0xf]
    %v272 = vld [vmem:[%s1 + $0x58] sm:$0xf]
    %v273 = vld [vmem:[%s1 + $0x5c] sm:$0xf]
    %v274 = vld [vmem:[%s1 + $0x60] sm:$0xf]
    %v275 = vld [vmem:[%s1 + $0x64] sm:$0xf]
    %v276 = vld [vmem:[%s1 + $0x68] sm:$0xf]
    %v277 = vld [vmem:[%s1 + $0x6c] sm:$0xf]
    %v278 = vld [vmem:[%s1 + $0x70] sm:$0xf]
    %v279 = vld [vmem:[%s1 + $0x74] sm:$0xf]
    %v280 = vld [vmem:[%s1 + $0x78] sm:$0xf]
    %v281 = vld [vmem:[%s1 + $0x7c] sm:$0xf]
    %v282 = vld [vmem:[%s2] sm:$0x1]
    %v284 = vlaneseq
    %v285 = vshrl.u32 %v284, 7
    %v286 = vsub.s32 0, %v285
    %v287 = vrot.slane %v282, %v286
    %v485 = vunpack.c.l.b16 %v54
    %v486 = vunpack.c.h.b16 %v54
    %v487 = vunpack.c.l.b16 %v55
    %v488 = vunpack.c.h.b16 %v55
    %v489 = vunpack.c.l.b16 %v56
    %v490 = vunpack.c.h.b16 %v56
    %v491 = vunpack.c.l.b16 %v57
    %v492 = vunpack.c.h.b16 %v57
    %v493 = vunpack.c.l.b16 %v58
    %v494 = vunpack.c.h.b16 %v58
    %v495 = vunpack.c.l.b16 %v59
    %v496 = vunpack.c.h.b16 %v59
    %v497 = vunpack.c.l.b16 %v60
    %v498 = vunpack.c.h.b16 %v60
    %v499 = vunpack.c.l.b16 %v61
    %v500 = vunpack.c.h.b16 %v61
    %v501 = vunpack.c.l.b16 %v62
    %v502 = vunpack.c.h.b16 %v62
    %v503 = vunpack.c.l.b16 %v63
    %v504 = vunpack.c.h.b16 %v63
    %v505 = vunpack.c.l.b16 %v64
    %v506 = vunpack.c.h.b16 %v64
    %v507 = vunpack.c.l.b16 %v65
    %v508 = vunpack.c.h.b16 %v65
    %v509 = vunpack.c.l.b16 %v66
    %v510 = vunpack.c.h.b16 %v66
    %v511 = vunpack.c.l.b16 %v67
    %v512 = vunpack.c.h.b16 %v67
    %v513 = vunpack.c.l.b16 %v68
    %v514 = vunpack.c.h.b16 %v68
    %v515 = vunpack.c.l.b16 %v69
    %v516 = vunpack.c.h.b16 %v69
    %v517 = vunpack.c.l.b16 %v70
    %v518 = vunpack.c.h.b16 %v70
    %v519 = vunpack.c.l.b16 %v71
    %v520 = vunpack.c.h.b16 %v71
    %v521 = vunpack.c.l.b16 %v72
    %v522 = vunpack.c.h.b16 %v72
    %v523 = vunpack.c.l.b16 %v73
    %v524 = vunpack.c.h.b16 %v73
    %v525 = vunpack.c.l.b16 %v74
    %v526 = vunpack.c.h.b16 %v74
    %v527 = vunpack.c.l.b16 %v75
    %v528 = vunpack.c.h.b16 %v75
    %v529 = vunpack.c.l.b16 %v76
    %v530 = vunpack.c.h.b16 %v76
    %v531 = vunpack.c.l.b16 %v77
    %v532 = vunpack.c.h.b16 %v77
    %v533 = vunpack.c.l.b16 %v78
    %v534 = vunpack.c.h.b16 %v78
    %v535 = vunpack.c.l.b16 %v79
    %v536 = vunpack.c.h.b16 %v79
    %v537 = vunpack.c.l.b16 %v80
    %v538 = vunpack.c.h.b16 %v80
    %v539 = vunpack.c.l.b16 %v81
    %v540 = vunpack.c.h.b16 %v81
    %v541 = vunpack.c.l.b16 %v82
    %v542 = vunpack.c.h.b16 %v82
    %v543 = vunpack.c.l.b16 %v83
    %v544 = vunpack.c.h.b16 %v83
    %v545 = vunpack.c.l.b16 %v84
    %v546 = vunpack.c.h.b16 %v84
    %v547 = vunpack.c.l.b16 %v85
    %v548 = vunpack.c.h.b16 %v85
    %v549 = vunpack.c.l.b16 %v86
    %v550 = vunpack.c.h.b16 %v86
    %v551 = vunpack.c.l.b16 %v87
    %v552 = vunpack.c.h.b16 %v87
    %v553 = vunpack.c.l.b16 %v88
    %v554 = vunpack.c.h.b16 %v88
    %v555 = vunpack.c.l.b16 %v89
    %v556 = vunpack.c.h.b16 %v89
    %v557 = vunpack.c.l.b16 %v90
    %v558 = vunpack.c.h.b16 %v90
    %v559 = vunpack.c.l.b16 %v91
    %v560 = vunpack.c.h.b16 %v91
    %v561 = vunpack.c.l.b16 %v92
    %v562 = vunpack.c.h.b16 %v92
    %v563 = vunpack.c.l.b16 %v93
    %v564 = vunpack.c.h.b16 %v93
    %v565 = vunpack.c.l.b16 %v94
    %v566 = vunpack.c.h.b16 %v94
    %v567 = vunpack.c.l.b16 %v95
    %v568 = vunpack.c.h.b16 %v95
    %v569 = vunpack.c.l.b16 %v96
    %v570 = vunpack.c.h.b16 %v96
    %v571 = vunpack.c.l.b16 %v97
    %v572 = vunpack.c.h.b16 %v97
    %v573 = vunpack.c.l.b16 %v98
    %v574 = vunpack.c.h.b16 %v98
    %v575 = vunpack.c.l.b16 %v99
    %v576 = vunpack.c.h.b16 %v99
    %v577 = vunpack.c.l.b16 %v100
    %v578 = vunpack.c.h.b16 %v100
    %v579 = vunpack.c.l.b16 %v101
    %v580 = vunpack.c.h.b16 %v101
    %v581 = vunpack.c.l.b16 %v102
    %v582 = vunpack.c.h.b16 %v102
    %v583 = vunpack.c.l.b16 %v103
    %v584 = vunpack.c.h.b16 %v103
    %v585 = vunpack.c.l.b16 %v104
    %v586 = vunpack.c.h.b16 %v104
    %v587 = vunpack.c.l.b16 %v105
    %v588 = vunpack.c.h.b16 %v105
    %v589 = vunpack.c.l.b16 %v106
    %v590 = vunpack.c.h.b16 %v106
    %v591 = vunpack.c.l.b16 %v107
    %v592 = vunpack.c.h.b16 %v107
    %v593 = vunpack.c.l.b16 %v108
    %v594 = vunpack.c.h.b16 %v108
    %v595 = vunpack.c.l.b16 %v109
    %v596 = vunpack.c.h.b16 %v109
    %v597 = vunpack.c.l.b16 %v110
    %v598 = vunpack.c.h.b16 %v110
    %v599 = vunpack.c.l.b16 %v111
    %v600 = vunpack.c.h.b16 %v111
    %v601 = vunpack.c.l.b16 %v112
    %v602 = vunpack.c.h.b16 %v112
    %v603 = vunpack.c.l.b16 %v113
    %v604 = vunpack.c.h.b16 %v113
    %v605 = vunpack.c.l.b16 %v114
    %v606 = vunpack.c.h.b16 %v114
    %v607 = vunpack.c.l.b16 %v115
    %v608 = vunpack.c.h.b16 %v115
    %v609 = vunpack.c.l.b16 %v116
    %v610 = vunpack.c.h.b16 %v116
    %v611 = vunpack.c.l.b16 %v117
    %v612 = vunpack.c.h.b16 %v117
    %v613 = vunpack.c.l.b16 %v118
    %v614 = vunpack.c.h.b16 %v118
    %v615 = vunpack.c.l.b16 %v119
    %v616 = vunpack.c.h.b16 %v119
    %v617 = vunpack.c.l.b16 %v120
    %v618 = vunpack.c.h.b16 %v120
    %v619 = vunpack.c.l.b16 %v121
    %v620 = vunpack.c.h.b16 %v121
    %v621 = vunpack.c.l.b16 %v122
    %v622 = vunpack.c.h.b16 %v122
    %v623 = vunpack.c.l.b16 %v123
    %v624 = vunpack.c.h.b16 %v123
    %v625 = vunpack.c.l.b16 %v124
    %v626 = vunpack.c.h.b16 %v124
    %v627 = vunpack.c.l.b16 %v125
    %v628 = vunpack.c.h.b16 %v125
    %v629 = vunpack.c.l.b16 %v126
    %v630 = vunpack.c.h.b16 %v126
    %v631 = vunpack.c.l.b16 %v127
    %v632 = vunpack.c.h.b16 %v127
    %v633 = vunpack.c.l.b16 %v128
    %v634 = vunpack.c.h.b16 %v128
    %v635 = vunpack.c.l.b16 %v129
    %v636 = vunpack.c.h.b16 %v129
    %v637 = vunpack.c.l.b16 %v130
    %v638 = vunpack.c.h.b16 %v130
    %v639 = vunpack.c.l.b16 %v131
    %v640 = vunpack.c.h.b16 %v131
    %v641 = vunpack.c.l.b16 %v132
    %v642 = vunpack.c.h.b16 %v132
    %v643 = vunpack.c.l.b16 %v133
    %v644 = vunpack.c.h.b16 %v133
    %v645 = vunpack.c.l.b16 %v134
    %v646 = vunpack.c.h.b16 %v134
    %v647 = vunpack.c.l.b16 %v135
    %v648 = vunpack.c.h.b16 %v135
    %v649 = vunpack.c.l.b16 %v136
    %v650 = vunpack.c.h.b16 %v136
    %v651 = vunpack.c.l.b16 %v137
    %v652 = vunpack.c.h.b16 %v137
    %v653 = vunpack.c.l.b16 %v138
    %v654 = vunpack.c.h.b16 %v138
    %v655 = vunpack.c.l.b16 %v139
    %v656 = vunpack.c.h.b16 %v139
    %v657 = vunpack.c.l.b16 %v140
    %v658 = vunpack.c.h.b16 %v140
    %v659 = vunpack.c.l.b16 %v141
    %v660 = vunpack.c.h.b16 %v141
    %v661 = vunpack.c.l.b16 %v142
    %v662 = vunpack.c.h.b16 %v142
    %v663 = vunpack.c.l.b16 %v143
    %v664 = vunpack.c.h.b16 %v143
    %v665 = vunpack.c.l.b16 %v144
    %v666 = vunpack.c.h.b16 %v144
    %v667 = vunpack.c.l.b16 %v145
    %v668 = vunpack.c.h.b16 %v145
    %v669 = vunpack.c.l.b16 %v146
    %v670 = vunpack.c.h.b16 %v146
    %v671 = vunpack.c.l.b16 %v147
    %v672 = vunpack.c.h.b16 %v147
    %v673 = vunpack.c.l.b16 %v148
    %v674 = vunpack.c.h.b16 %v148
    %v675 = vunpack.c.l.b16 %v149
    %v676 = vunpack.c.h.b16 %v149
    %v677 = vunpack.c.l.b16 %v150
    %v678 = vunpack.c.h.b16 %v150
    %v679 = vunpack.c.l.b16 %v151
    %v680 = vunpack.c.h.b16 %v151
    %v681 = vunpack.c.l.b16 %v152
    %v682 = vunpack.c.h.b16 %v152
    %v683 = vunpack.c.l.b16 %v153
    %v684 = vunpack.c.h.b16 %v153
    %v685 = vunpack.c.l.b16 %v154
    %v686 = vunpack.c.h.b16 %v154
    %v687 = vunpack.c.l.b16 %v155
    %v688 = vunpack.c.h.b16 %v155
    %v689 = vunpack.c.l.b16 %v156
    %v690 = vunpack.c.h.b16 %v156
    %v691 = vunpack.c.l.b16 %v157
    %v692 = vunpack.c.h.b16 %v157
    %v693 = vunpack.c.l.b16 %v158
    %v694 = vunpack.c.h.b16 %v158
    %v695 = vunpack.c.l.b16 %v159
    %v696 = vunpack.c.h.b16 %v159
    %v697 = vunpack.c.l.b16 %v160
    %v698 = vunpack.c.h.b16 %v160
    %v699 = vunpack.c.l.b16 %v161
    %v700 = vunpack.c.h.b16 %v161
    %v701 = vunpack.c.l.b16 %v162
    %v702 = vunpack.c.h.b16 %v162
    %v703 = vunpack.c.l.b16 %v163
    %v704 = vunpack.c.h.b16 %v163
    %v705 = vunpack.c.l.b16 %v164
    %v706 = vunpack.c.h.b16 %v164
    %v707 = vunpack.c.l.b16 %v165
    %v708 = vunpack.c.h.b16 %v165
    %v709 = vunpack.c.l.b16 %v166
    %v710 = vunpack.c.h.b16 %v166
    %v711 = vunpack.c.l.b16 %v167
    %v712 = vunpack.c.h.b16 %v167
    %v713 = vunpack.c.l.b16 %v168
    %v714 = vunpack.c.h.b16 %v168
    %v715 = vunpack.c.l.b16 %v169
    %v716 = vunpack.c.h.b16 %v169
    %v717 = vunpack.c.l.b16 %v170
    %v718 = vunpack.c.h.b16 %v170
    %v719 = vunpack.c.l.b16 %v171
    %v720 = vunpack.c.h.b16 %v171
    %v721 = vunpack.c.l.b16 %v172
    %v722 = vunpack.c.h.b16 %v172
    %v723 = vunpack.c.l.b16 %v173
    %v724 = vunpack.c.h.b16 %v173
    %v725 = vunpack.c.l.b16 %v174
    %v726 = vunpack.c.h.b16 %v174
    %v727 = vunpack.c.l.b16 %v175
    %v728 = vunpack.c.h.b16 %v175
    %v729 = vunpack.c.l.b16 %v176
    %v730 = vunpack.c.h.b16 %v176
    %v731 = vunpack.c.l.b16 %v177
    %v732 = vunpack.c.h.b16 %v177
    %v733 = vunpack.c.l.b16 %v178
    %v734 = vunpack.c.h.b16 %v178
    %v735 = vunpack.c.l.b16 %v179
    %v736 = vunpack.c.h.b16 %v179
    %v737 = vunpack.c.l.b16 %v180
    %v738 = vunpack.c.h.b16 %v180
    %v739 = vunpack.c.l.b16 %v181
    %v740 = vunpack.c.h.b16 %v181
    %v741 = vunpack.c.l.b16 %v182
    %v742 = vunpack.c.h.b16 %v182
    %v743 = vunpack.c.l.b16 %v183
    %v744 = vunpack.c.h.b16 %v183
    %v745 = vunpack.c.l.b16 %v184
    %v746 = vunpack.c.h.b16 %v184
    %v747 = vunpack.c.l.b16 %v185
    %v748 = vunpack.c.h.b16 %v185
    %v749 = vunpack.c.l.b16 %v186
    %v750 = vunpack.c.h.b16 %v186
    %v751 = vunpack.c.l.b16 %v187
    %v752 = vunpack.c.h.b16 %v187
    %v753 = vunpack.c.l.b16 %v188
    %v754 = vunpack.c.h.b16 %v188
    %v755 = vunpack.c.l.b16 %v189
    %v756 = vunpack.c.h.b16 %v189
    %v757 = vunpack.c.l.b16 %v190
    %v758 = vunpack.c.h.b16 %v190
    %v759 = vunpack.c.l.b16 %v191
    %v760 = vunpack.c.h.b16 %v191
    %v761 = vunpack.c.l.b16 %v192
    %v762 = vunpack.c.h.b16 %v192
    %v763 = vunpack.c.l.b16 %v193
    %v764 = vunpack.c.h.b16 %v193
    %v765 = vunpack.c.l.b16 %v194
    %v766 = vunpack.c.h.b16 %v194
    %v767 = vunpack.c.l.b16 %v195
    %v768 = vunpack.c.h.b16 %v195
    %v769 = vunpack.c.l.b16 %v196
    %v770 = vunpack.c.h.b16 %v196
    %v771 = vunpack.c.l.b16 %v197
    %v772 = vunpack.c.h.b16 %v197
    %v773 = vunpack.c.l.b16 %v198
    %v774 = vunpack.c.h.b16 %v198
    %v775 = vunpack.c.l.b16 %v199
    %v776 = vunpack.c.h.b16 %v199
    %v777 = vunpack.c.l.b16 %v200
    %v778 = vunpack.c.h.b16 %v200
    %v779 = vunpack.c.l.b16 %v201
    %v780 = vunpack.c.h.b16 %v201
    %v781 = vunpack.c.l.b16 %v202
    %v782 = vunpack.c.h.b16 %v202
    %v783 = vunpack.c.l.b16 %v203
    %v784 = vunpack.c.h.b16 %v203
    %v785 = vunpack.c.l.b16 %v204
    %v786 = vunpack.c.h.b16 %v204
    %v787 = vunpack.c.l.b16 %v205
    %v788 = vunpack.c.h.b16 %v205
    %v789 = vunpack.c.l.b16 %v206
    %v790 = vunpack.c.h.b16 %v206
    %v791 = vunpack.c.l.b16 %v207
    %v792 = vunpack.c.h.b16 %v207
    %v793 = vunpack.c.l.b16 %v208
    %v794 = vunpack.c.h.b16 %v208
    %v795 = vunpack.c.l.b16 %v209
    %v796 = vunpack.c.h.b16 %v209
    %v797 = vunpack.c.l.b16 %v210
    %v798 = vunpack.c.h.b16 %v210
    %v799 = vunpack.c.l.b16 %v211
    %v800 = vunpack.c.h.b16 %v211
    %v801 = vunpack.c.l.b16 %v212
    %v802 = vunpack.c.h.b16 %v212
    %v803 = vunpack.c.l.b16 %v213
    %v804 = vunpack.c.h.b16 %v213
    %v805 = vunpack.c.l.b16 %v214
    %v806 = vunpack.c.h.b16 %v214
    %v807 = vunpack.c.l.b16 %v215
    %v808 = vunpack.c.h.b16 %v215
    %v809 = vunpack.c.l.b16 %v216
    %v810 = vunpack.c.h.b16 %v216
    %v811 = vunpack.c.l.b16 %v217
    %v812 = vunpack.c.h.b16 %v217
    %v813 = vunpack.c.l.b16 %v218
    %v814 = vunpack.c.h.b16 %v218
    %v815 = vunpack.c.l.b16 %v219
    %v816 = vunpack.c.h.b16 %v219
    %v817 = vunpack.c.l.b16 %v220
    %v818 = vunpack.c.h.b16 %v220
    %v819 = vunpack.c.l.b16 %v221
    %v820 = vunpack.c.h.b16 %v221
    %v821 = vunpack.c.l.b16 %v222
    %v822 = vunpack.c.h.b16 %v222
    %v823 = vunpack.c.l.b16 %v223
    %v824 = vunpack.c.h.b16 %v223
    %v825 = vunpack.c.l.b16 %v224
    %v826 = vunpack.c.h.b16 %v224
    %v827 = vunpack.c.l.b16 %v225
    %v828 = vunpack.c.h.b16 %v225
    %v829 = vunpack.c.l.b16 %v226
    %v830 = vunpack.c.h.b16 %v226
    %v831 = vunpack.c.l.b16 %v227
    %v832 = vunpack.c.h.b16 %v227
    %v833 = vunpack.c.l.b16 %v228
    %v834 = vunpack.c.h.b16 %v228
    %v835 = vunpack.c.l.b16 %v229
    %v836 = vunpack.c.h.b16 %v229
    %v837 = vunpack.c.l.b16 %v230
    %v838 = vunpack.c.h.b16 %v230
    %v839 = vunpack.c.l.b16 %v231
    %v840 = vunpack.c.h.b16 %v231
    %v841 = vunpack.c.l.b16 %v232
    %v842 = vunpack.c.h.b16 %v232
    %v843 = vunpack.c.l.b16 %v233
    %v844 = vunpack.c.h.b16 %v233
    %v845 = vunpack.c.l.b16 %v234
    %v846 = vunpack.c.h.b16 %v234
    %v847 = vunpack.c.l.b16 %v235
    %v848 = vunpack.c.h.b16 %v235
    %v849 = vunpack.c.l.b16 %v236
    %v850 = vunpack.c.h.b16 %v236
    %v851 = vunpack.c.l.b16 %v237
    %v852 = vunpack.c.h.b16 %v237
    %v853 = vunpack.c.l.b16 %v238
    %v854 = vunpack.c.h.b16 %v238
    %v855 = vunpack.c.l.b16 %v239
    %v856 = vunpack.c.h.b16 %v239
    %v857 = vunpack.c.l.b16 %v240
    %v858 = vunpack.c.h.b16 %v240
    %v859 = vunpack.c.l.b16 %v241
    %v860 = vunpack.c.h.b16 %v241
    %v861 = vunpack.c.l.b16 %v242
    %v862 = vunpack.c.h.b16 %v242
    %v863 = vunpack.c.l.b16 %v243
    %v864 = vunpack.c.h.b16 %v243
    %v865 = vunpack.c.l.b16 %v244
    %v866 = vunpack.c.h.b16 %v244
    %v867 = vunpack.c.l.b16 %v245
    %v868 = vunpack.c.h.b16 %v245
    %v869 = vunpack.c.l.b16 %v246
    %v870 = vunpack.c.h.b16 %v246
    %v871 = vunpack.c.l.b16 %v247
    %v872 = vunpack.c.h.b16 %v247
    %v873 = vunpack.c.l.b16 %v248
    %v874 = vunpack.c.h.b16 %v248
    %v875 = vunpack.c.l.b16 %v249
    %v876 = vunpack.c.h.b16 %v249
    %v877 = vpack.c.b16 %v487, %v485
    %v878 = vpack.c.b16 %v488, %v486
    %v879 = vpack.c.b16 %v491, %v489
    %v880 = vpack.c.b16 %v492, %v490
    %v881 = vpack.c.b16 %v495, %v493
    %v882 = vpack.c.b16 %v496, %v494
    %v883 = vpack.c.b16 %v499, %v497
    %v884 = vpack.c.b16 %v500, %v498
    %v885 = vpack.c.b16 %v503, %v501
    %v886 = vpack.c.b16 %v504, %v502
    %v887 = vpack.c.b16 %v507, %v505
    %v888 = vpack.c.b16 %v508, %v506
    %v889 = vpack.c.b16 %v511, %v509
    %v890 = vpack.c.b16 %v512, %v510
    %v891 = vpack.c.b16 %v515, %v513
    %v892 = vpack.c.b16 %v516, %v514
    %v893 = vpack.c.b16 %v519, %v517
    %v894 = vpack.c.b16 %v520, %v518
    %v895 = vpack.c.b16 %v523, %v521
    %v896 = vpack.c.b16 %v524, %v522
    %v897 = vpack.c.b16 %v527, %v525
    %v898 = vpack.c.b16 %v528, %v526
    %v899 = vpack.c.b16 %v531, %v529
    %v900 = vpack.c.b16 %v532, %v530
    %v901 = vpack.c.b16 %v535, %v533
    %v902 = vpack.c.b16 %v536, %v534
    %v903 = vpack.c.b16 %v539, %v537
    %v904 = vpack.c.b16 %v540, %v538
    %v905 = vpack.c.b16 %v543, %v541
    %v906 = vpack.c.b16 %v544, %v542
    %v907 = vpack.c.b16 %v547, %v545
    %v908 = vpack.c.b16 %v548, %v546
    %v909 = vpack.c.b16 %v551, %v549
    %v910 = vpack.c.b16 %v552, %v550
    %v911 = vpack.c.b16 %v555, %v553
    %v912 = vpack.c.b16 %v556, %v554
    %v913 = vpack.c.b16 %v559, %v557
    %v914 = vpack.c.b16 %v560, %v558
    %v915 = vpack.c.b16 %v563, %v561
    %v916 = vpack.c.b16 %v564, %v562
    %v917 = vpack.c.b16 %v567, %v565
    %v918 = vpack.c.b16 %v568, %v566
    %v919 = vpack.c.b16 %v571, %v569
    %v920 = vpack.c.b16 %v572, %v570
    %v921 = vpack.c.b16 %v575, %v573
    %v922 = vpack.c.b16 %v576, %v574
    %v923 = vpack.c.b16 %v579, %v577
    %v924 = vpack.c.b16 %v580, %v578
    %v925 = vpack.c.b16 %v583, %v581
    %v926 = vpack.c.b16 %v584, %v582
    %v927 = vpack.c.b16 %v587, %v585
    %v928 = vpack.c.b16 %v588, %v586
    %v929 = vpack.c.b16 %v591, %v589
    %v930 = vpack.c.b16 %v592, %v590
    %v931 = vpack.c.b16 %v595, %v593
    %v932 = vpack.c.b16 %v596, %v594
    %v933 = vpack.c.b16 %v599, %v597
    %v934 = vpack.c.b16 %v600, %v598
    %v935 = vpack.c.b16 %v603, %v601
    %v936 = vpack.c.b16 %v604, %v602
    %v937 = vpack.c.b16 %v607, %v605
    %v938 = vpack.c.b16 %v608, %v606
    %v939 = vpack.c.b16 %v611, %v609
    %v940 = vpack.c.b16 %v612, %v610
    %v941 = vpack.c.b16 %v615, %v613
    %v942 = vpack.c.b16 %v616, %v614
    %v943 = vpack.c.b16 %v619, %v617
    %v944 = vpack.c.b16 %v620, %v618
    %v945 = vpack.c.b16 %v623, %v621
    %v946 = vpack.c.b16 %v624, %v622
    %v947 = vpack.c.b16 %v627, %v625
    %v948 = vpack.c.b16 %v628, %v626
    %v949 = vpack.c.b16 %v631, %v629
    %v950 = vpack.c.b16 %v632, %v630
    %v951 = vpack.c.b16 %v635, %v633
    %v952 = vpack.c.b16 %v636, %v634
    %v953 = vpack.c.b16 %v639, %v637
    %v954 = vpack.c.b16 %v640, %v638
    %v955 = vpack.c.b16 %v643, %v641
    %v956 = vpack.c.b16 %v644, %v642
    %v957 = vpack.c.b16 %v647, %v645
    %v958 = vpack.c.b16 %v648, %v646
    %v959 = vpack.c.b16 %v651, %v649
    %v960 = vpack.c.b16 %v652, %v650
    %v961 = vpack.c.b16 %v655, %v653
    %v962 = vpack.c.b16 %v656, %v654
    %v963 = vpack.c.b16 %v659, %v657
    %v964 = vpack.c.b16 %v660, %v658
    %v965 = vpack.c.b16 %v663, %v661
    %v966 = vpack.c.b16 %v664, %v662
    %v967 = vpack.c.b16 %v667, %v665
    %v968 = vpack.c.b16 %v668, %v666
    %v969 = vpack.c.b16 %v671, %v669
    %v970 = vpack.c.b16 %v672, %v670
    %v971 = vpack.c.b16 %v675, %v673
    %v972 = vpack.c.b16 %v676, %v674
    %v973 = vpack.c.b16 %v679, %v677
    %v974 = vpack.c.b16 %v680, %v678
    %v975 = vpack.c.b16 %v683, %v681
    %v976 = vpack.c.b16 %v684, %v682
    %v977 = vpack.c.b16 %v687, %v685
    %v978 = vpack.c.b16 %v688, %v686
    %v979 = vpack.c.b16 %v691, %v689
    %v980 = vpack.c.b16 %v692, %v690
    %v981 = vpack.c.b16 %v695, %v693
    %v982 = vpack.c.b16 %v696, %v694
    %v983 = vpack.c.b16 %v699, %v697
    %v984 = vpack.c.b16 %v700, %v698
    %v985 = vpack.c.b16 %v703, %v701
    %v986 = vpack.c.b16 %v704, %v702
    %v987 = vpack.c.b16 %v707, %v705
    %v988 = vpack.c.b16 %v708, %v706
    %v989 = vpack.c.b16 %v711, %v709
    %v990 = vpack.c.b16 %v712, %v710
    %v991 = vpack.c.b16 %v715, %v713
    %v992 = vpack.c.b16 %v716, %v714
    %v993 = vpack.c.b16 %v719, %v717
    %v994 = vpack.c.b16 %v720, %v718
    %v995 = vpack.c.b16 %v723, %v721
    %v996 = vpack.c.b16 %v724, %v722
    %v997 = vpack.c.b16 %v727, %v725
    %v998 = vpack.c.b16 %v728, %v726
    %v999 = vpack.c.b16 %v731, %v729
    %v1000 = vpack.c.b16 %v732, %v730
    %v1001 = vpack.c.b16 %v735, %v733
    %v1002 = vpack.c.b16 %v736, %v734
    %v1003 = vpack.c.b16 %v739, %v737
    %v1004 = vpack.c.b16 %v740, %v738
    %v1005 = vpack.c.b16 %v743, %v741
    %v1006 = vpack.c.b16 %v744, %v742
    %v1007 = vpack.c.b16 %v747, %v745
    %v1008 = vpack.c.b16 %v748, %v746
    %v1009 = vpack.c.b16 %v751, %v749
    %v1010 = vpack.c.b16 %v752, %v750
    %v1011 = vpack.c.b16 %v755, %v753
    %v1012 = vpack.c.b16 %v756, %v754
    %v1013 = vpack.c.b16 %v759, %v757
    %v1014 = vpack.c.b16 %v760, %v758
    %v1015 = vpack.c.b16 %v763, %v761
    %v1016 = vpack.c.b16 %v764, %v762
    %v1017 = vpack.c.b16 %v767, %v765
    %v1018 = vpack.c.b16 %v768, %v766
    %v1019 = vpack.c.b16 %v771, %v769
    %v1020 = vpack.c.b16 %v772, %v770
    %v1021 = vpack.c.b16 %v775, %v773
    %v1022 = vpack.c.b16 %v776, %v774
    %v1023 = vpack.c.b16 %v779, %v777
    %v1024 = vpack.c.b16 %v780, %v778
    %v1025 = vpack.c.b16 %v783, %v781
    %v1026 = vpack.c.b16 %v784, %v782
    %v1027 = vpack.c.b16 %v787, %v785
    %v1028 = vpack.c.b16 %v788, %v786
    %v1029 = vpack.c.b16 %v791, %v789
    %v1030 = vpack.c.b16 %v792, %v790
    %v1031 = vpack.c.b16 %v795, %v793
    %v1032 = vpack.c.b16 %v796, %v794
    %v1033 = vpack.c.b16 %v799, %v797
    %v1034 = vpack.c.b16 %v800, %v798
    %v1035 = vpack.c.b16 %v803, %v801
    %v1036 = vpack.c.b16 %v804, %v802
    %v1037 = vpack.c.b16 %v807, %v805
    %v1038 = vpack.c.b16 %v808, %v806
    %v1039 = vpack.c.b16 %v811, %v809
    %v1040 = vpack.c.b16 %v812, %v810
    %v1041 = vpack.c.b16 %v815, %v813
    %v1042 = vpack.c.b16 %v816, %v814
    %v1043 = vpack.c.b16 %v819, %v817
    %v1044 = vpack.c.b16 %v820, %v818
    %v1045 = vpack.c.b16 %v823, %v821
    %v1046 = vpack.c.b16 %v824, %v822
    %v1047 = vpack.c.b16 %v827, %v825
    %v1048 = vpack.c.b16 %v828, %v826
    %v1049 = vpack.c.b16 %v831, %v829
    %v1050 = vpack.c.b16 %v832, %v830
    %v1051 = vpack.c.b16 %v835, %v833
    %v1052 = vpack.c.b16 %v836, %v834
    %v1053 = vpack.c.b16 %v839, %v837
    %v1054 = vpack.c.b16 %v840, %v838
    %v1055 = vpack.c.b16 %v843, %v841
    %v1056 = vpack.c.b16 %v844, %v842
    %v1057 = vpack.c.b16 %v847, %v845
    %v1058 = vpack.c.b16 %v848, %v846
    %v1059 = vpack.c.b16 %v851, %v849
    %v1060 = vpack.c.b16 %v852, %v850
    %v1061 = vpack.c.b16 %v855, %v853
    %v1062 = vpack.c.b16 %v856, %v854
    %v1063 = vpack.c.b16 %v859, %v857
    %v1064 = vpack.c.b16 %v860, %v858
    %v1065 = vpack.c.b16 %v863, %v861
    %v1066 = vpack.c.b16 %v864, %v862
    %v1067 = vpack.c.b16 %v867, %v865
    %v1068 = vpack.c.b16 %v868, %v866
    %v1069 = vpack.c.b16 %v871, %v869
    %v1070 = vpack.c.b16 %v872, %v870
    %v1071 = vpack.c.b16 %v875, %v873
    %v1072 = vpack.c.b16 %v876, %v874
    %v1301 = vunpack.c.l.b16 %v250
    %v1302 = vunpack.c.l.b16 %v251
    %v1303 = vunpack.c.l.b16 %v252
    %v1304 = vunpack.c.l.b16 %v253
    %v1305 = vunpack.c.l.b16 %v254
    %v1306 = vunpack.c.l.b16 %v255
    %v1307 = vunpack.c.l.b16 %v256
    %v1308 = vunpack.c.l.b16 %v257
    %v1309 = vunpack.c.l.b16 %v258
    %v1310 = vunpack.c.l.b16 %v259
    %v1311 = vunpack.c.l.b16 %v260
    %v1312 = vunpack.c.l.b16 %v261
    %v1313 = vunpack.c.l.b16 %v262
    %v1314 = vunpack.c.l.b16 %v263
    %v1315 = vunpack.c.l.b16 %v264
    %v1316 = vunpack.c.l.b16 %v265
    %v1317 = vunpack.c.l.b16 %v266
    %v1318 = vunpack.c.l.b16 %v267
    %v1319 = vunpack.c.l.b16 %v268
    %v1320 = vunpack.c.l.b16 %v269
    %v1321 = vunpack.c.l.b16 %v270
    %v1322 = vunpack.c.l.b16 %v271
    %v1323 = vunpack.c.l.b16 %v272
    %v1324 = vunpack.c.l.b16 %v273
    %v1325 = vunpack.c.l.b16 %v274
    %v1326 = vunpack.c.l.b16 %v275
    %v1327 = vunpack.c.l.b16 %v276
    %v1328 = vunpack.c.l.b16 %v277
    %v1329 = vunpack.c.l.b16 %v278
    %v1330 = vunpack.c.l.b16 %v279
    %v1331 = vunpack.c.l.b16 %v280
    %v1332 = vunpack.c.l.b16 %v281
    %v1333 = vpack.c.b16 %v1302, %v1301
    %v1334 = vpack.c.b16 %v1304, %v1303
    %v1335 = vpack.c.b16 %v1306, %v1305
    %v1336 = vpack.c.b16 %v1308, %v1307
    %v1337 = vpack.c.b16 %v1310, %v1309
    %v1338 = vpack.c.b16 %v1312, %v1311
    %v1339 = vpack.c.b16 %v1314, %v1313
    %v1340 = vpack.c.b16 %v1316, %v1315
    %v1341 = vpack.c.b16 %v1318, %v1317
    %v1342 = vpack.c.b16 %v1320, %v1319
    %v1343 = vpack.c.b16 %v1322, %v1321
    %v1344 = vpack.c.b16 %v1324, %v1323
    %v1345 = vpack.c.b16 %v1326, %v1325
    %v1346 = vpack.c.b16 %v1328, %v1327
    %v1347 = vpack.c.b16 %v1330, %v1329
    %v1348 = vpack.c.b16 %v1332, %v1331
    %1365 = vmatprep.subr.bf16.mxu0 0
    %1366 = vmatpush1.bf16.msra.mxu0 %v1333
    %1367 = vmatprep.subr.bf16.mxu0 0
    %1368 = vmatpush1.bf16.msra.mxu0 %v1334
    %1369 = vmatprep.subr.bf16.mxu0 0
    %1370 = vmatpush1.bf16.msra.mxu0 %v1335
    %1371 = vmatprep.subr.bf16.mxu0 0
    %1372 = vmatpush1.bf16.msra.mxu0 %v1336
    %1373 = vmatprep.subr.bf16.mxu0 0
    %1374 = vmatpush1.bf16.msra.mxu0 %v1337
    %1375 = vmatprep.subr.bf16.mxu0 0
    %1376 = vmatpush1.bf16.msra.mxu0 %v1338
    %1377 = vmatprep.subr.bf16.mxu0 0
    %1378 = vmatpush1.bf16.msra.mxu0 %v1339
    %1379 = vmatprep.subr.bf16.mxu0 0
    %1380 = vmatpush1.bf16.msra.mxu0 %v1340
    %1381 = vmatprep.subr.bf16.mxu0 0
    %1382 = vmatpush1.bf16.msra.mxu0 %v1341
    %1383 = vmatprep.subr.bf16.mxu0 0
    %1384 = vmatpush1.bf16.msra.mxu0 %v1342
    %1385 = vmatprep.subr.bf16.mxu0 0
    %1386 = vmatpush1.bf16.msra.mxu0 %v1343
    %1387 = vmatprep.subr.bf16.mxu0 0
    %1388 = vmatpush1.bf16.msra.mxu0 %v1344
    %1389 = vmatprep.subr.bf16.mxu0 0
    %1390 = vmatpush1.bf16.msra.mxu0 %v1345
    %1391 = vmatprep.subr.bf16.mxu0 0
    %1392 = vmatpush1.bf16.msra.mxu0 %v1346
    %1393 = vmatprep.subr.bf16.mxu0 0
    %1394 = vmatpush1.bf16.msra.mxu0 %v1347
    %1395 = vmatprep.subr.bf16.mxu0 0
    %1396 = vmatpush1.bf16.msra.mxu0 %v1348
    %1397 = vmatprep.mubr.bf16.mxu0 %v878
    %1398 = vmatmul.mubr.bf16.gmra.mrb[0].mxu0 %v877
    %v1399 = vpop.f32.mrb[0].mxu0
    %v1400 = vadd.f32 %v287, %v1399
    %v1401 = vpop.f32.mrb[0].mxu0
    %v1402 = vpop.f32.mrb[0].mxu0
    %v1403 = vadd.f32 %v287, %v1402
    %v1404 = vpop.f32.mrb[0].mxu0
    %1405 = vmatprep.mubr.bf16.mxu0 %v880
    %1406 = vmatmul.mubr.bf16.gmra.mrb[0].mxu0 %v879
    %v1407 = vpop.f32.mrb[0].mxu0
    %v1408 = vadd.f32 %v287, %v1407
    %v1409 = vpop.f32.mrb[0].mxu0
    %v1410 = vpop.f32.mrb[0].mxu0
    %v1411 = vadd.f32 %v287, %v1410
    %v1412 = vpop.f32.mrb[0].mxu0
    %1413 = vmatprep.mubr.bf16.mxu0 %v882
    %1414 = vmatmul.mubr.bf16.gmra.mrb[0].mxu0 %v881
    %v1415 = vpop.f32.mrb[0].mxu0
    %v1416 = vadd.f32 %v287, %v1415
    %v1417 = vpop.f32.mrb[0].mxu0
    %v1418 = vpop.f32.mrb[0].mxu0
    %v1419 = vadd.f32 %v287, %v1418
    %v1420 = vpop.f32.mrb[0].mxu0
    %1421 = vmatprep.mubr.bf16.mxu0 %v884
    %1422 = vmatmul.mubr.bf16.gmra.mrb[0].mxu0 %v883
    %v1423 = vpop.f32.mrb[0].mxu0
    %v1424 = vadd.f32 %v287, %v1423
    %v1425 = vpop.f32.mrb[0].mxu0
    %v1426 = vpop.f32.mrb[0].mxu0
    %v1427 = vadd.f32 %v287, %v1426
    %v1428 = vpop.f32.mrb[0].mxu0
    %1429 = vmatprep.mubr.bf16.mxu0 %v886
    %1430 = vmatmul.mubr.bf16.gmra.mrb[0].mxu0 %v885
    %v1431 = vpop.f32.mrb[0].mxu0
    %v1432 = vadd.f32 %v287, %v1431
    %v1433 = vpop.f32.mrb[0].mxu0
    %v1434 = vpop.f32.mrb[0].mxu0
    %v1435 = vadd.f32 %v287, %v1434
    %v1436 = vpop.f32.mrb[0].mxu0
    %1437 = vmatprep.mubr.bf16.mxu0 %v888
    %1438 = vmatmul.mubr.bf16.gmra.mrb[0].mxu0 %v887
    %v1439 = vpop.f32.mrb[0].mxu0
    %v1440 = vadd.f32 %v287, %v1439
    %v1441 = vpop.f32.mrb[0].mxu0
    %v1442 = vpop.f32.mrb[0].mxu0
    %v1443 = vadd.f32 %v287, %v1442
    %v1444 = vpop.f32.mrb[0].mxu0
    %1445 = vmatprep.mubr.bf16.mxu0 %v890
    %1446 = vmatmul.mubr.bf16.gmra.mrb[0].mxu0 %v889
    %v1447 = vpop.f32.mrb[0].mxu0
    %v1448 = vadd.f32 %v287, %v1447
    %v1449 = vpop.f32.mrb[0].mxu0
    %v1450 = vpop.f32.mrb[0].mxu0
    %v1451 = vadd.f32 %v287, %v1450
    %v1452 = vpop.f32.mrb[0].mxu0
    %1453 = vmatprep.mubr.bf16.mxu0 %v892
    %1454 = vmatmul.mubr.bf16.gmra.mrb[0].mxu0 %v891
    %v1455 = vpop.f32.mrb[0].mxu0
    %v1456 = vadd.f32 %v287, %v1455
    %v1457 = vpop.f32.mrb[0].mxu0
    %v1458 = vpop.f32.mrb[0].mxu0
    %v1459 = vadd.f32 %v287, %v1458
    %v1460 = vpop.f32.mrb[0].mxu0
    %1461 = vmatprep.mubr.bf16.mxu0 %v894
    %1462 = vmatmul.mubr.bf16.gmra.mrb[0].mxu0 %v893
    %v1463 = vpop.f32.mrb[0].mxu0
    %v1464 = vadd.f32 %v287, %v1463
    %v1465 = vpop.f32.mrb[0].mxu0
    %v1466 = vpop.f32.mrb[0].mxu0
    %v1467 = vadd.f32 %v287, %v1466
    %v1468 = vpop.f32.mrb[0].mxu0
    %1469 = vmatprep.mubr.bf16.mxu0 %v896
    %1470 = vmatmul.mubr.bf16.gmra.mrb[0].mxu0 %v895
    %v1471 = vpop.f32.mrb[0].mxu0
    %v1472 = vadd.f32 %v287, %v1471
    %v1473 = vpop.f32.mrb[0].mxu0
    %v1474 = vpop.f32.mrb[0].mxu0
    %v1475 = vadd.f32 %v287, %v1474
    %v1476 = vpop.f32.mrb[0].mxu0
    %1477 = vmatprep.mubr.bf16.mxu0 %v898
    %1478 = vmatmul.mubr.bf16.gmra.mrb[0].mxu0 %v897
    %v1479 = vpop.f32.mrb[0].mxu0
    %v1480 = vadd.f32 %v287, %v1479
    %v1481 = vpop.f32.mrb[0].mxu0
    %v1482 = vpop.f32.mrb[0].mxu0
    %v1483 = vadd.f32 %v287, %v1482
    %v1484 = vpop.f32.mrb[0].mxu0
    %1485 = vmatprep.mubr.bf16.mxu0 %v900
    %1486 = vmatmul.mubr.bf16.gmra.mrb[0].mxu0 %v899
    %v1487 = vpop.f32.mrb[0].mxu0
    %v1488 = vadd.f32 %v287, %v1487
    %v1489 = vpop.f32.mrb[0].mxu0
    %v1490 = vpop.f32.mrb[0].mxu0
    %v1491 = vadd.f32 %v287, %v1490
    %v1492 = vpop.f32.mrb[0].mxu0
    %1493 = vmatprep.mubr.bf16.mxu0 %v902
    %1494 = vmatmul.mubr.bf16.gmra.mrb[0].mxu0 %v901
    %v1495 = vpop.f32.mrb[0].mxu0
    %v1496 = vadd.f32 %v287, %v1495
    %v1497 = vpop.f32.mrb[0].mxu0
    %v1498 = vpop.f32.mrb[0].mxu0
    %v1499 = vadd.f32 %v287, %v1498
    %v1500 = vpop.f32.mrb[0].mxu0
    %1501 = vmatprep.mubr.bf16.mxu0 %v904
    %1502 = vmatmul.mubr.bf16.gmra.mrb[0].mxu0 %v903
    %v1503 = vpop.f32.mrb[0].mxu0
    %v1504 = vadd.f32 %v287, %v1503
    %v1505 = vpop.f32.mrb[0].mxu0
    %v1506 = vpop.f32.mrb[0].mxu0
    %v1507 = vadd.f32 %v287, %v1506
    %v1508 = vpop.f32.mrb[0].mxu0
    %1509 = vmatprep.mubr.bf16.mxu0 %v906
    %1510 = vmatmul.mubr.bf16.gmra.mrb[0].mxu0 %v905
    %v1511 = vpop.f32.mrb[0].mxu0
    %v1512 = vadd.f32 %v287, %v1511
    %v1513 = vpop.f32.mrb[0].mxu0
    %v1514 = vpop.f32.mrb[0].mxu0
    %v1515 = vadd.f32 %v287, %v1514
    %v1516 = vpop.f32.mrb[0].mxu0
    %1517 = vmatprep.mubr.bf16.mxu0 %v908
    %1518 = vmatmul.mubr.bf16.gmra.mrb[0].mxu0 %v907
    %v1519 = vpop.f32.mrb[0].mxu0
    %v1520 = vadd.f32 %v287, %v1519
    %v1521 = vpop.f32.mrb[0].mxu0
    %v1522 = vpop.f32.mrb[0].mxu0
    %v1523 = vadd.f32 %v287, %v1522
    %v1524 = vpop.f32.mrb[0].mxu0
    %1525 = vmatprep.mubr.bf16.mxu0 %v910
    %1526 = vmatmul.mubr.bf16.gmra.mrb[0].mxu0 %v909
    %v1527 = vpop.f32.mrb[0].mxu0
    %v1528 = vadd.f32 %v287, %v1527
    %v1529 = vpop.f32.mrb[0].mxu0
    %v1530 = vpop.f32.mrb[0].mxu0
    %v1531 = vadd.f32 %v287, %v1530
    %v1532 = vpop.f32.mrb[0].mxu0
    %1533 = vmatprep.mubr.bf16.mxu0 %v912
    %1534 = vmatmul.mubr.bf16.gmra.mrb[0].mxu0 %v911
    %v1535 = vpop.f32.mrb[0].mxu0
    %v1536 = vadd.f32 %v287, %v1535
    %v1537 = vpop.f32.mrb[0].mxu0
    %v1538 = vpop.f32.mrb[0].mxu0
    %v1539 = vadd.f32 %v287, %v1538
    %v1540 = vpop.f32.mrb[0].mxu0
    %1541 = vmatprep.mubr.bf16.mxu0 %v914
    %1542 = vmatmul.mubr.bf16.gmra.mrb[0].mxu0 %v913
    %v1543 = vpop.f32.mrb[0].mxu0
    %v1544 = vadd.f32 %v287, %v1543
    %v1545 = vpop.f32.mrb[0].mxu0
    %v1546 = vpop.f32.mrb[0].mxu0
    %v1547 = vadd.f32 %v287, %v1546
    %v1548 = vpop.f32.mrb[0].mxu0
    %1549 = vmatprep.mubr.bf16.mxu0 %v916
    %1550 = vmatmul.mubr.bf16.gmra.mrb[0].mxu0 %v915
    %v1551 = vpop.f32.mrb[0].mxu0
    %v1552 = vadd.f32 %v287, %v1551
    %v1553 = vpop.f32.mrb[0].mxu0
    %v1554 = vpop.f32.mrb[0].mxu0
    %v1555 = vadd.f32 %v287, %v1554
    %v1556 = vpop.f32.mrb[0].mxu0
    %1557 = vmatprep.mubr.bf16.mxu0 %v918
    %1558 = vmatmul.mubr.bf16.gmra.mrb[0].mxu0 %v917
    %v1559 = vpop.f32.mrb[0].mxu0
    %v1560 = vadd.f32 %v287, %v1559
    %v1561 = vpop.f32.mrb[0].mxu0
    %v1562 = vpop.f32.mrb[0].mxu0
    %v1563 = vadd.f32 %v287, %v1562
    %v1564 = vpop.f32.mrb[0].mxu0
    %1565 = vmatprep.mubr.bf16.mxu0 %v920
    %1566 = vmatmul.mubr.bf16.gmra.mrb[0].mxu0 %v919
    %v1567 = vpop.f32.mrb[0].mxu0
    %v1568 = vadd.f32 %v287, %v1567
    %v1569 = vpop.f32.mrb[0].mxu0
    %v1570 = vpop.f32.mrb[0].mxu0
    %v1571 = vadd.f32 %v287, %v1570
    %v1572 = vpop.f32.mrb[0].mxu0
    %1573 = vmatprep.mubr.bf16.mxu0 %v922
    %1574 = vmatmul.mubr.bf16.gmra.mrb[0].mxu0 %v921
    %v1575 = vpop.f32.mrb[0].mxu0
    %v1576 = vadd.f32 %v287, %v1575
    %v1577 = vpop.f32.mrb[0].mxu0
    %v1578 = vpop.f32.mrb[0].mxu0
    %v1579 = vadd.f32 %v287, %v1578
    %v1580 = vpop.f32.mrb[0].mxu0
    %1581 = vmatprep.mubr.bf16.mxu0 %v924
    %1582 = vmatmul.mubr.bf16.gmra.mrb[0].mxu0 %v923
    %v1583 = vpop.f32.mrb[0].mxu0
    %v1584 = vadd.f32 %v287, %v1583
    %v1585 = vpop.f32.mrb[0].mxu0
    %v1586 = vpop.f32.mrb[0].mxu0
    %v1587 = vadd.f32 %v287, %v1586
    %v1588 = vpop.f32.mrb[0].mxu0
    %1589 = vmatprep.mubr.bf16.mxu0 %v926
    %1590 = vmatmul.mubr.bf16.gmra.mrb[0].mxu0 %v925
    %v1591 = vpop.f32.mrb[0].mxu0
    %v1592 = vadd.f32 %v287, %v1591
    %v1593 = vpop.f32.mrb[0].mxu0
    %v1594 = vpop.f32.mrb[0].mxu0
    %v1595 = vadd.f32 %v287, %v1594
    %v1596 = vpop.f32.mrb[0].mxu0
    %1597 = vmatprep.mubr.bf16.mxu0 %v928
    %1598 = vmatmul.mubr.bf16.gmra.mrb[0].mxu0 %v927
    %v1599 = vpop.f32.mrb[0].mxu0
    %v1600 = vadd.f32 %v287, %v1599
    %v1601 = vpop.f32.mrb[0].mxu0
    %v1602 = vpop.f32.mrb[0].mxu0
    %v1603 = vadd.f32 %v287, %v1602
    %v1604 = vpop.f32.mrb[0].mxu0
    %1605 = vmatprep.mubr.bf16.mxu0 %v930
    %1606 = vmatmul.mubr.bf16.gmra.mrb[0].mxu0 %v929
    %v1607 = vpop.f32.mrb[0].mxu0
    %v1608 = vadd.f32 %v287, %v1607
    %v1609 = vpop.f32.mrb[0].mxu0
    %v1610 = vpop.f32.mrb[0].mxu0
    %v1611 = vadd.f32 %v287, %v1610
    %v1612 = vpop.f32.mrb[0].mxu0
    %1613 = vmatprep.mubr.bf16.mxu0 %v932
    %1614 = vmatmul.mubr.bf16.gmra.mrb[0].mxu0 %v931
    %v1615 = vpop.f32.mrb[0].mxu0
    %v1616 = vadd.f32 %v287, %v1615
    %v1617 = vpop.f32.mrb[0].mxu0
    %v1618 = vpop.f32.mrb[0].mxu0
    %v1619 = vadd.f32 %v287, %v1618
    %v1620 = vpop.f32.mrb[0].mxu0
    %1621 = vmatprep.mubr.bf16.mxu0 %v934
    %1622 = vmatmul.mubr.bf16.gmra.mrb[0].mxu0 %v933
    %v1623 = vpop.f32.mrb[0].mxu0
    %v1624 = vadd.f32 %v287, %v1623
    %v1625 = vpop.f32.mrb[0].mxu0
    %v1626 = vpop.f32.mrb[0].mxu0
    %v1627 = vadd.f32 %v287, %v1626
    %v1628 = vpop.f32.mrb[0].mxu0
    %1629 = vmatprep.mubr.bf16.mxu0 %v936
    %1630 = vmatmul.mubr.bf16.gmra.mrb[0].mxu0 %v935
    %v1631 = vpop.f32.mrb[0].mxu0
    %v1632 = vadd.f32 %v287, %v1631
    %v1633 = vpop.f32.mrb[0].mxu0
    %v1634 = vpop.f32.mrb[0].mxu0
    %v1635 = vadd.f32 %v287, %v1634
    %v1636 = vpop.f32.mrb[0].mxu0
    %1637 = vmatprep.mubr.bf16.mxu0 %v938
    %1638 = vmatmul.mubr.bf16.gmra.mrb[0].mxu0 %v937
    %v1639 = vpop.f32.mrb[0].mxu0
    %v1640 = vadd.f32 %v287, %v1639
    %v1641 = vpop.f32.mrb[0].mxu0
    %v1642 = vpop.f32.mrb[0].mxu0
    %v1643 = vadd.f32 %v287, %v1642
    %v1644 = vpop.f32.mrb[0].mxu0
    %1645 = vmatprep.mubr.bf16.mxu0 %v940
    %1646 = vmatmul.mubr.bf16.gmra.mrb[0].mxu0 %v939
    %v1647 = vpop.f32.mrb[0].mxu0
    %v1648 = vadd.f32 %v287, %v1647
    %v1649 = vpop.f32.mrb[0].mxu0
    %v1650 = vpop.f32.mrb[0].mxu0
    %v1651 = vadd.f32 %v287, %v1650
    %v1652 = vpop.f32.mrb[0].mxu0
    %1653 = vmatprep.mubr.bf16.mxu0 %v942
    %1654 = vmatmul.mubr.bf16.gmra.mrb[0].mxu0 %v941
    %v1655 = vpop.f32.mrb[0].mxu0
    %v1656 = vadd.f32 %v287, %v1655
    %v1657 = vpop.f32.mrb[0].mxu0
    %v1658 = vpop.f32.mrb[0].mxu0
    %v1659 = vadd.f32 %v287, %v1658
    %v1660 = vpop.f32.mrb[0].mxu0
    %1661 = vmatprep.mubr.bf16.mxu0 %v944
    %1662 = vmatmul.mubr.bf16.gmra.mrb[0].mxu0 %v943
    %v1663 = vpop.f32.mrb[0].mxu0
    %v1664 = vadd.f32 %v287, %v1663
    %v1665 = vpop.f32.mrb[0].mxu0
    %v1666 = vpop.f32.mrb[0].mxu0
    %v1667 = vadd.f32 %v287, %v1666
    %v1668 = vpop.f32.mrb[0].mxu0
    %1669 = vmatprep.mubr.bf16.mxu0 %v946
    %1670 = vmatmul.mubr.bf16.gmra.mrb[0].mxu0 %v945
    %v1671 = vpop.f32.mrb[0].mxu0
    %v1672 = vadd.f32 %v287, %v1671
    %v1673 = vpop.f32.mrb[0].mxu0
    %v1674 = vpop.f32.mrb[0].mxu0
    %v1675 = vadd.f32 %v287, %v1674
    %v1676 = vpop.f32.mrb[0].mxu0
    %1677 = vmatprep.mubr.bf16.mxu0 %v948
    %1678 = vmatmul.mubr.bf16.gmra.mrb[0].mxu0 %v947
    %v1679 = vpop.f32.mrb[0].mxu0
    %v1680 = vadd.f32 %v287, %v1679
    %v1681 = vpop.f32.mrb[0].mxu0
    %v1682 = vpop.f32.mrb[0].mxu0
    %v1683 = vadd.f32 %v287, %v1682
    %v1684 = vpop.f32.mrb[0].mxu0
    %1685 = vmatprep.mubr.bf16.mxu0 %v950
    %1686 = vmatmul.mubr.bf16.gmra.mrb[0].mxu0 %v949
    %v1687 = vpop.f32.mrb[0].mxu0
    %v1688 = vadd.f32 %v287, %v1687
    %v1689 = vpop.f32.mrb[0].mxu0
    %v1690 = vpop.f32.mrb[0].mxu0
    %v1691 = vadd.f32 %v287, %v1690
    %v1692 = vpop.f32.mrb[0].mxu0
    %1693 = vmatprep.mubr.bf16.mxu0 %v952
    %1694 = vmatmul.mubr.bf16.gmra.mrb[0].mxu0 %v951
    %v1695 = vpop.f32.mrb[0].mxu0
    %v1696 = vadd.f32 %v287, %v1695
    %v1697 = vpop.f32.mrb[0].mxu0
    %v1698 = vpop.f32.mrb[0].mxu0
    %v1699 = vadd.f32 %v287, %v1698
    %v1700 = vpop.f32.mrb[0].mxu0
    %1701 = vmatprep.mubr.bf16.mxu0 %v954
    %1702 = vmatmul.mubr.bf16.gmra.mrb[0].mxu0 %v953
    %v1703 = vpop.f32.mrb[0].mxu0
    %v1704 = vadd.f32 %v287, %v1703
    %v1705 = vpop.f32.mrb[0].mxu0
    %v1706 = vpop.f32.mrb[0].mxu0
    %v1707 = vadd.f32 %v287, %v1706
    %v1708 = vpop.f32.mrb[0].mxu0
    %1709 = vmatprep.mubr.bf16.mxu0 %v956
    %1710 = vmatmul.mubr.bf16.gmra.mrb[0].mxu0 %v955
    %v1711 = vpop.f32.mrb[0].mxu0
    %v1712 = vadd.f32 %v287, %v1711
    %v1713 = vpop.f32.mrb[0].mxu0
    %v1714 = vpop.f32.mrb[0].mxu0
    %v1715 = vadd.f32 %v287, %v1714
    %v1716 = vpop.f32.mrb[0].mxu0
    %1717 = vmatprep.mubr.bf16.mxu0 %v958
    %1718 = vmatmul.mubr.bf16.gmra.mrb[0].mxu0 %v957
    %v1719 = vpop.f32.mrb[0].mxu0
    %v1720 = vadd.f32 %v287, %v1719
    %v1721 = vpop.f32.mrb[0].mxu0
    %v1722 = vpop.f32.mrb[0].mxu0
    %v1723 = vadd.f32 %v287, %v1722
    %v1724 = vpop.f32.mrb[0].mxu0
    %1725 = vmatprep.mubr.bf16.mxu0 %v960
    %1726 = vmatmul.mubr.bf16.gmra.mrb[0].mxu0 %v959
    %v1727 = vpop.f32.mrb[0].mxu0
    %v1728 = vadd.f32 %v287, %v1727
    %v1729 = vpop.f32.mrb[0].mxu0
    %v1730 = vpop.f32.mrb[0].mxu0
    %v1731 = vadd.f32 %v287, %v1730
    %v1732 = vpop.f32.mrb[0].mxu0
    %1733 = vmatprep.mubr.bf16.mxu0 %v962
    %1734 = vmatmul.mubr.bf16.gmra.mrb[0].mxu0 %v961
    %v1735 = vpop.f32.mrb[0].mxu0
    %v1736 = vadd.f32 %v287, %v1735
    %v1737 = vpop.f32.mrb[0].mxu0
    %v1738 = vpop.f32.mrb[0].mxu0
    %v1739 = vadd.f32 %v287, %v1738
    %v1740 = vpop.f32.mrb[0].mxu0
    %1741 = vmatprep.mubr.bf16.mxu0 %v964
    %1742 = vmatmul.mubr.bf16.gmra.mrb[0].mxu0 %v963
    %v1743 = vpop.f32.mrb[0].mxu0
    %v1744 = vadd.f32 %v287, %v1743
    %v1745 = vpop.f32.mrb[0].mxu0
    %v1746 = vpop.f32.mrb[0].mxu0
    %v1747 = vadd.f32 %v287, %v1746
    %v1748 = vpop.f32.mrb[0].mxu0
    %1749 = vmatprep.mubr.bf16.mxu0 %v966
    %1750 = vmatmul.mubr.bf16.gmra.mrb[0].mxu0 %v965
    %v1751 = vpop.f32.mrb[0].mxu0
    %v1752 = vadd.f32 %v287, %v1751
    %v1753 = vpop.f32.mrb[0].mxu0
    %v1754 = vpop.f32.mrb[0].mxu0
    %v1755 = vadd.f32 %v287, %v1754
    %v1756 = vpop.f32.mrb[0].mxu0
    %1757 = vmatprep.mubr.bf16.mxu0 %v968
    %1758 = vmatmul.mubr.bf16.gmra.mrb[0].mxu0 %v967
    %v1759 = vpop.f32.mrb[0].mxu0
    %v1760 = vadd.f32 %v287, %v1759
    %v1761 = vpop.f32.mrb[0].mxu0
    %v1762 = vpop.f32.mrb[0].mxu0
    %v1763 = vadd.f32 %v287, %v1762
    %v1764 = vpop.f32.mrb[0].mxu0
    %1765 = vmatprep.mubr.bf16.mxu0 %v970
    %1766 = vmatmul.mubr.bf16.gmra.mrb[0].mxu0 %v969
    %v1767 = vpop.f32.mrb[0].mxu0
    %v1768 = vadd.f32 %v287, %v1767
    %v1769 = vpop.f32.mrb[0].mxu0
    %v1770 = vpop.f32.mrb[0].mxu0
    %v1771 = vadd.f32 %v287, %v1770
    %v1772 = vpop.f32.mrb[0].mxu0
    %1773 = vmatprep.mubr.bf16.mxu0 %v972
    %1774 = vmatmul.mubr.bf16.gmra.mrb[0].mxu0 %v971
    %v1775 = vpop.f32.mrb[0].mxu0
    %v1776 = vadd.f32 %v287, %v1775
    %v1777 = vpop.f32.mrb[0].mxu0
    %v1778 = vpop.f32.mrb[0].mxu0
    %v1779 = vadd.f32 %v287, %v1778
    %v1780 = vpop.f32.mrb[0].mxu0
    %1781 = vmatprep.mubr.bf16.mxu0 %v974
    %1782 = vmatmul.mubr.bf16.gmra.mrb[0].mxu0 %v973
    %v1783 = vpop.f32.mrb[0].mxu0
    %v1784 = vadd.f32 %v287, %v1783
    %v1785 = vpop.f32.mrb[0].mxu0
    %v1786 = vpop.f32.mrb[0].mxu0
    %v1787 = vadd.f32 %v287, %v1786
    %v1788 = vpop.f32.mrb[0].mxu0
    %1789 = vmatprep.mubr.bf16.mxu0 %v976
    %1790 = vmatmul.mubr.bf16.gmra.mrb[0].mxu0 %v975
    %v1791 = vpop.f32.mrb[0].mxu0
    %v1792 = vadd.f32 %v287, %v1791
    %v1793 = vpop.f32.mrb[0].mxu0
    %v1794 = vpop.f32.mrb[0].mxu0
    %v1795 = vadd.f32 %v287, %v1794
    %v1796 = vpop.f32.mrb[0].mxu0
    %1797 = vmatprep.mubr.bf16.mxu0 %v978
    %1798 = vmatmul.mubr.bf16.gmra.mrb[0].mxu0 %v977
    %v1799 = vpop.f32.mrb[0].mxu0
    %v1800 = vadd.f32 %v287, %v1799
    %v1801 = vpop.f32.mrb[0].mxu0
    %v1802 = vpop.f32.mrb[0].mxu0
    %v1803 = vadd.f32 %v287, %v1802
    %v1804 = vpop.f32.mrb[0].mxu0
    %1805 = vmatprep.mubr.bf16.mxu0 %v980
    %1806 = vmatmul.mubr.bf16.gmra.mrb[0].mxu0 %v979
    %v1807 = vpop.f32.mrb[0].mxu0
    %v1808 = vadd.f32 %v287, %v1807
    %v1809 = vpop.f32.mrb[0].mxu0
    %v1810 = vpop.f32.mrb[0].mxu0
    %v1811 = vadd.f32 %v287, %v1810
    %v1812 = vpop.f32.mrb[0].mxu0
    %1813 = vmatprep.mubr.bf16.mxu0 %v982
    %1814 = vmatmul.mubr.bf16.gmra.mrb[0].mxu0 %v981
    %v1815 = vpop.f32.mrb[0].mxu0
    %v1816 = vadd.f32 %v287, %v1815
    %v1817 = vpop.f32.mrb[0].mxu0
    %v1818 = vpop.f32.mrb[0].mxu0
    %v1819 = vadd.f32 %v287, %v1818
    %v1820 = vpop.f32.mrb[0].mxu0
    %1821 = vmatprep.mubr.bf16.mxu0 %v984
    %1822 = vmatmul.mubr.bf16.gmra.mrb[0].mxu0 %v983
    %v1823 = vpop.f32.mrb[0].mxu0
    %v1824 = vadd.f32 %v287, %v1823
    %v1825 = vpop.f32.mrb[0].mxu0
    %v1826 = vpop.f32.mrb[0].mxu0
    %v1827 = vadd.f32 %v287, %v1826
    %v1828 = vpop.f32.mrb[0].mxu0
    %1829 = vmatprep.mubr.bf16.mxu0 %v986
    %1830 = vmatmul.mubr.bf16.gmra.mrb[0].mxu0 %v985
    %v1831 = vpop.f32.mrb[0].mxu0
    %v1832 = vadd.f32 %v287, %v1831
    %v1833 = vpop.f32.mrb[0].mxu0
    %v1834 = vpop.f32.mrb[0].mxu0
    %v1835 = vadd.f32 %v287, %v1834
    %v1836 = vpop.f32.mrb[0].mxu0
    %1837 = vmatprep.mubr.bf16.mxu0 %v988
    %1838 = vmatmul.mubr.bf16.gmra.mrb[0].mxu0 %v987
    %v1839 = vpop.f32.mrb[0].mxu0
    %v1840 = vadd.f32 %v287, %v1839
    %v1841 = vpop.f32.mrb[0].mxu0
    %v1842 = vpop.f32.mrb[0].mxu0
    %v1843 = vadd.f32 %v287, %v1842
    %v1844 = vpop.f32.mrb[0].mxu0
    %1845 = vmatprep.mubr.bf16.mxu0 %v990
    %1846 = vmatmul.mubr.bf16.gmra.mrb[0].mxu0 %v989
    %v1847 = vpop.f32.mrb[0].mxu0
    %v1848 = vadd.f32 %v287, %v1847
    %v1849 = vpop.f32.mrb[0].mxu0
    %v1850 = vpop.f32.mrb[0].mxu0
    %v1851 = vadd.f32 %v287, %v1850
    %v1852 = vpop.f32.mrb[0].mxu0
    %1853 = vmatprep.mubr.bf16.mxu0 %v992
    %1854 = vmatmul.mubr.bf16.gmra.mrb[0].mxu0 %v991
    %v1855 = vpop.f32.mrb[0].mxu0
    %v1856 = vadd.f32 %v287, %v1855
    %v1857 = vpop.f32.mrb[0].mxu0
    %v1858 = vpop.f32.mrb[0].mxu0
    %v1859 = vadd.f32 %v287, %v1858
    %v1860 = vpop.f32.mrb[0].mxu0
    %1861 = vmatprep.mubr.bf16.mxu0 %v994
    %1862 = vmatmul.mubr.bf16.gmra.mrb[0].mxu0 %v993
    %v1863 = vpop.f32.mrb[0].mxu0
    %v1864 = vadd.f32 %v287, %v1863
    %v1865 = vpop.f32.mrb[0].mxu0
    %v1866 = vpop.f32.mrb[0].mxu0
    %v1867 = vadd.f32 %v287, %v1866
    %v1868 = vpop.f32.mrb[0].mxu0
    %1869 = vmatprep.mubr.bf16.mxu0 %v996
    %1870 = vmatmul.mubr.bf16.gmra.mrb[0].mxu0 %v995
    %v1871 = vpop.f32.mrb[0].mxu0
    %v1872 = vadd.f32 %v287, %v1871
    %v1873 = vpop.f32.mrb[0].mxu0
    %v1874 = vpop.f32.mrb[0].mxu0
    %v1875 = vadd.f32 %v287, %v1874
    %v1876 = vpop.f32.mrb[0].mxu0
    %1877 = vmatprep.mubr.bf16.mxu0 %v998
    %1878 = vmatmul.mubr.bf16.gmra.mrb[0].mxu0 %v997
    %v1879 = vpop.f32.mrb[0].mxu0
    %v1880 = vadd.f32 %v287, %v1879
    %v1881 = vpop.f32.mrb[0].mxu0
    %v1882 = vpop.f32.mrb[0].mxu0
    %v1883 = vadd.f32 %v287, %v1882
    %v1884 = vpop.f32.mrb[0].mxu0
    %1885 = vmatprep.mubr.bf16.mxu0 %v1000
    %1886 = vmatmul.mubr.bf16.gmra.mrb[0].mxu0 %v999
    %v1887 = vpop.f32.mrb[0].mxu0
    %v1888 = vadd.f32 %v287, %v1887
    %v1889 = vpop.f32.mrb[0].mxu0
    %v1890 = vpop.f32.mrb[0].mxu0
    %v1891 = vadd.f32 %v287, %v1890
    %v1892 = vpop.f32.mrb[0].mxu0
    %1893 = vmatprep.mubr.bf16.mxu0 %v1002
    %1894 = vmatmul.mubr.bf16.gmra.mrb[0].mxu0 %v1001
    %v1895 = vpop.f32.mrb[0].mxu0
    %v1896 = vadd.f32 %v287, %v1895
    %v1897 = vpop.f32.mrb[0].mxu0
    %v1898 = vpop.f32.mrb[0].mxu0
    %v1899 = vadd.f32 %v287, %v1898
    %v1900 = vpop.f32.mrb[0].mxu0
    %1901 = vmatprep.mubr.bf16.mxu0 %v1004
    %1902 = vmatmul.mubr.bf16.gmra.mrb[0].mxu0 %v1003
    %v1903 = vpop.f32.mrb[0].mxu0
    %v1904 = vadd.f32 %v287, %v1903
    %v1905 = vpop.f32.mrb[0].mxu0
    %v1906 = vpop.f32.mrb[0].mxu0
    %v1907 = vadd.f32 %v287, %v1906
    %v1908 = vpop.f32.mrb[0].mxu0
    %1909 = vmatprep.mubr.bf16.mxu0 %v1006
    %1910 = vmatmul.mubr.bf16.gmra.mrb[0].mxu0 %v1005
    %v1911 = vpop.f32.mrb[0].mxu0
    %v1912 = vadd.f32 %v287, %v1911
    %v1913 = vpop.f32.mrb[0].mxu0
    %v1914 = vpop.f32.mrb[0].mxu0
    %v1915 = vadd.f32 %v287, %v1914
    %v1916 = vpop.f32.mrb[0].mxu0
    %1917 = vmatprep.mubr.bf16.mxu0 %v1008
    %1918 = vmatmul.mubr.bf16.gmra.mrb[0].mxu0 %v1007
    %v1919 = vpop.f32.mrb[0].mxu0
    %v1920 = vadd.f32 %v287, %v1919
    %v1921 = vpop.f32.mrb[0].mxu0
    %v1922 = vpop.f32.mrb[0].mxu0
    %v1923 = vadd.f32 %v287, %v1922
    %v1924 = vpop.f32.mrb[0].mxu0
    %1925 = vmatprep.mubr.bf16.mxu0 %v1010
    %1926 = vmatmul.mubr.bf16.gmra.mrb[0].mxu0 %v1009
    %v1927 = vpop.f32.mrb[0].mxu0
    %v1928 = vadd.f32 %v287, %v1927
    %v1929 = vpop.f32.mrb[0].mxu0
    %v1930 = vpop.f32.mrb[0].mxu0
    %v1931 = vadd.f32 %v287, %v1930
    %v1932 = vpop.f32.mrb[0].mxu0
    %1933 = vmatprep.mubr.bf16.mxu0 %v1012
    %1934 = vmatmul.mubr.bf16.gmra.mrb[0].mxu0 %v1011
    %v1935 = vpop.f32.mrb[0].mxu0
    %v1936 = vadd.f32 %v287, %v1935
    %v1937 = vpop.f32.mrb[0].mxu0
    %v1938 = vpop.f32.mrb[0].mxu0
    %v1939 = vadd.f32 %v287, %v1938
    %v1940 = vpop.f32.mrb[0].mxu0
    %1941 = vmatprep.mubr.bf16.mxu0 %v1014
    %1942 = vmatmul.mubr.bf16.gmra.mrb[0].mxu0 %v1013
    %v1943 = vpop.f32.mrb[0].mxu0
    %v1944 = vadd.f32 %v287, %v1943
    %v1945 = vpop.f32.mrb[0].mxu0
    %v1946 = vpop.f32.mrb[0].mxu0
    %v1947 = vadd.f32 %v287, %v1946
    %v1948 = vpop.f32.mrb[0].mxu0
    %1949 = vmatprep.mubr.bf16.mxu0 %v1016
    %1950 = vmatmul.mubr.bf16.gmra.mrb[0].mxu0 %v1015
    %v1951 = vpop.f32.mrb[0].mxu0
    %v1952 = vadd.f32 %v287, %v1951
    %v1953 = vpop.f32.mrb[0].mxu0
    %v1954 = vpop.f32.mrb[0].mxu0
    %v1955 = vadd.f32 %v287, %v1954
    %v1956 = vpop.f32.mrb[0].mxu0
    %1957 = vmatprep.mubr.bf16.mxu0 %v1018
    %1958 = vmatmul.mubr.bf16.gmra.mrb[0].mxu0 %v1017
    %v1959 = vpop.f32.mrb[0].mxu0
    %v1960 = vadd.f32 %v287, %v1959
    %v1961 = vpop.f32.mrb[0].mxu0
    %v1962 = vpop.f32.mrb[0].mxu0
    %v1963 = vadd.f32 %v287, %v1962
    %v1964 = vpop.f32.mrb[0].mxu0
    %1965 = vmatprep.mubr.bf16.mxu0 %v1020
    %1966 = vmatmul.mubr.bf16.gmra.mrb[0].mxu0 %v1019
    %v1967 = vpop.f32.mrb[0].mxu0
    %v1968 = vadd.f32 %v287, %v1967
    %v1969 = vpop.f32.mrb[0].mxu0
    %v1970 = vpop.f32.mrb[0].mxu0
    %v1971 = vadd.f32 %v287, %v1970
    %v1972 = vpop.f32.mrb[0].mxu0
    %1973 = vmatprep.mubr.bf16.mxu0 %v1022
    %1974 = vmatmul.mubr.bf16.gmra.mrb[0].mxu0 %v1021
    %v1975 = vpop.f32.mrb[0].mxu0
    %v1976 = vadd.f32 %v287, %v1975
    %v1977 = vpop.f32.mrb[0].mxu0
    %v1978 = vpop.f32.mrb[0].mxu0
    %v1979 = vadd.f32 %v287, %v1978
    %v1980 = vpop.f32.mrb[0].mxu0
    %1981 = vmatprep.mubr.bf16.mxu0 %v1024
    %1982 = vmatmul.mubr.bf16.gmra.mrb[0].mxu0 %v1023
    %v1983 = vpop.f32.mrb[0].mxu0
    %v1984 = vadd.f32 %v287, %v1983
    %v1985 = vpop.f32.mrb[0].mxu0
    %v1986 = vpop.f32.mrb[0].mxu0
    %v1987 = vadd.f32 %v287, %v1986
    %v1988 = vpop.f32.mrb[0].mxu0
    %1989 = vmatprep.mubr.bf16.mxu0 %v1026
    %1990 = vmatmul.mubr.bf16.gmra.mrb[0].mxu0 %v1025
    %v1991 = vpop.f32.mrb[0].mxu0
    %v1992 = vadd.f32 %v287, %v1991
    %v1993 = vpop.f32.mrb[0].mxu0
    %v1994 = vpop.f32.mrb[0].mxu0
    %v1995 = vadd.f32 %v287, %v1994
    %v1996 = vpop.f32.mrb[0].mxu0
    %1997 = vmatprep.mubr.bf16.mxu0 %v1028
    %1998 = vmatmul.mubr.bf16.gmra.mrb[0].mxu0 %v1027
    %v1999 = vpop.f32.mrb[0].mxu0
    %v2000 = vadd.f32 %v287, %v1999
    %v2001 = vpop.f32.mrb[0].mxu0
    %v2002 = vpop.f32.mrb[0].mxu0
    %v2003 = vadd.f32 %v287, %v2002
    %v2004 = vpop.f32.mrb[0].mxu0
    %2005 = vmatprep.mubr.bf16.mxu0 %v1030
    %2006 = vmatmul.mubr.bf16.gmra.mrb[0].mxu0 %v1029
    %v2007 = vpop.f32.mrb[0].mxu0
    %v2008 = vadd.f32 %v287, %v2007
    %v2009 = vpop.f32.mrb[0].mxu0
    %v2010 = vpop.f32.mrb[0].mxu0
    %v2011 = vadd.f32 %v287, %v2010
    %v2012 = vpop.f32.mrb[0].mxu0
    %2013 = vmatprep.mubr.bf16.mxu0 %v1032
    %2014 = vmatmul.mubr.bf16.gmra.mrb[0].mxu0 %v1031
    %v2015 = vpop.f32.mrb[0].mxu0
    %v2016 = vadd.f32 %v287, %v2015
    %v2017 = vpop.f32.mrb[0].mxu0
    %v2018 = vpop.f32.mrb[0].mxu0
    %v2019 = vadd.f32 %v287, %v2018
    %v2020 = vpop.f32.mrb[0].mxu0
    %2021 = vmatprep.mubr.bf16.mxu0 %v1034
    %2022 = vmatmul.mubr.bf16.gmra.mrb[0].mxu0 %v1033
    %v2023 = vpop.f32.mrb[0].mxu0
    %v2024 = vadd.f32 %v287, %v2023
    %v2025 = vpop.f32.mrb[0].mxu0
    %v2026 = vpop.f32.mrb[0].mxu0
    %v2027 = vadd.f32 %v287, %v2026
    %v2028 = vpop.f32.mrb[0].mxu0
    %2029 = vmatprep.mubr.bf16.mxu0 %v1036
    %2030 = vmatmul.mubr.bf16.gmra.mrb[0].mxu0 %v1035
    %v2031 = vpop.f32.mrb[0].mxu0
    %v2032 = vadd.f32 %v287, %v2031
    %v2033 = vpop.f32.mrb[0].mxu0
    %v2034 = vpop.f32.mrb[0].mxu0
    %v2035 = vadd.f32 %v287, %v2034
    %v2036 = vpop.f32.mrb[0].mxu0
    %2037 = vmatprep.mubr.bf16.mxu0 %v1038
    %2038 = vmatmul.mubr.bf16.gmra.mrb[0].mxu0 %v1037
    %v2039 = vpop.f32.mrb[0].mxu0
    %v2040 = vadd.f32 %v287, %v2039
    %v2041 = vpop.f32.mrb[0].mxu0
    %v2042 = vpop.f32.mrb[0].mxu0
    %v2043 = vadd.f32 %v287, %v2042
    %v2044 = vpop.f32.mrb[0].mxu0
    %2045 = vmatprep.mubr.bf16.mxu0 %v1040
    %2046 = vmatmul.mubr.bf16.gmra.mrb[0].mxu0 %v1039
    %v2047 = vpop.f32.mrb[0].mxu0
    %v2048 = vadd.f32 %v287, %v2047
    %v2049 = vpop.f32.mrb[0].mxu0
    %v2050 = vpop.f32.mrb[0].mxu0
    %v2051 = vadd.f32 %v287, %v2050
    %v2052 = vpop.f32.mrb[0].mxu0
    %2053 = vmatprep.mubr.bf16.mxu0 %v1042
    %2054 = vmatmul.mubr.bf16.gmra.mrb[0].mxu0 %v1041
    %v2055 = vpop.f32.mrb[0].mxu0
    %v2056 = vadd.f32 %v287, %v2055
    %v2057 = vpop.f32.mrb[0].mxu0
    %v2058 = vpop.f32.mrb[0].mxu0
    %v2059 = vadd.f32 %v287, %v2058
    %v2060 = vpop.f32.mrb[0].mxu0
    %2061 = vmatprep.mubr.bf16.mxu0 %v1044
    %2062 = vmatmul.mubr.bf16.gmra.mrb[0].mxu0 %v1043
    %v2063 = vpop.f32.mrb[0].mxu0
    %v2064 = vadd.f32 %v287, %v2063
    %v2065 = vpop.f32.mrb[0].mxu0
    %v2066 = vpop.f32.mrb[0].mxu0
    %v2067 = vadd.f32 %v287, %v2066
    %v2068 = vpop.f32.mrb[0].mxu0
    %2069 = vmatprep.mubr.bf16.mxu0 %v1046
    %2070 = vmatmul.mubr.bf16.gmra.mrb[0].mxu0 %v1045
    %v2071 = vpop.f32.mrb[0].mxu0
    %v2072 = vadd.f32 %v287, %v2071
    %v2073 = vpop.f32.mrb[0].mxu0
    %v2074 = vpop.f32.mrb[0].mxu0
    %v2075 = vadd.f32 %v287, %v2074
    %v2076 = vpop.f32.mrb[0].mxu0
    %2077 = vmatprep.mubr.bf16.mxu0 %v1048
    %2078 = vmatmul.mubr.bf16.gmra.mrb[0].mxu0 %v1047
    %v2079 = vpop.f32.mrb[0].mxu0
    %v2080 = vadd.f32 %v287, %v2079
    %v2081 = vpop.f32.mrb[0].mxu0
    %v2082 = vpop.f32.mrb[0].mxu0
    %v2083 = vadd.f32 %v287, %v2082
    %v2084 = vpop.f32.mrb[0].mxu0
    %2085 = vmatprep.mubr.bf16.mxu0 %v1050
    %2086 = vmatmul.mubr.bf16.gmra.mrb[0].mxu0 %v1049
    %v2087 = vpop.f32.mrb[0].mxu0
    %v2088 = vadd.f32 %v287, %v2087
    %v2089 = vpop.f32.mrb[0].mxu0
    %v2090 = vpop.f32.mrb[0].mxu0
    %v2091 = vadd.f32 %v287, %v2090
    %v2092 = vpop.f32.mrb[0].mxu0
    %2093 = vmatprep.mubr.bf16.mxu0 %v1052
    %2094 = vmatmul.mubr.bf16.gmra.mrb[0].mxu0 %v1051
    %v2095 = vpop.f32.mrb[0].mxu0
    %v2096 = vadd.f32 %v287, %v2095
    %v2097 = vpop.f32.mrb[0].mxu0
    %v2098 = vpop.f32.mrb[0].mxu0
    %v2099 = vadd.f32 %v287, %v2098
    %v2100 = vpop.f32.mrb[0].mxu0
    %2101 = vmatprep.mubr.bf16.mxu0 %v1054
    %2102 = vmatmul.mubr.bf16.gmra.mrb[0].mxu0 %v1053
    %v2103 = vpop.f32.mrb[0].mxu0
    %v2104 = vadd.f32 %v287, %v2103
    %v2105 = vpop.f32.mrb[0].mxu0
    %v2106 = vpop.f32.mrb[0].mxu0
    %v2107 = vadd.f32 %v287, %v2106
    %v2108 = vpop.f32.mrb[0].mxu0
    %2109 = vmatprep.mubr.bf16.mxu0 %v1056
    %2110 = vmatmul.mubr.bf16.gmra.mrb[0].mxu0 %v1055
    %v2111 = vpop.f32.mrb[0].mxu0
    %v2112 = vadd.f32 %v287, %v2111
    %v2113 = vpop.f32.mrb[0].mxu0
    %v2114 = vpop.f32.mrb[0].mxu0
    %v2115 = vadd.f32 %v287, %v2114
    %v2116 = vpop.f32.mrb[0].mxu0
    %2117 = vmatprep.mubr.bf16.mxu0 %v1058
    %2118 = vmatmul.mubr.bf16.gmra.mrb[0].mxu0 %v1057
    %v2119 = vpop.f32.mrb[0].mxu0
    %v2120 = vadd.f32 %v287, %v2119
    %v2121 = vpop.f32.mrb[0].mxu0
    %v2122 = vpop.f32.mrb[0].mxu0
    %v2123 = vadd.f32 %v287, %v2122
    %v2124 = vpop.f32.mrb[0].mxu0
    %2125 = vmatprep.mubr.bf16.mxu0 %v1060
    %2126 = vmatmul.mubr.bf16.gmra.mrb[0].mxu0 %v1059
    %v2127 = vpop.f32.mrb[0].mxu0
    %v2128 = vadd.f32 %v287, %v2127
    %v2129 = vpop.f32.mrb[0].mxu0
    %v2130 = vpop.f32.mrb[0].mxu0
    %v2131 = vadd.f32 %v287, %v2130
    %v2132 = vpop.f32.mrb[0].mxu0
    %2133 = vmatprep.mubr.bf16.mxu0 %v1062
    %2134 = vmatmul.mubr.bf16.gmra.mrb[0].mxu0 %v1061
    %v2135 = vpop.f32.mrb[0].mxu0
    %v2136 = vadd.f32 %v287, %v2135
    %v2137 = vpop.f32.mrb[0].mxu0
    %v2138 = vpop.f32.mrb[0].mxu0
    %v2139 = vadd.f32 %v287, %v2138
    %v2140 = vpop.f32.mrb[0].mxu0
    %2141 = vmatprep.mubr.bf16.mxu0 %v1064
    %2142 = vmatmul.mubr.bf16.gmra.mrb[0].mxu0 %v1063
    %v2143 = vpop.f32.mrb[0].mxu0
    %v2144 = vadd.f32 %v287, %v2143
    %v2145 = vpop.f32.mrb[0].mxu0
    %v2146 = vpop.f32.mrb[0].mxu0
    %v2147 = vadd.f32 %v287, %v2146
    %v2148 = vpop.f32.mrb[0].mxu0
    %2149 = vmatprep.mubr.bf16.mxu0 %v1066
    %2150 = vmatmul.mubr.bf16.gmra.mrb[0].mxu0 %v1065
    %v2151 = vpop.f32.mrb[0].mxu0
    %v2152 = vadd.f32 %v287, %v2151
    %v2153 = vpop.f32.mrb[0].mxu0
    %v2154 = vpop.f32.mrb[0].mxu0
    %v2155 = vadd.f32 %v287, %v2154
    %v2156 = vpop.f32.mrb[0].mxu0
    %2157 = vmatprep.mubr.bf16.mxu0 %v1068
    %2158 = vmatmul.mubr.bf16.gmra.mrb[0].mxu0 %v1067
    %v2159 = vpop.f32.mrb[0].mxu0
    %v2160 = vadd.f32 %v287, %v2159
    %v2161 = vpop.f32.mrb[0].mxu0
    %v2162 = vpop.f32.mrb[0].mxu0
    %v2163 = vadd.f32 %v287, %v2162
    %v2164 = vpop.f32.mrb[0].mxu0
    %2165 = vmatprep.mubr.bf16.mxu0 %v1070
    %2166 = vmatmul.mubr.bf16.gmra.mrb[0].mxu0 %v1069
    %v2167 = vpop.f32.mrb[0].mxu0
    %v2168 = vadd.f32 %v287, %v2167
    %v2169 = vpop.f32.mrb[0].mxu0
    %v2170 = vpop.f32.mrb[0].mxu0
    %v2171 = vadd.f32 %v287, %v2170
    %v2172 = vpop.f32.mrb[0].mxu0
    %2173 = vmatprep.mubr.bf16.mxu0 %v1072
    %2174 = vmatmul.mubr.bf16.gmra.mrb[0].mxu0 %v1071
    %v2175 = vpop.f32.mrb[0].mxu0
    %v2176 = vadd.f32 %v287, %v2175
    %v2177 = vpop.f32.mrb[0].mxu0
    %v2178 = vpop.f32.mrb[0].mxu0
    %v2179 = vadd.f32 %v287, %v2178
    %v2180 = vpop.f32.mrb[0].mxu0
    %2181 = vdwg.mxu0
    %v2182 = vmax.f32 %v1400, 0.0
    %v2183 = vmax.f32 %v1403, 0.0
    %v2184 = vmax.f32 %v1408, 0.0
    %v2185 = vmax.f32 %v1411, 0.0
    %v2186 = vmax.f32 %v1416, 0.0
    %v2187 = vmax.f32 %v1419, 0.0
    %v2188 = vmax.f32 %v1424, 0.0
    %v2189 = vmax.f32 %v1427, 0.0
    %v2190 = vmax.f32 %v1432, 0.0
    %v2191 = vmax.f32 %v1435, 0.0
    %v2192 = vmax.f32 %v1440, 0.0
    %v2193 = vmax.f32 %v1443, 0.0
    %v2194 = vmax.f32 %v1448, 0.0
    %v2195 = vmax.f32 %v1451, 0.0
    %v2196 = vmax.f32 %v1456, 0.0
    %v2197 = vmax.f32 %v1459, 0.0
    %v2198 = vmax.f32 %v1464, 0.0
    %v2199 = vmax.f32 %v1467, 0.0
    %v2200 = vmax.f32 %v1472, 0.0
    %v2201 = vmax.f32 %v1475, 0.0
    %v2202 = vmax.f32 %v1480, 0.0
    %v2203 = vmax.f32 %v1483, 0.0
    %v2204 = vmax.f32 %v1488, 0.0
    %v2205 = vmax.f32 %v1491, 0.0
    %v2206 = vmax.f32 %v1496, 0.0
    %v2207 = vmax.f32 %v1499, 0.0
    %v2208 = vmax.f32 %v1504, 0.0
    %v2209 = vmax.f32 %v1507, 0.0
    %v2210 = vmax.f32 %v1512, 0.0
    %v2211 = vmax.f32 %v1515, 0.0
    %v2212 = vmax.f32 %v1520, 0.0
    %v2213 = vmax.f32 %v1523, 0.0
    %v2214 = vmax.f32 %v1528, 0.0
    %v2215 = vmax.f32 %v1531, 0.0
    %v2216 = vmax.f32 %v1536, 0.0
    %v2217 = vmax.f32 %v1539, 0.0
    %v2218 = vmax.f32 %v1544, 0.0
    %v2219 = vmax.f32 %v1547, 0.0
    %v2220 = vmax.f32 %v1552, 0.0
    %v2221 = vmax.f32 %v1555, 0.0
    %v2222 = vmax.f32 %v1560, 0.0
    %v2223 = vmax.f32 %v1563, 0.0
    %v2224 = vmax.f32 %v1568, 0.0
    %v2225 = vmax.f32 %v1571, 0.0
    %v2226 = vmax.f32 %v1576, 0.0
    %v2227 = vmax.f32 %v1579, 0.0
    %v2228 = vmax.f32 %v1584, 0.0
    %v2229 = vmax.f32 %v1587, 0.0
    %v2230 = vmax.f32 %v1592, 0.0
    %v2231 = vmax.f32 %v1595, 0.0
    %v2232 = vmax.f32 %v1600, 0.0
    %v2233 = vmax.f32 %v1603, 0.0
    %v2234 = vmax.f32 %v1608, 0.0
    %v2235 = vmax.f32 %v1611, 0.0
    %v2236 = vmax.f32 %v1616, 0.0
    %v2237 = vmax.f32 %v1619, 0.0
    %v2238 = vmax.f32 %v1624, 0.0
    %v2239 = vmax.f32 %v1627, 0.0
    %v2240 = vmax.f32 %v1632, 0.0
    %v2241 = vmax.f32 %v1635, 0.0
    %v2242 = vmax.f32 %v1640, 0.0
    %v2243 = vmax.f32 %v1643, 0.0
    %v2244 = vmax.f32 %v1648, 0.0
    %v2245 = vmax.f32 %v1651, 0.0
    %v2246 = vmax.f32 %v1656, 0.0
    %v2247 = vmax.f32 %v1659, 0.0
    %v2248 = vmax.f32 %v1664, 0.0
    %v2249 = vmax.f32 %v1667, 0.0
    %v2250 = vmax.f32 %v1672, 0.0
    %v2251 = vmax.f32 %v1675, 0.0
    %v2252 = vmax.f32 %v1680, 0.0
    %v2253 = vmax.f32 %v1683, 0.0
    %v2254 = vmax.f32 %v1688, 0.0
    %v2255 = vmax.f32 %v1691, 0.0
    %v2256 = vmax.f32 %v1696, 0.0
    %v2257 = vmax.f32 %v1699, 0.0
    %v2258 = vmax.f32 %v1704, 0.0
    %v2259 = vmax.f32 %v1707, 0.0
    %v2260 = vmax.f32 %v1712, 0.0
    %v2261 = vmax.f32 %v1715, 0.0
    %v2262 = vmax.f32 %v1720, 0.0
    %v2263 = vmax.f32 %v1723, 0.0
    %v2264 = vmax.f32 %v1728, 0.0
    %v2265 = vmax.f32 %v1731, 0.0
    %v2266 = vmax.f32 %v1736, 0.0
    %v2267 = vmax.f32 %v1739, 0.0
    %v2268 = vmax.f32 %v1744, 0.0
    %v2269 = vmax.f32 %v1747, 0.0
    %v2270 = vmax.f32 %v1752, 0.0
    %v2271 = vmax.f32 %v1755, 0.0
    %v2272 = vmax.f32 %v1760, 0.0
    %v2273 = vmax.f32 %v1763, 0.0
    %v2274 = vmax.f32 %v1768, 0.0
    %v2275 = vmax.f32 %v1771, 0.0
    %v2276 = vmax.f32 %v1776, 0.0
    %v2277 = vmax.f32 %v1779, 0.0
    %v2278 = vmax.f32 %v1784, 0.0
    %v2279 = vmax.f32 %v1787, 0.0
    %v2280 = vmax.f32 %v1792, 0.0
    %v2281 = vmax.f32 %v1795, 0.0
    %v2282 = vmax.f32 %v1800, 0.0
    %v2283 = vmax.f32 %v1803, 0.0
    %v2284 = vmax.f32 %v1808, 0.0
    %v2285 = vmax.f32 %v1811, 0.0
    %v2286 = vmax.f32 %v1816, 0.0
    %v2287 = vmax.f32 %v1819, 0.0
    %v2288 = vmax.f32 %v1824, 0.0
    %v2289 = vmax.f32 %v1827, 0.0
    %v2290 = vmax.f32 %v1832, 0.0
    %v2291 = vmax.f32 %v1835, 0.0
    %v2292 = vmax.f32 %v1840, 0.0
    %v2293 = vmax.f32 %v1843, 0.0
    %v2294 = vmax.f32 %v1848, 0.0
    %v2295 = vmax.f32 %v1851, 0.0
    %v2296 = vmax.f32 %v1856, 0.0
    %v2297 = vmax.f32 %v1859, 0.0
    %v2298 = vmax.f32 %v1864, 0.0
    %v2299 = vmax.f32 %v1867, 0.0
    %v2300 = vmax.f32 %v1872, 0.0
    %v2301 = vmax.f32 %v1875, 0.0
    %v2302 = vmax.f32 %v1880, 0.0
    %v2303 = vmax.f32 %v1883, 0.0
    %v2304 = vmax.f32 %v1888, 0.0
    %v2305 = vmax.f32 %v1891, 0.0
    %v2306 = vmax.f32 %v1896, 0.0
    %v2307 = vmax.f32 %v1899, 0.0
    %v2308 = vmax.f32 %v1904, 0.0
    %v2309 = vmax.f32 %v1907, 0.0
    %v2310 = vmax.f32 %v1912, 0.0
    %v2311 = vmax.f32 %v1915, 0.0
    %v2312 = vmax.f32 %v1920, 0.0
    %v2313 = vmax.f32 %v1923, 0.0
    %v2314 = vmax.f32 %v1928, 0.0
    %v2315 = vmax.f32 %v1931, 0.0
    %v2316 = vmax.f32 %v1936, 0.0
    %v2317 = vmax.f32 %v1939, 0.0
    %v2318 = vmax.f32 %v1944, 0.0
    %v2319 = vmax.f32 %v1947, 0.0
    %v2320 = vmax.f32 %v1952, 0.0
    %v2321 = vmax.f32 %v1955, 0.0
    %v2322 = vmax.f32 %v1960, 0.0
    %v2323 = vmax.f32 %v1963, 0.0
    %v2324 = vmax.f32 %v1968, 0.0
    %v2325 = vmax.f32 %v1971, 0.0
    %v2326 = vmax.f32 %v1976, 0.0
    %v2327 = vmax.f32 %v1979, 0.0
    %v2328 = vmax.f32 %v1984, 0.0
    %v2329 = vmax.f32 %v1987, 0.0
    %v2330 = vmax.f32 %v1992, 0.0
    %v2331 = vmax.f32 %v1995, 0.0
    %v2332 = vmax.f32 %v2000, 0.0
    %v2333 = vmax.f32 %v2003, 0.0
    %v2334 = vmax.f32 %v2008, 0.0
    %v2335 = vmax.f32 %v2011, 0.0
    %v2336 = vmax.f32 %v2016, 0.0
    %v2337 = vmax.f32 %v2019, 0.0
    %v2338 = vmax.f32 %v2024, 0.0
    %v2339 = vmax.f32 %v2027, 0.0
    %v2340 = vmax.f32 %v2032, 0.0
    %v2341 = vmax.f32 %v2035, 0.0
    %v2342 = vmax.f32 %v2040, 0.0
    %v2343 = vmax.f32 %v2043, 0.0
    %v2344 = vmax.f32 %v2048, 0.0
    %v2345 = vmax.f32 %v2051, 0.0
    %v2346 = vmax.f32 %v2056, 0.0
    %v2347 = vmax.f32 %v2059, 0.0
    %v2348 = vmax.f32 %v2064, 0.0
    %v2349 = vmax.f32 %v2067, 0.0
    %v2350 = vmax.f32 %v2072, 0.0
    %v2351 = vmax.f32 %v2075, 0.0
    %v2352 = vmax.f32 %v2080, 0.0
    %v2353 = vmax.f32 %v2083, 0.0
    %v2354 = vmax.f32 %v2088, 0.0
    %v2355 = vmax.f32 %v2091, 0.0
    %v2356 = vmax.f32 %v2096, 0.0
    %v2357 = vmax.f32 %v2099, 0.0
    %v2358 = vmax.f32 %v2104, 0.0
    %v2359 = vmax.f32 %v2107, 0.0
    %v2360 = vmax.f32 %v2112, 0.0
    %v2361 = vmax.f32 %v2115, 0.0
    %v2362 = vmax.f32 %v2120, 0.0
    %v2363 = vmax.f32 %v2123, 0.0
    %v2364 = vmax.f32 %v2128, 0.0
    %v2365 = vmax.f32 %v2131, 0.0
    %v2366 = vmax.f32 %v2136, 0.0
    %v2367 = vmax.f32 %v2139, 0.0
    %v2368 = vmax.f32 %v2144, 0.0
    %v2369 = vmax.f32 %v2147, 0.0
    %v2370 = vmax.f32 %v2152, 0.0
    %v2371 = vmax.f32 %v2155, 0.0
    %v2372 = vmax.f32 %v2160, 0.0
    %v2373 = vmax.f32 %v2163, 0.0
    %v2374 = vmax.f32 %v2168, 0.0
    %v2375 = vmax.f32 %v2171, 0.0
    %v2376 = vmax.f32 %v2176, 0.0
    %v2377 = vmax.f32 %v2179, 0.0
    %v2378 = vpack.c.bf16 %v2183, %v2182
    %v2379 = vpack.c.bf16 %v2185, %v2184
    %v2380 = vpack.c.bf16 %v2187, %v2186
    %v2381 = vpack.c.bf16 %v2189, %v2188
    %v2382 = vpack.c.bf16 %v2191, %v2190
    %v2383 = vpack.c.bf16 %v2193, %v2192
    %v2384 = vpack.c.bf16 %v2195, %v2194
    %v2385 = vpack.c.bf16 %v2197, %v2196
    %v2386 = vpack.c.bf16 %v2199, %v2198
    %v2387 = vpack.c.bf16 %v2201, %v2200
    %v2388 = vpack.c.bf16 %v2203, %v2202
    %v2389 = vpack.c.bf16 %v2205, %v2204
    %v2390 = vpack.c.bf16 %v2207, %v2206
    %v2391 = vpack.c.bf16 %v2209, %v2208
    %v2392 = vpack.c.bf16 %v2211, %v2210
    %v2393 = vpack.c.bf16 %v2213, %v2212
    %v2394 = vpack.c.bf16 %v2215, %v2214
    %v2395 = vpack.c.bf16 %v2217, %v2216
    %v2396 = vpack.c.bf16 %v2219, %v2218
    %v2397 = vpack.c.bf16 %v2221, %v2220
    %v2398 = vpack.c.bf16 %v2223, %v2222
    %v2399 = vpack.c.bf16 %v2225, %v2224
    %v2400 = vpack.c.bf16 %v2227, %v2226
    %v2401 = vpack.c.bf16 %v2229, %v2228
    %v2402 = vpack.c.bf16 %v2231, %v2230
    %v2403 = vpack.c.bf16 %v2233, %v2232
    %v2404 = vpack.c.bf16 %v2235, %v2234
    %v2405 = vpack.c.bf16 %v2237, %v2236
    %v2406 = vpack.c.bf16 %v2239, %v2238
    %v2407 = vpack.c.bf16 %v2241, %v2240
    %v2408 = vpack.c.bf16 %v2243, %v2242
    %v2409 = vpack.c.bf16 %v2245, %v2244
    %v2410 = vpack.c.bf16 %v2247, %v2246
    %v2411 = vpack.c.bf16 %v2249, %v2248
    %v2412 = vpack.c.bf16 %v2251, %v2250
    %v2413 = vpack.c.bf16 %v2253, %v2252
    %v2414 = vpack.c.bf16 %v2255, %v2254
    %v2415 = vpack.c.bf16 %v2257, %v2256
    %v2416 = vpack.c.bf16 %v2259, %v2258
    %v2417 = vpack.c.bf16 %v2261, %v2260
    %v2418 = vpack.c.bf16 %v2263, %v2262
    %v2419 = vpack.c.bf16 %v2265, %v2264
    %v2420 = vpack.c.bf16 %v2267, %v2266
    %v2421 = vpack.c.bf16 %v2269, %v2268
    %v2422 = vpack.c.bf16 %v2271, %v2270
    %v2423 = vpack.c.bf16 %v2273, %v2272
    %v2424 = vpack.c.bf16 %v2275, %v2274
    %v2425 = vpack.c.bf16 %v2277, %v2276
    %v2426 = vpack.c.bf16 %v2279, %v2278
    %v2427 = vpack.c.bf16 %v2281, %v2280
    %v2428 = vpack.c.bf16 %v2283, %v2282
    %v2429 = vpack.c.bf16 %v2285, %v2284
    %v2430 = vpack.c.bf16 %v2287, %v2286
    %v2431 = vpack.c.bf16 %v2289, %v2288
    %v2432 = vpack.c.bf16 %v2291, %v2290
    %v2433 = vpack.c.bf16 %v2293, %v2292
    %v2434 = vpack.c.bf16 %v2295, %v2294
    %v2435 = vpack.c.bf16 %v2297, %v2296
    %v2436 = vpack.c.bf16 %v2299, %v2298
    %v2437 = vpack.c.bf16 %v2301, %v2300
    %v2438 = vpack.c.bf16 %v2303, %v2302
    %v2439 = vpack.c.bf16 %v2305, %v2304
    %v2440 = vpack.c.bf16 %v2307, %v2306
    %v2441 = vpack.c.bf16 %v2309, %v2308
    %v2442 = vpack.c.bf16 %v2311, %v2310
    %v2443 = vpack.c.bf16 %v2313, %v2312
    %v2444 = vpack.c.bf16 %v2315, %v2314
    %v2445 = vpack.c.bf16 %v2317, %v2316
    %v2446 = vpack.c.bf16 %v2319, %v2318
    %v2447 = vpack.c.bf16 %v2321, %v2320
    %v2448 = vpack.c.bf16 %v2323, %v2322
    %v2449 = vpack.c.bf16 %v2325, %v2324
    %v2450 = vpack.c.bf16 %v2327, %v2326
    %v2451 = vpack.c.bf16 %v2329, %v2328
    %v2452 = vpack.c.bf16 %v2331, %v2330
    %v2453 = vpack.c.bf16 %v2333, %v2332
    %v2454 = vpack.c.bf16 %v2335, %v2334
    %v2455 = vpack.c.bf16 %v2337, %v2336
    %v2456 = vpack.c.bf16 %v2339, %v2338
    %v2457 = vpack.c.bf16 %v2341, %v2340
    %v2458 = vpack.c.bf16 %v2343, %v2342
    %v2459 = vpack.c.bf16 %v2345, %v2344
    %v2460 = vpack.c.bf16 %v2347, %v2346
    %v2461 = vpack.c.bf16 %v2349, %v2348
    %v2462 = vpack.c.bf16 %v2351, %v2350
    %v2463 = vpack.c.bf16 %v2353, %v2352
    %v2464 = vpack.c.bf16 %v2355, %v2354
    %v2465 = vpack.c.bf16 %v2357, %v2356
    %v2466 = vpack.c.bf16 %v2359, %v2358
    %v2467 = vpack.c.bf16 %v2361, %v2360
    %v2468 = vpack.c.bf16 %v2363, %v2362
    %v2469 = vpack.c.bf16 %v2365, %v2364
    %v2470 = vpack.c.bf16 %v2367, %v2366
    %v2471 = vpack.c.bf16 %v2369, %v2368
    %v2472 = vpack.c.bf16 %v2371, %v2370
    %v2473 = vpack.c.bf16 %v2373, %v2372
    %v2474 = vpack.c.bf16 %v2375, %v2374
    %v2475 = vpack.c.bf16 %v2377, %v2376
    %vm2476 = vcmask 261120
    %2477 = vst.msk [vmem:[#allocation2] sm:$0xff] %vm2476, %v2378
    %2478 = vst.msk [vmem:[#allocation2 + $0x8] sm:$0xff] %vm2476, %v2379
    %2479 = vst.msk [vmem:[#allocation2 + $0x10] sm:$0xff] %vm2476, %v2380
    %2480 = vst.msk [vmem:[#allocation2 + $0x18] sm:$0xff] %vm2476, %v2381
    %2481 = vst.msk [vmem:[#allocation2 + $0x20] sm:$0xff] %vm2476, %v2382
    %2482 = vst.msk [vmem:[#allocation2 + $0x28] sm:$0xff] %vm2476, %v2383
    %2483 = vst.msk [vmem:[#allocation2 + $0x30] sm:$0xff] %vm2476, %v2384
    %2484 = vst.msk [vmem:[#allocation2 + $0x38] sm:$0xff] %vm2476, %v2385
    %2485 = vst.msk [vmem:[#allocation2 + $0x40] sm:$0xff] %vm2476, %v2386
    %2486 = vst.msk [vmem:[#allocation2 + $0x48] sm:$0xff] %vm2476, %v2387
    %2487 = vst.msk [vmem:[#allocation2 + $0x50] sm:$0xff] %vm2476, %v2388
    %2488 = vst.msk [vmem:[#allocation2 + $0x58] sm:$0xff] %vm2476, %v2389
    %2489 = vst.msk [vmem:[#allocation2 + $0x60] sm:$0xff] %vm2476, %v2390
    %2490 = vst.msk [vmem:[#allocation2 + $0x68] sm:$0xff] %vm2476, %v2391
    %2491 = vst.msk [vmem:[#allocation2 + $0x70] sm:$0xff] %vm2476, %v2392
    %2492 = vst.msk [vmem:[#allocation2 + $0x78] sm:$0xff] %vm2476, %v2393
    %2493 = vst.msk [vmem:[#allocation2 + $0x80] sm:$0xff] %vm2476, %v2394
    %2494 = vst.msk [vmem:[#allocation2 + $0x88] sm:$0xff] %vm2476, %v2395
    %2495 = vst.msk [vmem:[#allocation2 + $0x90] sm:$0xff] %vm2476, %v2396
    %2496 = vst.msk [vmem:[#allocation2 + $0x98] sm:$0xff] %vm2476, %v2397
    %2497 = vst.msk [vmem:[#allocation2 + $0xa0] sm:$0xff] %vm2476, %v2398
    %2498 = vst.msk [vmem:[#allocation2 + $0xa8] sm:$0xff] %vm2476, %v2399
    %2499 = vst.msk [vmem:[#allocation2 + $0xb0] sm:$0xff] %vm2476, %v2400
    %2500 = vst.msk [vmem:[#allocation2 + $0xb8] sm:$0xff] %vm2476, %v2401
    %2501 = vst.msk [vmem:[#allocation2 + $0xc0] sm:$0xff] %vm2476, %v2402
    %2502 = vst.msk [vmem:[#allocation2 + $0xc8] sm:$0xff] %vm2476, %v2403
    %2503 = vst.msk [vmem:[#allocation2 + $0xd0] sm:$0xff] %vm2476, %v2404
    %2504 = vst.msk [vmem:[#allocation2 + $0xd8] sm:$0xff] %vm2476, %v2405
    %2505 = vst.msk [vmem:[#allocation2 + $0xe0] sm:$0xff] %vm2476, %v2406
    %2506 = vst.msk [vmem:[#allocation2 + $0xe8] sm:$0xff] %vm2476, %v2407
    %2507 = vst.msk [vmem:[#allocation2 + $0xf0] sm:$0xff] %vm2476, %v2408
    %2508 = vst.msk [vmem:[#allocation2 + $0xf8] sm:$0xff] %vm2476, %v2409
    %2509 = vst.msk [vmem:[#allocation2 + $0x100] sm:$0xff] %vm2476, %v2410
    %2510 = vst.msk [vmem:[#allocation2 + $0x108] sm:$0xff] %vm2476, %v2411
    %2511 = vst.msk [vmem:[#allocation2 + $0x110] sm:$0xff] %vm2476, %v2412
    %2512 = vst.msk [vmem:[#allocation2 + $0x118] sm:$0xff] %vm2476, %v2413
    %2513 = vst.msk [vmem:[#allocation2 + $0x120] sm:$0xff] %vm2476, %v2414
    %2514 = vst.msk [vmem:[#allocation2 + $0x128] sm:$0xff] %vm2476, %v2415
    %2515 = vst.msk [vmem:[#allocation2 + $0x130] sm:$0xff] %vm2476, %v2416
    %2516 = vst.msk [vmem:[#allocation2 + $0x138] sm:$0xff] %vm2476, %v2417
    %2517 = vst.msk [vmem:[#allocation2 + $0x140] sm:$0xff] %vm2476, %v2418
    %2518 = vst.msk [vmem:[#allocation2 + $0x148] sm:$0xff] %vm2476, %v2419
    %2519 = vst.msk [vmem:[#allocation2 + $0x150] sm:$0xff] %vm2476, %v2420
    %2520 = vst.msk [vmem:[#allocation2 + $0x158] sm:$0xff] %vm2476, %v2421
    %2521 = vst.msk [vmem:[#allocation2 + $0x160] sm:$0xff] %vm2476, %v2422
    %2522 = vst.msk [vmem:[#allocation2 + $0x168] sm:$0xff] %vm2476, %v2423
    %2523 = vst.msk [vmem:[#allocation2 + $0x170] sm:$0xff] %vm2476, %v2424
    %2524 = vst.msk [vmem:[#allocation2 + $0x178] sm:$0xff] %vm2476, %v2425
    %2525 = vst.msk [vmem:[#allocation2 + $0x180] sm:$0xff] %vm2476, %v2426
    %2526 = vst.msk [vmem:[#allocation2 + $0x188] sm:$0xff] %vm2476, %v2427
    %2527 = vst.msk [vmem:[#allocation2 + $0x190] sm:$0xff] %vm2476, %v2428
    %2528 = vst.msk [vmem:[#allocation2 + $0x198] sm:$0xff] %vm2476, %v2429
    %2529 = vst.msk [vmem:[#allocation2 + $0x1a0] sm:$0xff] %vm2476, %v2430
    %2530 = vst.msk [vmem:[#allocation2 + $0x1a8] sm:$0xff] %vm2476, %v2431
    %2531 = vst.msk [vmem:[#allocation2 + $0x1b0] sm:$0xff] %vm2476, %v2432
    %2532 = vst.msk [vmem:[#allocation2 + $0x1b8] sm:$0xff] %vm2476, %v2433
    %2533 = vst.msk [vmem:[#allocation2 + $0x1c0] sm:$0xff] %vm2476, %v2434
    %2534 = vst.msk [vmem:[#allocation2 + $0x1c8] sm:$0xff] %vm2476, %v2435
    %2535 = vst.msk [vmem:[#allocation2 + $0x1d0] sm:$0xff] %vm2476, %v2436
    %2536 = vst.msk [vmem:[#allocation2 + $0x1d8] sm:$0xff] %vm2476, %v2437
    %2537 = vst.msk [vmem:[#allocation2 + $0x1e0] sm:$0xff] %vm2476, %v2438
    %2538 = vst.msk [vmem:[#allocation2 + $0x1e8] sm:$0xff] %vm2476, %v2439
    %2539 = vst.msk [vmem:[#allocation2 + $0x1f0] sm:$0xff] %vm2476, %v2440
    %2540 = vst.msk [vmem:[#allocation2 + $0x1f8] sm:$0xff] %vm2476, %v2441
    %2541 = vst.msk [vmem:[#allocation2 + $0x200] sm:$0xff] %vm2476, %v2442
    %2542 = vst.msk [vmem:[#allocation2 + $0x208] sm:$0xff] %vm2476, %v2443
    %2543 = vst.msk [vmem:[#allocation2 + $0x210] sm:$0xff] %vm2476, %v2444
    %2544 = vst.msk [vmem:[#allocation2 + $0x218] sm:$0xff] %vm2476, %v2445
    %2545 = vst.msk [vmem:[#allocation2 + $0x220] sm:$0xff] %vm2476, %v2446
    %2546 = vst.msk [vmem:[#allocation2 + $0x228] sm:$0xff] %vm2476, %v2447
    %2547 = vst.msk [vmem:[#allocation2 + $0x230] sm:$0xff] %vm2476, %v2448
    %2548 = vst.msk [vmem:[#allocation2 + $0x238] sm:$0xff] %vm2476, %v2449
    %2549 = vst.msk [vmem:[#allocation2 + $0x240] sm:$0xff] %vm2476, %v2450
    %2550 = vst.msk [vmem:[#allocation2 + $0x248] sm:$0xff] %vm2476, %v2451
    %2551 = vst.msk [vmem:[#allocation2 + $0x250] sm:$0xff] %vm2476, %v2452
    %2552 = vst.msk [vmem:[#allocation2 + $0x258] sm:$0xff] %vm2476, %v2453
    %2553 = vst.msk [vmem:[#allocation2 + $0x260] sm:$0xff] %vm2476, %v2454
    %2554 = vst.msk [vmem:[#allocation2 + $0x268] sm:$0xff] %vm2476, %v2455
    %2555 = vst.msk [vmem:[#allocation2 + $0x270] sm:$0xff] %vm2476, %v2456
    %2556 = vst.msk [vmem:[#allocation2 + $0x278] sm:$0xff] %vm2476, %v2457
    %2557 = vst.msk [vmem:[#allocation2 + $0x280] sm:$0xff] %vm2476, %v2458
    %2558 = vst.msk [vmem:[#allocation2 + $0x288] sm:$0xff] %vm2476, %v2459
    %2559 = vst.msk [vmem:[#allocation2 + $0x290] sm:$0xff] %vm2476, %v2460
    %2560 = vst.msk [vmem:[#allocation2 + $0x298] sm:$0xff] %vm2476, %v2461
    %2561 = vst.msk [vmem:[#allocation2 + $0x2a0] sm:$0xff] %vm2476, %v2462
    %2562 = vst.msk [vmem:[#allocation2 + $0x2a8] sm:$0xff] %vm2476, %v2463
    %2563 = vst.msk [vmem:[#allocation2 + $0x2b0] sm:$0xff] %vm2476, %v2464
    %2564 = vst.msk [vmem:[#allocation2 + $0x2b8] sm:$0xff] %vm2476, %v2465
    %2565 = vst.msk [vmem:[#allocation2 + $0x2c0] sm:$0xff] %vm2476, %v2466
    %2566 = vst.msk [vmem:[#allocation2 + $0x2c8] sm:$0xff] %vm2476, %v2467
    %2567 = vst.msk [vmem:[#allocation2 + $0x2d0] sm:$0xff] %vm2476, %v2468
    %2568 = vst.msk [vmem:[#allocation2 + $0x2d8] sm:$0xff] %vm2476, %v2469
    %2569 = vst.msk [vmem:[#allocation2 + $0x2e0] sm:$0xff] %vm2476, %v2470
    %2570 = vst.msk [vmem:[#allocation2 + $0x2e8] sm:$0xff] %vm2476, %v2471
    %2571 = vst.msk [vmem:[#allocation2 + $0x2f0] sm:$0xff] %vm2476, %v2472
    %2572 = vst.msk [vmem:[#allocation2 + $0x2f8] sm:$0xff] %vm2476, %v2473
    %2573 = vst.msk [vmem:[#allocation2 + $0x300] sm:$0xff] %vm2476, %v2474
    %2574 = vst.msk [vmem:[#allocation2 + $0x308] sm:$0xff] %vm2476, %v2475
    %v2575 = vld [vmem:[#allocation2] sm:$0xff]
    %v2576 = vld [vmem:[#allocation2 + $0x8] sm:$0xff]
    %v2577 = vld [vmem:[#allocation2 + $0x10] sm:$0xff]
    %2578 = vst.msk [vmem:[#allocation3] sm:$0xff] %vm2476, %v2575
    %2579 = vst.msk [vmem:[#allocation3 + $0x20] sm:$0xff] %vm2476, %v2576
    %2580 = vst.msk [vmem:[#allocation3 + $0x40] sm:$0xff] %vm2476, %v2577
    %v2581 = vld [vmem:[#allocation2 + $0x18] sm:$0xf0]
    %v2582 = vld [vmem:[#allocation2 + $0x20] sm:$0xff]
    %v2583 = vld [vmem:[#allocation2 + $0x28] sm:$0xff]
    %v2584 = vld [vmem:[#allocation2 + $0x30] sm:$0xf]
    %vm2589 = vcmask 1043456
    %v2590 = vrot.slane %v2581, 4
    %v2591 = vrot.slane %v2582, 4
    %v2592 = vsel %vm2589, %v2590, %v2591
    %v2593 = vrot.slane %v2583, 4
    %v2594 = vsel %vm2589, %v2591, %v2593
    %v2595 = vrot.slane %v2584, 4
    %v2596 = vsel %vm2589, %v2593, %v2595
    %2600 = vst.msk [vmem:[#allocation3 + $0x60] sm:$0xff] %vm2476, %v2592
    %2601 = vst.msk [vmem:[#allocation3 + $0x80] sm:$0xff] %vm2476, %v2594
    %2602 = vst.msk [vmem:[#allocation3 + $0xa0] sm:$0xff] %vm2476, %v2596
    %v2603 = vld [vmem:[#allocation2 + $0x38] sm:$0xff]
    %v2604 = vld [vmem:[#allocation2 + $0x40] sm:$0xff]
    %v2605 = vld [vmem:[#allocation2 + $0x48] sm:$0xff]
    %2606 = vst.msk [vmem:[#allocation3 + $0xc0] sm:$0xff] %vm2476, %v2603
    %2607 = vst.msk [vmem:[#allocation3 + $0xe0] sm:$0xff] %vm2476, %v2604
    %2608 = vst.msk [vmem:[#allocation3 + $0x100] sm:$0xff] %vm2476, %v2605
    %v2609 = vld [vmem:[#allocation2 + $0x50] sm:$0xf0]
    %v2610 = vld [vmem:[#allocation2 + $0x58] sm:$0xff]
    %v2611 = vld [vmem:[#allocation2 + $0x60] sm:$0xff]
    %v2612 = vld [vmem:[#allocation2 + $0x68] sm:$0xf]
    %v2617 = vrot.slane %v2609, 4
    %v2618 = vrot.slane %v2610, 4
    %v2619 = vsel %vm2589, %v2617, %v2618
    %v2620 = vrot.slane %v2611, 4
    %v2621 = vsel %vm2589, %v2618, %v2620
    %v2622 = vrot.slane %v2612, 4
    %v2623 = vsel %vm2589, %v2620, %v2622
    %2627 = vst.msk [vmem:[#allocation3 + $0x120] sm:$0xff] %vm2476, %v2619
    %2628 = vst.msk [vmem:[#allocation3 + $0x140] sm:$0xff] %vm2476, %v2621
    %2629 = vst.msk [vmem:[#allocation3 + $0x160] sm:$0xff] %vm2476, %v2623
    %v2630 = vld [vmem:[#allocation2 + $0x70] sm:$0xff]
    %v2631 = vld [vmem:[#allocation2 + $0x78] sm:$0xff]
    %v2632 = vld [vmem:[#allocation2 + $0x80] sm:$0xff]
    %2633 = vst.msk [vmem:[#allocation3 + $0x180] sm:$0xff] %vm2476, %v2630
    %2634 = vst.msk [vmem:[#allocation3 + $0x1a0] sm:$0xff] %vm2476, %v2631
    %2635 = vst.msk [vmem:[#allocation3 + $0x1c0] sm:$0xff] %vm2476, %v2632
    %v2636 = vld [vmem:[#allocation2 + $0x88] sm:$0xf0]
    %v2637 = vld [vmem:[#allocation2 + $0x90] sm:$0xff]
    %v2638 = vld [vmem:[#allocation2 + $0x98] sm:$0xff]
    %v2639 = vld [vmem:[#allocation2 + $0xa0] sm:$0xf]
    %v2644 = vrot.slane %v2636, 4
    %v2645 = vrot.slane %v2637, 4
    %v2646 = vsel %vm2589, %v2644, %v2645
    %v2647 = vrot.slane %v2638, 4
    %v2648 = vsel %vm2589, %v2645, %v2647
    %v2649 = vrot.slane %v2639, 4
    %v2650 = vsel %vm2589, %v2647, %v2649
    %2654 = vst.msk [vmem:[#allocation3 + $0x1e0] sm:$0xff] %vm2476, %v2646
    %2655 = vst.msk [vmem:[#allocation3 + $0x200] sm:$0xff] %vm2476, %v2648
    %2656 = vst.msk [vmem:[#allocation3 + $0x220] sm:$0xff] %vm2476, %v2650
    %v2657 = vld [vmem:[#allocation2 + $0xc0] sm:$0xf0]
    %v2658 = vld [vmem:[#allocation2 + $0xc8] sm:$0xff]
    %v2659 = vld [vmem:[#allocation2 + $0xd0] sm:$0xff]
    %v2660 = vld [vmem:[#allocation2 + $0xd8] sm:$0xf]
    %v2665 = vrot.slane %v2657, 4
    %v2666 = vrot.slane %v2658, 4
    %v2667 = vsel %vm2589, %v2665, %v2666
    %v2668 = vrot.slane %v2659, 4
    %v2669 = vsel %vm2589, %v2666, %v2668
    %v2670 = vrot.slane %v2660, 4
    %v2671 = vsel %vm2589, %v2668, %v2670
    %2672 = vrot.lane.b32.xlu0 %v2667, 32
    %v2673 = vpop.permute.xlu0 %2672
    %2674 = vrot.lane.b32.xlu0 %v2669, 32
    %v2675 = vpop.permute.xlu0 %2674
    %2676 = vrot.lane.b32.xlu0 %v2671, 32
    %v2677 = vpop.permute.xlu0 %2676
    %vm2681 = vcmask 523520
    %2682 = vst.msk [vmem:[#allocation3] sm:$0xff] %vm2681, %v2673
    %2683 = vst.msk [vmem:[#allocation3 + $0x20] sm:$0xff] %vm2681, %v2675
    %2684 = vst.msk [vmem:[#allocation3 + $0x40] sm:$0xff] %vm2681, %v2677
    %v2685 = vld [vmem:[#allocation2 + $0xe0] sm:$0xff]
    %v2686 = vld [vmem:[#allocation2 + $0xe8] sm:$0xff]
    %v2687 = vld [vmem:[#allocation2 + $0xf0] sm:$0xff]
    %2691 = vrot.lane.b32.xlu0 %v2685, 32
    %v2692 = vpop.permute.xlu0 %2691
    %2693 = vrot.lane.b32.xlu0 %v2686, 32
    %v2694 = vpop.permute.xlu0 %2693
    %2695 = vrot.lane.b32.xlu0 %v2687, 32
    %v2696 = vpop.permute.xlu0 %2695
    %2700 = vst.msk [vmem:[#allocation3 + $0x60] sm:$0xff] %vm2681, %v2692
    %2701 = vst.msk [vmem:[#allocation3 + $0x80] sm:$0xff] %vm2681, %v2694
    %2702 = vst.msk [vmem:[#allocation3 + $0xa0] sm:$0xff] %vm2681, %v2696
    %v2703 = vld [vmem:[#allocation2 + $0xf8] sm:$0xf0]
    %v2704 = vld [vmem:[#allocation2 + $0x100] sm:$0xff]
    %v2705 = vld [vmem:[#allocation2 + $0x108] sm:$0xff]
    %v2706 = vld [vmem:[#allocation2 + $0x110] sm:$0xf]
    %v2711 = vrot.slane %v2703, 4
    %v2712 = vrot.slane %v2704, 4
    %v2713 = vsel %vm2589, %v2711, %v2712
    %v2714 = vrot.slane %v2705, 4
    %v2715 = vsel %vm2589, %v2712, %v2714
    %v2716 = vrot.slane %v2706, 4
    %v2717 = vsel %vm2589, %v2714, %v2716
    %2718 = vrot.lane.b32.xlu0 %v2713, 32
    %v2719 = vpop.permute.xlu0 %2718
    %2720 = vrot.lane.b32.xlu0 %v2715, 32
    %v2721 = vpop.permute.xlu0 %2720
    %2722 = vrot.lane.b32.xlu0 %v2717, 32
    %v2723 = vpop.permute.xlu0 %2722
    %2727 = vst.msk [vmem:[#allocation3 + $0xc0] sm:$0xff] %vm2681, %v2719
    %2728 = vst.msk [vmem:[#allocation3 + $0xe0] sm:$0xff] %vm2681, %v2721
    %2729 = vst.msk [vmem:[#allocation3 + $0x100] sm:$0xff] %vm2681, %v2723
    %v2730 = vld [vmem:[#allocation2 + $0x118] sm:$0xff]
    %v2731 = vld [vmem:[#allocation2 + $0x120] sm:$0xff]
    %v2732 = vld [vmem:[#allocation2 + $0x128] sm:$0xff]
    %2736 = vrot.lane.b32.xlu0 %v2730, 32
    %v2737 = vpop.permute.xlu0 %2736
    %2738 = vrot.lane.b32.xlu0 %v2731, 32
    %v2739 = vpop.permute.xlu0 %2738
    %2740 = vrot.lane.b32.xlu0 %v2732, 32
    %v2741 = vpop.permute.xlu0 %2740
    %2745 = vst.msk [vmem:[#allocation3 + $0x120] sm:$0xff] %vm2681, %v2737
    %2746 = vst.msk [vmem:[#allocation3 + $0x140] sm:$0xff] %vm2681, %v2739
    %2747 = vst.msk [vmem:[#allocation3 + $0x160] sm:$0xff] %vm2681, %v2741
    %v2748 = vld [vmem:[#allocation2 + $0x130] sm:$0xf0]
    %v2749 = vld [vmem:[#allocation2 + $0x138] sm:$0xff]
    %v2750 = vld [vmem:[#allocation2 + $0x140] sm:$0xff]
    %v2751 = vld [vmem:[#allocation2 + $0x148] sm:$0xf]
    %v2756 = vrot.slane %v2748, 4
    %v2757 = vrot.slane %v2749, 4
    %v2758 = vsel %vm2589, %v2756, %v2757
    %v2759 = vrot.slane %v2750, 4
    %v2760 = vsel %vm2589, %v2757, %v2759
    %v2761 = vrot.slane %v2751, 4
    %v2762 = vsel %vm2589, %v2759, %v2761
    %2763 = vrot.lane.b32.xlu0 %v2758, 32
    %v2764 = vpop.permute.xlu0 %2763
    %2765 = vrot.lane.b32.xlu0 %v2760, 32
    %v2766 = vpop.permute.xlu0 %2765
    %2767 = vrot.lane.b32.xlu0 %v2762, 32
    %v2768 = vpop.permute.xlu0 %2767
    %2772 = vst.msk [vmem:[#allocation3 + $0x180] sm:$0xff] %vm2681, %v2764
    %2773 = vst.msk [vmem:[#allocation3 + $0x1a0] sm:$0xff] %vm2681, %v2766
    %2774 = vst.msk [vmem:[#allocation3 + $0x1c0] sm:$0xff] %vm2681, %v2768
    %v2775 = vld [vmem:[#allocation2 + $0x150] sm:$0xff]
    %v2776 = vld [vmem:[#allocation2 + $0x158] sm:$0xff]
    %v2777 = vld [vmem:[#allocation2 + $0x160] sm:$0xff]
    %2781 = vrot.lane.b32.xlu0 %v2775, 32
    %v2782 = vpop.permute.xlu0 %2781
    %2783 = vrot.lane.b32.xlu0 %v2776, 32
    %v2784 = vpop.permute.xlu0 %2783
    %2785 = vrot.lane.b32.xlu0 %v2777, 32
    %v2786 = vpop.permute.xlu0 %2785
    %2790 = vst.msk [vmem:[#allocation3 + $0x1e0] sm:$0xff] %vm2681, %v2782
    %2791 = vst.msk [vmem:[#allocation3 + $0x200] sm:$0xff] %vm2681, %v2784
    %2792 = vst.msk [vmem:[#allocation3 + $0x220] sm:$0xff] %vm2681, %v2786
    %v2793 = vld [vmem:[#allocation2] sm:$0xf0]
    %v2794 = vld [vmem:[#allocation2 + $0x8] sm:$0xff]
    %v2795 = vld [vmem:[#allocation2 + $0x10] sm:$0xff]
    %v2796 = vld [vmem:[#allocation2 + $0x18] sm:$0xf]
    %v2801 = vrot.slane %v2793, 4
    %v2802 = vrot.slane %v2794, 4
    %v2803 = vsel %vm2589, %v2801, %v2802
    %v2804 = vrot.slane %v2795, 4
    %v2805 = vsel %vm2589, %v2802, %v2804
    %v2806 = vrot.slane %v2796, 4
    %v2807 = vsel %vm2589, %v2804, %v2806
    %2808 = vrot.lane.b32.xlu0 %v2803, 64
    %v2809 = vpop.permute.xlu0 %2808
    %2810 = vrot.lane.b32.xlu0 %v2805, 64
    %v2811 = vpop.permute.xlu0 %2810
    %2812 = vrot.lane.b32.xlu0 %v2807, 64
    %v2813 = vpop.permute.xlu0 %2812
    %vm2817 = vcmask 785920
    %2818 = vst.msk [vmem:[#allocation3] sm:$0xff] %vm2817, %v2809
    %2819 = vst.msk [vmem:[#allocation3 + $0x20] sm:$0xff] %vm2817, %v2811
    %2820 = vst.msk [vmem:[#allocation3 + $0x40] sm:$0xff] %vm2817, %v2813
    %v2821 = vld [vmem:[#allocation2 + $0x20] sm:$0xff]
    %v2822 = vld [vmem:[#allocation2 + $0x28] sm:$0xff]
    %v2823 = vld [vmem:[#allocation2 + $0x30] sm:$0xff]
    %2827 = vrot.lane.b32.xlu0 %v2821, 64
    %v2828 = vpop.permute.xlu0 %2827
    %2829 = vrot.lane.b32.xlu0 %v2822, 64
    %v2830 = vpop.permute.xlu0 %2829
    %2831 = vrot.lane.b32.xlu0 %v2823, 64
    %v2832 = vpop.permute.xlu0 %2831
    %2836 = vst.msk [vmem:[#allocation3 + $0x60] sm:$0xff] %vm2817, %v2828
    %2837 = vst.msk [vmem:[#allocation3 + $0x80] sm:$0xff] %vm2817, %v2830
    %2838 = vst.msk [vmem:[#allocation3 + $0xa0] sm:$0xff] %vm2817, %v2832
    %v2839 = vld [vmem:[#allocation2 + $0x38] sm:$0xf0]
    %v2840 = vld [vmem:[#allocation2 + $0x40] sm:$0xff]
    %v2841 = vld [vmem:[#allocation2 + $0x48] sm:$0xff]
    %v2842 = vld [vmem:[#allocation2 + $0x50] sm:$0xf]
    %v2847 = vrot.slane %v2839, 4
    %v2848 = vrot.slane %v2840, 4
    %v2849 = vsel %vm2589, %v2847, %v2848
    %v2850 = vrot.slane %v2841, 4
    %v2851 = vsel %vm2589, %v2848, %v2850
    %v2852 = vrot.slane %v2842, 4
    %v2853 = vsel %vm2589, %v2850, %v2852
    %2854 = vrot.lane.b32.xlu0 %v2849, 64
    %v2855 = vpop.permute.xlu0 %2854
    %2856 = vrot.lane.b32.xlu0 %v2851, 64
    %v2857 = vpop.permute.xlu0 %2856
    %2858 = vrot.lane.b32.xlu0 %v2853, 64
    %v2859 = vpop.permute.xlu0 %2858
    %2863 = vst.msk [vmem:[#allocation3 + $0xc0] sm:$0xff] %vm2817, %v2855
    %2864 = vst.msk [vmem:[#allocation3 + $0xe0] sm:$0xff] %vm2817, %v2857
    %2865 = vst.msk [vmem:[#allocation3 + $0x100] sm:$0xff] %vm2817, %v2859
    %v2866 = vld [vmem:[#allocation2 + $0x58] sm:$0xff]
    %v2867 = vld [vmem:[#allocation2 + $0x60] sm:$0xff]
    %v2868 = vld [vmem:[#allocation2 + $0x68] sm:$0xff]
    %2872 = vrot.lane.b32.xlu0 %v2866, 64
    %v2873 = vpop.permute.xlu0 %2872
    %2874 = vrot.lane.b32.xlu0 %v2867, 64
    %v2875 = vpop.permute.xlu0 %2874
    %2876 = vrot.lane.b32.xlu0 %v2868, 64
    %v2877 = vpop.permute.xlu0 %2876
    %2881 = vst.msk [vmem:[#allocation3 + $0x120] sm:$0xff] %vm2817, %v2873
    %2882 = vst.msk [vmem:[#allocation3 + $0x140] sm:$0xff] %vm2817, %v2875
    %2883 = vst.msk [vmem:[#allocation3 + $0x160] sm:$0xff] %vm2817, %v2877
    %v2884 = vld [vmem:[#allocation2 + $0x70] sm:$0xf0]
    %v2885 = vld [vmem:[#allocation2 + $0x78] sm:$0xff]
    %v2886 = vld [vmem:[#allocation2 + $0x80] sm:$0xff]
    %v2887 = vld [vmem:[#allocation2 + $0x88] sm:$0xf]
    %v2892 = vrot.slane %v2884, 4
    %v2893 = vrot.slane %v2885, 4
    %v2894 = vsel %vm2589, %v2892, %v2893
    %v2895 = vrot.slane %v2886, 4
    %v2896 = vsel %vm2589, %v2893, %v2895
    %v2897 = vrot.slane %v2887, 4
    %v2898 = vsel %vm2589, %v2895, %v2897
    %2899 = vrot.lane.b32.xlu0 %v2894, 64
    %v2900 = vpop.permute.xlu0 %2899
    %2901 = vrot.lane.b32.xlu0 %v2896, 64
    %v2902 = vpop.permute.xlu0 %2901
    %2903 = vrot.lane.b32.xlu0 %v2898, 64
    %v2904 = vpop.permute.xlu0 %2903
    %2908 = vst.msk [vmem:[#allocation3 + $0x180] sm:$0xff] %vm2817, %v2900
    %2909 = vst.msk [vmem:[#allocation3 + $0x1a0] sm:$0xff] %vm2817, %v2902
    %2910 = vst.msk [vmem:[#allocation3 + $0x1c0] sm:$0xff] %vm2817, %v2904
    %v2911 = vld [vmem:[#allocation2 + $0x90] sm:$0xff]
    %v2912 = vld [vmem:[#allocation2 + $0x98] sm:$0xff]
    %v2913 = vld [vmem:[#allocation2 + $0xa0] sm:$0xff]
    %2917 = vrot.lane.b32.xlu0 %v2911, 64
    %v2918 = vpop.permute.xlu0 %2917
    %2919 = vrot.lane.b32.xlu0 %v2912, 64
    %v2920 = vpop.permute.xlu0 %2919
    %2921 = vrot.lane.b32.xlu0 %v2913, 64
    %v2922 = vpop.permute.xlu0 %2921
    %2926 = vst.msk [vmem:[#allocation3 + $0x1e0] sm:$0xff] %vm2817, %v2918
    %2927 = vst.msk [vmem:[#allocation3 + $0x200] sm:$0xff] %vm2817, %v2920
    %2928 = vst.msk [vmem:[#allocation3 + $0x220] sm:$0xff] %vm2817, %v2922
    %v2929 = vld [vmem:[#allocation2 + $0xc8] sm:$0xff]
    %v2930 = vld [vmem:[#allocation2 + $0xd0] sm:$0xff]
    %v2931 = vld [vmem:[#allocation2 + $0xd8] sm:$0xff]
    %2935 = vrot.lane.b32.xlu0 %v2929, 96
    %v2936 = vpop.permute.xlu0 %2935
    %2937 = vrot.lane.b32.xlu0 %v2930, 96
    %v2938 = vpop.permute.xlu0 %2937
    %2939 = vrot.lane.b32.xlu0 %v2931, 96
    %v2940 = vpop.permute.xlu0 %2939
    %vm2944 = vcmask 1048320
    %2945 = vst.msk [vmem:[#allocation3] sm:$0xff] %vm2944, %v2936
    %2946 = vst.msk [vmem:[#allocation3 + $0x20] sm:$0xff] %vm2944, %v2938
    %2947 = vst.msk [vmem:[#allocation3 + $0x40] sm:$0xff] %vm2944, %v2940
    %v2948 = vld [vmem:[#allocation2 + $0xe0] sm:$0xf0]
    %v2949 = vld [vmem:[#allocation2 + $0xe8] sm:$0xff]
    %v2950 = vld [vmem:[#allocation2 + $0xf0] sm:$0xff]
    %v2951 = vld [vmem:[#allocation2 + $0xf8] sm:$0xf]
    %v2956 = vrot.slane %v2948, 4
    %v2957 = vrot.slane %v2949, 4
    %v2958 = vsel %vm2589, %v2956, %v2957
    %v2959 = vrot.slane %v2950, 4
    %v2960 = vsel %vm2589, %v2957, %v2959
    %v2961 = vrot.slane %v2951, 4
    %v2962 = vsel %vm2589, %v2959, %v2961
    %2963 = vrot.lane.b32.xlu0 %v2958, 96
    %v2964 = vpop.permute.xlu0 %2963
    %2965 = vrot.lane.b32.xlu0 %v2960, 96
    %v2966 = vpop.permute.xlu0 %2965
    %2967 = vrot.lane.b32.xlu0 %v2962, 96
    %v2968 = vpop.permute.xlu0 %2967
    %2972 = vst.msk [vmem:[#allocation3 + $0x60] sm:$0xff] %vm2944, %v2964
    %2973 = vst.msk [vmem:[#allocation3 + $0x80] sm:$0xff] %vm2944, %v2966
    %2974 = vst.msk [vmem:[#allocation3 + $0xa0] sm:$0xff] %vm2944, %v2968
    %v2975 = vld [vmem:[#allocation2 + $0x100] sm:$0xff]
    %v2976 = vld [vmem:[#allocation2 + $0x108] sm:$0xff]
    %v2977 = vld [vmem:[#allocation2 + $0x110] sm:$0xff]
    %2981 = vrot.lane.b32.xlu0 %v2975, 96
    %v2982 = vpop.permute.xlu0 %2981
    %2983 = vrot.lane.b32.xlu0 %v2976, 96
    %v2984 = vpop.permute.xlu0 %2983
    %2985 = vrot.lane.b32.xlu0 %v2977, 96
    %v2986 = vpop.permute.xlu0 %2985
    %2990 = vst.msk [vmem:[#allocation3 + $0xc0] sm:$0xff] %vm2944, %v2982
    %2991 = vst.msk [vmem:[#allocation3 + $0xe0] sm:$0xff] %vm2944, %v2984
    %2992 = vst.msk [vmem:[#allocation3 + $0x100] sm:$0xff] %vm2944, %v2986
    %v2993 = vld [vmem:[#allocation2 + $0x118] sm:$0xf0]
    %v2994 = vld [vmem:[#allocation2 + $0x120] sm:$0xff]
    %v2995 = vld [vmem:[#allocation2 + $0x128] sm:$0xff]
    %v2996 = vld [vmem:[#allocation2 + $0x130] sm:$0xf]
    %v3001 = vrot.slane %v2993, 4
    %v3002 = vrot.slane %v2994, 4
    %v3003 = vsel %vm2589, %v3001, %v3002
    %v3004 = vrot.slane %v2995, 4
    %v3005 = vsel %vm2589, %v3002, %v3004
    %v3006 = vrot.slane %v2996, 4
    %v3007 = vsel %vm2589, %v3004, %v3006
    %3008 = vrot.lane.b32.xlu0 %v3003, 96
    %v3009 = vpop.permute.xlu0 %3008
    %3010 = vrot.lane.b32.xlu0 %v3005, 96
    %v3011 = vpop.permute.xlu0 %3010
    %3012 = vrot.lane.b32.xlu0 %v3007, 96
    %v3013 = vpop.permute.xlu0 %3012
    %3017 = vst.msk [vmem:[#allocation3 + $0x120] sm:$0xff] %vm2944, %v3009
    %3018 = vst.msk [vmem:[#allocation3 + $0x140] sm:$0xff] %vm2944, %v3011
    %3019 = vst.msk [vmem:[#allocation3 + $0x160] sm:$0xff] %vm2944, %v3013
    %v3020 = vld [vmem:[#allocation2 + $0x138] sm:$0xff]
    %v3021 = vld [vmem:[#allocation2 + $0x140] sm:$0xff]
    %v3022 = vld [vmem:[#allocation2 + $0x148] sm:$0xff]
    %3026 = vrot.lane.b32.xlu0 %v3020, 96
    %v3027 = vpop.permute.xlu0 %3026
    %3028 = vrot.lane.b32.xlu0 %v3021, 96
    %v3029 = vpop.permute.xlu0 %3028
    %3030 = vrot.lane.b32.xlu0 %v3022, 96
    %v3031 = vpop.permute.xlu0 %3030
    %3035 = vst.msk [vmem:[#allocation3 + $0x180] sm:$0xff] %vm2944, %v3027
    %3036 = vst.msk [vmem:[#allocation3 + $0x1a0] sm:$0xff] %vm2944, %v3029
    %3037 = vst.msk [vmem:[#allocation3 + $0x1c0] sm:$0xff] %vm2944, %v3031
    %v3038 = vld [vmem:[#allocation2 + $0x150] sm:$0xf0]
    %v3039 = vld [vmem:[#allocation2 + $0x158] sm:$0xff]
    %v3040 = vld [vmem:[#allocation2 + $0x160] sm:$0xff]
    %v3041 = vld [vmem:[#allocation2 + $0x168] sm:$0xf]
    %v3046 = vrot.slane %v3038, 4
    %v3047 = vrot.slane %v3039, 4
    %v3048 = vsel %vm2589, %v3046, %v3047
    %v3049 = vrot.slane %v3040, 4
    %v3050 = vsel %vm2589, %v3047, %v3049
    %v3051 = vrot.slane %v3041, 4
    %v3052 = vsel %vm2589, %v3049, %v3051
    %3053 = vrot.lane.b32.xlu0 %v3048, 96
    %v3054 = vpop.permute.xlu0 %3053
    %3055 = vrot.lane.b32.xlu0 %v3050, 96
    %v3056 = vpop.permute.xlu0 %3055
    %3057 = vrot.lane.b32.xlu0 %v3052, 96
    %v3058 = vpop.permute.xlu0 %3057
    %3062 = vst.msk [vmem:[#allocation3 + $0x1e0] sm:$0xff] %vm2944, %v3054
    %3063 = vst.msk [vmem:[#allocation3 + $0x200] sm:$0xff] %vm2944, %v3056
    %3064 = vst.msk [vmem:[#allocation3 + $0x220] sm:$0xff] %vm2944, %v3058
    %v3065 = vld [vmem:[#allocation2 + $0x188] sm:$0xff]
    %v3066 = vld [vmem:[#allocation2 + $0x190] sm:$0xff]
    %v3067 = vld [vmem:[#allocation2 + $0x198] sm:$0xff]
    %3068 = vst.msk [vmem:[#allocation3 + $0x8] sm:$0xff] %vm2476, %v3065
    %3069 = vst.msk [vmem:[#allocation3 + $0x28] sm:$0xff] %vm2476, %v3066
    %3070 = vst.msk [vmem:[#allocation3 + $0x48] sm:$0xff] %vm2476, %v3067
    %v3071 = vld [vmem:[#allocation2 + $0x1a0] sm:$0xf0]
    %v3072 = vld [vmem:[#allocation2 + $0x1a8] sm:$0xff]
    %v3073 = vld [vmem:[#allocation2 + $0x1b0] sm:$0xff]
    %v3074 = vld [vmem:[#allocation2 + $0x1b8] sm:$0xf]
    %v3079 = vrot.slane %v3071, 4
    %v3080 = vrot.slane %v3072, 4
    %v3081 = vsel %vm2589, %v3079, %v3080
    %v3082 = vrot.slane %v3073, 4
    %v3083 = vsel %vm2589, %v3080, %v3082
    %v3084 = vrot.slane %v3074, 4
    %v3085 = vsel %vm2589, %v3082, %v3084
    %3089 = vst.msk [vmem:[#allocation3 + $0x68] sm:$0xff] %vm2476, %v3081
    %3090 = vst.msk [vmem:[#allocation3 + $0x88] sm:$0xff] %vm2476, %v3083
    %3091 = vst.msk [vmem:[#allocation3 + $0xa8] sm:$0xff] %vm2476, %v3085
    %v3092 = vld [vmem:[#allocation2 + $0x1c0] sm:$0xff]
    %v3093 = vld [vmem:[#allocation2 + $0x1c8] sm:$0xff]
    %v3094 = vld [vmem:[#allocation2 + $0x1d0] sm:$0xff]
    %3095 = vst.msk [vmem:[#allocation3 + $0xc8] sm:$0xff] %vm2476, %v3092
    %3096 = vst.msk [vmem:[#allocation3 + $0xe8] sm:$0xff] %vm2476, %v3093
    %3097 = vst.msk [vmem:[#allocation3 + $0x108] sm:$0xff] %vm2476, %v3094
    %v3098 = vld [vmem:[#allocation2 + $0x1d8] sm:$0xf0]
    %v3099 = vld [vmem:[#allocation2 + $0x1e0] sm:$0xff]
    %v3100 = vld [vmem:[#allocation2 + $0x1e8] sm:$0xff]
    %v3101 = vld [vmem:[#allocation2 + $0x1f0] sm:$0xf]
    %v3106 = vrot.slane %v3098, 4
    %v3107 = vrot.slane %v3099, 4
    %v3108 = vsel %vm2589, %v3106, %v3107
    %v3109 = vrot.slane %v3100, 4
    %v3110 = vsel %vm2589, %v3107, %v3109
    %v3111 = vrot.slane %v3101, 4
    %v3112 = vsel %vm2589, %v3109, %v3111
    %3116 = vst.msk [vmem:[#allocation3 + $0x128] sm:$0xff] %vm2476, %v3108
    %3117 = vst.msk [vmem:[#allocation3 + $0x148] sm:$0xff] %vm2476, %v3110
    %3118 = vst.msk [vmem:[#allocation3 + $0x168] sm:$0xff] %vm2476, %v3112
    %v3119 = vld [vmem:[#allocation2 + $0x1f8] sm:$0xff]
    %v3120 = vld [vmem:[#allocation2 + $0x200] sm:$0xff]
    %v3121 = vld [vmem:[#allocation2 + $0x208] sm:$0xff]
    %3122 = vst.msk [vmem:[#allocation3 + $0x188] sm:$0xff] %vm2476, %v3119
    %3123 = vst.msk [vmem:[#allocation3 + $0x1a8] sm:$0xff] %vm2476, %v3120
    %3124 = vst.msk [vmem:[#allocation3 + $0x1c8] sm:$0xff] %vm2476, %v3121
    %v3125 = vld [vmem:[#allocation2 + $0x210] sm:$0xf0]
    %v3126 = vld [vmem:[#allocation2 + $0x218] sm:$0xff]
    %v3127 = vld [vmem:[#allocation2 + $0x220] sm:$0xff]
    %v3128 = vld [vmem:[#allocation2 + $0x228] sm:$0xf]
    %v3133 = vrot.slane %v3125, 4
    %v3134 = vrot.slane %v3126, 4
    %v3135 = vsel %vm2589, %v3133, %v3134
    %v3136 = vrot.slane %v3127, 4
    %v3137 = vsel %vm2589, %v3134, %v3136
    %v3138 = vrot.slane %v3128, 4
    %v3139 = vsel %vm2589, %v3136, %v3138
    %3143 = vst.msk [vmem:[#allocation3 + $0x1e8] sm:$0xff] %vm2476, %v3135
    %3144 = vst.msk [vmem:[#allocation3 + $0x208] sm:$0xff] %vm2476, %v3137
    %3145 = vst.msk [vmem:[#allocation3 + $0x228] sm:$0xff] %vm2476, %v3139
    %v3146 = vld [vmem:[#allocation2 + $0x248] sm:$0xf0]
    %v3147 = vld [vmem:[#allocation2 + $0x250] sm:$0xff]
    %v3148 = vld [vmem:[#allocation2 + $0x258] sm:$0xff]
    %v3149 = vld [vmem:[#allocation2 + $0x260] sm:$0xf]
    %v3154 = vrot.slane %v3146, 4
    %v3155 = vrot.slane %v3147, 4
    %v3156 = vsel %vm2589, %v3154, %v3155
    %v3157 = vrot.slane %v3148, 4
    %v3158 = vsel %vm2589, %v3155, %v3157
    %v3159 = vrot.slane %v3149, 4
    %v3160 = vsel %vm2589, %v3157, %v3159
    %3161 = vrot.lane.b32.xlu0 %v3156, 32
    %v3162 = vpop.permute.xlu0 %3161
    %3163 = vrot.lane.b32.xlu0 %v3158, 32
    %v3164 = vpop.permute.xlu0 %3163
    %3165 = vrot.lane.b32.xlu0 %v3160, 32
    %v3166 = vpop.permute.xlu0 %3165
    %3170 = vst.msk [vmem:[#allocation3 + $0x8] sm:$0xff] %vm2681, %v3162
    %3171 = vst.msk [vmem:[#allocation3 + $0x28] sm:$0xff] %vm2681, %v3164
    %3172 = vst.msk [vmem:[#allocation3 + $0x48] sm:$0xff] %vm2681, %v3166
    %v3173 = vld [vmem:[#allocation2 + $0x268] sm:$0xff]
    %v3174 = vld [vmem:[#allocation2 + $0x270] sm:$0xff]
    %v3175 = vld [vmem:[#allocation2 + $0x278] sm:$0xff]
    %3179 = vrot.lane.b32.xlu0 %v3173, 32
    %v3180 = vpop.permute.xlu0 %3179
    %3181 = vrot.lane.b32.xlu0 %v3174, 32
    %v3182 = vpop.permute.xlu0 %3181
    %3183 = vrot.lane.b32.xlu0 %v3175, 32
    %v3184 = vpop.permute.xlu0 %3183
    %3188 = vst.msk [vmem:[#allocation3 + $0x68] sm:$0xff] %vm2681, %v3180
    %3189 = vst.msk [vmem:[#allocation3 + $0x88] sm:$0xff] %vm2681, %v3182
    %3190 = vst.msk [vmem:[#allocation3 + $0xa8] sm:$0xff] %vm2681, %v3184
    %v3191 = vld [vmem:[#allocation2 + $0x280] sm:$0xf0]
    %v3192 = vld [vmem:[#allocation2 + $0x288] sm:$0xff]
    %v3193 = vld [vmem:[#allocation2 + $0x290] sm:$0xff]
    %v3194 = vld [vmem:[#allocation2 + $0x298] sm:$0xf]
    %v3199 = vrot.slane %v3191, 4
    %v3200 = vrot.slane %v3192, 4
    %v3201 = vsel %vm2589, %v3199, %v3200
    %v3202 = vrot.slane %v3193, 4
    %v3203 = vsel %vm2589, %v3200, %v3202
    %v3204 = vrot.slane %v3194, 4
    %v3205 = vsel %vm2589, %v3202, %v3204
    %3206 = vrot.lane.b32.xlu0 %v3201, 32
    %v3207 = vpop.permute.xlu0 %3206
    %3208 = vrot.lane.b32.xlu0 %v3203, 32
    %v3209 = vpop.permute.xlu0 %3208
    %3210 = vrot.lane.b32.xlu0 %v3205, 32
    %v3211 = vpop.permute.xlu0 %3210
    %3215 = vst.msk [vmem:[#allocation3 + $0xc8] sm:$0xff] %vm2681, %v3207
    %3216 = vst.msk [vmem:[#allocation3 + $0xe8] sm:$0xff] %vm2681, %v3209
    %3217 = vst.msk [vmem:[#allocation3 + $0x108] sm:$0xff] %vm2681, %v3211
    %v3218 = vld [vmem:[#allocation2 + $0x2a0] sm:$0xff]
    %v3219 = vld [vmem:[#allocation2 + $0x2a8] sm:$0xff]
    %v3220 = vld [vmem:[#allocation2 + $0x2b0] sm:$0xff]
    %3224 = vrot.lane.b32.xlu0 %v3218, 32
    %v3225 = vpop.permute.xlu0 %3224
    %3226 = vrot.lane.b32.xlu0 %v3219, 32
    %v3227 = vpop.permute.xlu0 %3226
    %3228 = vrot.lane.b32.xlu0 %v3220, 32
    %v3229 = vpop.permute.xlu0 %3228
    %3233 = vst.msk [vmem:[#allocation3 + $0x128] sm:$0xff] %vm2681, %v3225
    %3234 = vst.msk [vmem:[#allocation3 + $0x148] sm:$0xff] %vm2681, %v3227
    %3235 = vst.msk [vmem:[#allocation3 + $0x168] sm:$0xff] %vm2681, %v3229
    %v3236 = vld [vmem:[#allocation2 + $0x2b8] sm:$0xf0]
    %v3237 = vld [vmem:[#allocation2 + $0x2c0] sm:$0xff]
    %v3238 = vld [vmem:[#allocation2 + $0x2c8] sm:$0xff]
    %v3239 = vld [vmem:[#allocation2 + $0x2d0] sm:$0xf]
    %v3244 = vrot.slane %v3236, 4
    %v3245 = vrot.slane %v3237, 4
    %v3246 = vsel %vm2589, %v3244, %v3245
    %v3247 = vrot.slane %v3238, 4
    %v3248 = vsel %vm2589, %v3245, %v3247
    %v3249 = vrot.slane %v3239, 4
    %v3250 = vsel %vm2589, %v3247, %v3249
    %3251 = vrot.lane.b32.xlu0 %v3246, 32
    %v3252 = vpop.permute.xlu0 %3251
    %3253 = vrot.lane.b32.xlu0 %v3248, 32
    %v3254 = vpop.permute.xlu0 %3253
    %3255 = vrot.lane.b32.xlu0 %v3250, 32
    %v3256 = vpop.permute.xlu0 %3255
    %3260 = vst.msk [vmem:[#allocation3 + $0x188] sm:$0xff] %vm2681, %v3252
    %3261 = vst.msk [vmem:[#allocation3 + $0x1a8] sm:$0xff] %vm2681, %v3254
    %3262 = vst.msk [vmem:[#allocation3 + $0x1c8] sm:$0xff] %vm2681, %v3256
    %v3263 = vld [vmem:[#allocation2 + $0x2d8] sm:$0xff]
    %v3264 = vld [vmem:[#allocation2 + $0x2e0] sm:$0xff]
    %v3265 = vld [vmem:[#allocation2 + $0x2e8] sm:$0xff]
    %3269 = vrot.lane.b32.xlu0 %v3263, 32
    %v3270 = vpop.permute.xlu0 %3269
    %3271 = vrot.lane.b32.xlu0 %v3264, 32
    %v3272 = vpop.permute.xlu0 %3271
    %3273 = vrot.lane.b32.xlu0 %v3265, 32
    %v3274 = vpop.permute.xlu0 %3273
    %3278 = vst.msk [vmem:[#allocation3 + $0x1e8] sm:$0xff] %vm2681, %v3270
    %3279 = vst.msk [vmem:[#allocation3 + $0x208] sm:$0xff] %vm2681, %v3272
    %3280 = vst.msk [vmem:[#allocation3 + $0x228] sm:$0xff] %vm2681, %v3274
    %v3281 = vld [vmem:[#allocation2 + $0x188] sm:$0xf0]
    %v3282 = vld [vmem:[#allocation2 + $0x190] sm:$0xff]
    %v3283 = vld [vmem:[#allocation2 + $0x198] sm:$0xff]
    %v3284 = vld [vmem:[#allocation2 + $0x1a0] sm:$0xf]
    %v3289 = vrot.slane %v3281, 4
    %v3290 = vrot.slane %v3282, 4
    %v3291 = vsel %vm2589, %v3289, %v3290
    %v3292 = vrot.slane %v3283, 4
    %v3293 = vsel %vm2589, %v3290, %v3292
    %v3294 = vrot.slane %v3284, 4
    %v3295 = vsel %vm2589, %v3292, %v3294
    %3296 = vrot.lane.b32.xlu0 %v3291, 64
    %v3297 = vpop.permute.xlu0 %3296
    %3298 = vrot.lane.b32.xlu0 %v3293, 64
    %v3299 = vpop.permute.xlu0 %3298
    %3300 = vrot.lane.b32.xlu0 %v3295, 64
    %v3301 = vpop.permute.xlu0 %3300
    %3305 = vst.msk [vmem:[#allocation3 + $0x8] sm:$0xff] %vm2817, %v3297
    %3306 = vst.msk [vmem:[#allocation3 + $0x28] sm:$0xff] %vm2817, %v3299
    %3307 = vst.msk [vmem:[#allocation3 + $0x48] sm:$0xff] %vm2817, %v3301
    %v3308 = vld [vmem:[#allocation2 + $0x1a8] sm:$0xff]
    %v3309 = vld [vmem:[#allocation2 + $0x1b0] sm:$0xff]
    %v3310 = vld [vmem:[#allocation2 + $0x1b8] sm:$0xff]
    %3314 = vrot.lane.b32.xlu0 %v3308, 64
    %v3315 = vpop.permute.xlu0 %3314
    %3316 = vrot.lane.b32.xlu0 %v3309, 64
    %v3317 = vpop.permute.xlu0 %3316
    %3318 = vrot.lane.b32.xlu0 %v3310, 64
    %v3319 = vpop.permute.xlu0 %3318
    %3323 = vst.msk [vmem:[#allocation3 + $0x68] sm:$0xff] %vm2817, %v3315
    %3324 = vst.msk [vmem:[#allocation3 + $0x88] sm:$0xff] %vm2817, %v3317
    %3325 = vst.msk [vmem:[#allocation3 + $0xa8] sm:$0xff] %vm2817, %v3319
    %v3326 = vld [vmem:[#allocation2 + $0x1c0] sm:$0xf0]
    %v3327 = vld [vmem:[#allocation2 + $0x1c8] sm:$0xff]
    %v3328 = vld [vmem:[#allocation2 + $0x1d0] sm:$0xff]
    %v3329 = vld [vmem:[#allocation2 + $0x1d8] sm:$0xf]
    %v3334 = vrot.slane %v3326, 4
    %v3335 = vrot.slane %v3327, 4
    %v3336 = vsel %vm2589, %v3334, %v3335
    %v3337 = vrot.slane %v3328, 4
    %v3338 = vsel %vm2589, %v3335, %v3337
    %v3339 = vrot.slane %v3329, 4
    %v3340 = vsel %vm2589, %v3337, %v3339
    %3341 = vrot.lane.b32.xlu0 %v3336, 64
    %v3342 = vpop.permute.xlu0 %3341
    %3343 = vrot.lane.b32.xlu0 %v3338, 64
    %v3344 = vpop.permute.xlu0 %3343
    %3345 = vrot.lane.b32.xlu0 %v3340, 64
    %v3346 = vpop.permute.xlu0 %3345
    %3350 = vst.msk [vmem:[#allocation3 + $0xc8] sm:$0xff] %vm2817, %v3342
    %3351 = vst.msk [vmem:[#allocation3 + $0xe8] sm:$0xff] %vm2817, %v3344
    %3352 = vst.msk [vmem:[#allocation3 + $0x108] sm:$0xff] %vm2817, %v3346
    %v3353 = vld [vmem:[#allocation2 + $0x1e0] sm:$0xff]
    %v3354 = vld [vmem:[#allocation2 + $0x1e8] sm:$0xff]
    %v3355 = vld [vmem:[#allocation2 + $0x1f0] sm:$0xff]
    %3359 = vrot.lane.b32.xlu0 %v3353, 64
    %v3360 = vpop.permute.xlu0 %3359
    %3361 = vrot.lane.b32.xlu0 %v3354, 64
    %v3362 = vpop.permute.xlu0 %3361
    %3363 = vrot.lane.b32.xlu0 %v3355, 64
    %v3364 = vpop.permute.xlu0 %3363
    %3368 = vst.msk [vmem:[#allocation3 + $0x128] sm:$0xff] %vm2817, %v3360
    %3369 = vst.msk [vmem:[#allocation3 + $0x148] sm:$0xff] %vm2817, %v3362
    %3370 = vst.msk [vmem:[#allocation3 + $0x168] sm:$0xff] %vm2817, %v3364
    %v3371 = vld [vmem:[#allocation2 + $0x1f8] sm:$0xf0]
    %v3372 = vld [vmem:[#allocation2 + $0x200] sm:$0xff]
    %v3373 = vld [vmem:[#allocation2 + $0x208] sm:$0xff]
    %v3374 = vld [vmem:[#allocation2 + $0x210] sm:$0xf]
    %v3379 = vrot.slane %v3371, 4
    %v3380 = vrot.slane %v3372, 4
    %v3381 = vsel %vm2589, %v3379, %v3380
    %v3382 = vrot.slane %v3373, 4
    %v3383 = vsel %vm2589, %v3380, %v3382
    %v3384 = vrot.slane %v3374, 4
    %v3385 = vsel %vm2589, %v3382, %v3384
    %3386 = vrot.lane.b32.xlu0 %v3381, 64
    %v3387 = vpop.permute.xlu0 %3386
    %3388 = vrot.lane.b32.xlu0 %v3383, 64
    %v3389 = vpop.permute.xlu0 %3388
    %3390 = vrot.lane.b32.xlu0 %v3385, 64
    %v3391 = vpop.permute.xlu0 %3390
    %3395 = vst.msk [vmem:[#allocation3 + $0x188] sm:$0xff] %vm2817, %v3387
    %3396 = vst.msk [vmem:[#allocation3 + $0x1a8] sm:$0xff] %vm2817, %v3389
    %3397 = vst.msk [vmem:[#allocation3 + $0x1c8] sm:$0xff] %vm2817, %v3391
    %v3398 = vld [vmem:[#allocation2 + $0x218] sm:$0xff]
    %v3399 = vld [vmem:[#allocation2 + $0x220] sm:$0xff]
    %v3400 = vld [vmem:[#allocation2 + $0x228] sm:$0xff]
    %3404 = vrot.lane.b32.xlu0 %v3398, 64
    %v3405 = vpop.permute.xlu0 %3404
    %3406 = vrot.lane.b32.xlu0 %v3399, 64
    %v3407 = vpop.permute.xlu0 %3406
    %3408 = vrot.lane.b32.xlu0 %v3400, 64
    %v3409 = vpop.permute.xlu0 %3408
    %3413 = vst.msk [vmem:[#allocation3 + $0x1e8] sm:$0xff] %vm2817, %v3405
    %3414 = vst.msk [vmem:[#allocation3 + $0x208] sm:$0xff] %vm2817, %v3407
    %3415 = vst.msk [vmem:[#allocation3 + $0x228] sm:$0xff] %vm2817, %v3409
    %v3416 = vld [vmem:[#allocation2 + $0x250] sm:$0xff]
    %v3417 = vld [vmem:[#allocation2 + $0x258] sm:$0xff]
    %v3418 = vld [vmem:[#allocation2 + $0x260] sm:$0xff]
    %3422 = vrot.lane.b32.xlu0 %v3416, 96
    %v3423 = vpop.permute.xlu0 %3422
    %3424 = vrot.lane.b32.xlu0 %v3417, 96
    %v3425 = vpop.permute.xlu0 %3424
    %3426 = vrot.lane.b32.xlu0 %v3418, 96
    %v3427 = vpop.permute.xlu0 %3426
    %3431 = vst.msk [vmem:[#allocation3 + $0x8] sm:$0xff] %vm2944, %v3423
    %3432 = vst.msk [vmem:[#allocation3 + $0x28] sm:$0xff] %vm2944, %v3425
    %3433 = vst.msk [vmem:[#allocation3 + $0x48] sm:$0xff] %vm2944, %v3427
    %v3434 = vld [vmem:[#allocation2 + $0x268] sm:$0xf0]
    %v3435 = vld [vmem:[#allocation2 + $0x270] sm:$0xff]
    %v3436 = vld [vmem:[#allocation2 + $0x278] sm:$0xff]
    %v3437 = vld [vmem:[#allocation2 + $0x280] sm:$0xf]
    %v3442 = vrot.slane %v3434, 4
    %v3443 = vrot.slane %v3435, 4
    %v3444 = vsel %vm2589, %v3442, %v3443
    %v3445 = vrot.slane %v3436, 4
    %v3446 = vsel %vm2589, %v3443, %v3445
    %v3447 = vrot.slane %v3437, 4
    %v3448 = vsel %vm2589, %v3445, %v3447
    %3449 = vrot.lane.b32.xlu0 %v3444, 96
    %v3450 = vpop.permute.xlu0 %3449
    %3451 = vrot.lane.b32.xlu0 %v3446, 96
    %v3452 = vpop.permute.xlu0 %3451
    %3453 = vrot.lane.b32.xlu0 %v3448, 96
    %v3454 = vpop.permute.xlu0 %3453
    %3458 = vst.msk [vmem:[#allocation3 + $0x68] sm:$0xff] %vm2944, %v3450
    %3459 = vst.msk [vmem:[#allocation3 + $0x88] sm:$0xff] %vm2944, %v3452
    %3460 = vst.msk [vmem:[#allocation3 + $0xa8] sm:$0xff] %vm2944, %v3454
    %v3461 = vld [vmem:[#allocation2 + $0x288] sm:$0xff]
    %v3462 = vld [vmem:[#allocation2 + $0x290] sm:$0xff]
    %v3463 = vld [vmem:[#allocation2 + $0x298] sm:$0xff]
    %3467 = vrot.lane.b32.xlu0 %v3461, 96
    %v3468 = vpop.permute.xlu0 %3467
    %3469 = vrot.lane.b32.xlu0 %v3462, 96
    %v3470 = vpop.permute.xlu0 %3469
    %3471 = vrot.lane.b32.xlu0 %v3463, 96
    %v3472 = vpop.permute.xlu0 %3471
    %3476 = vst.msk [vmem:[#allocation3 + $0xc8] sm:$0xff] %vm2944, %v3468
    %3477 = vst.msk [vmem:[#allocation3 + $0xe8] sm:$0xff] %vm2944, %v3470
    %3478 = vst.msk [vmem:[#allocation3 + $0x108] sm:$0xff] %vm2944, %v3472
    %v3479 = vld [vmem:[#allocation2 + $0x2a0] sm:$0xf0]
    %v3480 = vld [vmem:[#allocation2 + $0x2a8] sm:$0xff]
    %v3481 = vld [vmem:[#allocation2 + $0x2b0] sm:$0xff]
    %v3482 = vld [vmem:[#allocation2 + $0x2b8] sm:$0xf]
    %v3487 = vrot.slane %v3479, 4
    %v3488 = vrot.slane %v3480, 4
    %v3489 = vsel %vm2589, %v3487, %v3488
    %v3490 = vrot.slane %v3481, 4
    %v3491 = vsel %vm2589, %v3488, %v3490
    %v3492 = vrot.slane %v3482, 4
    %v3493 = vsel %vm2589, %v3490, %v3492
    %3494 = vrot.lane.b32.xlu0 %v3489, 96
    %v3495 = vpop.permute.xlu0 %3494
    %3496 = vrot.lane.b32.xlu0 %v3491, 96
    %v3497 = vpop.permute.xlu0 %3496
    %3498 = vrot.lane.b32.xlu0 %v3493, 96
    %v3499 = vpop.permute.xlu0 %3498
    %3503 = vst.msk [vmem:[#allocation3 + $0x128] sm:$0xff] %vm2944, %v3495
    %3504 = vst.msk [vmem:[#allocation3 + $0x148] sm:$0xff] %vm2944, %v3497
    %3505 = vst.msk [vmem:[#allocation3 + $0x168] sm:$0xff] %vm2944, %v3499
    %v3506 = vld [vmem:[#allocation2 + $0x2c0] sm:$0xff]
    %v3507 = vld [vmem:[#allocation2 + $0x2c8] sm:$0xff]
    %v3508 = vld [vmem:[#allocation2 + $0x2d0] sm:$0xff]
    %3512 = vrot.lane.b32.xlu0 %v3506, 96
    %v3513 = vpop.permute.xlu0 %3512
    %3514 = vrot.lane.b32.xlu0 %v3507, 96
    %v3515 = vpop.permute.xlu0 %3514
    %3516 = vrot.lane.b32.xlu0 %v3508, 96
    %v3517 = vpop.permute.xlu0 %3516
    %3521 = vst.msk [vmem:[#allocation3 + $0x188] sm:$0xff] %vm2944, %v3513
    %3522 = vst.msk [vmem:[#allocation3 + $0x1a8] sm:$0xff] %vm2944, %v3515
    %3523 = vst.msk [vmem:[#allocation3 + $0x1c8] sm:$0xff] %vm2944, %v3517
    %v3524 = vld [vmem:[#allocation2 + $0x2d8] sm:$0xf0]
    %v3525 = vld [vmem:[#allocation2 + $0x2e0] sm:$0xff]
    %v3526 = vld [vmem:[#allocation2 + $0x2e8] sm:$0xff]
    %v3527 = vld [vmem:[#allocation2 + $0x2f0] sm:$0xf]
    %v3532 = vrot.slane %v3524, 4
    %v3533 = vrot.slane %v3525, 4
    %v3534 = vsel %vm2589, %v3532, %v3533
    %v3535 = vrot.slane %v3526, 4
    %v3536 = vsel %vm2589, %v3533, %v3535
    %v3537 = vrot.slane %v3527, 4
    %v3538 = vsel %vm2589, %v3535, %v3537
    %3539 = vrot.lane.b32.xlu0 %v3534, 96
    %v3540 = vpop.permute.xlu0 %3539
    %3541 = vrot.lane.b32.xlu0 %v3536, 96
    %v3542 = vpop.permute.xlu0 %3541
    %3543 = vrot.lane.b32.xlu0 %v3538, 96
    %v3544 = vpop.permute.xlu0 %3543
    %3548 = vst.msk [vmem:[#allocation3 + $0x1e8] sm:$0xff] %vm2944, %v3540
    %3549 = vst.msk [vmem:[#allocation3 + $0x208] sm:$0xff] %vm2944, %v3542
    %3550 = vst.msk [vmem:[#allocation3 + $0x228] sm:$0xff] %vm2944, %v3544
    %v3551 = vld [vmem:[#allocation2 + $0x18] sm:$0xf0]
    %v3552 = vld [vmem:[#allocation2 + $0x20] sm:$0xff]
    %v3553 = vld [vmem:[#allocation2 + $0x28] sm:$0xff]
    %v3554 = vld [vmem:[#allocation2 + $0x30] sm:$0xf]
    %v3559 = vrot.slane %v3551, 4
    %v3560 = vrot.slane %v3552, 4
    %v3561 = vsel %vm2589, %v3559, %v3560
    %v3562 = vrot.slane %v3553, 4
    %v3563 = vsel %vm2589, %v3560, %v3562
    %v3564 = vrot.slane %v3554, 4
    %v3565 = vsel %vm2589, %v3562, %v3564
    %3569 = vst.msk [vmem:[#allocation3 + $0x10] sm:$0xff] %vm2476, %v3561
    %3570 = vst.msk [vmem:[#allocation3 + $0x30] sm:$0xff] %vm2476, %v3563
    %3571 = vst.msk [vmem:[#allocation3 + $0x50] sm:$0xff] %vm2476, %v3565
    %v3572 = vld [vmem:[#allocation2 + $0x38] sm:$0xff]
    %v3573 = vld [vmem:[#allocation2 + $0x40] sm:$0xff]
    %v3574 = vld [vmem:[#allocation2 + $0x48] sm:$0xff]
    %3575 = vst.msk [vmem:[#allocation3 + $0x70] sm:$0xff] %vm2476, %v3572
    %3576 = vst.msk [vmem:[#allocation3 + $0x90] sm:$0xff] %vm2476, %v3573
    %3577 = vst.msk [vmem:[#allocation3 + $0xb0] sm:$0xff] %vm2476, %v3574
    %v3578 = vld [vmem:[#allocation2 + $0x50] sm:$0xf0]
    %v3579 = vld [vmem:[#allocation2 + $0x58] sm:$0xff]
    %v3580 = vld [vmem:[#allocation2 + $0x60] sm:$0xff]
    %v3581 = vld [vmem:[#allocation2 + $0x68] sm:$0xf]
    %v3586 = vrot.slane %v3578, 4
    %v3587 = vrot.slane %v3579, 4
    %v3588 = vsel %vm2589, %v3586, %v3587
    %v3589 = vrot.slane %v3580, 4
    %v3590 = vsel %vm2589, %v3587, %v3589
    %v3591 = vrot.slane %v3581, 4
    %v3592 = vsel %vm2589, %v3589, %v3591
    %3596 = vst.msk [vmem:[#allocation3 + $0xd0] sm:$0xff] %vm2476, %v3588
    %3597 = vst.msk [vmem:[#allocation3 + $0xf0] sm:$0xff] %vm2476, %v3590
    %3598 = vst.msk [vmem:[#allocation3 + $0x110] sm:$0xff] %vm2476, %v3592
    %v3599 = vld [vmem:[#allocation2 + $0x70] sm:$0xff]
    %v3600 = vld [vmem:[#allocation2 + $0x78] sm:$0xff]
    %v3601 = vld [vmem:[#allocation2 + $0x80] sm:$0xff]
    %3602 = vst.msk [vmem:[#allocation3 + $0x130] sm:$0xff] %vm2476, %v3599
    %3603 = vst.msk [vmem:[#allocation3 + $0x150] sm:$0xff] %vm2476, %v3600
    %3604 = vst.msk [vmem:[#allocation3 + $0x170] sm:$0xff] %vm2476, %v3601
    %v3605 = vld [vmem:[#allocation2 + $0x88] sm:$0xf0]
    %v3606 = vld [vmem:[#allocation2 + $0x90] sm:$0xff]
    %v3607 = vld [vmem:[#allocation2 + $0x98] sm:$0xff]
    %v3608 = vld [vmem:[#allocation2 + $0xa0] sm:$0xf]
    %v3613 = vrot.slane %v3605, 4
    %v3614 = vrot.slane %v3606, 4
    %v3615 = vsel %vm2589, %v3613, %v3614
    %v3616 = vrot.slane %v3607, 4
    %v3617 = vsel %vm2589, %v3614, %v3616
    %v3618 = vrot.slane %v3608, 4
    %v3619 = vsel %vm2589, %v3616, %v3618
    %3623 = vst.msk [vmem:[#allocation3 + $0x190] sm:$0xff] %vm2476, %v3615
    %3624 = vst.msk [vmem:[#allocation3 + $0x1b0] sm:$0xff] %vm2476, %v3617
    %3625 = vst.msk [vmem:[#allocation3 + $0x1d0] sm:$0xff] %vm2476, %v3619
    %v3626 = vld [vmem:[#allocation2 + $0xa8] sm:$0xff]
    %v3627 = vld [vmem:[#allocation2 + $0xb0] sm:$0xff]
    %v3628 = vld [vmem:[#allocation2 + $0xb8] sm:$0xff]
    %3629 = vst.msk [vmem:[#allocation3 + $0x1f0] sm:$0xff] %vm2476, %v3626
    %3630 = vst.msk [vmem:[#allocation3 + $0x210] sm:$0xff] %vm2476, %v3627
    %3631 = vst.msk [vmem:[#allocation3 + $0x230] sm:$0xff] %vm2476, %v3628
    %v3632 = vld [vmem:[#allocation2 + $0xe0] sm:$0xff]
    %v3633 = vld [vmem:[#allocation2 + $0xe8] sm:$0xff]
    %v3634 = vld [vmem:[#allocation2 + $0xf0] sm:$0xff]
    %3638 = vrot.lane.b32.xlu0 %v3632, 32
    %v3639 = vpop.permute.xlu0 %3638
    %3640 = vrot.lane.b32.xlu0 %v3633, 32
    %v3641 = vpop.permute.xlu0 %3640
    %3642 = vrot.lane.b32.xlu0 %v3634, 32
    %v3643 = vpop.permute.xlu0 %3642
    %3647 = vst.msk [vmem:[#allocation3 + $0x10] sm:$0xff] %vm2681, %v3639
    %3648 = vst.msk [vmem:[#allocation3 + $0x30] sm:$0xff] %vm2681, %v3641
    %3649 = vst.msk [vmem:[#allocation3 + $0x50] sm:$0xff] %vm2681, %v3643
    %v3650 = vld [vmem:[#allocation2 + $0xf8] sm:$0xf0]
    %v3651 = vld [vmem:[#allocation2 + $0x100] sm:$0xff]
    %v3652 = vld [vmem:[#allocation2 + $0x108] sm:$0xff]
    %v3653 = vld [vmem:[#allocation2 + $0x110] sm:$0xf]
    %v3658 = vrot.slane %v3650, 4
    %v3659 = vrot.slane %v3651, 4
    %v3660 = vsel %vm2589, %v3658, %v3659
    %v3661 = vrot.slane %v3652, 4
    %v3662 = vsel %vm2589, %v3659, %v3661
    %v3663 = vrot.slane %v3653, 4
    %v3664 = vsel %vm2589, %v3661, %v3663
    %3665 = vrot.lane.b32.xlu0 %v3660, 32
    %v3666 = vpop.permute.xlu0 %3665
    %3667 = vrot.lane.b32.xlu0 %v3662, 32
    %v3668 = vpop.permute.xlu0 %3667
    %3669 = vrot.lane.b32.xlu0 %v3664, 32
    %v3670 = vpop.permute.xlu0 %3669
    %3674 = vst.msk [vmem:[#allocation3 + $0x70] sm:$0xff] %vm2681, %v3666
    %3675 = vst.msk [vmem:[#allocation3 + $0x90] sm:$0xff] %vm2681, %v3668
    %3676 = vst.msk [vmem:[#allocation3 + $0xb0] sm:$0xff] %vm2681, %v3670
    %v3677 = vld [vmem:[#allocation2 + $0x118] sm:$0xff]
    %v3678 = vld [vmem:[#allocation2 + $0x120] sm:$0xff]
    %v3679 = vld [vmem:[#allocation2 + $0x128] sm:$0xff]
    %3683 = vrot.lane.b32.xlu0 %v3677, 32
    %v3684 = vpop.permute.xlu0 %3683
    %3685 = vrot.lane.b32.xlu0 %v3678, 32
    %v3686 = vpop.permute.xlu0 %3685
    %3687 = vrot.lane.b32.xlu0 %v3679, 32
    %v3688 = vpop.permute.xlu0 %3687
    %3692 = vst.msk [vmem:[#allocation3 + $0xd0] sm:$0xff] %vm2681, %v3684
    %3693 = vst.msk [vmem:[#allocation3 + $0xf0] sm:$0xff] %vm2681, %v3686
    %3694 = vst.msk [vmem:[#allocation3 + $0x110] sm:$0xff] %vm2681, %v3688
    %v3695 = vld [vmem:[#allocation2 + $0x130] sm:$0xf0]
    %v3696 = vld [vmem:[#allocation2 + $0x138] sm:$0xff]
    %v3697 = vld [vmem:[#allocation2 + $0x140] sm:$0xff]
    %v3698 = vld [vmem:[#allocation2 + $0x148] sm:$0xf]
    %v3703 = vrot.slane %v3695, 4
    %v3704 = vrot.slane %v3696, 4
    %v3705 = vsel %vm2589, %v3703, %v3704
    %v3706 = vrot.slane %v3697, 4
    %v3707 = vsel %vm2589, %v3704, %v3706
    %v3708 = vrot.slane %v3698, 4
    %v3709 = vsel %vm2589, %v3706, %v3708
    %3710 = vrot.lane.b32.xlu0 %v3705, 32
    %v3711 = vpop.permute.xlu0 %3710
    %3712 = vrot.lane.b32.xlu0 %v3707, 32
    %v3713 = vpop.permute.xlu0 %3712
    %3714 = vrot.lane.b32.xlu0 %v3709, 32
    %v3715 = vpop.permute.xlu0 %3714
    %3719 = vst.msk [vmem:[#allocation3 + $0x130] sm:$0xff] %vm2681, %v3711
    %3720 = vst.msk [vmem:[#allocation3 + $0x150] sm:$0xff] %vm2681, %v3713
    %3721 = vst.msk [vmem:[#allocation3 + $0x170] sm:$0xff] %vm2681, %v3715
    %v3722 = vld [vmem:[#allocation2 + $0x150] sm:$0xff]
    %v3723 = vld [vmem:[#allocation2 + $0x158] sm:$0xff]
    %v3724 = vld [vmem:[#allocation2 + $0x160] sm:$0xff]
    %3728 = vrot.lane.b32.xlu0 %v3722, 32
    %v3729 = vpop.permute.xlu0 %3728
    %3730 = vrot.lane.b32.xlu0 %v3723, 32
    %v3731 = vpop.permute.xlu0 %3730
    %3732 = vrot.lane.b32.xlu0 %v3724, 32
    %v3733 = vpop.permute.xlu0 %3732
    %3737 = vst.msk [vmem:[#allocation3 + $0x190] sm:$0xff] %vm2681, %v3729
    %3738 = vst.msk [vmem:[#allocation3 + $0x1b0] sm:$0xff] %vm2681, %v3731
    %3739 = vst.msk [vmem:[#allocation3 + $0x1d0] sm:$0xff] %vm2681, %v3733
    %v3740 = vld [vmem:[#allocation2 + $0x168] sm:$0xf0]
    %v3741 = vld [vmem:[#allocation2 + $0x170] sm:$0xff]
    %v3742 = vld [vmem:[#allocation2 + $0x178] sm:$0xff]
    %v3743 = vld [vmem:[#allocation2 + $0x180] sm:$0xf]
    %v3748 = vrot.slane %v3740, 4
    %v3749 = vrot.slane %v3741, 4
    %v3750 = vsel %vm2589, %v3748, %v3749
    %v3751 = vrot.slane %v3742, 4
    %v3752 = vsel %vm2589, %v3749, %v3751
    %v3753 = vrot.slane %v3743, 4
    %v3754 = vsel %vm2589, %v3751, %v3753
    %3755 = vrot.lane.b32.xlu0 %v3750, 32
    %v3756 = vpop.permute.xlu0 %3755
    %3757 = vrot.lane.b32.xlu0 %v3752, 32
    %v3758 = vpop.permute.xlu0 %3757
    %3759 = vrot.lane.b32.xlu0 %v3754, 32
    %v3760 = vpop.permute.xlu0 %3759
    %3764 = vst.msk [vmem:[#allocation3 + $0x1f0] sm:$0xff] %vm2681, %v3756
    %3765 = vst.msk [vmem:[#allocation3 + $0x210] sm:$0xff] %vm2681, %v3758
    %3766 = vst.msk [vmem:[#allocation3 + $0x230] sm:$0xff] %vm2681, %v3760
    %v3767 = vld [vmem:[#allocation2 + $0x20] sm:$0xff]
    %v3768 = vld [vmem:[#allocation2 + $0x28] sm:$0xff]
    %v3769 = vld [vmem:[#allocation2 + $0x30] sm:$0xff]
    %3773 = vrot.lane.b32.xlu0 %v3767, 64
    %v3774 = vpop.permute.xlu0 %3773
    %3775 = vrot.lane.b32.xlu0 %v3768, 64
    %v3776 = vpop.permute.xlu0 %3775
    %3777 = vrot.lane.b32.xlu0 %v3769, 64
    %v3778 = vpop.permute.xlu0 %3777
    %3782 = vst.msk [vmem:[#allocation3 + $0x10] sm:$0xff] %vm2817, %v3774
    %3783 = vst.msk [vmem:[#allocation3 + $0x30] sm:$0xff] %vm2817, %v3776
    %3784 = vst.msk [vmem:[#allocation3 + $0x50] sm:$0xff] %vm2817, %v3778
    %v3785 = vld [vmem:[#allocation2 + $0x38] sm:$0xf0]
    %v3786 = vld [vmem:[#allocation2 + $0x40] sm:$0xff]
    %v3787 = vld [vmem:[#allocation2 + $0x48] sm:$0xff]
    %v3788 = vld [vmem:[#allocation2 + $0x50] sm:$0xf]
    %v3793 = vrot.slane %v3785, 4
    %v3794 = vrot.slane %v3786, 4
    %v3795 = vsel %vm2589, %v3793, %v3794
    %v3796 = vrot.slane %v3787, 4
    %v3797 = vsel %vm2589, %v3794, %v3796
    %v3798 = vrot.slane %v3788, 4
    %v3799 = vsel %vm2589, %v3796, %v3798
    %3800 = vrot.lane.b32.xlu0 %v3795, 64
    %v3801 = vpop.permute.xlu0 %3800
    %3802 = vrot.lane.b32.xlu0 %v3797, 64
    %v3803 = vpop.permute.xlu0 %3802
    %3804 = vrot.lane.b32.xlu0 %v3799, 64
    %v3805 = vpop.permute.xlu0 %3804
    %3809 = vst.msk [vmem:[#allocation3 + $0x70] sm:$0xff] %vm2817, %v3801
    %3810 = vst.msk [vmem:[#allocation3 + $0x90] sm:$0xff] %vm2817, %v3803
    %3811 = vst.msk [vmem:[#allocation3 + $0xb0] sm:$0xff] %vm2817, %v3805
    %v3812 = vld [vmem:[#allocation2 + $0x58] sm:$0xff]
    %v3813 = vld [vmem:[#allocation2 + $0x60] sm:$0xff]
    %v3814 = vld [vmem:[#allocation2 + $0x68] sm:$0xff]
    %3818 = vrot.lane.b32.xlu0 %v3812, 64
    %v3819 = vpop.permute.xlu0 %3818
    %3820 = vrot.lane.b32.xlu0 %v3813, 64
    %v3821 = vpop.permute.xlu0 %3820
    %3822 = vrot.lane.b32.xlu0 %v3814, 64
    %v3823 = vpop.permute.xlu0 %3822
    %3827 = vst.msk [vmem:[#allocation3 + $0xd0] sm:$0xff] %vm2817, %v3819
    %3828 = vst.msk [vmem:[#allocation3 + $0xf0] sm:$0xff] %vm2817, %v3821
    %3829 = vst.msk [vmem:[#allocation3 + $0x110] sm:$0xff] %vm2817, %v3823
    %v3830 = vld [vmem:[#allocation2 + $0x70] sm:$0xf0]
    %v3831 = vld [vmem:[#allocation2 + $0x78] sm:$0xff]
    %v3832 = vld [vmem:[#allocation2 + $0x80] sm:$0xff]
    %v3833 = vld [vmem:[#allocation2 + $0x88] sm:$0xf]
    %v3838 = vrot.slane %v3830, 4
    %v3839 = vrot.slane %v3831, 4
    %v3840 = vsel %vm2589, %v3838, %v3839
    %v3841 = vrot.slane %v3832, 4
    %v3842 = vsel %vm2589, %v3839, %v3841
    %v3843 = vrot.slane %v3833, 4
    %v3844 = vsel %vm2589, %v3841, %v3843
    %3845 = vrot.lane.b32.xlu0 %v3840, 64
    %v3846 = vpop.permute.xlu0 %3845
    %3847 = vrot.lane.b32.xlu0 %v3842, 64
    %v3848 = vpop.permute.xlu0 %3847
    %3849 = vrot.lane.b32.xlu0 %v3844, 64
    %v3850 = vpop.permute.xlu0 %3849
    %3854 = vst.msk [vmem:[#allocation3 + $0x130] sm:$0xff] %vm2817, %v3846
    %3855 = vst.msk [vmem:[#allocation3 + $0x150] sm:$0xff] %vm2817, %v3848
    %3856 = vst.msk [vmem:[#allocation3 + $0x170] sm:$0xff] %vm2817, %v3850
    %v3857 = vld [vmem:[#allocation2 + $0x90] sm:$0xff]
    %v3858 = vld [vmem:[#allocation2 + $0x98] sm:$0xff]
    %v3859 = vld [vmem:[#allocation2 + $0xa0] sm:$0xff]
    %3863 = vrot.lane.b32.xlu0 %v3857, 64
    %v3864 = vpop.permute.xlu0 %3863
    %3865 = vrot.lane.b32.xlu0 %v3858, 64
    %v3866 = vpop.permute.xlu0 %3865
    %3867 = vrot.lane.b32.xlu0 %v3859, 64
    %v3868 = vpop.permute.xlu0 %3867
    %3872 = vst.msk [vmem:[#allocation3 + $0x190] sm:$0xff] %vm2817, %v3864
    %3873 = vst.msk [vmem:[#allocation3 + $0x1b0] sm:$0xff] %vm2817, %v3866
    %3874 = vst.msk [vmem:[#allocation3 + $0x1d0] sm:$0xff] %vm2817, %v3868
    %v3875 = vld [vmem:[#allocation2 + $0xa8] sm:$0xf0]
    %v3876 = vld [vmem:[#allocation2 + $0xb0] sm:$0xff]
    %v3877 = vld [vmem:[#allocation2 + $0xb8] sm:$0xff]
    %v3878 = vld [vmem:[#allocation2 + $0xc0] sm:$0xf]
    %v3883 = vrot.slane %v3875, 4
    %v3884 = vrot.slane %v3876, 4
    %v3885 = vsel %vm2589, %v3883, %v3884
    %v3886 = vrot.slane %v3877, 4
    %v3887 = vsel %vm2589, %v3884, %v3886
    %v3888 = vrot.slane %v3878, 4
    %v3889 = vsel %vm2589, %v3886, %v3888
    %3890 = vrot.lane.b32.xlu0 %v3885, 64
    %v3891 = vpop.permute.xlu0 %3890
    %3892 = vrot.lane.b32.xlu0 %v3887, 64
    %v3893 = vpop.permute.xlu0 %3892
    %3894 = vrot.lane.b32.xlu0 %v3889, 64
    %v3895 = vpop.permute.xlu0 %3894
    %3899 = vst.msk [vmem:[#allocation3 + $0x1f0] sm:$0xff] %vm2817, %v3891
    %3900 = vst.msk [vmem:[#allocation3 + $0x210] sm:$0xff] %vm2817, %v3893
    %3901 = vst.msk [vmem:[#allocation3 + $0x230] sm:$0xff] %vm2817, %v3895
    %v3902 = vld [vmem:[#allocation2 + $0xe0] sm:$0xf0]
    %v3903 = vld [vmem:[#allocation2 + $0xe8] sm:$0xff]
    %v3904 = vld [vmem:[#allocation2 + $0xf0] sm:$0xff]
    %v3905 = vld [vmem:[#allocation2 + $0xf8] sm:$0xf]
    %v3910 = vrot.slane %v3902, 4
    %v3911 = vrot.slane %v3903, 4
    %v3912 = vsel %vm2589, %v3910, %v3911
    %v3913 = vrot.slane %v3904, 4
    %v3914 = vsel %vm2589, %v3911, %v3913
    %v3915 = vrot.slane %v3905, 4
    %v3916 = vsel %vm2589, %v3913, %v3915
    %3917 = vrot.lane.b32.xlu0 %v3912, 96
    %v3918 = vpop.permute.xlu0 %3917
    %3919 = vrot.lane.b32.xlu0 %v3914, 96
    %v3920 = vpop.permute.xlu0 %3919
    %3921 = vrot.lane.b32.xlu0 %v3916, 96
    %v3922 = vpop.permute.xlu0 %3921
    %3926 = vst.msk [vmem:[#allocation3 + $0x10] sm:$0xff] %vm2944, %v3918
    %3927 = vst.msk [vmem:[#allocation3 + $0x30] sm:$0xff] %vm2944, %v3920
    %3928 = vst.msk [vmem:[#allocation3 + $0x50] sm:$0xff] %vm2944, %v3922
    %v3929 = vld [vmem:[#allocation2 + $0x100] sm:$0xff]
    %v3930 = vld [vmem:[#allocation2 + $0x108] sm:$0xff]
    %v3931 = vld [vmem:[#allocation2 + $0x110] sm:$0xff]
    %3935 = vrot.lane.b32.xlu0 %v3929, 96
    %v3936 = vpop.permute.xlu0 %3935
    %3937 = vrot.lane.b32.xlu0 %v3930, 96
    %v3938 = vpop.permute.xlu0 %3937
    %3939 = vrot.lane.b32.xlu0 %v3931, 96
    %v3940 = vpop.permute.xlu0 %3939
    %3944 = vst.msk [vmem:[#allocation3 + $0x70] sm:$0xff] %vm2944, %v3936
    %3945 = vst.msk [vmem:[#allocation3 + $0x90] sm:$0xff] %vm2944, %v3938
    %3946 = vst.msk [vmem:[#allocation3 + $0xb0] sm:$0xff] %vm2944, %v3940
    %v3947 = vld [vmem:[#allocation2 + $0x118] sm:$0xf0]
    %v3948 = vld [vmem:[#allocation2 + $0x120] sm:$0xff]
    %v3949 = vld [vmem:[#allocation2 + $0x128] sm:$0xff]
    %v3950 = vld [vmem:[#allocation2 + $0x130] sm:$0xf]
    %v3955 = vrot.slane %v3947, 4
    %v3956 = vrot.slane %v3948, 4
    %v3957 = vsel %vm2589, %v3955, %v3956
    %v3958 = vrot.slane %v3949, 4
    %v3959 = vsel %vm2589, %v3956, %v3958
    %v3960 = vrot.slane %v3950, 4
    %v3961 = vsel %vm2589, %v3958, %v3960
    %3962 = vrot.lane.b32.xlu0 %v3957, 96
    %v3963 = vpop.permute.xlu0 %3962
    %3964 = vrot.lane.b32.xlu0 %v3959, 96
    %v3965 = vpop.permute.xlu0 %3964
    %3966 = vrot.lane.b32.xlu0 %v3961, 96
    %v3967 = vpop.permute.xlu0 %3966
    %3971 = vst.msk [vmem:[#allocation3 + $0xd0] sm:$0xff] %vm2944, %v3963
    %3972 = vst.msk [vmem:[#allocation3 + $0xf0] sm:$0xff] %vm2944, %v3965
    %3973 = vst.msk [vmem:[#allocation3 + $0x110] sm:$0xff] %vm2944, %v3967
    %v3974 = vld [vmem:[#allocation2 + $0x138] sm:$0xff]
    %v3975 = vld [vmem:[#allocation2 + $0x140] sm:$0xff]
    %v3976 = vld [vmem:[#allocation2 + $0x148] sm:$0xff]
    %3980 = vrot.lane.b32.xlu0 %v3974, 96
    %v3981 = vpop.permute.xlu0 %3980
    %3982 = vrot.lane.b32.xlu0 %v3975, 96
    %v3983 = vpop.permute.xlu0 %3982
    %3984 = vrot.lane.b32.xlu0 %v3976, 96
    %v3985 = vpop.permute.xlu0 %3984
    %3989 = vst.msk [vmem:[#allocation3 + $0x130] sm:$0xff] %vm2944, %v3981
    %3990 = vst.msk [vmem:[#allocation3 + $0x150] sm:$0xff] %vm2944, %v3983
    %3991 = vst.msk [vmem:[#allocation3 + $0x170] sm:$0xff] %vm2944, %v3985
    %v3992 = vld [vmem:[#allocation2 + $0x150] sm:$0xf0]
    %v3993 = vld [vmem:[#allocation2 + $0x158] sm:$0xff]
    %v3994 = vld [vmem:[#allocation2 + $0x160] sm:$0xff]
    %v3995 = vld [vmem:[#allocation2 + $0x168] sm:$0xf]
    %v4000 = vrot.slane %v3992, 4
    %v4001 = vrot.slane %v3993, 4
    %v4002 = vsel %vm2589, %v4000, %v4001
    %v4003 = vrot.slane %v3994, 4
    %v4004 = vsel %vm2589, %v4001, %v4003
    %v4005 = vrot.slane %v3995, 4
    %v4006 = vsel %vm2589, %v4003, %v4005
    %4007 = vrot.lane.b32.xlu0 %v4002, 96
    %v4008 = vpop.permute.xlu0 %4007
    %4009 = vrot.lane.b32.xlu0 %v4004, 96
    %v4010 = vpop.permute.xlu0 %4009
    %4011 = vrot.lane.b32.xlu0 %v4006, 96
    %v4012 = vpop.permute.xlu0 %4011
    %4016 = vst.msk [vmem:[#allocation3 + $0x190] sm:$0xff] %vm2944, %v4008
    %4017 = vst.msk [vmem:[#allocation3 + $0x1b0] sm:$0xff] %vm2944, %v4010
    %4018 = vst.msk [vmem:[#allocation3 + $0x1d0] sm:$0xff] %vm2944, %v4012
    %v4019 = vld [vmem:[#allocation2 + $0x170] sm:$0xff]
    %v4020 = vld [vmem:[#allocation2 + $0x178] sm:$0xff]
    %v4021 = vld [vmem:[#allocation2 + $0x180] sm:$0xff]
    %4025 = vrot.lane.b32.xlu0 %v4019, 96
    %v4026 = vpop.permute.xlu0 %4025
    %4027 = vrot.lane.b32.xlu0 %v4020, 96
    %v4028 = vpop.permute.xlu0 %4027
    %4029 = vrot.lane.b32.xlu0 %v4021, 96
    %v4030 = vpop.permute.xlu0 %4029
    %4034 = vst.msk [vmem:[#allocation3 + $0x1f0] sm:$0xff] %vm2944, %v4026
    %4035 = vst.msk [vmem:[#allocation3 + $0x210] sm:$0xff] %vm2944, %v4028
    %4036 = vst.msk [vmem:[#allocation3 + $0x230] sm:$0xff] %vm2944, %v4030
    %v4037 = vld [vmem:[#allocation2 + $0x1a0] sm:$0xf0]
    %v4038 = vld [vmem:[#allocation2 + $0x1a8] sm:$0xff]
    %v4039 = vld [vmem:[#allocation2 + $0x1b0] sm:$0xff]
    %v4040 = vld [vmem:[#allocation2 + $0x1b8] sm:$0xf]
    %v4045 = vrot.slane %v4037, 4
    %v4046 = vrot.slane %v4038, 4
    %v4047 = vsel %vm2589, %v4045, %v4046
    %v4048 = vrot.slane %v4039, 4
    %v4049 = vsel %vm2589, %v4046, %v4048
    %v4050 = vrot.slane %v4040, 4
    %v4051 = vsel %vm2589, %v4048, %v4050
    %4055 = vst.msk [vmem:[#allocation3 + $0x18] sm:$0xff] %vm2476, %v4047
    %4056 = vst.msk [vmem:[#allocation3 + $0x38] sm:$0xff] %vm2476, %v4049
    %4057 = vst.msk [vmem:[#allocation3 + $0x58] sm:$0xff] %vm2476, %v4051
    %v4058 = vld [vmem:[#allocation2 + $0x1c0] sm:$0xff]
    %v4059 = vld [vmem:[#allocation2 + $0x1c8] sm:$0xff]
    %v4060 = vld [vmem:[#allocation2 + $0x1d0] sm:$0xff]
    %4061 = vst.msk [vmem:[#allocation3 + $0x78] sm:$0xff] %vm2476, %v4058
    %4062 = vst.msk [vmem:[#allocation3 + $0x98] sm:$0xff] %vm2476, %v4059
    %4063 = vst.msk [vmem:[#allocation3 + $0xb8] sm:$0xff] %vm2476, %v4060
    %v4064 = vld [vmem:[#allocation2 + $0x1d8] sm:$0xf0]
    %v4065 = vld [vmem:[#allocation2 + $0x1e0] sm:$0xff]
    %v4066 = vld [vmem:[#allocation2 + $0x1e8] sm:$0xff]
    %v4067 = vld [vmem:[#allocation2 + $0x1f0] sm:$0xf]
    %v4072 = vrot.slane %v4064, 4
    %v4073 = vrot.slane %v4065, 4
    %v4074 = vsel %vm2589, %v4072, %v4073
    %v4075 = vrot.slane %v4066, 4
    %v4076 = vsel %vm2589, %v4073, %v4075
    %v4077 = vrot.slane %v4067, 4
    %v4078 = vsel %vm2589, %v4075, %v4077
    %4082 = vst.msk [vmem:[#allocation3 + $0xd8] sm:$0xff] %vm2476, %v4074
    %4083 = vst.msk [vmem:[#allocation3 + $0xf8] sm:$0xff] %vm2476, %v4076
    %4084 = vst.msk [vmem:[#allocation3 + $0x118] sm:$0xff] %vm2476, %v4078
    %v4085 = vld [vmem:[#allocation2 + $0x1f8] sm:$0xff]
    %v4086 = vld [vmem:[#allocation2 + $0x200] sm:$0xff]
    %v4087 = vld [vmem:[#allocation2 + $0x208] sm:$0xff]
    %4088 = vst.msk [vmem:[#allocation3 + $0x138] sm:$0xff] %vm2476, %v4085
    %4089 = vst.msk [vmem:[#allocation3 + $0x158] sm:$0xff] %vm2476, %v4086
    %4090 = vst.msk [vmem:[#allocation3 + $0x178] sm:$0xff] %vm2476, %v4087
    %v4091 = vld [vmem:[#allocation2 + $0x210] sm:$0xf0]
    %v4092 = vld [vmem:[#allocation2 + $0x218] sm:$0xff]
    %v4093 = vld [vmem:[#allocation2 + $0x220] sm:$0xff]
    %v4094 = vld [vmem:[#allocation2 + $0x228] sm:$0xf]
    %v4099 = vrot.slane %v4091, 4
    %v4100 = vrot.slane %v4092, 4
    %v4101 = vsel %vm2589, %v4099, %v4100
    %v4102 = vrot.slane %v4093, 4
    %v4103 = vsel %vm2589, %v4100, %v4102
    %v4104 = vrot.slane %v4094, 4
    %v4105 = vsel %vm2589, %v4102, %v4104
    %4109 = vst.msk [vmem:[#allocation3 + $0x198] sm:$0xff] %vm2476, %v4101
    %4110 = vst.msk [vmem:[#allocation3 + $0x1b8] sm:$0xff] %vm2476, %v4103
    %4111 = vst.msk [vmem:[#allocation3 + $0x1d8] sm:$0xff] %vm2476, %v4105
    %v4112 = vld [vmem:[#allocation2 + $0x230] sm:$0xff]
    %v4113 = vld [vmem:[#allocation2 + $0x238] sm:$0xff]
    %v4114 = vld [vmem:[#allocation2 + $0x240] sm:$0xff]
    %4115 = vst.msk [vmem:[#allocation3 + $0x1f8] sm:$0xff] %vm2476, %v4112
    %4116 = vst.msk [vmem:[#allocation3 + $0x218] sm:$0xff] %vm2476, %v4113
    %4117 = vst.msk [vmem:[#allocation3 + $0x238] sm:$0xff] %vm2476, %v4114
    %v4118 = vld [vmem:[#allocation2 + $0x268] sm:$0xff]
    %v4119 = vld [vmem:[#allocation2 + $0x270] sm:$0xff]
    %v4120 = vld [vmem:[#allocation2 + $0x278] sm:$0xff]
    %4124 = vrot.lane.b32.xlu0 %v4118, 32
    %v4125 = vpop.permute.xlu0 %4124
    %4126 = vrot.lane.b32.xlu0 %v4119, 32
    %v4127 = vpop.permute.xlu0 %4126
    %4128 = vrot.lane.b32.xlu0 %v4120, 32
    %v4129 = vpop.permute.xlu0 %4128
    %4133 = vst.msk [vmem:[#allocation3 + $0x18] sm:$0xff] %vm2681, %v4125
    %4134 = vst.msk [vmem:[#allocation3 + $0x38] sm:$0xff] %vm2681, %v4127
    %4135 = vst.msk [vmem:[#allocation3 + $0x58] sm:$0xff] %vm2681, %v4129
    %v4136 = vld [vmem:[#allocation2 + $0x280] sm:$0xf0]
    %v4137 = vld [vmem:[#allocation2 + $0x288] sm:$0xff]
    %v4138 = vld [vmem:[#allocation2 + $0x290] sm:$0xff]
    %v4139 = vld [vmem:[#allocation2 + $0x298] sm:$0xf]
    %v4144 = vrot.slane %v4136, 4
    %v4145 = vrot.slane %v4137, 4
    %v4146 = vsel %vm2589, %v4144, %v4145
    %v4147 = vrot.slane %v4138, 4
    %v4148 = vsel %vm2589, %v4145, %v4147
    %v4149 = vrot.slane %v4139, 4
    %v4150 = vsel %vm2589, %v4147, %v4149
    %4151 = vrot.lane.b32.xlu0 %v4146, 32
    %v4152 = vpop.permute.xlu0 %4151
    %4153 = vrot.lane.b32.xlu0 %v4148, 32
    %v4154 = vpop.permute.xlu0 %4153
    %4155 = vrot.lane.b32.xlu0 %v4150, 32
    %v4156 = vpop.permute.xlu0 %4155
    %4160 = vst.msk [vmem:[#allocation3 + $0x78] sm:$0xff] %vm2681, %v4152
    %4161 = vst.msk [vmem:[#allocation3 + $0x98] sm:$0xff] %vm2681, %v4154
    %4162 = vst.msk [vmem:[#allocation3 + $0xb8] sm:$0xff] %vm2681, %v4156
    %v4163 = vld [vmem:[#allocation2 + $0x2a0] sm:$0xff]
    %v4164 = vld [vmem:[#allocation2 + $0x2a8] sm:$0xff]
    %v4165 = vld [vmem:[#allocation2 + $0x2b0] sm:$0xff]
    %4169 = vrot.lane.b32.xlu0 %v4163, 32
    %v4170 = vpop.permute.xlu0 %4169
    %4171 = vrot.lane.b32.xlu0 %v4164, 32
    %v4172 = vpop.permute.xlu0 %4171
    %4173 = vrot.lane.b32.xlu0 %v4165, 32
    %v4174 = vpop.permute.xlu0 %4173
    %4178 = vst.msk [vmem:[#allocation3 + $0xd8] sm:$0xff] %vm2681, %v4170
    %4179 = vst.msk [vmem:[#allocation3 + $0xf8] sm:$0xff] %vm2681, %v4172
    %4180 = vst.msk [vmem:[#allocation3 + $0x118] sm:$0xff] %vm2681, %v4174
    %v4181 = vld [vmem:[#allocation2 + $0x2b8] sm:$0xf0]
    %v4182 = vld [vmem:[#allocation2 + $0x2c0] sm:$0xff]
    %v4183 = vld [vmem:[#allocation2 + $0x2c8] sm:$0xff]
    %v4184 = vld [vmem:[#allocation2 + $0x2d0] sm:$0xf]
    %v4189 = vrot.slane %v4181, 4
    %v4190 = vrot.slane %v4182, 4
    %v4191 = vsel %vm2589, %v4189, %v4190
    %v4192 = vrot.slane %v4183, 4
    %v4193 = vsel %vm2589, %v4190, %v4192
    %v4194 = vrot.slane %v4184, 4
    %v4195 = vsel %vm2589, %v4192, %v4194
    %4196 = vrot.lane.b32.xlu0 %v4191, 32
    %v4197 = vpop.permute.xlu0 %4196
    %4198 = vrot.lane.b32.xlu0 %v4193, 32
    %v4199 = vpop.permute.xlu0 %4198
    %4200 = vrot.lane.b32.xlu0 %v4195, 32
    %v4201 = vpop.permute.xlu0 %4200
    %4205 = vst.msk [vmem:[#allocation3 + $0x138] sm:$0xff] %vm2681, %v4197
    %4206 = vst.msk [vmem:[#allocation3 + $0x158] sm:$0xff] %vm2681, %v4199
    %4207 = vst.msk [vmem:[#allocation3 + $0x178] sm:$0xff] %vm2681, %v4201
    %v4208 = vld [vmem:[#allocation2 + $0x2d8] sm:$0xff]
    %v4209 = vld [vmem:[#allocation2 + $0x2e0] sm:$0xff]
    %v4210 = vld [vmem:[#allocation2 + $0x2e8] sm:$0xff]
    %4214 = vrot.lane.b32.xlu0 %v4208, 32
    %v4215 = vpop.permute.xlu0 %4214
    %4216 = vrot.lane.b32.xlu0 %v4209, 32
    %v4217 = vpop.permute.xlu0 %4216
    %4218 = vrot.lane.b32.xlu0 %v4210, 32
    %v4219 = vpop.permute.xlu0 %4218
    %4223 = vst.msk [vmem:[#allocation3 + $0x198] sm:$0xff] %vm2681, %v4215
    %4224 = vst.msk [vmem:[#allocation3 + $0x1b8] sm:$0xff] %vm2681, %v4217
    %4225 = vst.msk [vmem:[#allocation3 + $0x1d8] sm:$0xff] %vm2681, %v4219
    %v4226 = vld [vmem:[#allocation2 + $0x2f0] sm:$0xf0]
    %v4227 = vld [vmem:[#allocation2 + $0x2f8] sm:$0xff]
    %v4228 = vld [vmem:[#allocation2 + $0x300] sm:$0xff]
    %v4229 = vld [vmem:[#allocation2 + $0x308] sm:$0xf]
    %v4234 = vrot.slane %v4226, 4
    %v4235 = vrot.slane %v4227, 4
    %v4236 = vsel %vm2589, %v4234, %v4235
    %v4237 = vrot.slane %v4228, 4
    %v4238 = vsel %vm2589, %v4235, %v4237
    %v4239 = vrot.slane %v4229, 4
    %v4240 = vsel %vm2589, %v4237, %v4239
    %4241 = vrot.lane.b32.xlu0 %v4236, 32
    %v4242 = vpop.permute.xlu0 %4241
    %4243 = vrot.lane.b32.xlu0 %v4238, 32
    %v4244 = vpop.permute.xlu0 %4243
    %4245 = vrot.lane.b32.xlu0 %v4240, 32
    %v4246 = vpop.permute.xlu0 %4245
    %4250 = vst.msk [vmem:[#allocation3 + $0x1f8] sm:$0xff] %vm2681, %v4242
    %4251 = vst.msk [vmem:[#allocation3 + $0x218] sm:$0xff] %vm2681, %v4244
    %4252 = vst.msk [vmem:[#allocation3 + $0x238] sm:$0xff] %vm2681, %v4246
    %v4253 = vld [vmem:[#allocation2 + $0x1a8] sm:$0xff]
    %v4254 = vld [vmem:[#allocation2 + $0x1b0] sm:$0xff]
    %v4255 = vld [vmem:[#allocation2 + $0x1b8] sm:$0xff]
    %4259 = vrot.lane.b32.xlu0 %v4253, 64
    %v4260 = vpop.permute.xlu0 %4259
    %4261 = vrot.lane.b32.xlu0 %v4254, 64
    %v4262 = vpop.permute.xlu0 %4261
    %4263 = vrot.lane.b32.xlu0 %v4255, 64
    %v4264 = vpop.permute.xlu0 %4263
    %4268 = vst.msk [vmem:[#allocation3 + $0x18] sm:$0xff] %vm2817, %v4260
    %4269 = vst.msk [vmem:[#allocation3 + $0x38] sm:$0xff] %vm2817, %v4262
    %4270 = vst.msk [vmem:[#allocation3 + $0x58] sm:$0xff] %vm2817, %v4264
    %v4271 = vld [vmem:[#allocation2 + $0x1c0] sm:$0xf0]
    %v4272 = vld [vmem:[#allocation2 + $0x1c8] sm:$0xff]
    %v4273 = vld [vmem:[#allocation2 + $0x1d0] sm:$0xff]
    %v4274 = vld [vmem:[#allocation2 + $0x1d8] sm:$0xf]
    %v4279 = vrot.slane %v4271, 4
    %v4280 = vrot.slane %v4272, 4
    %v4281 = vsel %vm2589, %v4279, %v4280
    %v4282 = vrot.slane %v4273, 4
    %v4283 = vsel %vm2589, %v4280, %v4282
    %v4284 = vrot.slane %v4274, 4
    %v4285 = vsel %vm2589, %v4282, %v4284
    %4286 = vrot.lane.b32.xlu0 %v4281, 64
    %v4287 = vpop.permute.xlu0 %4286
    %4288 = vrot.lane.b32.xlu0 %v4283, 64
    %v4289 = vpop.permute.xlu0 %4288
    %4290 = vrot.lane.b32.xlu0 %v4285, 64
    %v4291 = vpop.permute.xlu0 %4290
    %4295 = vst.msk [vmem:[#allocation3 + $0x78] sm:$0xff] %vm2817, %v4287
    %4296 = vst.msk [vmem:[#allocation3 + $0x98] sm:$0xff] %vm2817, %v4289
    %4297 = vst.msk [vmem:[#allocation3 + $0xb8] sm:$0xff] %vm2817, %v4291
    %v4298 = vld [vmem:[#allocation2 + $0x1e0] sm:$0xff]
    %v4299 = vld [vmem:[#allocation2 + $0x1e8] sm:$0xff]
    %v4300 = vld [vmem:[#allocation2 + $0x1f0] sm:$0xff]
    %4304 = vrot.lane.b32.xlu0 %v4298, 64
    %v4305 = vpop.permute.xlu0 %4304
    %4306 = vrot.lane.b32.xlu0 %v4299, 64
    %v4307 = vpop.permute.xlu0 %4306
    %4308 = vrot.lane.b32.xlu0 %v4300, 64
    %v4309 = vpop.permute.xlu0 %4308
    %4313 = vst.msk [vmem:[#allocation3 + $0xd8] sm:$0xff] %vm2817, %v4305
    %4314 = vst.msk [vmem:[#allocation3 + $0xf8] sm:$0xff] %vm2817, %v4307
    %4315 = vst.msk [vmem:[#allocation3 + $0x118] sm:$0xff] %vm2817, %v4309
    %v4316 = vld [vmem:[#allocation2 + $0x1f8] sm:$0xf0]
    %v4317 = vld [vmem:[#allocation2 + $0x200] sm:$0xff]
    %v4318 = vld [vmem:[#allocation2 + $0x208] sm:$0xff]
    %v4319 = vld [vmem:[#allocation2 + $0x210] sm:$0xf]
    %v4324 = vrot.slane %v4316, 4
    %v4325 = vrot.slane %v4317, 4
    %v4326 = vsel %vm2589, %v4324, %v4325
    %v4327 = vrot.slane %v4318, 4
    %v4328 = vsel %vm2589, %v4325, %v4327
    %v4329 = vrot.slane %v4319, 4
    %v4330 = vsel %vm2589, %v4327, %v4329
    %4331 = vrot.lane.b32.xlu0 %v4326, 64
    %v4332 = vpop.permute.xlu0 %4331
    %4333 = vrot.lane.b32.xlu0 %v4328, 64
    %v4334 = vpop.permute.xlu0 %4333
    %4335 = vrot.lane.b32.xlu0 %v4330, 64
    %v4336 = vpop.permute.xlu0 %4335
    %4340 = vst.msk [vmem:[#allocation3 + $0x138] sm:$0xff] %vm2817, %v4332
    %4341 = vst.msk [vmem:[#allocation3 + $0x158] sm:$0xff] %vm2817, %v4334
    %4342 = vst.msk [vmem:[#allocation3 + $0x178] sm:$0xff] %vm2817, %v4336
    %v4343 = vld [vmem:[#allocation2 + $0x218] sm:$0xff]
    %v4344 = vld [vmem:[#allocation2 + $0x220] sm:$0xff]
    %v4345 = vld [vmem:[#allocation2 + $0x228] sm:$0xff]
    %4349 = vrot.lane.b32.xlu0 %v4343, 64
    %v4350 = vpop.permute.xlu0 %4349
    %4351 = vrot.lane.b32.xlu0 %v4344, 64
    %v4352 = vpop.permute.xlu0 %4351
    %4353 = vrot.lane.b32.xlu0 %v4345, 64
    %v4354 = vpop.permute.xlu0 %4353
    %4358 = vst.msk [vmem:[#allocation3 + $0x198] sm:$0xff] %vm2817, %v4350
    %4359 = vst.msk [vmem:[#allocation3 + $0x1b8] sm:$0xff] %vm2817, %v4352
    %4360 = vst.msk [vmem:[#allocation3 + $0x1d8] sm:$0xff] %vm2817, %v4354
    %v4361 = vld [vmem:[#allocation2 + $0x230] sm:$0xf0]
    %v4362 = vld [vmem:[#allocation2 + $0x238] sm:$0xff]
    %v4363 = vld [vmem:[#allocation2 + $0x240] sm:$0xff]
    %v4364 = vld [vmem:[#allocation2 + $0x248] sm:$0xf]
    %v4369 = vrot.slane %v4361, 4
    %v4370 = vrot.slane %v4362, 4
    %v4371 = vsel %vm2589, %v4369, %v4370
    %v4372 = vrot.slane %v4363, 4
    %v4373 = vsel %vm2589, %v4370, %v4372
    %v4374 = vrot.slane %v4364, 4
    %v4375 = vsel %vm2589, %v4372, %v4374
    %4376 = vrot.lane.b32.xlu0 %v4371, 64
    %v4377 = vpop.permute.xlu0 %4376
    %4378 = vrot.lane.b32.xlu0 %v4373, 64
    %v4379 = vpop.permute.xlu0 %4378
    %4380 = vrot.lane.b32.xlu0 %v4375, 64
    %v4381 = vpop.permute.xlu0 %4380
    %4385 = vst.msk [vmem:[#allocation3 + $0x1f8] sm:$0xff] %vm2817, %v4377
    %4386 = vst.msk [vmem:[#allocation3 + $0x218] sm:$0xff] %vm2817, %v4379
    %4387 = vst.msk [vmem:[#allocation3 + $0x238] sm:$0xff] %vm2817, %v4381
    %v4388 = vld [vmem:[#allocation2 + $0x268] sm:$0xf0]
    %v4389 = vld [vmem:[#allocation2 + $0x270] sm:$0xff]
    %v4390 = vld [vmem:[#allocation2 + $0x278] sm:$0xff]
    %v4391 = vld [vmem:[#allocation2 + $0x280] sm:$0xf]
    %v4396 = vrot.slane %v4388, 4
    %v4397 = vrot.slane %v4389, 4
    %v4398 = vsel %vm2589, %v4396, %v4397
    %v4399 = vrot.slane %v4390, 4
    %v4400 = vsel %vm2589, %v4397, %v4399
    %v4401 = vrot.slane %v4391, 4
    %v4402 = vsel %vm2589, %v4399, %v4401
    %4403 = vrot.lane.b32.xlu0 %v4398, 96
    %v4404 = vpop.permute.xlu0 %4403
    %4405 = vrot.lane.b32.xlu0 %v4400, 96
    %v4406 = vpop.permute.xlu0 %4405
    %4407 = vrot.lane.b32.xlu0 %v4402, 96
    %v4408 = vpop.permute.xlu0 %4407
    %4412 = vst.msk [vmem:[#allocation3 + $0x18] sm:$0xff] %vm2944, %v4404
    %4413 = vst.msk [vmem:[#allocation3 + $0x38] sm:$0xff] %vm2944, %v4406
    %4414 = vst.msk [vmem:[#allocation3 + $0x58] sm:$0xff] %vm2944, %v4408
    %v4415 = vld [vmem:[#allocation2 + $0x288] sm:$0xff]
    %v4416 = vld [vmem:[#allocation2 + $0x290] sm:$0xff]
    %v4417 = vld [vmem:[#allocation2 + $0x298] sm:$0xff]
    %4421 = vrot.lane.b32.xlu0 %v4415, 96
    %v4422 = vpop.permute.xlu0 %4421
    %4423 = vrot.lane.b32.xlu0 %v4416, 96
    %v4424 = vpop.permute.xlu0 %4423
    %4425 = vrot.lane.b32.xlu0 %v4417, 96
    %v4426 = vpop.permute.xlu0 %4425
    %4430 = vst.msk [vmem:[#allocation3 + $0x78] sm:$0xff] %vm2944, %v4422
    %4431 = vst.msk [vmem:[#allocation3 + $0x98] sm:$0xff] %vm2944, %v4424
    %4432 = vst.msk [vmem:[#allocation3 + $0xb8] sm:$0xff] %vm2944, %v4426
    %v4433 = vld [vmem:[#allocation2 + $0x2a0] sm:$0xf0]
    %v4434 = vld [vmem:[#allocation2 + $0x2a8] sm:$0xff]
    %v4435 = vld [vmem:[#allocation2 + $0x2b0] sm:$0xff]
    %v4436 = vld [vmem:[#allocation2 + $0x2b8] sm:$0xf]
    %v4441 = vrot.slane %v4433, 4
    %v4442 = vrot.slane %v4434, 4
    %v4443 = vsel %vm2589, %v4441, %v4442
    %v4444 = vrot.slane %v4435, 4
    %v4445 = vsel %vm2589, %v4442, %v4444
    %v4446 = vrot.slane %v4436, 4
    %v4447 = vsel %vm2589, %v4444, %v4446
    %4448 = vrot.lane.b32.xlu0 %v4443, 96
    %v4449 = vpop.permute.xlu0 %4448
    %4450 = vrot.lane.b32.xlu0 %v4445, 96
    %v4451 = vpop.permute.xlu0 %4450
    %4452 = vrot.lane.b32.xlu0 %v4447, 96
    %v4453 = vpop.permute.xlu0 %4452
    %4457 = vst.msk [vmem:[#allocation3 + $0xd8] sm:$0xff] %vm2944, %v4449
    %4458 = vst.msk [vmem:[#allocation3 + $0xf8] sm:$0xff] %vm2944, %v4451
    %4459 = vst.msk [vmem:[#allocation3 + $0x118] sm:$0xff] %vm2944, %v4453
    %v4460 = vld [vmem:[#allocation2 + $0x2c0] sm:$0xff]
    %v4461 = vld [vmem:[#allocation2 + $0x2c8] sm:$0xff]
    %v4462 = vld [vmem:[#allocation2 + $0x2d0] sm:$0xff]
    %4466 = vrot.lane.b32.xlu0 %v4460, 96
    %v4467 = vpop.permute.xlu0 %4466
    %4468 = vrot.lane.b32.xlu0 %v4461, 96
    %v4469 = vpop.permute.xlu0 %4468
    %4470 = vrot.lane.b32.xlu0 %v4462, 96
    %v4471 = vpop.permute.xlu0 %4470
    %4475 = vst.msk [vmem:[#allocation3 + $0x138] sm:$0xff] %vm2944, %v4467
    %4476 = vst.msk [vmem:[#allocation3 + $0x158] sm:$0xff] %vm2944, %v4469
    %4477 = vst.msk [vmem:[#allocation3 + $0x178] sm:$0xff] %vm2944, %v4471
    %v4478 = vld [vmem:[#allocation2 + $0x2d8] sm:$0xf0]
    %v4479 = vld [vmem:[#allocation2 + $0x2e0] sm:$0xff]
    %v4480 = vld [vmem:[#allocation2 + $0x2e8] sm:$0xff]
    %v4481 = vld [vmem:[#allocation2 + $0x2f0] sm:$0xf]
    %v4486 = vrot.slane %v4478, 4
    %v4487 = vrot.slane %v4479, 4
    %v4488 = vsel %vm2589, %v4486, %v4487
    %v4489 = vrot.slane %v4480, 4
    %v4490 = vsel %vm2589, %v4487, %v4489
    %v4491 = vrot.slane %v4481, 4
    %v4492 = vsel %vm2589, %v4489, %v4491
    %4493 = vrot.lane.b32.xlu0 %v4488, 96
    %v4494 = vpop.permute.xlu0 %4493
    %4495 = vrot.lane.b32.xlu0 %v4490, 96
    %v4496 = vpop.permute.xlu0 %4495
    %4497 = vrot.lane.b32.xlu0 %v4492, 96
    %v4498 = vpop.permute.xlu0 %4497
    %4502 = vst.msk [vmem:[#allocation3 + $0x198] sm:$0xff] %vm2944, %v4494
    %4503 = vst.msk [vmem:[#allocation3 + $0x1b8] sm:$0xff] %vm2944, %v4496
    %4504 = vst.msk [vmem:[#allocation3 + $0x1d8] sm:$0xff] %vm2944, %v4498
    %v4505 = vld [vmem:[#allocation2 + $0x2f8] sm:$0xff]
    %v4506 = vld [vmem:[#allocation2 + $0x300] sm:$0xff]
    %v4507 = vld [vmem:[#allocation2 + $0x308] sm:$0xff]
    %4511 = vrot.lane.b32.xlu0 %v4505, 96
    %v4512 = vpop.permute.xlu0 %4511
    %4513 = vrot.lane.b32.xlu0 %v4506, 96
    %v4514 = vpop.permute.xlu0 %4513
    %4515 = vrot.lane.b32.xlu0 %v4507, 96
    %v4516 = vpop.permute.xlu0 %4515
    %4520 = vst.msk [vmem:[#allocation3 + $0x1f8] sm:$0xff] %vm2944, %v4512
    %4521 = vst.msk [vmem:[#allocation3 + $0x218] sm:$0xff] %vm2944, %v4514
    %4522 = vst.msk [vmem:[#allocation3 + $0x238] sm:$0xff] %vm2944, %v4516
    %v4523 = vld [vmem:[#allocation3] sm:$0xff]
    %v4524 = vld [vmem:[#allocation3 + $0x8] sm:$0xff]
    %v4525 = vld [vmem:[#allocation3 + $0x10] sm:$0xff]
    %v4526 = vld [vmem:[#allocation3 + $0x18] sm:$0xff]
    %v4527 = vld [vmem:[#allocation3 + $0x20] sm:$0xff]
    %v4528 = vld [vmem:[#allocation3 + $0x28] sm:$0xff]
    %v4529 = vld [vmem:[#allocation3 + $0x30] sm:$0xff]
    %v4530 = vld [vmem:[#allocation3 + $0x38] sm:$0xff]
    %v4531 = vld [vmem:[#allocation3 + $0x40] sm:$0xff]
    %v4532 = vld [vmem:[#allocation3 + $0x48] sm:$0xff]
    %v4533 = vld [vmem:[#allocation3 + $0x50] sm:$0xff]
    %v4534 = vld [vmem:[#allocation3 + $0x58] sm:$0xff]
    %v4535 = vld [vmem:[#allocation3 + $0x60] sm:$0xff]
    %v4536 = vld [vmem:[#allocation3 + $0x68] sm:$0xff]
    %v4537 = vld [vmem:[#allocation3 + $0x70] sm:$0xff]
    %v4538 = vld [vmem:[#allocation3 + $0x78] sm:$0xff]
    %v4539 = vld [vmem:[#allocation3 + $0x80] sm:$0xff]
    %v4540 = vld [vmem:[#allocation3 + $0x88] sm:$0xff]
    %v4541 = vld [vmem:[#allocation3 + $0x90] sm:$0xff]
    %v4542 = vld [vmem:[#allocation3 + $0x98] sm:$0xff]
    %v4543 = vld [vmem:[#allocation3 + $0xa0] sm:$0xff]
    %v4544 = vld [vmem:[#allocation3 + $0xa8] sm:$0xff]
    %v4545 = vld [vmem:[#allocation3 + $0xb0] sm:$0xff]
    %v4546 = vld [vmem:[#allocation3 + $0xb8] sm:$0xff]
    %v4547 = vld [vmem:[#allocation3 + $0xc0] sm:$0xff]
    %v4548 = vld [vmem:[#allocation3 + $0xc8] sm:$0xff]
    %v4549 = vld [vmem:[#allocation3 + $0xd0] sm:$0xff]
    %v4550 = vld [vmem:[#allocation3 + $0xd8] sm:$0xff]
    %v4551 = vld [vmem:[#allocation3 + $0xe0] sm:$0xff]
    %v4552 = vld [vmem:[#allocation3 + $0xe8] sm:$0xff]
    %v4553 = vld [vmem:[#allocation3 + $0xf0] sm:$0xff]
    %v4554 = vld [vmem:[#allocation3 + $0xf8] sm:$0xff]
    %v4555 = vld [vmem:[#allocation3 + $0x100] sm:$0xff]
    %v4556 = vld [vmem:[#allocation3 + $0x108] sm:$0xff]
    %v4557 = vld [vmem:[#allocation3 + $0x110] sm:$0xff]
    %v4558 = vld [vmem:[#allocation3 + $0x118] sm:$0xff]
    %v4559 = vld [vmem:[#allocation3 + $0x120] sm:$0xff]
    %v4560 = vld [vmem:[#allocation3 + $0x128] sm:$0xff]
    %v4561 = vld [vmem:[#allocation3 + $0x130] sm:$0xff]
    %v4562 = vld [vmem:[#allocation3 + $0x138] sm:$0xff]
    %v4563 = vld [vmem:[#allocation3 + $0x140] sm:$0xff]
    %v4564 = vld [vmem:[#allocation3 + $0x148] sm:$0xff]
    %v4565 = vld [vmem:[#allocation3 + $0x150] sm:$0xff]
    %v4566 = vld [vmem:[#allocation3 + $0x158] sm:$0xff]
    %v4567 = vld [vmem:[#allocation3 + $0x160] sm:$0xff]
    %v4568 = vld [vmem:[#allocation3 + $0x168] sm:$0xff]
    %v4569 = vld [vmem:[#allocation3 + $0x170] sm:$0xff]
    %v4570 = vld [vmem:[#allocation3 + $0x178] sm:$0xff]
    %v4571 = vld [vmem:[#allocation3 + $0x180] sm:$0xff]
    %v4572 = vld [vmem:[#allocation3 + $0x188] sm:$0xff]
    %v4573 = vld [vmem:[#allocation3 + $0x190] sm:$0xff]
    %v4574 = vld [vmem:[#allocation3 + $0x198] sm:$0xff]
    %v4575 = vld [vmem:[#allocation3 + $0x1a0] sm:$0xff]
    %v4576 = vld [vmem:[#allocation3 + $0x1a8] sm:$0xff]
    %v4577 = vld [vmem:[#allocation3 + $0x1b0] sm:$0xff]
    %v4578 = vld [vmem:[#allocation3 + $0x1b8] sm:$0xff]
    %v4579 = vld [vmem:[#allocation3 + $0x1c0] sm:$0xff]
    %v4580 = vld [vmem:[#allocation3 + $0x1c8] sm:$0xff]
    %v4581 = vld [vmem:[#allocation3 + $0x1d0] sm:$0xff]
    %v4582 = vld [vmem:[#allocation3 + $0x1d8] sm:$0xff]
    %v4583 = vld [vmem:[#allocation3 + $0x1e0] sm:$0xff]
    %v4584 = vld [vmem:[#allocation3 + $0x1e8] sm:$0xff]
    %v4585 = vld [vmem:[#allocation3 + $0x1f0] sm:$0xff]
    %v4586 = vld [vmem:[#allocation3 + $0x1f8] sm:$0xff]
    %v4587 = vld [vmem:[#allocation3 + $0x200] sm:$0xff]
    %v4588 = vld [vmem:[#allocation3 + $0x208] sm:$0xff]
    %v4589 = vld [vmem:[#allocation3 + $0x210] sm:$0xff]
    %v4590 = vld [vmem:[#allocation3 + $0x218] sm:$0xff]
    %v4591 = vld [vmem:[#allocation3 + $0x220] sm:$0xff]
    %v4592 = vld [vmem:[#allocation3 + $0x228] sm:$0xff]
    %v4593 = vld [vmem:[#allocation3 + $0x230] sm:$0xff]
    %v4594 = vld [vmem:[#allocation3 + $0x238] sm:$0xff]
    %v4595 = vld [vmem:[%s3] sm:$0xf]
    %v4596 = vld [vmem:[%s3 + $0x4] sm:$0xf]
    %v4597 = vld [vmem:[%s3 + $0x8] sm:$0xf]
    %v4598 = vld [vmem:[%s3 + $0xc] sm:$0xf]
    %v4599 = vld [vmem:[%s3 + $0x10] sm:$0xf]
    %v4600 = vld [vmem:[%s3 + $0x14] sm:$0xf]
    %v4601 = vld [vmem:[%s3 + $0x18] sm:$0xf]
    %v4602 = vld [vmem:[%s3 + $0x1c] sm:$0xf]
    %v4603 = vld [vmem:[%s3 + $0x20] sm:$0xf]
    %v4604 = vld [vmem:[%s3 + $0x24] sm:$0xf]
    %v4605 = vld [vmem:[%s3 + $0x28] sm:$0xf]
    %v4606 = vld [vmem:[%s3 + $0x2c] sm:$0xf]
    %v4607 = vld [vmem:[%s3 + $0x30] sm:$0xf]
    %v4608 = vld [vmem:[%s3 + $0x34] sm:$0xf]
    %v4609 = vld [vmem:[%s3 + $0x38] sm:$0xf]
    %v4610 = vld [vmem:[%s3 + $0x3c] sm:$0xf]
    %v4611 = vld [vmem:[%s3 + $0x40] sm:$0xf]
    %v4612 = vld [vmem:[%s3 + $0x44] sm:$0xf]
    %v4613 = vld [vmem:[%s3 + $0x48] sm:$0xf]
    %v4614 = vld [vmem:[%s3 + $0x4c] sm:$0xf]
    %v4615 = vld [vmem:[%s3 + $0x50] sm:$0xf]
    %v4616 = vld [vmem:[%s3 + $0x54] sm:$0xf]
    %v4617 = vld [vmem:[%s3 + $0x58] sm:$0xf]
    %v4618 = vld [vmem:[%s3 + $0x5c] sm:$0xf]
    %v4619 = vld [vmem:[%s3 + $0x60] sm:$0xf]
    %v4620 = vld [vmem:[%s3 + $0x64] sm:$0xf]
    %v4621 = vld [vmem:[%s3 + $0x68] sm:$0xf]
    %v4622 = vld [vmem:[%s3 + $0x6c] sm:$0xf]
    %v4623 = vld [vmem:[%s3 + $0x70] sm:$0xf]
    %v4624 = vld [vmem:[%s3 + $0x74] sm:$0xf]
    %v4625 = vld [vmem:[%s3 + $0x78] sm:$0xf]
    %v4626 = vld [vmem:[%s3 + $0x7c] sm:$0xf]
    %v4627 = vld [vmem:[%s3 + $0x80] sm:$0xf]
    %v4628 = vld [vmem:[%s3 + $0x84] sm:$0xf]
    %v4629 = vld [vmem:[%s3 + $0x88] sm:$0xf]
    %v4630 = vld [vmem:[%s3 + $0x8c] sm:$0xf]
    %v4631 = vld [vmem:[%s3 + $0x90] sm:$0xf]
    %v4632 = vld [vmem:[%s3 + $0x94] sm:$0xf]
    %v4633 = vld [vmem:[%s3 + $0x98] sm:$0xf]
    %v4634 = vld [vmem:[%s3 + $0x9c] sm:$0xf]
    %v4635 = vld [vmem:[%s3 + $0xa0] sm:$0xf]
    %v4636 = vld [vmem:[%s3 + $0xa4] sm:$0xf]
    %v4637 = vld [vmem:[%s3 + $0xa8] sm:$0xf]
    %v4638 = vld [vmem:[%s3 + $0xac] sm:$0xf]
    %v4639 = vld [vmem:[%s3 + $0xb0] sm:$0xf]
    %v4640 = vld [vmem:[%s3 + $0xb4] sm:$0xf]
    %v4641 = vld [vmem:[%s3 + $0xb8] sm:$0xf]
    %v4642 = vld [vmem:[%s3 + $0xbc] sm:$0xf]
    %v4643 = vld [vmem:[%s3 + $0xc0] sm:$0xf]
    %v4644 = vld [vmem:[%s3 + $0xc4] sm:$0xf]
    %v4645 = vld [vmem:[%s3 + $0xc8] sm:$0xf]
    %v4646 = vld [vmem:[%s3 + $0xcc] sm:$0xf]
    %v4647 = vld [vmem:[%s3 + $0xd0] sm:$0xf]
    %v4648 = vld [vmem:[%s3 + $0xd4] sm:$0xf]
    %v4649 = vld [vmem:[%s3 + $0xd8] sm:$0xf]
    %v4650 = vld [vmem:[%s3 + $0xdc] sm:$0xf]
    %v4651 = vld [vmem:[%s3 + $0xe0] sm:$0xf]
    %v4652 = vld [vmem:[%s3 + $0xe4] sm:$0xf]
    %v4653 = vld [vmem:[%s3 + $0xe8] sm:$0xf]
    %v4654 = vld [vmem:[%s3 + $0xec] sm:$0xf]
    %v4655 = vld [vmem:[%s3 + $0xf0] sm:$0xf]
    %v4656 = vld [vmem:[%s3 + $0xf4] sm:$0xf]
    %v4657 = vld [vmem:[%s3 + $0xf8] sm:$0xf]
    %v4658 = vld [vmem:[%s3 + $0xfc] sm:$0xf]
    %v4659 = vld [vmem:[%s4] sm:$0x1]
    %v4661 = vlaneseq
    %v4662 = vshrl.u32 %v4661, 7
    %v4663 = vsub.s32 0, %v4662
    %v4664 = vrot.slane %v4659, %v4663
    %v4730 = vunpack.c.l.b16 %v4595
    %v4731 = vunpack.c.l.b16 %v4596
    %v4732 = vunpack.c.l.b16 %v4597
    %v4733 = vunpack.c.l.b16 %v4598
    %v4734 = vunpack.c.l.b16 %v4599
    %v4735 = vunpack.c.l.b16 %v4600
    %v4736 = vunpack.c.l.b16 %v4601
    %v4737 = vunpack.c.l.b16 %v4602
    %v4738 = vunpack.c.l.b16 %v4603
    %v4739 = vunpack.c.l.b16 %v4604
    %v4740 = vunpack.c.l.b16 %v4605
    %v4741 = vunpack.c.l.b16 %v4606
    %v4742 = vunpack.c.l.b16 %v4607
    %v4743 = vunpack.c.l.b16 %v4608
    %v4744 = vunpack.c.l.b16 %v4609
    %v4745 = vunpack.c.l.b16 %v4610
    %v4746 = vunpack.c.l.b16 %v4611
    %v4747 = vunpack.c.l.b16 %v4612
    %v4748 = vunpack.c.l.b16 %v4613
    %v4749 = vunpack.c.l.b16 %v4614
    %v4750 = vunpack.c.l.b16 %v4615
    %v4751 = vunpack.c.l.b16 %v4616
    %v4752 = vunpack.c.l.b16 %v4617
    %v4753 = vunpack.c.l.b16 %v4618
    %v4754 = vunpack.c.l.b16 %v4619
    %v4755 = vunpack.c.l.b16 %v4620
    %v4756 = vunpack.c.l.b16 %v4621
    %v4757 = vunpack.c.l.b16 %v4622
    %v4758 = vunpack.c.l.b16 %v4623
    %v4759 = vunpack.c.l.b16 %v4624
    %v4760 = vunpack.c.l.b16 %v4625
    %v4761 = vunpack.c.l.b16 %v4626
    %v4762 = vunpack.c.l.b16 %v4627
    %v4763 = vunpack.c.l.b16 %v4628
    %v4764 = vunpack.c.l.b16 %v4629
    %v4765 = vunpack.c.l.b16 %v4630
    %v4766 = vunpack.c.l.b16 %v4631
    %v4767 = vunpack.c.l.b16 %v4632
    %v4768 = vunpack.c.l.b16 %v4633
    %v4769 = vunpack.c.l.b16 %v4634
    %v4770 = vunpack.c.l.b16 %v4635
    %v4771 = vunpack.c.l.b16 %v4636
    %v4772 = vunpack.c.l.b16 %v4637
    %v4773 = vunpack.c.l.b16 %v4638
    %v4774 = vunpack.c.l.b16 %v4639
    %v4775 = vunpack.c.l.b16 %v4640
    %v4776 = vunpack.c.l.b16 %v4641
    %v4777 = vunpack.c.l.b16 %v4642
    %v4778 = vunpack.c.l.b16 %v4643
    %v4779 = vunpack.c.l.b16 %v4644
    %v4780 = vunpack.c.l.b16 %v4645
    %v4781 = vunpack.c.l.b16 %v4646
    %v4782 = vunpack.c.l.b16 %v4647
    %v4783 = vunpack.c.l.b16 %v4648
    %v4784 = vunpack.c.l.b16 %v4649
    %v4785 = vunpack.c.l.b16 %v4650
    %v4786 = vunpack.c.l.b16 %v4651
    %v4787 = vunpack.c.l.b16 %v4652
    %v4788 = vunpack.c.l.b16 %v4653
    %v4789 = vunpack.c.l.b16 %v4654
    %v4790 = vunpack.c.l.b16 %v4655
    %v4791 = vunpack.c.l.b16 %v4656
    %v4792 = vunpack.c.l.b16 %v4657
    %v4793 = vunpack.c.l.b16 %v4658
    %v4794 = vpack.c.b16 %v4731, %v4730
    %v4795 = vpack.c.b16 %v4733, %v4732
    %v4796 = vpack.c.b16 %v4735, %v4734
    %v4797 = vpack.c.b16 %v4737, %v4736
    %v4798 = vpack.c.b16 %v4739, %v4738
    %v4799 = vpack.c.b16 %v4741, %v4740
    %v4800 = vpack.c.b16 %v4743, %v4742
    %v4801 = vpack.c.b16 %v4745, %v4744
    %v4802 = vpack.c.b16 %v4747, %v4746
    %v4803 = vpack.c.b16 %v4749, %v4748
    %v4804 = vpack.c.b16 %v4751, %v4750
    %v4805 = vpack.c.b16 %v4753, %v4752
    %v4806 = vpack.c.b16 %v4755, %v4754
    %v4807 = vpack.c.b16 %v4757, %v4756
    %v4808 = vpack.c.b16 %v4759, %v4758
    %v4809 = vpack.c.b16 %v4761, %v4760
    %v4810 = vpack.c.b16 %v4763, %v4762
    %v4811 = vpack.c.b16 %v4765, %v4764
    %v4812 = vpack.c.b16 %v4767, %v4766
    %v4813 = vpack.c.b16 %v4769, %v4768
    %v4814 = vpack.c.b16 %v4771, %v4770
    %v4815 = vpack.c.b16 %v4773, %v4772
    %v4816 = vpack.c.b16 %v4775, %v4774
    %v4817 = vpack.c.b16 %v4777, %v4776
    %v4818 = vpack.c.b16 %v4779, %v4778
    %v4819 = vpack.c.b16 %v4781, %v4780
    %v4820 = vpack.c.b16 %v4783, %v4782
    %v4821 = vpack.c.b16 %v4785, %v4784
    %v4822 = vpack.c.b16 %v4787, %v4786
    %v4823 = vpack.c.b16 %v4789, %v4788
    %v4824 = vpack.c.b16 %v4791, %v4790
    %v4825 = vpack.c.b16 %v4793, %v4792
    %4858 = vmatprep.subr.bf16.mxu0 0
    %4859 = vmatpush1.bf16.msra.mxu0 %v4794
    %4860 = vmatprep.subr.bf16.mxu0 0
    %4861 = vmatpush1.bf16.msra.mxu0 %v4795
    %4862 = vmatprep.subr.bf16.mxu0 0
    %4863 = vmatpush1.bf16.msra.mxu0 %v4796
    %4864 = vmatprep.subr.bf16.mxu0 0
    %4865 = vmatpush1.bf16.msra.mxu0 %v4797
    %4866 = vmatprep.subr.bf16.mxu0 0
    %4867 = vmatpush1.bf16.msra.mxu0 %v4798
    %4868 = vmatprep.subr.bf16.mxu0 0
    %4869 = vmatpush1.bf16.msra.mxu0 %v4799
    %4870 = vmatprep.subr.bf16.mxu0 0
    %4871 = vmatpush1.bf16.msra.mxu0 %v4800
    %4872 = vmatprep.subr.bf16.mxu0 0
    %4873 = vmatpush1.bf16.msra.mxu0 %v4801
    %4874 = vmatprep.subr.bf16.mxu0 0
    %4875 = vmatpush1.bf16.msra.mxu0 %v4802
    %4876 = vmatprep.subr.bf16.mxu0 0
    %4877 = vmatpush1.bf16.msra.mxu0 %v4803
    %4878 = vmatprep.subr.bf16.mxu0 0
    %4879 = vmatpush1.bf16.msra.mxu0 %v4804
    %4880 = vmatprep.subr.bf16.mxu0 0
    %4881 = vmatpush1.bf16.msra.mxu0 %v4805
    %4882 = vmatprep.subr.bf16.mxu0 0
    %4883 = vmatpush1.bf16.msra.mxu0 %v4806
    %4884 = vmatprep.subr.bf16.mxu0 0
    %4885 = vmatpush1.bf16.msra.mxu0 %v4807
    %4886 = vmatprep.subr.bf16.mxu0 0
    %4887 = vmatpush1.bf16.msra.mxu0 %v4808
    %4888 = vmatprep.subr.bf16.mxu0 0
    %4889 = vmatpush1.bf16.msra.mxu0 %v4809
    %4890 = vmatprep.mubr.bf16.mxu0 %v4524
    %4891 = vmatmul.mubr.bf16.gmra.mrb[0].mxu0 %v4523
    %v4892 = vpop.f32.mrb[0].mxu0
    %v4893 = vadd.f32 %v4664, %v4892
    %v4894 = vpop.f32.mrb[0].mxu0
    %v4895 = vpop.f32.mrb[0].mxu0
    %v4896 = vadd.f32 %v4664, %v4895
    %v4897 = vpop.f32.mrb[0].mxu0
    %4898 = vmatprep.mubr.bf16.mxu0 %v4528
    %4899 = vmatmul.mubr.bf16.gmra.mrb[0].mxu0 %v4527
    %v4900 = vpop.f32.mrb[0].mxu0
    %v4901 = vadd.f32 %v4664, %v4900
    %v4902 = vpop.f32.mrb[0].mxu0
    %v4903 = vpop.f32.mrb[0].mxu0
    %v4904 = vadd.f32 %v4664, %v4903
    %v4905 = vpop.f32.mrb[0].mxu0
    %4906 = vmatprep.mubr.bf16.mxu0 %v4532
    %4907 = vmatmul.mubr.bf16.gmra.mrb[0].mxu0 %v4531
    %v4908 = vpop.f32.mrb[0].mxu0
    %v4909 = vadd.f32 %v4664, %v4908
    %v4910 = vpop.f32.mrb[0].mxu0
    %v4911 = vpop.f32.mrb[0].mxu0
    %v4912 = vadd.f32 %v4664, %v4911
    %v4913 = vpop.f32.mrb[0].mxu0
    %4914 = vmatprep.mubr.bf16.mxu0 %v4536
    %4915 = vmatmul.mubr.bf16.gmra.mrb[0].mxu0 %v4535
    %v4916 = vpop.f32.mrb[0].mxu0
    %v4917 = vadd.f32 %v4664, %v4916
    %v4918 = vpop.f32.mrb[0].mxu0
    %v4919 = vpop.f32.mrb[0].mxu0
    %v4920 = vadd.f32 %v4664, %v4919
    %v4921 = vpop.f32.mrb[0].mxu0
    %4922 = vmatprep.mubr.bf16.mxu0 %v4540
    %4923 = vmatmul.mubr.bf16.gmra.mrb[0].mxu0 %v4539
    %v4924 = vpop.f32.mrb[0].mxu0
    %v4925 = vadd.f32 %v4664, %v4924
    %v4926 = vpop.f32.mrb[0].mxu0
    %v4927 = vpop.f32.mrb[0].mxu0
    %v4928 = vadd.f32 %v4664, %v4927
    %v4929 = vpop.f32.mrb[0].mxu0
    %4930 = vmatprep.mubr.bf16.mxu0 %v4544
    %4931 = vmatmul.mubr.bf16.gmra.mrb[0].mxu0 %v4543
    %v4932 = vpop.f32.mrb[0].mxu0
    %v4933 = vadd.f32 %v4664, %v4932
    %v4934 = vpop.f32.mrb[0].mxu0
    %v4935 = vpop.f32.mrb[0].mxu0
    %v4936 = vadd.f32 %v4664, %v4935
    %v4937 = vpop.f32.mrb[0].mxu0
    %4938 = vmatprep.mubr.bf16.mxu0 %v4548
    %4939 = vmatmul.mubr.bf16.gmra.mrb[0].mxu0 %v4547
    %v4940 = vpop.f32.mrb[0].mxu0
    %v4941 = vadd.f32 %v4664, %v4940
    %v4942 = vpop.f32.mrb[0].mxu0
    %v4943 = vpop.f32.mrb[0].mxu0
    %v4944 = vadd.f32 %v4664, %v4943
    %v4945 = vpop.f32.mrb[0].mxu0
    %4946 = vmatprep.mubr.bf16.mxu0 %v4552
    %4947 = vmatmul.mubr.bf16.gmra.mrb[0].mxu0 %v4551
    %v4948 = vpop.f32.mrb[0].mxu0
    %v4949 = vadd.f32 %v4664, %v4948
    %v4950 = vpop.f32.mrb[0].mxu0
    %v4951 = vpop.f32.mrb[0].mxu0
    %v4952 = vadd.f32 %v4664, %v4951
    %v4953 = vpop.f32.mrb[0].mxu0
    %4954 = vmatprep.mubr.bf16.mxu0 %v4556
    %4955 = vmatmul.mubr.bf16.gmra.mrb[0].mxu0 %v4555
    %v4956 = vpop.f32.mrb[0].mxu0
    %v4957 = vadd.f32 %v4664, %v4956
    %v4958 = vpop.f32.mrb[0].mxu0
    %v4959 = vpop.f32.mrb[0].mxu0
    %v4960 = vadd.f32 %v4664, %v4959
    %v4961 = vpop.f32.mrb[0].mxu0
    %4962 = vmatprep.mubr.bf16.mxu0 %v4560
    %4963 = vmatmul.mubr.bf16.gmra.mrb[0].mxu0 %v4559
    %v4964 = vpop.f32.mrb[0].mxu0
    %v4965 = vadd.f32 %v4664, %v4964
    %v4966 = vpop.f32.mrb[0].mxu0
    %v4967 = vpop.f32.mrb[0].mxu0
    %v4968 = vadd.f32 %v4664, %v4967
    %v4969 = vpop.f32.mrb[0].mxu0
    %4970 = vmatprep.mubr.bf16.mxu0 %v4564
    %4971 = vmatmul.mubr.bf16.gmra.mrb[0].mxu0 %v4563
    %v4972 = vpop.f32.mrb[0].mxu0
    %v4973 = vadd.f32 %v4664, %v4972
    %v4974 = vpop.f32.mrb[0].mxu0
    %v4975 = vpop.f32.mrb[0].mxu0
    %v4976 = vadd.f32 %v4664, %v4975
    %v4977 = vpop.f32.mrb[0].mxu0
    %4978 = vmatprep.mubr.bf16.mxu0 %v4568
    %4979 = vmatmul.mubr.bf16.gmra.mrb[0].mxu0 %v4567
    %v4980 = vpop.f32.mrb[0].mxu0
    %v4981 = vadd.f32 %v4664, %v4980
    %v4982 = vpop.f32.mrb[0].mxu0
    %v4983 = vpop.f32.mrb[0].mxu0
    %v4984 = vadd.f32 %v4664, %v4983
    %v4985 = vpop.f32.mrb[0].mxu0
    %4986 = vmatprep.mubr.bf16.mxu0 %v4572
    %4987 = vmatmul.mubr.bf16.gmra.mrb[0].mxu0 %v4571
    %v4988 = vpop.f32.mrb[0].mxu0
    %v4989 = vadd.f32 %v4664, %v4988
    %v4990 = vpop.f32.mrb[0].mxu0
    %v4991 = vpop.f32.mrb[0].mxu0
    %v4992 = vadd.f32 %v4664, %v4991
    %v4993 = vpop.f32.mrb[0].mxu0
    %4994 = vmatprep.mubr.bf16.mxu0 %v4576
    %4995 = vmatmul.mubr.bf16.gmra.mrb[0].mxu0 %v4575
    %v4996 = vpop.f32.mrb[0].mxu0
    %v4997 = vadd.f32 %v4664, %v4996
    %v4998 = vpop.f32.mrb[0].mxu0
    %v4999 = vpop.f32.mrb[0].mxu0
    %v5000 = vadd.f32 %v4664, %v4999
    %v5001 = vpop.f32.mrb[0].mxu0
    %5002 = vmatprep.mubr.bf16.mxu0 %v4580
    %5003 = vmatmul.mubr.bf16.gmra.mrb[0].mxu0 %v4579
    %v5004 = vpop.f32.mrb[0].mxu0
    %v5005 = vadd.f32 %v4664, %v5004
    %v5006 = vpop.f32.mrb[0].mxu0
    %v5007 = vpop.f32.mrb[0].mxu0
    %v5008 = vadd.f32 %v4664, %v5007
    %v5009 = vpop.f32.mrb[0].mxu0
    %5010 = vmatprep.mubr.bf16.mxu0 %v4584
    %5011 = vmatmul.mubr.bf16.gmra.mrb[0].mxu0 %v4583
    %v5012 = vpop.f32.mrb[0].mxu0
    %v5013 = vadd.f32 %v4664, %v5012
    %v5014 = vpop.f32.mrb[0].mxu0
    %v5015 = vpop.f32.mrb[0].mxu0
    %v5016 = vadd.f32 %v4664, %v5015
    %v5017 = vpop.f32.mrb[0].mxu0
    %5018 = vmatprep.mubr.bf16.mxu0 %v4588
    %5019 = vmatmul.mubr.bf16.gmra.mrb[0].mxu0 %v4587
    %v5020 = vpop.f32.mrb[0].mxu0
    %v5021 = vadd.f32 %v4664, %v5020
    %v5022 = vpop.f32.mrb[0].mxu0
    %v5023 = vpop.f32.mrb[0].mxu0
    %v5024 = vadd.f32 %v4664, %v5023
    %v5025 = vpop.f32.mrb[0].mxu0
    %5026 = vmatprep.mubr.bf16.mxu0 %v4592
    %5027 = vmatmul.mubr.bf16.gmra.mrb[0].mxu0 %v4591
    %v5028 = vpop.f32.mrb[0].mxu0
    %v5029 = vadd.f32 %v4664, %v5028
    %v5030 = vpop.f32.mrb[0].mxu0
    %v5031 = vpop.f32.mrb[0].mxu0
    %v5032 = vadd.f32 %v4664, %v5031
    %v5033 = vpop.f32.mrb[0].mxu0
    %5034 = vdwg.mxu0
    %5035 = vmatprep.subr.bf16.mxu0 0
    %5036 = vmatpush1.bf16.msra.mxu0 %v4810
    %5037 = vmatprep.subr.bf16.mxu0 0
    %5038 = vmatpush1.bf16.msra.mxu0 %v4811
    %5039 = vmatprep.subr.bf16.mxu0 0
    %5040 = vmatpush1.bf16.msra.mxu0 %v4812
    %5041 = vmatprep.subr.bf16.mxu0 0
    %5042 = vmatpush1.bf16.msra.mxu0 %v4813
    %5043 = vmatprep.subr.bf16.mxu0 0
    %5044 = vmatpush1.bf16.msra.mxu0 %v4814
    %5045 = vmatprep.subr.bf16.mxu0 0
    %5046 = vmatpush1.bf16.msra.mxu0 %v4815
    %5047 = vmatprep.subr.bf16.mxu0 0
    %5048 = vmatpush1.bf16.msra.mxu0 %v4816
    %5049 = vmatprep.subr.bf16.mxu0 0
    %5050 = vmatpush1.bf16.msra.mxu0 %v4817
    %5051 = vmatprep.subr.bf16.mxu0 0
    %5052 = vmatpush1.bf16.msra.mxu0 %v4818
    %5053 = vmatprep.subr.bf16.mxu0 0
    %5054 = vmatpush1.bf16.msra.mxu0 %v4819
    %5055 = vmatprep.subr.bf16.mxu0 0
    %5056 = vmatpush1.bf16.msra.mxu0 %v4820
    %5057 = vmatprep.subr.bf16.mxu0 0
    %5058 = vmatpush1.bf16.msra.mxu0 %v4821
    %5059 = vmatprep.subr.bf16.mxu0 0
    %5060 = vmatpush1.bf16.msra.mxu0 %v4822
    %5061 = vmatprep.subr.bf16.mxu0 0
    %5062 = vmatpush1.bf16.msra.mxu0 %v4823
    %5063 = vmatprep.subr.bf16.mxu0 0
    %5064 = vmatpush1.bf16.msra.mxu0 %v4824
    %5065 = vmatprep.subr.bf16.mxu0 0
    %5066 = vmatpush1.bf16.msra.mxu0 %v4825
    %5067 = vmatprep.mubr.bf16.mxu0 %v4526
    %5068 = vmatmul.mubr.bf16.gmra.mrb[0].mxu0 %v4525
    %v5069 = vpop.f32.mrb[0].mxu0
    %v5070 = vadd.f32 %v4893, %v5069
    %v5071 = vpop.f32.mrb[0].mxu0
    %v5072 = vpop.f32.mrb[0].mxu0
    %v5073 = vadd.f32 %v4896, %v5072
    %v5074 = vpop.f32.mrb[0].mxu0
    %5075 = vmatprep.mubr.bf16.mxu0 %v4530
    %5076 = vmatmul.mubr.bf16.gmra.mrb[0].mxu0 %v4529
    %v5077 = vpop.f32.mrb[0].mxu0
    %v5078 = vadd.f32 %v4901, %v5077
    %v5079 = vpop.f32.mrb[0].mxu0
    %v5080 = vpop.f32.mrb[0].mxu0
    %v5081 = vadd.f32 %v4904, %v5080
    %v5082 = vpop.f32.mrb[0].mxu0
    %5083 = vmatprep.mubr.bf16.mxu0 %v4534
    %5084 = vmatmul.mubr.bf16.gmra.mrb[0].mxu0 %v4533
    %v5085 = vpop.f32.mrb[0].mxu0
    %v5086 = vadd.f32 %v4909, %v5085
    %v5087 = vpop.f32.mrb[0].mxu0
    %v5088 = vpop.f32.mrb[0].mxu0
    %v5089 = vadd.f32 %v4912, %v5088
    %v5090 = vpop.f32.mrb[0].mxu0
    %5091 = vmatprep.mubr.bf16.mxu0 %v4538
    %5092 = vmatmul.mubr.bf16.gmra.mrb[0].mxu0 %v4537
    %v5093 = vpop.f32.mrb[0].mxu0
    %v5094 = vadd.f32 %v4917, %v5093
    %v5095 = vpop.f32.mrb[0].mxu0
    %v5096 = vpop.f32.mrb[0].mxu0
    %v5097 = vadd.f32 %v4920, %v5096
    %v5098 = vpop.f32.mrb[0].mxu0
    %5099 = vmatprep.mubr.bf16.mxu0 %v4542
    %5100 = vmatmul.mubr.bf16.gmra.mrb[0].mxu0 %v4541
    %v5101 = vpop.f32.mrb[0].mxu0
    %v5102 = vadd.f32 %v4925, %v5101
    %v5103 = vpop.f32.mrb[0].mxu0
    %v5104 = vpop.f32.mrb[0].mxu0
    %v5105 = vadd.f32 %v4928, %v5104
    %v5106 = vpop.f32.mrb[0].mxu0
    %5107 = vmatprep.mubr.bf16.mxu0 %v4546
    %5108 = vmatmul.mubr.bf16.gmra.mrb[0].mxu0 %v4545
    %v5109 = vpop.f32.mrb[0].mxu0
    %v5110 = vadd.f32 %v4933, %v5109
    %v5111 = vpop.f32.mrb[0].mxu0
    %v5112 = vpop.f32.mrb[0].mxu0
    %v5113 = vadd.f32 %v4936, %v5112
    %v5114 = vpop.f32.mrb[0].mxu0
    %5115 = vmatprep.mubr.bf16.mxu0 %v4550
    %5116 = vmatmul.mubr.bf16.gmra.mrb[0].mxu0 %v4549
    %v5117 = vpop.f32.mrb[0].mxu0
    %v5118 = vadd.f32 %v4941, %v5117
    %v5119 = vpop.f32.mrb[0].mxu0
    %v5120 = vpop.f32.mrb[0].mxu0
    %v5121 = vadd.f32 %v4944, %v5120
    %v5122 = vpop.f32.mrb[0].mxu0
    %5123 = vmatprep.mubr.bf16.mxu0 %v4554
    %5124 = vmatmul.mubr.bf16.gmra.mrb[0].mxu0 %v4553
    %v5125 = vpop.f32.mrb[0].mxu0
    %v5126 = vadd.f32 %v4949, %v5125
    %v5127 = vpop.f32.mrb[0].mxu0
    %v5128 = vpop.f32.mrb[0].mxu0
    %v5129 = vadd.f32 %v4952, %v5128
    %v5130 = vpop.f32.mrb[0].mxu0
    %5131 = vmatprep.mubr.bf16.mxu0 %v4558
    %5132 = vmatmul.mubr.bf16.gmra.mrb[0].mxu0 %v4557
    %v5133 = vpop.f32.mrb[0].mxu0
    %v5134 = vadd.f32 %v4957, %v5133
    %v5135 = vpop.f32.mrb[0].mxu0
    %v5136 = vpop.f32.mrb[0].mxu0
    %v5137 = vadd.f32 %v4960, %v5136
    %v5138 = vpop.f32.mrb[0].mxu0
    %5139 = vmatprep.mubr.bf16.mxu0 %v4562
    %5140 = vmatmul.mubr.bf16.gmra.mrb[0].mxu0 %v4561
    %v5141 = vpop.f32.mrb[0].mxu0
    %v5142 = vadd.f32 %v4965, %v5141
    %v5143 = vpop.f32.mrb[0].mxu0
    %v5144 = vpop.f32.mrb[0].mxu0
    %v5145 = vadd.f32 %v4968, %v5144
    %v5146 = vpop.f32.mrb[0].mxu0
    %5147 = vmatprep.mubr.bf16.mxu0 %v4566
    %5148 = vmatmul.mubr.bf16.gmra.mrb[0].mxu0 %v4565
    %v5149 = vpop.f32.mrb[0].mxu0
    %v5150 = vadd.f32 %v4973, %v5149
    %v5151 = vpop.f32.mrb[0].mxu0
    %v5152 = vpop.f32.mrb[0].mxu0
    %v5153 = vadd.f32 %v4976, %v5152
    %v5154 = vpop.f32.mrb[0].mxu0
    %5155 = vmatprep.mubr.bf16.mxu0 %v4570
    %5156 = vmatmul.mubr.bf16.gmra.mrb[0].mxu0 %v4569
    %v5157 = vpop.f32.mrb[0].mxu0
    %v5158 = vadd.f32 %v4981, %v5157
    %v5159 = vpop.f32.mrb[0].mxu0
    %v5160 = vpop.f32.mrb[0].mxu0
    %v5161 = vadd.f32 %v4984, %v5160
    %v5162 = vpop.f32.mrb[0].mxu0
    %5163 = vmatprep.mubr.bf16.mxu0 %v4574
    %5164 = vmatmul.mubr.bf16.gmra.mrb[0].mxu0 %v4573
    %v5165 = vpop.f32.mrb[0].mxu0
    %v5166 = vadd.f32 %v4989, %v5165
    %v5167 = vpop.f32.mrb[0].mxu0
    %v5168 = vpop.f32.mrb[0].mxu0
    %v5169 = vadd.f32 %v4992, %v5168
    %v5170 = vpop.f32.mrb[0].mxu0
    %5171 = vmatprep.mubr.bf16.mxu0 %v4578
    %5172 = vmatmul.mubr.bf16.gmra.mrb[0].mxu0 %v4577
    %v5173 = vpop.f32.mrb[0].mxu0
    %v5174 = vadd.f32 %v4997, %v5173
    %v5175 = vpop.f32.mrb[0].mxu0
    %v5176 = vpop.f32.mrb[0].mxu0
    %v5177 = vadd.f32 %v5000, %v5176
    %v5178 = vpop.f32.mrb[0].mxu0
    %5179 = vmatprep.mubr.bf16.mxu0 %v4582
    %5180 = vmatmul.mubr.bf16.gmra.mrb[0].mxu0 %v4581
    %v5181 = vpop.f32.mrb[0].mxu0
    %v5182 = vadd.f32 %v5005, %v5181
    %v5183 = vpop.f32.mrb[0].mxu0
    %v5184 = vpop.f32.mrb[0].mxu0
    %v5185 = vadd.f32 %v5008, %v5184
    %v5186 = vpop.f32.mrb[0].mxu0
    %5187 = vmatprep.mubr.bf16.mxu0 %v4586
    %5188 = vmatmul.mubr.bf16.gmra.mrb[0].mxu0 %v4585
    %v5189 = vpop.f32.mrb[0].mxu0
    %v5190 = vadd.f32 %v5013, %v5189
    %v5191 = vpop.f32.mrb[0].mxu0
    %v5192 = vpop.f32.mrb[0].mxu0
    %v5193 = vadd.f32 %v5016, %v5192
    %v5194 = vpop.f32.mrb[0].mxu0
    %5195 = vmatprep.mubr.bf16.mxu0 %v4590
    %5196 = vmatmul.mubr.bf16.gmra.mrb[0].mxu0 %v4589
    %v5197 = vpop.f32.mrb[0].mxu0
    %v5198 = vadd.f32 %v5021, %v5197
    %v5199 = vpop.f32.mrb[0].mxu0
    %v5200 = vpop.f32.mrb[0].mxu0
    %v5201 = vadd.f32 %v5024, %v5200
    %v5202 = vpop.f32.mrb[0].mxu0
    %5203 = vmatprep.mubr.bf16.mxu0 %v4594
    %5204 = vmatmul.mubr.bf16.gmra.mrb[0].mxu0 %v4593
    %v5205 = vpop.f32.mrb[0].mxu0
    %v5206 = vadd.f32 %v5029, %v5205
    %v5207 = vpop.f32.mrb[0].mxu0
    %v5208 = vpop.f32.mrb[0].mxu0
    %v5209 = vadd.f32 %v5032, %v5208
    %v5210 = vpop.f32.mrb[0].mxu0
    %5211 = vdwg.mxu0
    %v5212 = vmax.f32 %v5070, 0.0
    %v5213 = vmax.f32 %v5073, 0.0
    %v5214 = vmax.f32 %v5078, 0.0
    %v5215 = vmax.f32 %v5081, 0.0
    %v5216 = vmax.f32 %v5086, 0.0
    %v5217 = vmax.f32 %v5089, 0.0
    %v5218 = vmax.f32 %v5094, 0.0
    %v5219 = vmax.f32 %v5097, 0.0
    %v5220 = vmax.f32 %v5102, 0.0
    %v5221 = vmax.f32 %v5105, 0.0
    %v5222 = vmax.f32 %v5110, 0.0
    %v5223 = vmax.f32 %v5113, 0.0
    %v5224 = vmax.f32 %v5118, 0.0
    %v5225 = vmax.f32 %v5121, 0.0
    %v5226 = vmax.f32 %v5126, 0.0
    %v5227 = vmax.f32 %v5129, 0.0
    %v5228 = vmax.f32 %v5134, 0.0
    %v5229 = vmax.f32 %v5137, 0.0
    %v5230 = vmax.f32 %v5142, 0.0
    %v5231 = vmax.f32 %v5145, 0.0
    %v5232 = vmax.f32 %v5150, 0.0
    %v5233 = vmax.f32 %v5153, 0.0
    %v5234 = vmax.f32 %v5158, 0.0
    %v5235 = vmax.f32 %v5161, 0.0
    %v5236 = vmax.f32 %v5166, 0.0
    %v5237 = vmax.f32 %v5169, 0.0
    %v5238 = vmax.f32 %v5174, 0.0
    %v5239 = vmax.f32 %v5177, 0.0
    %v5240 = vmax.f32 %v5182, 0.0
    %v5241 = vmax.f32 %v5185, 0.0
    %v5242 = vmax.f32 %v5190, 0.0
    %v5243 = vmax.f32 %v5193, 0.0
    %v5244 = vmax.f32 %v5198, 0.0
    %v5245 = vmax.f32 %v5201, 0.0
    %v5246 = vmax.f32 %v5206, 0.0
    %v5247 = vmax.f32 %v5209, 0.0
    %v5248 = vpack.c.bf16 %v5213, %v5212
    %v5249 = vpack.c.bf16 %v5215, %v5214
    %v5250 = vpack.c.bf16 %v5217, %v5216
    %v5251 = vpack.c.bf16 %v5219, %v5218
    %v5252 = vpack.c.bf16 %v5221, %v5220
    %v5253 = vpack.c.bf16 %v5223, %v5222
    %v5254 = vpack.c.bf16 %v5225, %v5224
    %v5255 = vpack.c.bf16 %v5227, %v5226
    %v5256 = vpack.c.bf16 %v5229, %v5228
    %v5257 = vpack.c.bf16 %v5231, %v5230
    %v5258 = vpack.c.bf16 %v5233, %v5232
    %v5259 = vpack.c.bf16 %v5235, %v5234
    %v5260 = vpack.c.bf16 %v5237, %v5236
    %v5261 = vpack.c.bf16 %v5239, %v5238
    %v5262 = vpack.c.bf16 %v5241, %v5240
    %v5263 = vpack.c.bf16 %v5243, %v5242
    %v5264 = vpack.c.bf16 %v5245, %v5244
    %v5265 = vpack.c.bf16 %v5247, %v5246
    %vm5266 = vcmask 523264
    %5267 = vst.msk [vmem:[#allocation4] sm:$0xff] %vm5266, %v5248
    %5268 = vst.msk [vmem:[#allocation4 + $0x8] sm:$0xff] %vm5266, %v5249
    %5269 = vst.msk [vmem:[#allocation4 + $0x10] sm:$0xff] %vm5266, %v5250
    %5270 = vst.msk [vmem:[#allocation4 + $0x18] sm:$0xff] %vm5266, %v5251
    %5271 = vst.msk [vmem:[#allocation4 + $0x20] sm:$0xff] %vm5266, %v5252
    %5272 = vst.msk [vmem:[#allocation4 + $0x28] sm:$0xff] %vm5266, %v5253
    %5273 = vst.msk [vmem:[#allocation4 + $0x30] sm:$0xff] %vm5266, %v5254
    %5274 = vst.msk [vmem:[#allocation4 + $0x38] sm:$0xff] %vm5266, %v5255
    %5275 = vst.msk [vmem:[#allocation4 + $0x40] sm:$0xff] %vm5266, %v5256
    %5276 = vst.msk [vmem:[#allocation4 + $0x48] sm:$0xff] %vm5266, %v5257
    %5277 = vst.msk [vmem:[#allocation4 + $0x50] sm:$0xff] %vm5266, %v5258
    %5278 = vst.msk [vmem:[#allocation4 + $0x58] sm:$0xff] %vm5266, %v5259
    %5279 = vst.msk [vmem:[#allocation4 + $0x60] sm:$0xff] %vm5266, %v5260
    %5280 = vst.msk [vmem:[#allocation4 + $0x68] sm:$0xff] %vm5266, %v5261
    %5281 = vst.msk [vmem:[#allocation4 + $0x70] sm:$0xff] %vm5266, %v5262
    %5282 = vst.msk [vmem:[#allocation4 + $0x78] sm:$0xff] %vm5266, %v5263
    %5283 = vst.msk [vmem:[#allocation4 + $0x80] sm:$0xff] %vm5266, %v5264
    %5284 = vst.msk [vmem:[#allocation4 + $0x88] sm:$0xff] %vm5266, %v5265
    %v5285 = vld [vmem:[#allocation4] sm:$0xff]
    %v5286 = vld [vmem:[#allocation4 + $0x8] sm:$0xff]
    %5287 = vst.msk [vmem:[#allocation5] sm:$0xff] %vm5266, %v5285
    %5288 = vst.msk [vmem:[#allocation5 + $0x28] sm:$0xff] %vm5266, %v5286
    %v5289 = vld [vmem:[#allocation4 + $0x18] sm:$0xff]
    %v5290 = vld [vmem:[#allocation4 + $0x20] sm:$0xff]
    %5291 = vst.msk [vmem:[#allocation5 + $0x50] sm:$0xff] %vm5266, %v5289
    %5292 = vst.msk [vmem:[#allocation5 + $0x78] sm:$0xff] %vm5266, %v5290
    %v5293 = vld [vmem:[#allocation4 + $0x30] sm:$0xff]
    %v5294 = vld [vmem:[#allocation4 + $0x38] sm:$0xff]
    %5295 = vst.msk [vmem:[#allocation5 + $0xa0] sm:$0xff] %vm5266, %v5293
    %5296 = vst.msk [vmem:[#allocation5 + $0xc8] sm:$0xff] %vm5266, %v5294
    %v5297 = vld [vmem:[#allocation4 + $0x48] sm:$0xff]
    %v5298 = vld [vmem:[#allocation4 + $0x50] sm:$0xff]
    %5299 = vst.msk [vmem:[#allocation5 + $0xf0] sm:$0xff] %vm5266, %v5297
    %5300 = vst.msk [vmem:[#allocation5 + $0x118] sm:$0xff] %vm5266, %v5298
    %v5301 = vld [vmem:[#allocation4] sm:$0xf0]
    %v5302 = vld [vmem:[#allocation4 + $0x8] sm:$0xff]
    %v5303 = vld [vmem:[#allocation4 + $0x10] sm:$0xf]
    %v5307 = vrot.slane %v5301, 4
    %v5308 = vrot.slane %v5302, 4
    %v5309 = vsel %vm2589, %v5307, %v5308
    %v5310 = vrot.slane %v5303, 4
    %v5311 = vsel %vm2589, %v5308, %v5310
    %5312 = vrot.lane.b32.xlu0 %v5309, 64
    %v5313 = vpop.permute.xlu0 %5312
    %5314 = vrot.lane.b32.xlu0 %v5311, 64
    %v5315 = vpop.permute.xlu0 %5314
    %vm5318 = vcmask 1048064
    %5319 = vst.msk [vmem:[#allocation5] sm:$0xff] %vm5318, %v5313
    %5320 = vst.msk [vmem:[#allocation5 + $0x28] sm:$0xff] %vm5318, %v5315
    %v5321 = vld [vmem:[#allocation4 + $0x18] sm:$0xf0]
    %v5322 = vld [vmem:[#allocation4 + $0x20] sm:$0xff]
    %v5323 = vld [vmem:[#allocation4 + $0x28] sm:$0xf]
    %v5327 = vrot.slane %v5321, 4
    %v5328 = vrot.slane %v5322, 4
    %v5329 = vsel %vm2589, %v5327, %v5328
    %v5330 = vrot.slane %v5323, 4
    %v5331 = vsel %vm2589, %v5328, %v5330
    %5332 = vrot.lane.b32.xlu0 %v5329, 64
    %v5333 = vpop.permute.xlu0 %5332
    %5334 = vrot.lane.b32.xlu0 %v5331, 64
    %v5335 = vpop.permute.xlu0 %5334
    %5338 = vst.msk [vmem:[#allocation5 + $0x50] sm:$0xff] %vm5318, %v5333
    %5339 = vst.msk [vmem:[#allocation5 + $0x78] sm:$0xff] %vm5318, %v5335
    %v5340 = vld [vmem:[#allocation4 + $0x30] sm:$0xf0]
    %v5341 = vld [vmem:[#allocation4 + $0x38] sm:$0xff]
    %v5342 = vld [vmem:[#allocation4 + $0x40] sm:$0xf]
    %v5346 = vrot.slane %v5340, 4
    %v5347 = vrot.slane %v5341, 4
    %v5348 = vsel %vm2589, %v5346, %v5347
    %v5349 = vrot.slane %v5342, 4
    %v5350 = vsel %vm2589, %v5347, %v5349
    %5351 = vrot.lane.b32.xlu0 %v5348, 64
    %v5352 = vpop.permute.xlu0 %5351
    %5353 = vrot.lane.b32.xlu0 %v5350, 64
    %v5354 = vpop.permute.xlu0 %5353
    %5357 = vst.msk [vmem:[#allocation5 + $0xa0] sm:$0xff] %vm5318, %v5352
    %5358 = vst.msk [vmem:[#allocation5 + $0xc8] sm:$0xff] %vm5318, %v5354
    %v5359 = vld [vmem:[#allocation4 + $0x48] sm:$0xf0]
    %v5360 = vld [vmem:[#allocation4 + $0x50] sm:$0xff]
    %v5361 = vld [vmem:[#allocation4 + $0x58] sm:$0xf]
    %v5365 = vrot.slane %v5359, 4
    %v5366 = vrot.slane %v5360, 4
    %v5367 = vsel %vm2589, %v5365, %v5366
    %v5368 = vrot.slane %v5361, 4
    %v5369 = vsel %vm2589, %v5366, %v5368
    %5370 = vrot.lane.b32.xlu0 %v5367, 64
    %v5371 = vpop.permute.xlu0 %5370
    %5372 = vrot.lane.b32.xlu0 %v5369, 64
    %v5373 = vpop.permute.xlu0 %5372
    %5376 = vst.msk [vmem:[#allocation5 + $0xf0] sm:$0xff] %vm5318, %v5371
    %5377 = vst.msk [vmem:[#allocation5 + $0x118] sm:$0xff] %vm5318, %v5373
    %v5378 = vld [vmem:[#allocation4 + $0x8] sm:$0xff]
    %v5379 = vld [vmem:[#allocation4 + $0x10] sm:$0xff]
    %5380 = vst.msk [vmem:[#allocation5 + $0x8] sm:$0xff] %vm5266, %v5378
    %5381 = vst.msk [vmem:[#allocation5 + $0x30] sm:$0xff] %vm5266, %v5379
    %v5382 = vld [vmem:[#allocation4 + $0x20] sm:$0xff]
    %v5383 = vld [vmem:[#allocation4 + $0x28] sm:$0xff]
    %5384 = vst.msk [vmem:[#allocation5 + $0x58] sm:$0xff] %vm5266, %v5382
    %5385 = vst.msk [vmem:[#allocation5 + $0x80] sm:$0xff] %vm5266, %v5383
    %v5386 = vld [vmem:[#allocation4 + $0x38] sm:$0xff]
    %v5387 = vld [vmem:[#allocation4 + $0x40] sm:$0xff]
    %5388 = vst.msk [vmem:[#allocation5 + $0xa8] sm:$0xff] %vm5266, %v5386
    %5389 = vst.msk [vmem:[#allocation5 + $0xd0] sm:$0xff] %vm5266, %v5387
    %v5390 = vld [vmem:[#allocation4 + $0x50] sm:$0xff]
    %v5391 = vld [vmem:[#allocation4 + $0x58] sm:$0xff]
    %5392 = vst.msk [vmem:[#allocation5 + $0xf8] sm:$0xff] %vm5266, %v5390
    %5393 = vst.msk [vmem:[#allocation5 + $0x120] sm:$0xff] %vm5266, %v5391
    %v5394 = vld [vmem:[#allocation4 + $0x18] sm:$0xff]
    %v5395 = vld [vmem:[#allocation4 + $0x20] sm:$0xff]
    %5398 = vrot.lane.b32.xlu0 %v5394, 64
    %v5399 = vpop.permute.xlu0 %5398
    %5400 = vrot.lane.b32.xlu0 %v5395, 64
    %v5401 = vpop.permute.xlu0 %5400
    %5404 = vst.msk [vmem:[#allocation5 + $0x8] sm:$0xff] %vm5318, %v5399
    %5405 = vst.msk [vmem:[#allocation5 + $0x30] sm:$0xff] %vm5318, %v5401
    %v5406 = vld [vmem:[#allocation4 + $0x30] sm:$0xff]
    %v5407 = vld [vmem:[#allocation4 + $0x38] sm:$0xff]
    %5410 = vrot.lane.b32.xlu0 %v5406, 64
    %v5411 = vpop.permute.xlu0 %5410
    %5412 = vrot.lane.b32.xlu0 %v5407, 64
    %v5413 = vpop.permute.xlu0 %5412
    %5416 = vst.msk [vmem:[#allocation5 + $0x58] sm:$0xff] %vm5318, %v5411
    %5417 = vst.msk [vmem:[#allocation5 + $0x80] sm:$0xff] %vm5318, %v5413
    %v5418 = vld [vmem:[#allocation4 + $0x48] sm:$0xff]
    %v5419 = vld [vmem:[#allocation4 + $0x50] sm:$0xff]
    %5422 = vrot.lane.b32.xlu0 %v5418, 64
    %v5423 = vpop.permute.xlu0 %5422
    %5424 = vrot.lane.b32.xlu0 %v5419, 64
    %v5425 = vpop.permute.xlu0 %5424
    %5428 = vst.msk [vmem:[#allocation5 + $0xa8] sm:$0xff] %vm5318, %v5423
    %5429 = vst.msk [vmem:[#allocation5 + $0xd0] sm:$0xff] %vm5318, %v5425
    %v5430 = vld [vmem:[#allocation4 + $0x60] sm:$0xff]
    %v5431 = vld [vmem:[#allocation4 + $0x68] sm:$0xff]
    %5434 = vrot.lane.b32.xlu0 %v5430, 64
    %v5435 = vpop.permute.xlu0 %5434
    %5436 = vrot.lane.b32.xlu0 %v5431, 64
    %v5437 = vpop.permute.xlu0 %5436
    %5440 = vst.msk [vmem:[#allocation5 + $0xf8] sm:$0xff] %vm5318, %v5435
    %5441 = vst.msk [vmem:[#allocation5 + $0x120] sm:$0xff] %vm5318, %v5437
    %v5442 = vld [vmem:[#allocation4 + $0x18] sm:$0xf0]
    %v5443 = vld [vmem:[#allocation4 + $0x20] sm:$0xff]
    %v5444 = vld [vmem:[#allocation4 + $0x28] sm:$0xf]
    %v5448 = vrot.slane %v5442, 4
    %v5449 = vrot.slane %v5443, 4
    %v5450 = vsel %vm2589, %v5448, %v5449
    %v5451 = vrot.slane %v5444, 4
    %v5452 = vsel %vm2589, %v5449, %v5451
    %5455 = vst.msk [vmem:[#allocation5 + $0x10] sm:$0xff] %vm5266, %v5450
    %5456 = vst.msk [vmem:[#allocation5 + $0x38] sm:$0xff] %vm5266, %v5452
    %v5457 = vld [vmem:[#allocation4 + $0x30] sm:$0xf0]
    %v5458 = vld [vmem:[#allocation4 + $0x38] sm:$0xff]
    %v5459 = vld [vmem:[#allocation4 + $0x40] sm:$0xf]
    %v5463 = vrot.slane %v5457, 4
    %v5464 = vrot.slane %v5458, 4
    %v5465 = vsel %vm2589, %v5463, %v5464
    %v5466 = vrot.slane %v5459, 4
    %v5467 = vsel %vm2589, %v5464, %v5466
    %5470 = vst.msk [vmem:[#allocation5 + $0x60] sm:$0xff] %vm5266, %v5465
    %5471 = vst.msk [vmem:[#allocation5 + $0x88] sm:$0xff] %vm5266, %v5467
    %v5472 = vld [vmem:[#allocation4 + $0x48] sm:$0xf0]
    %v5473 = vld [vmem:[#allocation4 + $0x50] sm:$0xff]
    %v5474 = vld [vmem:[#allocation4 + $0x58] sm:$0xf]
    %v5478 = vrot.slane %v5472, 4
    %v5479 = vrot.slane %v5473, 4
    %v5480 = vsel %vm2589, %v5478, %v5479
    %v5481 = vrot.slane %v5474, 4
    %v5482 = vsel %vm2589, %v5479, %v5481
    %5485 = vst.msk [vmem:[#allocation5 + $0xb0] sm:$0xff] %vm5266, %v5480
    %5486 = vst.msk [vmem:[#allocation5 + $0xd8] sm:$0xff] %vm5266, %v5482
    %v5487 = vld [vmem:[#allocation4 + $0x60] sm:$0xf0]
    %v5488 = vld [vmem:[#allocation4 + $0x68] sm:$0xff]
    %v5489 = vld [vmem:[#allocation4 + $0x70] sm:$0xf]
    %v5493 = vrot.slane %v5487, 4
    %v5494 = vrot.slane %v5488, 4
    %v5495 = vsel %vm2589, %v5493, %v5494
    %v5496 = vrot.slane %v5489, 4
    %v5497 = vsel %vm2589, %v5494, %v5496
    %5500 = vst.msk [vmem:[#allocation5 + $0x100] sm:$0xff] %vm5266, %v5495
    %5501 = vst.msk [vmem:[#allocation5 + $0x128] sm:$0xff] %vm5266, %v5497
    %v5502 = vld [vmem:[#allocation4 + $0x20] sm:$0xff]
    %v5503 = vld [vmem:[#allocation4 + $0x28] sm:$0xff]
    %5506 = vrot.lane.b32.xlu0 %v5502, 64
    %v5507 = vpop.permute.xlu0 %5506
    %5508 = vrot.lane.b32.xlu0 %v5503, 64
    %v5509 = vpop.permute.xlu0 %5508
    %5512 = vst.msk [vmem:[#allocation5 + $0x10] sm:$0xff] %vm5318, %v5507
    %5513 = vst.msk [vmem:[#allocation5 + $0x38] sm:$0xff] %vm5318, %v5509
    %v5514 = vld [vmem:[#allocation4 + $0x38] sm:$0xff]
    %v5515 = vld [vmem:[#allocation4 + $0x40] sm:$0xff]
    %5518 = vrot.lane.b32.xlu0 %v5514, 64
    %v5519 = vpop.permute.xlu0 %5518
    %5520 = vrot.lane.b32.xlu0 %v5515, 64
    %v5521 = vpop.permute.xlu0 %5520
    %5524 = vst.msk [vmem:[#allocation5 + $0x60] sm:$0xff] %vm5318, %v5519
    %5525 = vst.msk [vmem:[#allocation5 + $0x88] sm:$0xff] %vm5318, %v5521
    %v5526 = vld [vmem:[#allocation4 + $0x50] sm:$0xff]
    %v5527 = vld [vmem:[#allocation4 + $0x58] sm:$0xff]
    %5530 = vrot.lane.b32.xlu0 %v5526, 64
    %v5531 = vpop.permute.xlu0 %5530
    %5532 = vrot.lane.b32.xlu0 %v5527, 64
    %v5533 = vpop.permute.xlu0 %5532
    %5536 = vst.msk [vmem:[#allocation5 + $0xb0] sm:$0xff] %vm5318, %v5531
    %5537 = vst.msk [vmem:[#allocation5 + $0xd8] sm:$0xff] %vm5318, %v5533
    %v5538 = vld [vmem:[#allocation4 + $0x68] sm:$0xff]
    %v5539 = vld [vmem:[#allocation4 + $0x70] sm:$0xff]
    %5542 = vrot.lane.b32.xlu0 %v5538, 64
    %v5543 = vpop.permute.xlu0 %5542
    %5544 = vrot.lane.b32.xlu0 %v5539, 64
    %v5545 = vpop.permute.xlu0 %5544
    %5548 = vst.msk [vmem:[#allocation5 + $0x100] sm:$0xff] %vm5318, %v5543
    %5549 = vst.msk [vmem:[#allocation5 + $0x128] sm:$0xff] %vm5318, %v5545
    %v5550 = vld [vmem:[#allocation4 + $0x30] sm:$0xff]
    %v5551 = vld [vmem:[#allocation4 + $0x38] sm:$0xff]
    %5552 = vst.msk [vmem:[#allocation5 + $0x18] sm:$0xff] %vm5266, %v5550
    %5553 = vst.msk [vmem:[#allocation5 + $0x40] sm:$0xff] %vm5266, %v5551
    %v5554 = vld [vmem:[#allocation4 + $0x48] sm:$0xff]
    %v5555 = vld [vmem:[#allocation4 + $0x50] sm:$0xff]
    %5556 = vst.msk [vmem:[#allocation5 + $0x68] sm:$0xff] %vm5266, %v5554
    %5557 = vst.msk [vmem:[#allocation5 + $0x90] sm:$0xff] %vm5266, %v5555
    %v5558 = vld [vmem:[#allocation4 + $0x60] sm:$0xff]
    %v5559 = vld [vmem:[#allocation4 + $0x68] sm:$0xff]
    %5560 = vst.msk [vmem:[#allocation5 + $0xb8] sm:$0xff] %vm5266, %v5558
    %5561 = vst.msk [vmem:[#allocation5 + $0xe0] sm:$0xff] %vm5266, %v5559
    %v5562 = vld [vmem:[#allocation4 + $0x78] sm:$0xff]
    %v5563 = vld [vmem:[#allocation4 + $0x80] sm:$0xff]
    %5564 = vst.msk [vmem:[#allocation5 + $0x108] sm:$0xff] %vm5266, %v5562
    %5565 = vst.msk [vmem:[#allocation5 + $0x130] sm:$0xff] %vm5266, %v5563
    %v5566 = vld [vmem:[#allocation4 + $0x30] sm:$0xf0]
    %v5567 = vld [vmem:[#allocation4 + $0x38] sm:$0xff]
    %v5568 = vld [vmem:[#allocation4 + $0x40] sm:$0xf]
    %v5572 = vrot.slane %v5566, 4
    %v5573 = vrot.slane %v5567, 4
    %v5574 = vsel %vm2589, %v5572, %v5573
    %v5575 = vrot.slane %v5568, 4
    %v5576 = vsel %vm2589, %v5573, %v5575
    %5577 = vrot.lane.b32.xlu0 %v5574, 64
    %v5578 = vpop.permute.xlu0 %5577
    %5579 = vrot.lane.b32.xlu0 %v5576, 64
    %v5580 = vpop.permute.xlu0 %5579
    %5583 = vst.msk [vmem:[#allocation5 + $0x18] sm:$0xff] %vm5318, %v5578
    %5584 = vst.msk [vmem:[#allocation5 + $0x40] sm:$0xff] %vm5318, %v5580
    %v5585 = vld [vmem:[#allocation4 + $0x48] sm:$0xf0]
    %v5586 = vld [vmem:[#allocation4 + $0x50] sm:$0xff]
    %v5587 = vld [vmem:[#allocation4 + $0x58] sm:$0xf]
    %v5591 = vrot.slane %v5585, 4
    %v5592 = vrot.slane %v5586, 4
    %v5593 = vsel %vm2589, %v5591, %v5592
    %v5594 = vrot.slane %v5587, 4
    %v5595 = vsel %vm2589, %v5592, %v5594
    %5596 = vrot.lane.b32.xlu0 %v5593, 64
    %v5597 = vpop.permute.xlu0 %5596
    %5598 = vrot.lane.b32.xlu0 %v5595, 64
    %v5599 = vpop.permute.xlu0 %5598
    %5602 = vst.msk [vmem:[#allocation5 + $0x68] sm:$0xff] %vm5318, %v5597
    %5603 = vst.msk [vmem:[#allocation5 + $0x90] sm:$0xff] %vm5318, %v5599
    %v5604 = vld [vmem:[#allocation4 + $0x60] sm:$0xf0]
    %v5605 = vld [vmem:[#allocation4 + $0x68] sm:$0xff]
    %v5606 = vld [vmem:[#allocation4 + $0x70] sm:$0xf]
    %v5610 = vrot.slane %v5604, 4
    %v5611 = vrot.slane %v5605, 4
    %v5612 = vsel %vm2589, %v5610, %v5611
    %v5613 = vrot.slane %v5606, 4
    %v5614 = vsel %vm2589, %v5611, %v5613
    %5615 = vrot.lane.b32.xlu0 %v5612, 64
    %v5616 = vpop.permute.xlu0 %5615
    %5617 = vrot.lane.b32.xlu0 %v5614, 64
    %v5618 = vpop.permute.xlu0 %5617
    %5621 = vst.msk [vmem:[#allocation5 + $0xb8] sm:$0xff] %vm5318, %v5616
    %5622 = vst.msk [vmem:[#allocation5 + $0xe0] sm:$0xff] %vm5318, %v5618
    %v5623 = vld [vmem:[#allocation4 + $0x78] sm:$0xf0]
    %v5624 = vld [vmem:[#allocation4 + $0x80] sm:$0xff]
    %v5625 = vld [vmem:[#allocation4 + $0x88] sm:$0xf]
    %v5629 = vrot.slane %v5623, 4
    %v5630 = vrot.slane %v5624, 4
    %v5631 = vsel %vm2589, %v5629, %v5630
    %v5632 = vrot.slane %v5625, 4
    %v5633 = vsel %vm2589, %v5630, %v5632
    %5634 = vrot.lane.b32.xlu0 %v5631, 64
    %v5635 = vpop.permute.xlu0 %5634
    %5636 = vrot.lane.b32.xlu0 %v5633, 64
    %v5637 = vpop.permute.xlu0 %5636
    %5640 = vst.msk [vmem:[#allocation5 + $0x108] sm:$0xff] %vm5318, %v5635
    %5641 = vst.msk [vmem:[#allocation5 + $0x130] sm:$0xff] %vm5318, %v5637
    %v5642 = vld [vmem:[#allocation4 + $0x38] sm:$0xff]
    %v5643 = vld [vmem:[#allocation4 + $0x40] sm:$0xff]
    %5644 = vst.msk [vmem:[#allocation5 + $0x20] sm:$0xff] %vm5266, %v5642
    %5645 = vst.msk [vmem:[#allocation5 + $0x48] sm:$0xff] %vm5266, %v5643
    %v5646 = vld [vmem:[#allocation4 + $0x50] sm:$0xff]
    %v5647 = vld [vmem:[#allocation4 + $0x58] sm:$0xff]
    %5648 = vst.msk [vmem:[#allocation5 + $0x70] sm:$0xff] %vm5266, %v5646
    %5649 = vst.msk [vmem:[#allocation5 + $0x98] sm:$0xff] %vm5266, %v5647
    %v5650 = vld [vmem:[#allocation4 + $0x68] sm:$0xff]
    %v5651 = vld [vmem:[#allocation4 + $0x70] sm:$0xff]
    %5652 = vst.msk [vmem:[#allocation5 + $0xc0] sm:$0xff] %vm5266, %v5650
    %5653 = vst.msk [vmem:[#allocation5 + $0xe8] sm:$0xff] %vm5266, %v5651
    %v5654 = vld [vmem:[#allocation4 + $0x80] sm:$0xff]
    %v5655 = vld [vmem:[#allocation4 + $0x88] sm:$0xff]
    %5656 = vst.msk [vmem:[#allocation5 + $0x110] sm:$0xff] %vm5266, %v5654
    %5657 = vst.msk [vmem:[#allocation5 + $0x138] sm:$0xff] %vm5266, %v5655
    %v5658 = vld [vmem:[#allocation5] sm:$0xff]
    %v5659 = vld [vmem:[#allocation5 + $0x8] sm:$0xff]
    %v5660 = vld [vmem:[#allocation5 + $0x10] sm:$0xff]
    %v5661 = vld [vmem:[#allocation5 + $0x18] sm:$0xff]
    %v5662 = vld [vmem:[#allocation5 + $0x20] sm:$0xff]
    %v5663 = vld [vmem:[#allocation5 + $0x28] sm:$0xff]
    %v5664 = vld [vmem:[#allocation5 + $0x30] sm:$0xff]
    %v5665 = vld [vmem:[#allocation5 + $0x38] sm:$0xff]
    %v5666 = vld [vmem:[#allocation5 + $0x40] sm:$0xff]
    %v5667 = vld [vmem:[#allocation5 + $0x48] sm:$0xff]
    %v5668 = vld [vmem:[#allocation5 + $0x50] sm:$0xff]
    %v5669 = vld [vmem:[#allocation5 + $0x58] sm:$0xff]
    %v5670 = vld [vmem:[#allocation5 + $0x60] sm:$0xff]
    %v5671 = vld [vmem:[#allocation5 + $0x68] sm:$0xff]
    %v5672 = vld [vmem:[#allocation5 + $0x70] sm:$0xff]
    %v5673 = vld [vmem:[#allocation5 + $0x78] sm:$0xff]
    %v5674 = vld [vmem:[#allocation5 + $0x80] sm:$0xff]
    %v5675 = vld [vmem:[#allocation5 + $0x88] sm:$0xff]
    %v5676 = vld [vmem:[#allocation5 + $0x90] sm:$0xff]
    %v5677 = vld [vmem:[#allocation5 + $0x98] sm:$0xff]
    %v5678 = vld [vmem:[#allocation5 + $0xa0] sm:$0xff]
    %v5679 = vld [vmem:[#allocation5 + $0xa8] sm:$0xff]
    %v5680 = vld [vmem:[#allocation5 + $0xb0] sm:$0xff]
    %v5681 = vld [vmem:[#allocation5 + $0xb8] sm:$0xff]
    %v5682 = vld [vmem:[#allocation5 + $0xc0] sm:$0xff]
    %v5683 = vld [vmem:[#allocation5 + $0xc8] sm:$0xff]
    %v5684 = vld [vmem:[#allocation5 + $0xd0] sm:$0xff]
    %v5685 = vld [vmem:[#allocation5 + $0xd8] sm:$0xff]
    %v5686 = vld [vmem:[#allocation5 + $0xe0] sm:$0xff]
    %v5687 = vld [vmem:[#allocation5 + $0xe8] sm:$0xff]
    %v5688 = vld [vmem:[#allocation5 + $0xf0] sm:$0xff]
    %v5689 = vld [vmem:[#allocation5 + $0xf8] sm:$0xff]
    %v5690 = vld [vmem:[#allocation5 + $0x100] sm:$0xff]
    %v5691 = vld [vmem:[#allocation5 + $0x108] sm:$0xff]
    %v5692 = vld [vmem:[#allocation5 + $0x110] sm:$0xff]
    %v5693 = vld [vmem:[#allocation5 + $0x118] sm:$0xff]
    %v5694 = vld [vmem:[#allocation5 + $0x120] sm:$0xff]
    %v5695 = vld [vmem:[#allocation5 + $0x128] sm:$0xff]
    %v5696 = vld [vmem:[#allocation5 + $0x130] sm:$0xff]
    %v5697 = vld [vmem:[#allocation5 + $0x138] sm:$0xff]
    %v5698 = vld [vmem:[%s5] sm:$0xf]
    %v5699 = vld [vmem:[%s5 + $0x4] sm:$0xf]
    %v5700 = vld [vmem:[%s5 + $0x8] sm:$0xf]
    %v5701 = vld [vmem:[%s5 + $0xc] sm:$0xf]
    %v5702 = vld [vmem:[%s5 + $0x10] sm:$0xf]
    %v5703 = vld [vmem:[%s5 + $0x14] sm:$0xf]
    %v5704 = vld [vmem:[%s5 + $0x18] sm:$0xf]
    %v5705 = vld [vmem:[%s5 + $0x1c] sm:$0xf]
    %v5706 = vld [vmem:[%s5 + $0x20] sm:$0xf]
    %v5707 = vld [vmem:[%s5 + $0x24] sm:$0xf]
    %v5708 = vld [vmem:[%s5 + $0x28] sm:$0xf]
    %v5709 = vld [vmem:[%s5 + $0x2c] sm:$0xf]
    %v5710 = vld [vmem:[%s5 + $0x30] sm:$0xf]
    %v5711 = vld [vmem:[%s5 + $0x34] sm:$0xf]
    %v5712 = vld [vmem:[%s5 + $0x38] sm:$0xf]
    %v5713 = vld [vmem:[%s5 + $0x3c] sm:$0xf]
    %v5714 = vld [vmem:[%s5 + $0x40] sm:$0xf]
    %v5715 = vld [vmem:[%s5 + $0x44] sm:$0xf]
    %v5716 = vld [vmem:[%s5 + $0x48] sm:$0xf]
    %v5717 = vld [vmem:[%s5 + $0x4c] sm:$0xf]
    %v5718 = vld [vmem:[%s5 + $0x50] sm:$0xf]
    %v5719 = vld [vmem:[%s5 + $0x54] sm:$0xf]
    %v5720 = vld [vmem:[%s5 + $0x58] sm:$0xf]
    %v5721 = vld [vmem:[%s5 + $0x5c] sm:$0xf]
    %v5722 = vld [vmem:[%s5 + $0x60] sm:$0xf]
    %v5723 = vld [vmem:[%s5 + $0x64] sm:$0xf]
    %v5724 = vld [vmem:[%s5 + $0x68] sm:$0xf]
    %v5725 = vld [vmem:[%s5 + $0x6c] sm:$0xf]
    %v5726 = vld [vmem:[%s5 + $0x70] sm:$0xf]
    %v5727 = vld [vmem:[%s5 + $0x74] sm:$0xf]
    %v5728 = vld [vmem:[%s5 + $0x78] sm:$0xf]
    %v5729 = vld [vmem:[%s5 + $0x7c] sm:$0xf]
    %v5730 = vld [vmem:[%s5 + $0x80] sm:$0xf]
    %v5731 = vld [vmem:[%s5 + $0x84] sm:$0xf]
    %v5732 = vld [vmem:[%s5 + $0x88] sm:$0xf]
    %v5733 = vld [vmem:[%s5 + $0x8c] sm:$0xf]
    %v5734 = vld [vmem:[%s5 + $0x90] sm:$0xf]
    %v5735 = vld [vmem:[%s5 + $0x94] sm:$0xf]
    %v5736 = vld [vmem:[%s5 + $0x98] sm:$0xf]
    %v5737 = vld [vmem:[%s5 + $0x9c] sm:$0xf]
    %v5738 = vld [vmem:[%s5 + $0xa0] sm:$0xf]
    %v5739 = vld [vmem:[%s5 + $0xa4] sm:$0xf]
    %v5740 = vld [vmem:[%s5 + $0xa8] sm:$0xf]
    %v5741 = vld [vmem:[%s5 + $0xac] sm:$0xf]
    %v5742 = vld [vmem:[%s5 + $0xb0] sm:$0xf]
    %v5743 = vld [vmem:[%s5 + $0xb4] sm:$0xf]
    %v5744 = vld [vmem:[%s5 + $0xb8] sm:$0xf]
    %v5745 = vld [vmem:[%s5 + $0xbc] sm:$0xf]
    %v5746 = vld [vmem:[%s5 + $0xc0] sm:$0xf]
    %v5747 = vld [vmem:[%s5 + $0xc4] sm:$0xf]
    %v5748 = vld [vmem:[%s5 + $0xc8] sm:$0xf]
    %v5749 = vld [vmem:[%s5 + $0xcc] sm:$0xf]
    %v5750 = vld [vmem:[%s5 + $0xd0] sm:$0xf]
    %v5751 = vld [vmem:[%s5 + $0xd4] sm:$0xf]
    %v5752 = vld [vmem:[%s5 + $0xd8] sm:$0xf]
    %v5753 = vld [vmem:[%s5 + $0xdc] sm:$0xf]
    %v5754 = vld [vmem:[%s5 + $0xe0] sm:$0xf]
    %v5755 = vld [vmem:[%s5 + $0xe4] sm:$0xf]
    %v5756 = vld [vmem:[%s5 + $0xe8] sm:$0xf]
    %v5757 = vld [vmem:[%s5 + $0xec] sm:$0xf]
    %v5758 = vld [vmem:[%s5 + $0xf0] sm:$0xf]
    %v5759 = vld [vmem:[%s5 + $0xf4] sm:$0xf]
    %v5760 = vld [vmem:[%s5 + $0xf8] sm:$0xf]
    %v5761 = vld [vmem:[%s5 + $0xfc] sm:$0xf]
    %v5762 = vld [vmem:[%s5 + $0x100] sm:$0xf]
    %v5763 = vld [vmem:[%s5 + $0x104] sm:$0xf]
    %v5764 = vld [vmem:[%s5 + $0x108] sm:$0xf]
    %v5765 = vld [vmem:[%s5 + $0x10c] sm:$0xf]
    %v5766 = vld [vmem:[%s5 + $0x110] sm:$0xf]
    %v5767 = vld [vmem:[%s5 + $0x114] sm:$0xf]
    %v5768 = vld [vmem:[%s5 + $0x118] sm:$0xf]
    %v5769 = vld [vmem:[%s5 + $0x11c] sm:$0xf]
    %v5770 = vld [vmem:[%s6] sm:$0x1]
    %v5772 = vlaneseq
    %v5773 = vshrl.u32 %v5772, 7
    %v5774 = vsub.s32 0, %v5773
    %v5775 = vrot.slane %v5770, %v5774
    %v5849 = vunpack.c.l.b16 %v5698
    %v5850 = vunpack.c.l.b16 %v5699
    %v5851 = vunpack.c.l.b16 %v5700
    %v5852 = vunpack.c.l.b16 %v5701
    %v5853 = vunpack.c.l.b16 %v5702
    %v5854 = vunpack.c.l.b16 %v5703
    %v5855 = vunpack.c.l.b16 %v5704
    %v5856 = vunpack.c.l.b16 %v5705
    %v5857 = vunpack.c.l.b16 %v5706
    %v5858 = vunpack.c.l.b16 %v5707
    %v5859 = vunpack.c.l.b16 %v5708
    %v5860 = vunpack.c.l.b16 %v5709
    %v5861 = vunpack.c.l.b16 %v5710
    %v5862 = vunpack.c.l.b16 %v5711
    %v5863 = vunpack.c.l.b16 %v5712
    %v5864 = vunpack.c.l.b16 %v5713
    %v5865 = vunpack.c.l.b16 %v5714
    %v5866 = vunpack.c.l.b16 %v5715
    %v5867 = vunpack.c.l.b16 %v5716
    %v5868 = vunpack.c.l.b16 %v5717
    %v5869 = vunpack.c.l.b16 %v5718
    %v5870 = vunpack.c.l.b16 %v5719
    %v5871 = vunpack.c.l.b16 %v5720
    %v5872 = vunpack.c.l.b16 %v5721
    %v5873 = vunpack.c.l.b16 %v5722
    %v5874 = vunpack.c.l.b16 %v5723
    %v5875 = vunpack.c.l.b16 %v5724
    %v5876 = vunpack.c.l.b16 %v5725
    %v5877 = vunpack.c.l.b16 %v5726
    %v5878 = vunpack.c.l.b16 %v5727
    %v5879 = vunpack.c.l.b16 %v5728
    %v5880 = vunpack.c.l.b16 %v5729
    %v5881 = vunpack.c.l.b16 %v5730
    %v5882 = vunpack.c.l.b16 %v5731
    %v5883 = vunpack.c.l.b16 %v5732
    %v5884 = vunpack.c.l.b16 %v5733
    %v5885 = vunpack.c.l.b16 %v5734
    %v5886 = vunpack.c.l.b16 %v5735
    %v5887 = vunpack.c.l.b16 %v5736
    %v5888 = vunpack.c.l.b16 %v5737
    %v5889 = vunpack.c.l.b16 %v5738
    %v5890 = vunpack.c.l.b16 %v5739
    %v5891 = vunpack.c.l.b16 %v5740
    %v5892 = vunpack.c.l.b16 %v5741
    %v5893 = vunpack.c.l.b16 %v5742
    %v5894 = vunpack.c.l.b16 %v5743
    %v5895 = vunpack.c.l.b16 %v5744
    %v5896 = vunpack.c.l.b16 %v5745
    %v5897 = vunpack.c.l.b16 %v5746
    %v5898 = vunpack.c.l.b16 %v5747
    %v5899 = vunpack.c.l.b16 %v5748
    %v5900 = vunpack.c.l.b16 %v5749
    %v5901 = vunpack.c.l.b16 %v5750
    %v5902 = vunpack.c.l.b16 %v5751
    %v5903 = vunpack.c.l.b16 %v5752
    %v5904 = vunpack.c.l.b16 %v5753
    %v5905 = vunpack.c.l.b16 %v5754
    %v5906 = vunpack.c.l.b16 %v5755
    %v5907 = vunpack.c.l.b16 %v5756
    %v5908 = vunpack.c.l.b16 %v5757
    %v5909 = vunpack.c.l.b16 %v5758
    %v5910 = vunpack.c.l.b16 %v5759
    %v5911 = vunpack.c.l.b16 %v5760
    %v5912 = vunpack.c.l.b16 %v5761
    %v5913 = vunpack.c.l.b16 %v5762
    %v5914 = vunpack.c.l.b16 %v5763
    %v5915 = vunpack.c.l.b16 %v5764
    %v5916 = vunpack.c.l.b16 %v5765
    %v5917 = vunpack.c.l.b16 %v5766
    %v5918 = vunpack.c.l.b16 %v5767
    %v5919 = vunpack.c.l.b16 %v5768
    %v5920 = vunpack.c.l.b16 %v5769
    %v5921 = vpack.c.b16 %v5850, %v5849
    %v5922 = vpack.c.b16 %v5852, %v5851
    %v5923 = vpack.c.b16 %v5854, %v5853
    %v5924 = vpack.c.b16 %v5856, %v5855
    %v5925 = vpack.c.b16 %v5858, %v5857
    %v5926 = vpack.c.b16 %v5860, %v5859
    %v5927 = vpack.c.b16 %v5862, %v5861
    %v5928 = vpack.c.b16 %v5864, %v5863
    %v5929 = vpack.c.b16 %v5866, %v5865
    %v5930 = vpack.c.b16 %v5868, %v5867
    %v5931 = vpack.c.b16 %v5870, %v5869
    %v5932 = vpack.c.b16 %v5872, %v5871
    %v5933 = vpack.c.b16 %v5874, %v5873
    %v5934 = vpack.c.b16 %v5876, %v5875
    %v5935 = vpack.c.b16 %v5878, %v5877
    %v5936 = vpack.c.b16 %v5880, %v5879
    %v5937 = vpack.c.b16 %v5882, %v5881
    %v5938 = vpack.c.b16 %v5884, %v5883
    %v5939 = vpack.c.b16 %v5886, %v5885
    %v5940 = vpack.c.b16 %v5888, %v5887
    %v5941 = vpack.c.b16 %v5890, %v5889
    %v5942 = vpack.c.b16 %v5892, %v5891
    %v5943 = vpack.c.b16 %v5894, %v5893
    %v5944 = vpack.c.b16 %v5896, %v5895
    %v5945 = vpack.c.b16 %v5898, %v5897
    %v5946 = vpack.c.b16 %v5900, %v5899
    %v5947 = vpack.c.b16 %v5902, %v5901
    %v5948 = vpack.c.b16 %v5904, %v5903
    %v5949 = vpack.c.b16 %v5906, %v5905
    %v5950 = vpack.c.b16 %v5908, %v5907
    %v5951 = vpack.c.b16 %v5910, %v5909
    %v5952 = vpack.c.b16 %v5912, %v5911
    %v5953 = vpack.c.b16 %v5914, %v5913
    %v5954 = vpack.c.b16 %v5916, %v5915
    %v5955 = vpack.c.b16 %v5918, %v5917
    %v5956 = vpack.c.b16 %v5920, %v5919
    %v5994 = vsel %vm5266, %v5662, 0
    %v5997 = vsel %vm5266, %v5667, 0
    %v6000 = vsel %vm5266, %v5672, 0
    %v6003 = vsel %vm5266, %v5677, 0
    %v6006 = vsel %vm5266, %v5682, 0
    %v6009 = vsel %vm5266, %v5687, 0
    %v6012 = vsel %vm5266, %v5692, 0
    %v6015 = vsel %vm5266, %v5697, 0
    %6017 = vmatprep.subr.bf16.mxu0 0
    %6018 = vmatpush1.bf16.msra.mxu0 %v5921
    %6019 = vmatprep.subr.bf16.mxu0 0
    %6020 = vmatpush1.bf16.msra.mxu0 %v5922
    %6021 = vmatprep.subr.bf16.mxu0 0
    %6022 = vmatpush1.bf16.msra.mxu0 %v5923
    %6023 = vmatprep.subr.bf16.mxu0 0
    %6024 = vmatpush1.bf16.msra.mxu0 %v5924
    %6025 = vmatprep.subr.bf16.mxu0 0
    %6026 = vmatpush1.bf16.msra.mxu0 %v5925
    %6027 = vmatprep.subr.bf16.mxu0 0
    %6028 = vmatpush1.bf16.msra.mxu0 %v5926
    %6029 = vmatprep.subr.bf16.mxu0 0
    %6030 = vmatpush1.bf16.msra.mxu0 %v5927
    %6031 = vmatprep.subr.bf16.mxu0 0
    %6032 = vmatpush1.bf16.msra.mxu0 %v5928
    %6033 = vmatprep.subr.bf16.mxu0 0
    %6034 = vmatpush1.bf16.msra.mxu0 %v5929
    %6035 = vmatprep.subr.bf16.mxu0 0
    %6036 = vmatpush1.bf16.msra.mxu0 %v5930
    %6037 = vmatprep.subr.bf16.mxu0 0
    %6038 = vmatpush1.bf16.msra.mxu0 %v5931
    %6039 = vmatprep.subr.bf16.mxu0 0
    %6040 = vmatpush1.bf16.msra.mxu0 %v5932
    %6041 = vmatprep.subr.bf16.mxu0 0
    %6042 = vmatpush1.bf16.msra.mxu0 %v5933
    %6043 = vmatprep.subr.bf16.mxu0 0
    %6044 = vmatpush1.bf16.msra.mxu0 %v5934
    %6045 = vmatprep.subr.bf16.mxu0 0
    %6046 = vmatpush1.bf16.msra.mxu0 %v5935
    %6047 = vmatprep.subr.bf16.mxu0 0
    %6048 = vmatpush1.bf16.msra.mxu0 %v5936
    %6049 = vmatprep.mubr.bf16.mxu0 %v5659
    %6050 = vmatmul.mubr.bf16.gmra.mrb[0].mxu0 %v5658
    %v6051 = vpop.f32.mrb[0].mxu0
    %v6052 = vadd.f32 %v5775, %v6051
    %v6053 = vpop.f32.mrb[0].mxu0
    %v6054 = vpop.f32.mrb[0].mxu0
    %v6055 = vadd.f32 %v5775, %v6054
    %v6056 = vpop.f32.mrb[0].mxu0
    %6057 = vmatprep.mubr.bf16.mxu0 %v5664
    %6058 = vmatmul.mubr.bf16.gmra.mrb[0].mxu0 %v5663
    %v6059 = vpop.f32.mrb[0].mxu0
    %v6060 = vadd.f32 %v5775, %v6059
    %v6061 = vpop.f32.mrb[0].mxu0
    %v6062 = vpop.f32.mrb[0].mxu0
    %v6063 = vadd.f32 %v5775, %v6062
    %v6064 = vpop.f32.mrb[0].mxu0
    %6065 = vmatprep.mubr.bf16.mxu0 %v5669
    %6066 = vmatmul.mubr.bf16.gmra.mrb[0].mxu0 %v5668
    %v6067 = vpop.f32.mrb[0].mxu0
    %v6068 = vadd.f32 %v5775, %v6067
    %v6069 = vpop.f32.mrb[0].mxu0
    %v6070 = vpop.f32.mrb[0].mxu0
    %v6071 = vadd.f32 %v5775, %v6070
    %v6072 = vpop.f32.mrb[0].mxu0
    %6073 = vmatprep.mubr.bf16.mxu0 %v5674
    %6074 = vmatmul.mubr.bf16.gmra.mrb[0].mxu0 %v5673
    %v6075 = vpop.f32.mrb[0].mxu0
    %v6076 = vadd.f32 %v5775, %v6075
    %v6077 = vpop.f32.mrb[0].mxu0
    %v6078 = vpop.f32.mrb[0].mxu0
    %v6079 = vadd.f32 %v5775, %v6078
    %v6080 = vpop.f32.mrb[0].mxu0
    %6081 = vmatprep.mubr.bf16.mxu0 %v5679
    %6082 = vmatmul.mubr.bf16.gmra.mrb[0].mxu0 %v5678
    %v6083 = vpop.f32.mrb[0].mxu0
    %v6084 = vadd.f32 %v5775, %v6083
    %v6085 = vpop.f32.mrb[0].mxu0
    %v6086 = vpop.f32.mrb[0].mxu0
    %v6087 = vadd.f32 %v5775, %v6086
    %v6088 = vpop.f32.mrb[0].mxu0
    %6089 = vmatprep.mubr.bf16.mxu0 %v5684
    %6090 = vmatmul.mubr.bf16.gmra.mrb[0].mxu0 %v5683
    %v6091 = vpop.f32.mrb[0].mxu0
    %v6092 = vadd.f32 %v5775, %v6091
    %v6093 = vpop.f32.mrb[0].mxu0
    %v6094 = vpop.f32.mrb[0].mxu0
    %v6095 = vadd.f32 %v5775, %v6094
    %v6096 = vpop.f32.mrb[0].mxu0
    %6097 = vmatprep.mubr.bf16.mxu0 %v5689
    %6098 = vmatmul.mubr.bf16.gmra.mrb[0].mxu0 %v5688
    %v6099 = vpop.f32.mrb[0].mxu0
    %v6100 = vadd.f32 %v5775, %v6099
    %v6101 = vpop.f32.mrb[0].mxu0
    %v6102 = vpop.f32.mrb[0].mxu0
    %v6103 = vadd.f32 %v5775, %v6102
    %v6104 = vpop.f32.mrb[0].mxu0
    %6105 = vmatprep.mubr.bf16.mxu0 %v5694
    %6106 = vmatmul.mubr.bf16.gmra.mrb[0].mxu0 %v5693
    %v6107 = vpop.f32.mrb[0].mxu0
    %v6108 = vadd.f32 %v5775, %v6107
    %v6109 = vpop.f32.mrb[0].mxu0
    %v6110 = vpop.f32.mrb[0].mxu0
    %v6111 = vadd.f32 %v5775, %v6110
    %v6112 = vpop.f32.mrb[0].mxu0
    %6113 = vdwg.mxu0
    %6114 = vmatprep.subr.bf16.mxu0 0
    %6115 = vmatpush1.bf16.msra.mxu0 %v5937
    %6116 = vmatprep.subr.bf16.mxu0 0
    %6117 = vmatpush1.bf16.msra.mxu0 %v5938
    %6118 = vmatprep.subr.bf16.mxu0 0
    %6119 = vmatpush1.bf16.msra.mxu0 %v5939
    %6120 = vmatprep.subr.bf16.mxu0 0
    %6121 = vmatpush1.bf16.msra.mxu0 %v5940
    %6122 = vmatprep.subr.bf16.mxu0 0
    %6123 = vmatpush1.bf16.msra.mxu0 %v5941
    %6124 = vmatprep.subr.bf16.mxu0 0
    %6125 = vmatpush1.bf16.msra.mxu0 %v5942
    %6126 = vmatprep.subr.bf16.mxu0 0
    %6127 = vmatpush1.bf16.msra.mxu0 %v5943
    %6128 = vmatprep.subr.bf16.mxu0 0
    %6129 = vmatpush1.bf16.msra.mxu0 %v5944
    %6130 = vmatprep.subr.bf16.mxu0 0
    %6131 = vmatpush1.bf16.msra.mxu0 %v5945
    %6132 = vmatprep.subr.bf16.mxu0 0
    %6133 = vmatpush1.bf16.msra.mxu0 %v5946
    %6134 = vmatprep.subr.bf16.mxu0 0
    %6135 = vmatpush1.bf16.msra.mxu0 %v5947
    %6136 = vmatprep.subr.bf16.mxu0 0
    %6137 = vmatpush1.bf16.msra.mxu0 %v5948
    %6138 = vmatprep.subr.bf16.mxu0 0
    %6139 = vmatpush1.bf16.msra.mxu0 %v5949
    %6140 = vmatprep.subr.bf16.mxu0 0
    %6141 = vmatpush1.bf16.msra.mxu0 %v5950
    %6142 = vmatprep.subr.bf16.mxu0 0
    %6143 = vmatpush1.bf16.msra.mxu0 %v5951
    %6144 = vmatprep.subr.bf16.mxu0 0
    %6145 = vmatpush1.bf16.msra.mxu0 %v5952
    %6146 = vmatprep.mubr.bf16.mxu0 %v5661
    %6147 = vmatmul.mubr.bf16.gmra.mrb[0].mxu0 %v5660
    %v6148 = vpop.f32.mrb[0].mxu0
    %v6149 = vadd.f32 %v6052, %v6148
    %v6150 = vpop.f32.mrb[0].mxu0
    %v6151 = vpop.f32.mrb[0].mxu0
    %v6152 = vadd.f32 %v6055, %v6151
    %v6153 = vpop.f32.mrb[0].mxu0
    %6154 = vmatprep.mubr.bf16.mxu0 %v5666
    %6155 = vmatmul.mubr.bf16.gmra.mrb[0].mxu0 %v5665
    %v6156 = vpop.f32.mrb[0].mxu0
    %v6157 = vadd.f32 %v6060, %v6156
    %v6158 = vpop.f32.mrb[0].mxu0
    %v6159 = vpop.f32.mrb[0].mxu0
    %v6160 = vadd.f32 %v6063, %v6159
    %v6161 = vpop.f32.mrb[0].mxu0
    %6162 = vmatprep.mubr.bf16.mxu0 %v5671
    %6163 = vmatmul.mubr.bf16.gmra.mrb[0].mxu0 %v5670
    %v6164 = vpop.f32.mrb[0].mxu0
    %v6165 = vadd.f32 %v6068, %v6164
    %v6166 = vpop.f32.mrb[0].mxu0
    %v6167 = vpop.f32.mrb[0].mxu0
    %v6168 = vadd.f32 %v6071, %v6167
    %v6169 = vpop.f32.mrb[0].mxu0
    %6170 = vmatprep.mubr.bf16.mxu0 %v5676
    %6171 = vmatmul.mubr.bf16.gmra.mrb[0].mxu0 %v5675
    %v6172 = vpop.f32.mrb[0].mxu0
    %v6173 = vadd.f32 %v6076, %v6172
    %v6174 = vpop.f32.mrb[0].mxu0
    %v6175 = vpop.f32.mrb[0].mxu0
    %v6176 = vadd.f32 %v6079, %v6175
    %v6177 = vpop.f32.mrb[0].mxu0
    %6178 = vmatprep.mubr.bf16.mxu0 %v5681
    %6179 = vmatmul.mubr.bf16.gmra.mrb[0].mxu0 %v5680
    %v6180 = vpop.f32.mrb[0].mxu0
    %v6181 = vadd.f32 %v6084, %v6180
    %v6182 = vpop.f32.mrb[0].mxu0
    %v6183 = vpop.f32.mrb[0].mxu0
    %v6184 = vadd.f32 %v6087, %v6183
    %v6185 = vpop.f32.mrb[0].mxu0
    %6186 = vmatprep.mubr.bf16.mxu0 %v5686
    %6187 = vmatmul.mubr.bf16.gmra.mrb[0].mxu0 %v5685
    %v6188 = vpop.f32.mrb[0].mxu0
    %v6189 = vadd.f32 %v6092, %v6188
    %v6190 = vpop.f32.mrb[0].mxu0
    %v6191 = vpop.f32.mrb[0].mxu0
    %v6192 = vadd.f32 %v6095, %v6191
    %v6193 = vpop.f32.mrb[0].mxu0
    %6194 = vmatprep.mubr.bf16.mxu0 %v5691
    %6195 = vmatmul.mubr.bf16.gmra.mrb[0].mxu0 %v5690
    %v6196 = vpop.f32.mrb[0].mxu0
    %v6197 = vadd.f32 %v6100, %v6196
    %v6198 = vpop.f32.mrb[0].mxu0
    %v6199 = vpop.f32.mrb[0].mxu0
    %v6200 = vadd.f32 %v6103, %v6199
    %v6201 = vpop.f32.mrb[0].mxu0
    %6202 = vmatprep.mubr.bf16.mxu0 %v5696
    %6203 = vmatmul.mubr.bf16.gmra.mrb[0].mxu0 %v5695
    %v6204 = vpop.f32.mrb[0].mxu0
    %v6205 = vadd.f32 %v6108, %v6204
    %v6206 = vpop.f32.mrb[0].mxu0
    %v6207 = vpop.f32.mrb[0].mxu0
    %v6208 = vadd.f32 %v6111, %v6207
    %v6209 = vpop.f32.mrb[0].mxu0
    %6210 = vdwg.mxu0
    %6211 = vmatprep.subr.bf16.mxu0 0
    %6212 = vmatpush1.bf16.msra.mxu0 %v5953
    %6213 = vmatprep.subr.bf16.mxu0 0
    %6214 = vmatpush1.bf16.msra.mxu0 %v5954
    %6215 = vmatprep.subr.bf16.mxu0 0
    %6216 = vmatpush1.bf16.msra.mxu0 %v5955
    %6217 = vmatprep.subr.bf16.mxu0 0
    %6218 = vmatpush1.bf16.msra.mxu0 %v5956
    %6219 = vmatprep.subr.bf16.mxu0 0
    %6220 = vmatpush1.bf16.msra.mxu0 0
    %6221 = vmatprep.subr.bf16.mxu0 0
    %6222 = vmatpush1.bf16.msra.mxu0 0
    %6223 = vmatprep.subr.bf16.mxu0 0
    %6224 = vmatpush1.bf16.msra.mxu0 0
    %6225 = vmatprep.subr.bf16.mxu0 0
    %6226 = vmatpush1.bf16.msra.mxu0 0
    %6227 = vmatprep.subr.bf16.mxu0 0
    %6228 = vmatpush1.bf16.msra.mxu0 0
    %6229 = vmatprep.subr.bf16.mxu0 0
    %6230 = vmatpush1.bf16.msra.mxu0 0
    %6231 = vmatprep.subr.bf16.mxu0 0
    %6232 = vmatpush1.bf16.msra.mxu0 0
    %6233 = vmatprep.subr.bf16.mxu0 0
    %6234 = vmatpush1.bf16.msra.mxu0 0
    %6235 = vmatprep.subr.bf16.mxu0 0
    %6236 = vmatpush1.bf16.msra.mxu0 0
    %6237 = vmatprep.subr.bf16.mxu0 0
    %6238 = vmatpush1.bf16.msra.mxu0 0
    %6239 = vmatprep.subr.bf16.mxu0 0
    %6240 = vmatpush1.bf16.msra.mxu0 0
    %6241 = vmatprep.subr.bf16.mxu0 0
    %6242 = vmatpush1.bf16.msra.mxu0 0
    %6243 = vmatprep.mubr.bf16.mxu0 0
    %6244 = vmatmul.mubr.bf16.gmra.mrb[0].mxu0 %v5994
    %v6245 = vpop.f32.mrb[0].mxu0
    %v6246 = vadd.f32 %v6149, %v6245
    %v6247 = vpop.f32.mrb[0].mxu0
    %v6248 = vpop.f32.mrb[0].mxu0
    %v6249 = vadd.f32 %v6152, %v6248
    %v6250 = vpop.f32.mrb[0].mxu0
    %6251 = vmatprep.mubr.bf16.mxu0 0
    %6252 = vmatmul.mubr.bf16.gmra.mrb[0].mxu0 %v5997
    %v6253 = vpop.f32.mrb[0].mxu0
    %v6254 = vadd.f32 %v6157, %v6253
    %v6255 = vpop.f32.mrb[0].mxu0
    %v6256 = vpop.f32.mrb[0].mxu0
    %v6257 = vadd.f32 %v6160, %v6256
    %v6258 = vpop.f32.mrb[0].mxu0
    %6259 = vmatprep.mubr.bf16.mxu0 0
    %6260 = vmatmul.mubr.bf16.gmra.mrb[0].mxu0 %v6000
    %v6261 = vpop.f32.mrb[0].mxu0
    %v6262 = vadd.f32 %v6165, %v6261
    %v6263 = vpop.f32.mrb[0].mxu0
    %v6264 = vpop.f32.mrb[0].mxu0
    %v6265 = vadd.f32 %v6168, %v6264
    %v6266 = vpop.f32.mrb[0].mxu0
    %6267 = vmatprep.mubr.bf16.mxu0 0
    %6268 = vmatmul.mubr.bf16.gmra.mrb[0].mxu0 %v6003
    %v6269 = vpop.f32.mrb[0].mxu0
    %v6270 = vadd.f32 %v6173, %v6269
    %v6271 = vpop.f32.mrb[0].mxu0
    %v6272 = vpop.f32.mrb[0].mxu0
    %v6273 = vadd.f32 %v6176, %v6272
    %v6274 = vpop.f32.mrb[0].mxu0
    %6275 = vmatprep.mubr.bf16.mxu0 0
    %6276 = vmatmul.mubr.bf16.gmra.mrb[0].mxu0 %v6006
    %v6277 = vpop.f32.mrb[0].mxu0
    %v6278 = vadd.f32 %v6181, %v6277
    %v6279 = vpop.f32.mrb[0].mxu0
    %v6280 = vpop.f32.mrb[0].mxu0
    %v6281 = vadd.f32 %v6184, %v6280
    %v6282 = vpop.f32.mrb[0].mxu0
    %6283 = vmatprep.mubr.bf16.mxu0 0
    %6284 = vmatmul.mubr.bf16.gmra.mrb[0].mxu0 %v6009
    %v6285 = vpop.f32.mrb[0].mxu0
    %v6286 = vadd.f32 %v6189, %v6285
    %v6287 = vpop.f32.mrb[0].mxu0
    %v6288 = vpop.f32.mrb[0].mxu0
    %v6289 = vadd.f32 %v6192, %v6288
    %v6290 = vpop.f32.mrb[0].mxu0
    %6291 = vmatprep.mubr.bf16.mxu0 0
    %6292 = vmatmul.mubr.bf16.gmra.mrb[0].mxu0 %v6012
    %v6293 = vpop.f32.mrb[0].mxu0
    %v6294 = vadd.f32 %v6197, %v6293
    %v6295 = vpop.f32.mrb[0].mxu0
    %v6296 = vpop.f32.mrb[0].mxu0
    %v6297 = vadd.f32 %v6200, %v6296
    %v6298 = vpop.f32.mrb[0].mxu0
    %6299 = vmatprep.mubr.bf16.mxu0 0
    %6300 = vmatmul.mubr.bf16.gmra.mrb[0].mxu0 %v6015
    %v6301 = vpop.f32.mrb[0].mxu0
    %v6302 = vadd.f32 %v6205, %v6301
    %v6303 = vpop.f32.mrb[0].mxu0
    %v6304 = vpop.f32.mrb[0].mxu0
    %v6305 = vadd.f32 %v6208, %v6304
    %v6306 = vpop.f32.mrb[0].mxu0
    %6307 = vdwg.mxu0
    %v6308 = vmax.f32 %v6246, 0.0
    %v6309 = vmax.f32 %v6249, 0.0
    %v6310 = vmax.f32 %v6254, 0.0
    %v6311 = vmax.f32 %v6257, 0.0
    %v6312 = vmax.f32 %v6262, 0.0
    %v6313 = vmax.f32 %v6265, 0.0
    %v6314 = vmax.f32 %v6270, 0.0
    %v6315 = vmax.f32 %v6273, 0.0
    %v6316 = vmax.f32 %v6278, 0.0
    %v6317 = vmax.f32 %v6281, 0.0
    %v6318 = vmax.f32 %v6286, 0.0
    %v6319 = vmax.f32 %v6289, 0.0
    %v6320 = vmax.f32 %v6294, 0.0
    %v6321 = vmax.f32 %v6297, 0.0
    %v6322 = vmax.f32 %v6302, 0.0
    %v6323 = vmax.f32 %v6305, 0.0
    %v6324 = vpack.c.bf16 %v6309, %v6308
    %v6325 = vpack.c.bf16 %v6311, %v6310
    %v6326 = vpack.c.bf16 %v6313, %v6312
    %v6327 = vpack.c.bf16 %v6315, %v6314
    %v6328 = vpack.c.bf16 %v6317, %v6316
    %v6329 = vpack.c.bf16 %v6319, %v6318
    %v6330 = vpack.c.bf16 %v6321, %v6320
    %v6331 = vpack.c.bf16 %v6323, %v6322
    %6332 = vst.msk [vmem:[#allocation6] sm:$0xff] %vm2476, %v6324
    %6333 = vst.msk [vmem:[#allocation6 + $0x8] sm:$0xff] %vm2476, %v6325
    %6334 = vst.msk [vmem:[#allocation6 + $0x10] sm:$0xff] %vm2476, %v6326
    %6335 = vst.msk [vmem:[#allocation6 + $0x18] sm:$0xff] %vm2476, %v6327
    %6336 = vst.msk [vmem:[#allocation6 + $0x20] sm:$0xff] %vm2476, %v6328
    %6337 = vst.msk [vmem:[#allocation6 + $0x28] sm:$0xff] %vm2476, %v6329
    %6338 = vst.msk [vmem:[#allocation6 + $0x30] sm:$0xff] %vm2476, %v6330
    %6339 = vst.msk [vmem:[#allocation6 + $0x38] sm:$0xff] %vm2476, %v6331
    %v6340 = vld [vmem:[#allocation6] sm:$0xf]
    %vm6341 = vcmask 257024
    %6342 = vst.msk [vmem:[#allocation7] sm:$0xf] %vm6341, %v6340
    %v6343 = vld [vmem:[#allocation6] sm:$0xf0]
    %v6345 = vunpack.c.h.b16 %v6343
    %v6346 = vpack.c.b16 %v6345, %v6345
    %6347 = vrot.lane.b32.xlu0 %v6346, 32
    %v6348 = vpop.permute.xlu0 %6347
    %vm6350 = vcmask 519424
    %6351 = vst.msk [vmem:[#allocation7] sm:$0xf] %vm6350, %v6348
    %v6352 = vld [vmem:[#allocation6 + $0x8] sm:$0xf]
    %v6354 = vunpack.c.l.b16 %v6352
    %v6355 = vpack.c.b16 %v6354, %v6354
    %6356 = vrot.lane.b32.xlu0 %v6355, 64
    %v6357 = vpop.permute.xlu0 %6356
    %vm6359 = vcmask 781824
    %6360 = vst.msk [vmem:[#allocation7] sm:$0xf] %vm6359, %v6357
    %v6361 = vld [vmem:[#allocation6 + $0x8] sm:$0xf0]
    %v6363 = vunpack.c.h.b16 %v6361
    %v6364 = vpack.c.b16 %v6363, %v6363
    %6365 = vrot.lane.b32.xlu0 %v6364, 96
    %v6366 = vpop.permute.xlu0 %6365
    %vm6368 = vcmask 1044224
    %6369 = vst.msk [vmem:[#allocation7] sm:$0xf] %vm6368, %v6366
    %v6370 = vld [vmem:[#allocation6 + $0x10] sm:$0xf]
    %6371 = vst.msk [vmem:[#allocation7 + $0x4] sm:$0xf] %vm6341, %v6370
    %v6372 = vld [vmem:[#allocation6 + $0x10] sm:$0xf0]
    %v6374 = vunpack.c.h.b16 %v6372
    %v6375 = vpack.c.b16 %v6374, %v6374
    %6376 = vrot.lane.b32.xlu0 %v6375, 32
    %v6377 = vpop.permute.xlu0 %6376
    %6379 = vst.msk [vmem:[#allocation7 + $0x4] sm:$0xf] %vm6350, %v6377
    %v6380 = vld [vmem:[#allocation6 + $0x18] sm:$0xf]
    %v6382 = vunpack.c.l.b16 %v6380
    %v6383 = vpack.c.b16 %v6382, %v6382
    %6384 = vrot.lane.b32.xlu0 %v6383, 64
    %v6385 = vpop.permute.xlu0 %6384
    %6387 = vst.msk [vmem:[#allocation7 + $0x4] sm:$0xf] %vm6359, %v6385
    %v6388 = vld [vmem:[#allocation6 + $0x18] sm:$0xf0]
    %v6390 = vunpack.c.h.b16 %v6388
    %v6391 = vpack.c.b16 %v6390, %v6390
    %6392 = vrot.lane.b32.xlu0 %v6391, 96
    %v6393 = vpop.permute.xlu0 %6392
    %6395 = vst.msk [vmem:[#allocation7 + $0x4] sm:$0xf] %vm6368, %v6393
    %v6396 = vld [vmem:[#allocation6 + $0x20] sm:$0xf]
    %6397 = vst.msk [vmem:[#allocation7 + $0x8] sm:$0xf] %vm6341, %v6396
    %v6398 = vld [vmem:[#allocation6 + $0x20] sm:$0xf0]
    %v6400 = vunpack.c.h.b16 %v6398
    %v6401 = vpack.c.b16 %v6400, %v6400
    %6402 = vrot.lane.b32.xlu0 %v6401, 32
    %v6403 = vpop.permute.xlu0 %6402
    %6405 = vst.msk [vmem:[#allocation7 + $0x8] sm:$0xf] %vm6350, %v6403
    %v6406 = vld [vmem:[#allocation6 + $0x28] sm:$0xf]
    %v6408 = vunpack.c.l.b16 %v6406
    %v6409 = vpack.c.b16 %v6408, %v6408
    %6410 = vrot.lane.b32.xlu0 %v6409, 64
    %v6411 = vpop.permute.xlu0 %6410
    %6413 = vst.msk [vmem:[#allocation7 + $0x8] sm:$0xf] %vm6359, %v6411
    %v6414 = vld [vmem:[#allocation6 + $0x28] sm:$0xf0]
    %v6416 = vunpack.c.h.b16 %v6414
    %v6417 = vpack.c.b16 %v6416, %v6416
    %6418 = vrot.lane.b32.xlu0 %v6417, 96
    %v6419 = vpop.permute.xlu0 %6418
    %6421 = vst.msk [vmem:[#allocation7 + $0x8] sm:$0xf] %vm6368, %v6419
    %v6422 = vld [vmem:[#allocation6 + $0x30] sm:$0xf]
    %6423 = vst.msk [vmem:[#allocation7 + $0xc] sm:$0xf] %vm6341, %v6422
    %v6424 = vld [vmem:[#allocation6 + $0x30] sm:$0xf0]
    %v6426 = vunpack.c.h.b16 %v6424
    %v6427 = vpack.c.b16 %v6426, %v6426
    %6428 = vrot.lane.b32.xlu0 %v6427, 32
    %v6429 = vpop.permute.xlu0 %6428
    %6431 = vst.msk [vmem:[#allocation7 + $0xc] sm:$0xf] %vm6350, %v6429
    %v6432 = vld [vmem:[#allocation6 + $0x38] sm:$0xf]
    %v6434 = vunpack.c.l.b16 %v6432
    %v6435 = vpack.c.b16 %v6434, %v6434
    %6436 = vrot.lane.b32.xlu0 %v6435, 64
    %v6437 = vpop.permute.xlu0 %6436
    %6439 = vst.msk [vmem:[#allocation7 + $0xc] sm:$0xf] %vm6359, %v6437
    %v6440 = vld [vmem:[#allocation6 + $0x38] sm:$0xf0]
    %v6442 = vunpack.c.h.b16 %v6440
    %v6443 = vpack.c.b16 %v6442, %v6442
    %6444 = vrot.lane.b32.xlu0 %v6443, 96
    %v6445 = vpop.permute.xlu0 %6444
    %6447 = vst.msk [vmem:[#allocation7 + $0xc] sm:$0xf] %vm6368, %v6445
    %v6448 = vld [vmem:[#allocation7] sm:$0xff]
    %v6449 = vld [vmem:[#allocation7 + $0x8] sm:$0xff]
    %v6450 = vld [vmem:[%s7] sm:$0xf]
    %v6451 = vld [vmem:[%s7 + $0x4] sm:$0xf]
    %v6452 = vld [vmem:[%s7 + $0x8] sm:$0xf]
    %v6453 = vld [vmem:[%s7 + $0xc] sm:$0xf]
    %v6454 = vld [vmem:[%s7 + $0x10] sm:$0xf]
    %v6455 = vld [vmem:[%s7 + $0x14] sm:$0xf]
    %v6456 = vld [vmem:[%s7 + $0x18] sm:$0xf]
    %v6457 = vld [vmem:[%s7 + $0x1c] sm:$0xf]
    %v6458 = vld [vmem:[%s7 + $0x20] sm:$0xf]
    %v6459 = vld [vmem:[%s7 + $0x24] sm:$0xf]
    %v6460 = vld [vmem:[%s7 + $0x28] sm:$0xf]
    %v6461 = vld [vmem:[%s7 + $0x2c] sm:$0xf]
    %v6462 = vld [vmem:[%s7 + $0x30] sm:$0xf]
    %v6463 = vld [vmem:[%s7 + $0x34] sm:$0xf]
    %v6464 = vld [vmem:[%s7 + $0x38] sm:$0xf]
    %v6465 = vld [vmem:[%s7 + $0x3c] sm:$0xf]
    %v6466 = vld [vmem:[%s7 + $0x40] sm:$0xf]
    %v6467 = vld [vmem:[%s7 + $0x44] sm:$0xf]
    %v6468 = vld [vmem:[%s7 + $0x48] sm:$0xf]
    %v6469 = vld [vmem:[%s7 + $0x4c] sm:$0xf]
    %v6470 = vld [vmem:[%s7 + $0x50] sm:$0xf]
    %v6471 = vld [vmem:[%s7 + $0x54] sm:$0xf]
    %v6472 = vld [vmem:[%s7 + $0x58] sm:$0xf]
    %v6473 = vld [vmem:[%s7 + $0x5c] sm:$0xf]
    %v6474 = vld [vmem:[%s7 + $0x60] sm:$0xf]
    %v6475 = vld [vmem:[%s7 + $0x64] sm:$0xf]
    %v6476 = vld [vmem:[%s7 + $0x68] sm:$0xf]
    %v6477 = vld [vmem:[%s7 + $0x6c] sm:$0xf]
    %v6478 = vld [vmem:[%s7 + $0x70] sm:$0xf]
    %v6479 = vld [vmem:[%s7 + $0x74] sm:$0xf]
    %v6480 = vld [vmem:[%s7 + $0x78] sm:$0xf]
    %v6481 = vld [vmem:[%s7 + $0x7c] sm:$0xf]
    %v6482 = vld [vmem:[%s7 + $0x80] sm:$0xf]
    %v6483 = vld [vmem:[%s7 + $0x84] sm:$0xf]
    %v6484 = vld [vmem:[%s7 + $0x88] sm:$0xf]
    %v6485 = vld [vmem:[%s7 + $0x8c] sm:$0xf]
    %v6486 = vld [vmem:[%s7 + $0x90] sm:$0xf]
    %v6487 = vld [vmem:[%s7 + $0x94] sm:$0xf]
    %v6488 = vld [vmem:[%s7 + $0x98] sm:$0xf]
    %v6489 = vld [vmem:[%s7 + $0x9c] sm:$0xf]
    %v6490 = vld [vmem:[%s7 + $0xa0] sm:$0xf]
    %v6491 = vld [vmem:[%s7 + $0xa4] sm:$0xf]
    %v6492 = vld [vmem:[%s7 + $0xa8] sm:$0xf]
    %v6493 = vld [vmem:[%s7 + $0xac] sm:$0xf]
    %v6494 = vld [vmem:[%s7 + $0xb0] sm:$0xf]
    %v6495 = vld [vmem:[%s7 + $0xb4] sm:$0xf]
    %v6496 = vld [vmem:[%s7 + $0xb8] sm:$0xf]
    %v6497 = vld [vmem:[%s7 + $0xbc] sm:$0xf]
    %v6498 = vld [vmem:[%s7 + $0xc0] sm:$0xf]
    %v6499 = vld [vmem:[%s7 + $0xc4] sm:$0xf]
    %v6500 = vld [vmem:[%s7 + $0xc8] sm:$0xf]
    %v6501 = vld [vmem:[%s7 + $0xcc] sm:$0xf]
    %v6502 = vld [vmem:[%s7 + $0xd0] sm:$0xf]
    %v6503 = vld [vmem:[%s7 + $0xd4] sm:$0xf]
    %v6504 = vld [vmem:[%s7 + $0xd8] sm:$0xf]
    %v6505 = vld [vmem:[%s7 + $0xdc] sm:$0xf]
    %v6506 = vld [vmem:[%s7 + $0xe0] sm:$0xf]
    %v6507 = vld [vmem:[%s7 + $0xe4] sm:$0xf]
    %v6508 = vld [vmem:[%s7 + $0xe8] sm:$0xf]
    %v6509 = vld [vmem:[%s7 + $0xec] sm:$0xf]
    %v6510 = vld [vmem:[%s7 + $0xf0] sm:$0xf]
    %v6511 = vld [vmem:[%s7 + $0xf4] sm:$0xf]
    %v6512 = vld [vmem:[%s7 + $0xf8] sm:$0xf]
    %v6513 = vld [vmem:[%s7 + $0xfc] sm:$0xf]
    %v6514 = vld [vmem:[%s8] sm:$0x1]
    %v6516 = vlaneseq
    %v6517 = vshrl.u32 %v6516, 7
    %v6518 = vsub.s32 0, %v6517
    %v6519 = vrot.slane %v6514, %v6518
    %v6523 = vunpack.c.l.b16 %v6448
    %v6524 = vunpack.c.h.b16 %v6448
    %v6525 = vunpack.c.l.b16 %v6449
    %v6526 = vunpack.c.h.b16 %v6449
    %v6527 = vpack.c.b16 %v6523, %v6523
    %v6528 = vpack.c.b16 %v6524, %v6524
    %v6529 = vpack.c.b16 %v6525, %v6525
    %v6530 = vpack.c.b16 %v6526, %v6526
    %v6599 = vunpack.c.l.b16 %v6450
    %v6600 = vunpack.c.l.b16 %v6451
    %v6601 = vunpack.c.l.b16 %v6452
    %v6602 = vunpack.c.l.b16 %v6453
    %v6603 = vunpack.c.l.b16 %v6454
    %v6604 = vunpack.c.l.b16 %v6455
    %v6605 = vunpack.c.l.b16 %v6456
    %v6606 = vunpack.c.l.b16 %v6457
    %v6607 = vunpack.c.l.b16 %v6458
    %v6608 = vunpack.c.l.b16 %v6459
    %v6609 = vunpack.c.l.b16 %v6460
    %v6610 = vunpack.c.l.b16 %v6461
    %v6611 = vunpack.c.l.b16 %v6462
    %v6612 = vunpack.c.l.b16 %v6463
    %v6613 = vunpack.c.l.b16 %v6464
    %v6614 = vunpack.c.l.b16 %v6465
    %v6615 = vunpack.c.l.b16 %v6466
    %v6616 = vunpack.c.l.b16 %v6467
    %v6617 = vunpack.c.l.b16 %v6468
    %v6618 = vunpack.c.l.b16 %v6469
    %v6619 = vunpack.c.l.b16 %v6470
    %v6620 = vunpack.c.l.b16 %v6471
    %v6621 = vunpack.c.l.b16 %v6472
    %v6622 = vunpack.c.l.b16 %v6473
    %v6623 = vunpack.c.l.b16 %v6474
    %v6624 = vunpack.c.l.b16 %v6475
    %v6625 = vunpack.c.l.b16 %v6476
    %v6626 = vunpack.c.l.b16 %v6477
    %v6627 = vunpack.c.l.b16 %v6478
    %v6628 = vunpack.c.l.b16 %v6479
    %v6629 = vunpack.c.l.b16 %v6480
    %v6630 = vunpack.c.l.b16 %v6481
    %v6631 = vunpack.c.l.b16 %v6482
    %v6632 = vunpack.c.l.b16 %v6483
    %v6633 = vunpack.c.l.b16 %v6484
    %v6634 = vunpack.c.l.b16 %v6485
    %v6635 = vunpack.c.l.b16 %v6486
    %v6636 = vunpack.c.l.b16 %v6487
    %v6637 = vunpack.c.l.b16 %v6488
    %v6638 = vunpack.c.l.b16 %v6489
    %v6639 = vunpack.c.l.b16 %v6490
    %v6640 = vunpack.c.l.b16 %v6491
    %v6641 = vunpack.c.l.b16 %v6492
    %v6642 = vunpack.c.l.b16 %v6493
    %v6643 = vunpack.c.l.b16 %v6494
    %v6644 = vunpack.c.l.b16 %v6495
    %v6645 = vunpack.c.l.b16 %v6496
    %v6646 = vunpack.c.l.b16 %v6497
    %v6647 = vunpack.c.l.b16 %v6498
    %v6648 = vunpack.c.l.b16 %v6499
    %v6649 = vunpack.c.l.b16 %v6500
    %v6650 = vunpack.c.l.b16 %v6501
    %v6651 = vunpack.c.l.b16 %v6502
    %v6652 = vunpack.c.l.b16 %v6503
    %v6653 = vunpack.c.l.b16 %v6504
    %v6654 = vunpack.c.l.b16 %v6505
    %v6655 = vunpack.c.l.b16 %v6506
    %v6656 = vunpack.c.l.b16 %v6507
    %v6657 = vunpack.c.l.b16 %v6508
    %v6658 = vunpack.c.l.b16 %v6509
    %v6659 = vunpack.c.l.b16 %v6510
    %v6660 = vunpack.c.l.b16 %v6511
    %v6661 = vunpack.c.l.b16 %v6512
    %v6662 = vunpack.c.l.b16 %v6513
    %v6663 = vpack.c.b16 %v6600, %v6599
    %v6664 = vpack.c.b16 %v6602, %v6601
    %v6665 = vpack.c.b16 %v6604, %v6603
    %v6666 = vpack.c.b16 %v6606, %v6605
    %v6667 = vpack.c.b16 %v6608, %v6607
    %v6668 = vpack.c.b16 %v6610, %v6609
    %v6669 = vpack.c.b16 %v6612, %v6611
    %v6670 = vpack.c.b16 %v6614, %v6613
    %v6671 = vpack.c.b16 %v6616, %v6615
    %v6672 = vpack.c.b16 %v6618, %v6617
    %v6673 = vpack.c.b16 %v6620, %v6619
    %v6674 = vpack.c.b16 %v6622, %v6621
    %v6675 = vpack.c.b16 %v6624, %v6623
    %v6676 = vpack.c.b16 %v6626, %v6625
    %v6677 = vpack.c.b16 %v6628, %v6627
    %v6678 = vpack.c.b16 %v6630, %v6629
    %v6679 = vpack.c.b16 %v6632, %v6631
    %v6680 = vpack.c.b16 %v6634, %v6633
    %v6681 = vpack.c.b16 %v6636, %v6635
    %v6682 = vpack.c.b16 %v6638, %v6637
    %v6683 = vpack.c.b16 %v6640, %v6639
    %v6684 = vpack.c.b16 %v6642, %v6641
    %v6685 = vpack.c.b16 %v6644, %v6643
    %v6686 = vpack.c.b16 %v6646, %v6645
    %v6687 = vpack.c.b16 %v6648, %v6647
    %v6688 = vpack.c.b16 %v6650, %v6649
    %v6689 = vpack.c.b16 %v6652, %v6651
    %v6690 = vpack.c.b16 %v6654, %v6653
    %v6691 = vpack.c.b16 %v6656, %v6655
    %v6692 = vpack.c.b16 %v6658, %v6657
    %v6693 = vpack.c.b16 %v6660, %v6659
    %v6694 = vpack.c.b16 %v6662, %v6661
    %6727 = vmatprep.subr.bf16.mxu0 0
    %6728 = vmatpush1.bf16.msra.mxu0 %v6663
    %6729 = vmatprep.subr.bf16.mxu0 0
    %6730 = vmatpush1.bf16.msra.mxu0 %v6664
    %6731 = vmatprep.subr.bf16.mxu0 0
    %6732 = vmatpush1.bf16.msra.mxu0 %v6665
    %6733 = vmatprep.subr.bf16.mxu0 0
    %6734 = vmatpush1.bf16.msra.mxu0 %v6666
    %6735 = vmatprep.subr.bf16.mxu0 0
    %6736 = vmatpush1.bf16.msra.mxu0 %v6667
    %6737 = vmatprep.subr.bf16.mxu0 0
    %6738 = vmatpush1.bf16.msra.mxu0 %v6668
    %6739 = vmatprep.subr.bf16.mxu0 0
    %6740 = vmatpush1.bf16.msra.mxu0 %v6669
    %6741 = vmatprep.subr.bf16.mxu0 0
    %6742 = vmatpush1.bf16.msra.mxu0 %v6670
    %6743 = vmatprep.subr.bf16.mxu0 0
    %6744 = vmatpush1.bf16.msra.mxu0 %v6671
    %6745 = vmatprep.subr.bf16.mxu0 0
    %6746 = vmatpush1.bf16.msra.mxu0 %v6672
    %6747 = vmatprep.subr.bf16.mxu0 0
    %6748 = vmatpush1.bf16.msra.mxu0 %v6673
    %6749 = vmatprep.subr.bf16.mxu0 0
    %6750 = vmatpush1.bf16.msra.mxu0 %v6674
    %6751 = vmatprep.subr.bf16.mxu0 0
    %6752 = vmatpush1.bf16.msra.mxu0 %v6675
    %6753 = vmatprep.subr.bf16.mxu0 0
    %6754 = vmatpush1.bf16.msra.mxu0 %v6676
    %6755 = vmatprep.subr.bf16.mxu0 0
    %6756 = vmatpush1.bf16.msra.mxu0 %v6677
    %6757 = vmatprep.subr.bf16.mxu0 0
    %6758 = vmatpush1.bf16.msra.mxu0 %v6678
    %6759 = vmatprep.mubr.bf16.mxu0 %v6528
    %6760 = vmatmul.mubr.bf16.gmra.mrb[0].mxu0 %v6527
    %v6761 = vpop.f32.mrb[0].mxu0
    %v6762 = vadd.f32 %v6519, %v6761
    %v6763 = vpop.f32.mrb[0].mxu0
    %v6764 = vpop.f32.mrb[0].mxu0
    %v6765 = vpop.f32.mrb[0].mxu0
    %6766 = vdwg.mxu0
    %6767 = vmatprep.subr.bf16.mxu0 0
    %6768 = vmatpush1.bf16.msra.mxu0 %v6679
    %6769 = vmatprep.subr.bf16.mxu0 0
    %6770 = vmatpush1.bf16.msra.mxu0 %v6680
    %6771 = vmatprep.subr.bf16.mxu0 0
    %6772 = vmatpush1.bf16.msra.mxu0 %v6681
    %6773 = vmatprep.subr.bf16.mxu0 0
    %6774 = vmatpush1.bf16.msra.mxu0 %v6682
    %6775 = vmatprep.subr.bf16.mxu0 0
    %6776 = vmatpush1.bf16.msra.mxu0 %v6683
    %6777 = vmatprep.subr.bf16.mxu0 0
    %6778 = vmatpush1.bf16.msra.mxu0 %v6684
    %6779 = vmatprep.subr.bf16.mxu0 0
    %6780 = vmatpush1.bf16.msra.mxu0 %v6685
    %6781 = vmatprep.subr.bf16.mxu0 0
    %6782 = vmatpush1.bf16.msra.mxu0 %v6686
    %6783 = vmatprep.subr.bf16.mxu0 0
    %6784 = vmatpush1.bf16.msra.mxu0 %v6687
    %6785 = vmatprep.subr.bf16.mxu0 0
    %6786 = vmatpush1.bf16.msra.mxu0 %v6688
    %6787 = vmatprep.subr.bf16.mxu0 0
    %6788 = vmatpush1.bf16.msra.mxu0 %v6689
    %6789 = vmatprep.subr.bf16.mxu0 0
    %6790 = vmatpush1.bf16.msra.mxu0 %v6690
    %6791 = vmatprep.subr.bf16.mxu0 0
    %6792 = vmatpush1.bf16.msra.mxu0 %v6691
    %6793 = vmatprep.subr.bf16.mxu0 0
    %6794 = vmatpush1.bf16.msra.mxu0 %v6692
    %6795 = vmatprep.subr.bf16.mxu0 0
    %6796 = vmatpush1.bf16.msra.mxu0 %v6693
    %6797 = vmatprep.subr.bf16.mxu0 0
    %6798 = vmatpush1.bf16.msra.mxu0 %v6694
    %6799 = vmatprep.mubr.bf16.mxu0 %v6530
    %6800 = vmatmul.mubr.bf16.gmra.mrb[0].mxu0 %v6529
    %v6801 = vpop.f32.mrb[0].mxu0
    %v6802 = vadd.f32 %v6762, %v6801
    %v6803 = vpop.f32.mrb[0].mxu0
    %v6804 = vpop.f32.mrb[0].mxu0
    %v6805 = vpop.f32.mrb[0].mxu0
    %6806 = vdwg.mxu0
    %v6807 = vmax.f32 %v6802, 0.0
    %v6808 = vpack.c.bf16 %v6807, %v6807
    %v6809 = vld [vmem:[%s9] sm:$0xf]
    %v6810 = vld [vmem:[%s9 + $0x4] sm:$0xf]
    %v6811 = vld [vmem:[%s9 + $0x8] sm:$0xf]
    %v6812 = vld [vmem:[%s9 + $0xc] sm:$0xf]
    %v6813 = vld [vmem:[%s10] sm:$0x1]
    %v6815 = vlaneseq
    %v6816 = vshrl.u32 %v6815, 7
    %v6817 = vsub.s32 0, %v6816
    %v6818 = vrot.slane %v6813, %v6817
    %v6824 = vunpack.c.l.b16 %v6809
    %v6825 = vunpack.c.l.b16 %v6810
    %v6826 = vunpack.c.l.b16 %v6811
    %v6827 = vunpack.c.l.b16 %v6812
    %v6828 = vpack.c.b16 %v6825, %v6824
    %v6829 = vpack.c.b16 %v6827, %v6826
    %v6833 = vsel %vm2476, %v6808, 0
    %6835 = vmatprep.subr.bf16.mxu0 0
    %6836 = vmatpush1.bf16.msra.mxu0 %v6828
    %6837 = vmatprep.subr.bf16.mxu0 0
    %6838 = vmatpush1.bf16.msra.mxu0 %v6829
    %6839 = vmatprep.subr.bf16.mxu0 0
    %6840 = vmatpush1.bf16.msra.mxu0 0
    %6841 = vmatprep.subr.bf16.mxu0 0
    %6842 = vmatpush1.bf16.msra.mxu0 0
    %6843 = vmatprep.subr.bf16.mxu0 0
    %6844 = vmatpush1.bf16.msra.mxu0 0
    %6845 = vmatprep.subr.bf16.mxu0 0
    %6846 = vmatpush1.bf16.msra.mxu0 0
    %6847 = vmatprep.subr.bf16.mxu0 0
    %6848 = vmatpush1.bf16.msra.mxu0 0
    %6849 = vmatprep.subr.bf16.mxu0 0
    %6850 = vmatpush1.bf16.msra.mxu0 0
    %6851 = vmatprep.subr.bf16.mxu0 0
    %6852 = vmatpush1.bf16.msra.mxu0 0
    %6853 = vmatprep.subr.bf16.mxu0 0
    %6854 = vmatpush1.bf16.msra.mxu0 0
    %6855 = vmatprep.subr.bf16.mxu0 0
    %6856 = vmatpush1.bf16.msra.mxu0 0
    %6857 = vmatprep.subr.bf16.mxu0 0
    %6858 = vmatpush1.bf16.msra.mxu0 0
    %6859 = vmatprep.subr.bf16.mxu0 0
    %6860 = vmatpush1.bf16.msra.mxu0 0
    %6861 = vmatprep.subr.bf16.mxu0 0
    %6862 = vmatpush1.bf16.msra.mxu0 0
    %6863 = vmatprep.subr.bf16.mxu0 0
    %6864 = vmatpush1.bf16.msra.mxu0 0
    %6865 = vmatprep.subr.bf16.mxu0 0
    %6866 = vmatpush1.bf16.msra.mxu0 0
    %6867 = vmatprep.mubr.bf16.mxu0 0
    %6868 = vmatmul.mubr.bf16.gmra.mrb[0].mxu0 %v6833
    %v6869 = vpop.f32.mrb[0].mxu0
    %v6870 = vadd.f32 %v6818, %v6869
    %v6871 = vpop.f32.mrb[0].mxu0
    %v6872 = vpop.f32.mrb[0].mxu0
    %v6873 = vpop.f32.mrb[0].mxu0
    %6874 = vdwg.mxu0
    %vm6875 = vcmask 64512
    %6876 = vst.msk [vmem:[#allocation11] sm:$0xff] %vm6875, %v6870
    // Predicated region
    $region50: #{tpu_custom_call.1} parent=1 // pred_check
      _
    $region51: #{tpu_custom_call.1} parent=1 // pred_check_branch
      %6878 = sbr.rel (0) target = $region53
    $region52: #{tpu_custom_call.1} parent=1 // pred_region
      %s6880 = ssub.s32 128, 128
      %6881 = vsyncadd [#allocation10], %s6880
      %s6883 = sshll.u32 [#allocation11], 4
      %s6884 = int_to_ptr.vmem [resolvable:$true] %s6883
      %6886 = dma.vmem_to_hbm [thread:$0]  %s6884, 128, %s11, [#allocation10]
    $region53: #{tpu_custom_call.1} parent=1 // pred_fallthru
      _
    // Predicated region
    $region54: #{tpu_custom_call.1} parent=1 // pred_check
      _
    $region55: #{tpu_custom_call.1} parent=1 // pred_check_branch
      %6888 = sbr.rel (0) target = $region57
    $region56: #{tpu_custom_call.1} parent=1 // pred_region
      %6889 = dma.done [#allocation10], 128
    $region57: #{tpu_custom_call.1} parent=1 // pred_fallthru
      _
    %6890 = vsyncpa [#allocation9], 1
    %6891 = vsyncpa [#allocation10], 1

</llo_original>
